<compile_context>
chip_gen: v7x
topology: tpu7x:2x2x1
jax: 0.10.0
libtpu: 0.0.40
codegen_flags: <defaults>
</compile_context>

<pallas_src>
import jax
import jax.numpy as jnp
from jax.experimental import pallas as pl
from jax.experimental.pallas import tpu as pltpu


def _tree_sum(vals):
    """Pairwise sum -> independent accumulators, no serial MXU->VALU chain."""
    vals = list(vals)
    while len(vals) > 1:
        nxt = [vals[i] + vals[i + 1] for i in range(0, len(vals) - 1, 2)]
        if len(vals) % 2:
            nxt.append(vals[-1])
        vals = nxt
    return vals[0]


# ---------------------------------------------------------------------------
# Fused Actor forward kernel (single invocation, everything VMEM-resident)
# ---------------------------------------------------------------------------
def actor_fused_kernel(xpad_ref, vec_ref,
                       wc1_ref, bc1_ref, wc2_ref, bc2_ref,
                       w1c_hbm, w1v_ref, b1_ref,
                       w2_hbm, b2_ref,
                       wms_ref, bms_ref,
                       out_ref,
                       pad2_ref, featflat_ref, w1c_vmem, w2_vmem, dma_sem):
    B, Hp, Wp, C_IN = xpad_ref.shape          # (B, H+2, W+2, 3), pre-padded
    H, W = Hp - 2, Wp - 2
    HW = H * W
    M = B * HW                                 # batch folded into matmul M dim
    F1 = wc1_ref.shape[2]                      # conv1 channels (16)
    F2 = wc2_ref.shape[2]                      # conv2 channels (32)
    A2 = wms_ref.shape[1]                      # 2 * action_size
    A = A2 // 2

    # Kick off the two dominant weight DMAs (HBM -> VMEM) immediately so they
    # overlap the conv stage instead of being exposed before the body starts.
    w1c_cp = pltpu.make_async_copy(w1c_hbm, w1c_vmem, dma_sem.at[0])
    w2_cp = pltpu.make_async_copy(w2_hbm, w2_vmem, dma_sem.at[1])
    w1c_cp.start()
    w2_cp.start()

    def conv3x3(src_ref, w_ref, cin):
        # 9 accumulating taps: (M, cin) @ (cin, cout), summed as a tree.
        taps = []
        for k in range(9):
            ky, kx = divmod(k, 3)
            patch = src_ref[:, ky:ky + H, kx:kx + W, :].reshape(M, cin)
            taps.append(jnp.dot(patch, w_ref[k],
                                preferred_element_type=jnp.float32))
        return _tree_sum(taps)

    # ---- conv1 + ReLU (input already zero-padded by the wrapper)
    h1 = jnp.maximum(conv3x3(xpad_ref, wc1_ref, C_IN) + bc1_ref[...], 0.0)

    # ---- conv2 + ReLU; its zero-padded input lives in VMEM scratch
    pad2_ref[...] = jnp.zeros_like(pad2_ref)
    pad2_ref[:, 1:H + 1, 1:W + 1, :] = h1.reshape(B, H, W, F1)
    feat = jnp.maximum(conv3x3(pad2_ref, wc2_ref, F1) + bc2_ref[...], 0.0)

    # ---- NHWC flatten realized through VMEM: 64 static lane-offset stores
    #      (store/XLU work only) instead of 64 serialized M=2 MXU dots.
    feat3 = feat.reshape(B, HW, F2)                       # (B, 64, 32)
    for p in range(HW):
        featflat_ref[:, p * F2:(p + 1) * F2] = feat3[:, p, :]
    xflat = featflat_ref[...].astype(jnp.bfloat16)        # cast once (hoisted)

    # ---- fc1: vector block + conv block as a few K=256 (MXU-native) dots
    #      against the prefetched bf16 weight; partials tree-summed.
    w1c_cp.wait()
    parts = [jnp.dot(vec_ref[...].astype(jnp.bfloat16), w1v_ref[...],
                     preferred_element_type=jnp.float32)]
    K_total = HW * F2
    KC = 256
    k0 = 0
    while k0 < K_total:
        kc = min(KC, K_total - k0)
        parts.append(jnp.dot(xflat[:, k0:k0 + kc], w1c_vmem[k0:k0 + kc, :],
                             preferred_element_type=jnp.float32))
        k0 += kc
    hfc1 = jnp.maximum(_tree_sum(parts) + b1_ref[...], 0.0)        # (B, 256)

    # ---- fc2 (bf16 weight, prefetched)
    w2_cp.wait()
    hfc2 = jnp.dot(hfc1.astype(jnp.bfloat16), w2_vmem[...],
                   preferred_element_type=jnp.float32)
    hfc2 = jnp.maximum(hfc2 + b2_ref[...], 0.0)                    # (B, 256)

    # ---- merged mean||log_std head: one matmul, one store; clamp log_std cols
    ms = jnp.dot(hfc2.astype(jnp.bfloat16), wms_ref[...],
                 preferred_element_type=jnp.float32) + bms_ref[...]
    col = jax.lax.broadcasted_iota(jnp.int32, ms.shape, 1)
    out_ref[...] = jnp.where(col >= A, jnp.clip(ms, -20.0, 2.0), ms)


# ---------------------------------------------------------------------------
# Wrapper: single fused pallas_call (no grid); NCHW->NHWC + pad in the wrapper
# ---------------------------------------------------------------------------
def actor_forward(params, vector_input, visual_input_nchw):
    x = jnp.transpose(visual_input_nchw, (0, 2, 3, 1)).astype(jnp.float32)
    x_pad = jnp.pad(x, ((0, 0), (1, 1), (1, 1), (0, 0)))   # layout plumbing
    vec = vector_input.astype(jnp.float32)
    B, H, W, _ = x.shape
    F1 = params["w_conv1"].shape[2]
    F2 = params["w_conv2"].shape[2]
    A2 = params["w_ms"].shape[1]

    args = (x_pad, vec,
            params["w_conv1"], params["b_conv1"],
            params["w_conv2"], params["b_conv2"],
            params["w_fc1_conv"], params["w_fc1_vec"], params["b_fc1"],
            params["w_fc2"], params["b_fc2"],
            params["w_ms"], params["b_ms"])

    vmem = pl.BlockSpec(memory_space=pltpu.MemorySpace.VMEM)   # whole array
    hbm = pl.BlockSpec(memory_space=pl.ANY)                    # manual DMA
    in_specs = [vmem, vmem,
                vmem, vmem, vmem, vmem,
                hbm, vmem, vmem,
                hbm, vmem,
                vmem, vmem]

    out = pl.pallas_call(
        actor_fused_kernel,
        out_shape=jax.ShapeDtypeStruct((B, A2), jnp.float32),
        in_specs=in_specs,
        out_specs=pl.BlockSpec(memory_space=pltpu.MemorySpace.VMEM),
        scratch_shapes=[
            pltpu.VMEM((B, H + 2, W + 2, F1), jnp.float32),          # conv1 out, padded
            pltpu.VMEM((B, H * W * F2), jnp.float32),                # NHWC-flat features
            pltpu.VMEM(params["w_fc1_conv"].shape,
                       params["w_fc1_conv"].dtype),                  # fc1 weight landing
            pltpu.VMEM(params["w_fc2"].shape, params["w_fc2"].dtype),  # fc2 weight landing
            pltpu.SemaphoreType.DMA((2,)),
        ],
    )(*args)

    A = A2 // 2
    return out[:, :A], out[:, A:]
    # TODO(synk): `sample()` (Normal sampling / tanh-squash log-prob) is not
    # part of forward(); omitted here.


# ---------------------------------------------------------------------------
# Deterministic parameter construction (layout documented at top of file)
# ---------------------------------------------------------------------------
def make_params(key, state_size, action_size, H, W, hidden=256):
    ks = jax.random.split(key, 11)
    scale = 0.05

    def nrm(k, shape, dtype=jnp.float32):
        return (scale * jax.random.normal(k, shape)).astype(dtype)

    return {
        "w_conv1": nrm(ks[0], (9, 3, 16)),                 # (KH*KW, Cin, Cout)
        "b_conv1": nrm(ks[1], (1, 16)),
        "w_conv2": nrm(ks[2], (9, 16, 32)),
        "b_conv2": nrm(ks[3], (1, 32)),
        # fc1 split: conv-feature block (rows in NHWC flatten order) + vector
        # block, both bf16 (dominant HBM transfer halved).
        "w_fc1_conv": nrm(ks[4], (H * W * 32, hidden), jnp.bfloat16),
        "w_fc1_vec": nrm(ks[5], (state_size, hidden), jnp.bfloat16),
        "b_fc1": nrm(ks[6], (1, hidden)),
        "w_fc2": nrm(ks[7], (hidden, hidden), jnp.bfloat16),
        "b_fc2": nrm(ks[8], (1, hidden)),
        # mean || log_std heads merged along the output dim.
        "w_ms": nrm(ks[9], (hidden, 2 * action_size), jnp.bfloat16),
        "b_ms": nrm(ks[10], (1, 2 * action_size)),
    }


# ---------------------------------------------------------------------------
# Pure-JAX reference (same math, same parameter layout) for a sanity check
# ---------------------------------------------------------------------------
def reference_forward(params, vector_input, visual_input_nchw):
    x = jnp.transpose(visual_input_nchw, (0, 2, 3, 1)).astype(jnp.float32)
    for wk, bk in (("w_conv1", "b_conv1"), ("w_conv2", "b_conv2")):
        w = params[wk]
        w = w.reshape(3, 3, w.shape[1], w.shape[2])          # HWIO
        x = jax.lax.conv_general_dilated(
            x, w, window_strides=(1, 1), padding="SAME",
            dimension_numbers=("NHWC", "HWIO", "NHWC"))
        x = jax.nn.relu(x + params[bk][0])
    B = x.shape[0]
    feat = x.reshape(B, -1)                                  # NHWC flatten order
    w1c = params["w_fc1_conv"].astype(jnp.float32)
    w1v = params["w_fc1_vec"].astype(jnp.float32)
    vec = vector_input.astype(jnp.float32)
    h = jax.nn.relu(feat @ w1c + vec @ w1v + params["b_fc1"])
    h = jax.nn.relu(h @ params["w_fc2"].astype(jnp.float32) + params["b_fc2"])
    ms = h @ params["w_ms"].astype(jnp.float32) + params["b_ms"]
    A = params["w_ms"].shape[1] // 2
    return ms[:, :A], jnp.clip(ms[:, A:], -20.0, 2.0)


if __name__ == "__main__":
    B = 2
    H = W = 8            # visual_input_shape = (8, 8)
    state_size = 8
    action_size = 4
    max_action = 10000   # kept for parity with the module; unused in forward()

    key = jax.random.PRNGKey(0)
    kp, kv, kx = jax.random.split(key, 3)

    params = make_params(kp, state_size, action_size, H, W)
    vector_input = jax.random.normal(kv, (B, state_size), dtype=jnp.float32)
    visual_input = jax.random.normal(kx, (B, 3, H, W), dtype=jnp.float32)

    mean, log_std = jax.jit(actor_forward)(params, vector_input, visual_input)
    jax.block_until_ready((mean, log_std))

    m_ref, ls_ref = reference_forward(params, vector_input, visual_input)

    assert mean.shape == (B, action_size)
    assert log_std.shape == (B, action_size)
    assert bool(jnp.all(log_std >= -20.0)) and bool(jnp.all(log_std <= 2.0))
    assert bool(jnp.allclose(mean, m_ref, rtol=5e-2, atol=5e-2))
    assert bool(jnp.allclose(log_std, ls_ref, rtol=5e-2, atol=5e-2))
    print("KERNEL_OK")
</pallas_src>

<mosaic_0001>
module attributes {stable_mosaic.version = 11 : i64} {
  func.func @actor_fused_kernel(%arg0: memref<2x10x10x3xf32, #tpu.memory_space<vmem>>, %arg1: memref<2x8xf32, #tpu.memory_space<vmem>>, %arg2: memref<9x3x16xf32, #tpu.memory_space<vmem>>, %arg3: memref<1x16xf32, #tpu.memory_space<vmem>>, %arg4: memref<9x16x32xf32, #tpu.memory_space<vmem>>, %arg5: memref<1x32xf32, #tpu.memory_space<vmem>>, %arg6: memref<2048x256xbf16, #tpu.memory_space<any>>, %arg7: memref<8x256xbf16, #tpu.memory_space<vmem>>, %arg8: memref<1x256xf32, #tpu.memory_space<vmem>>, %arg9: memref<256x256xbf16, #tpu.memory_space<any>>, %arg10: memref<1x256xf32, #tpu.memory_space<vmem>>, %arg11: memref<256x8xbf16, #tpu.memory_space<vmem>>, %arg12: memref<1x8xf32, #tpu.memory_space<vmem>>, %arg13: memref<2x8xf32, #tpu.memory_space<vmem>>, %arg14: memref<2x10x10x16xf32, #tpu.memory_space<vmem>>, %arg15: memref<2x2048xf32, #tpu.memory_space<vmem>>, %arg16: memref<2048x256xbf16, #tpu.memory_space<vmem>>, %arg17: memref<256x256xbf16, #tpu.memory_space<vmem>>, %arg18: memref<2x!tpu.dma_semaphore, #tpu.memory_space<semaphore_mem>>) attributes {dimension_semantics = [], scalar_prefetch = 0 : i64, scratch_operands = 5 : i64, tpu.core_type = #tpu.core_type<tc>} {
    %c0_i32 = arith.constant 0 : i32
    %0 = tpu.memref_slice %arg18[%c0_i32] : memref<2x!tpu.dma_semaphore, #tpu.memory_space<semaphore_mem>> -> memref<1x!tpu.dma_semaphore, #tpu.memory_space<semaphore_mem>>
    %1 = tpu.memref_squeeze %0 : memref<1x!tpu.dma_semaphore, #tpu.memory_space<semaphore_mem>> -> memref<!tpu.dma_semaphore, #tpu.memory_space<semaphore_mem>>
    tpu.enqueue_dma source(%arg6 : memref<2048x256xbf16, #tpu.memory_space<any>>) target(%arg16 : memref<2048x256xbf16, #tpu.memory_space<vmem>>) target_semaphore(%1 : memref<!tpu.dma_semaphore, #tpu.memory_space<semaphore_mem>>)
    %c1_i32 = arith.constant 1 : i32
    %2 = tpu.memref_slice %arg18[%c1_i32] : memref<2x!tpu.dma_semaphore, #tpu.memory_space<semaphore_mem>> -> memref<1x!tpu.dma_semaphore, #tpu.memory_space<semaphore_mem>>
    %3 = tpu.memref_squeeze %2 : memref<1x!tpu.dma_semaphore, #tpu.memory_space<semaphore_mem>> -> memref<!tpu.dma_semaphore, #tpu.memory_space<semaphore_mem>>
    tpu.enqueue_dma source(%arg9 : memref<256x256xbf16, #tpu.memory_space<any>>) target(%arg17 : memref<256x256xbf16, #tpu.memory_space<vmem>>) target_semaphore(%3 : memref<!tpu.dma_semaphore, #tpu.memory_space<semaphore_mem>>)
    %c0 = arith.constant 0 : index
    %c0_0 = arith.constant 0 : index
    %c0_1 = arith.constant 0 : index
    %c0_2 = arith.constant 0 : index
    %4 = vector.load %arg0[%c0, %c0_0, %c0_1, %c0_2] : memref<2x10x10x3xf32, #tpu.memory_space<vmem>>, vector<2x8x8x3xf32>
    %5 = vector.shape_cast %4 : vector<2x8x8x3xf32> to vector<128x3xf32>
    %c0_3 = arith.constant 0 : index
    %c0_4 = arith.constant 0 : index
    %c0_5 = arith.constant 0 : index
    %6 = vector.load %arg2[%c0_3, %c0_4, %c0_5] : memref<9x3x16xf32, #tpu.memory_space<vmem>>, vector<1x3x16xf32>
    %7 = vector.shape_cast %6 : vector<1x3x16xf32> to vector<3x16xf32>
    %cst = arith.constant dense<0.000000e+00> : vector<128x16xf32>
    %8 = tpu.matmul %5, %7, %cst {dimension_numbers = #tpu.dot_dimension_numbers<[1], [0], [0], [1], [0, 0, 1, 1], [], []>} : vector<128x3xf32>, vector<3x16xf32>, vector<128x16xf32> -> vector<128x16xf32>
    %c0_6 = arith.constant 0 : index
    %c0_7 = arith.constant 0 : index
    %c1 = arith.constant 1 : index
    %c0_8 = arith.constant 0 : index
    %9 = vector.load %arg0[%c0_6, %c0_7, %c1, %c0_8] : memref<2x10x10x3xf32, #tpu.memory_space<vmem>>, vector<2x8x8x3xf32>
    %10 = vector.shape_cast %9 : vector<2x8x8x3xf32> to vector<128x3xf32>
    %c1_9 = arith.constant 1 : index
    %c0_10 = arith.constant 0 : index
    %c0_11 = arith.constant 0 : index
    %11 = vector.load %arg2[%c1_9, %c0_10, %c0_11] : memref<9x3x16xf32, #tpu.memory_space<vmem>>, vector<1x3x16xf32>
    %12 = vector.shape_cast %11 : vector<1x3x16xf32> to vector<3x16xf32>
    %cst_12 = arith.constant dense<0.000000e+00> : vector<128x16xf32>
    %13 = tpu.matmul %10, %12, %cst_12 {dimension_numbers = #tpu.dot_dimension_numbers<[1], [0], [0], [1], [0, 0, 1, 1], [], []>} : vector<128x3xf32>, vector<3x16xf32>, vector<128x16xf32> -> vector<128x16xf32>
    %c0_13 = arith.constant 0 : index
    %c0_14 = arith.constant 0 : index
    %c2 = arith.constant 2 : index
    %c0_15 = arith.constant 0 : index
    %14 = vector.load %arg0[%c0_13, %c0_14, %c2, %c0_15] : memref<2x10x10x3xf32, #tpu.memory_space<vmem>>, vector<2x8x8x3xf32>
    %15 = vector.shape_cast %14 : vector<2x8x8x3xf32> to vector<128x3xf32>
    %c2_16 = arith.constant 2 : index
    %c0_17 = arith.constant 0 : index
    %c0_18 = arith.constant 0 : index
    %16 = vector.load %arg2[%c2_16, %c0_17, %c0_18] : memref<9x3x16xf32, #tpu.memory_space<vmem>>, vector<1x3x16xf32>
    %17 = vector.shape_cast %16 : vector<1x3x16xf32> to vector<3x16xf32>
    %cst_19 = arith.constant dense<0.000000e+00> : vector<128x16xf32>
    %18 = tpu.matmul %15, %17, %cst_19 {dimension_numbers = #tpu.dot_dimension_numbers<[1], [0], [0], [1], [0, 0, 1, 1], [], []>} : vector<128x3xf32>, vector<3x16xf32>, vector<128x16xf32> -> vector<128x16xf32>
    %c0_20 = arith.constant 0 : index
    %c1_21 = arith.constant 1 : index
    %c0_22 = arith.constant 0 : index
    %c0_23 = arith.constant 0 : index
    %19 = vector.load %arg0[%c0_20, %c1_21, %c0_22, %c0_23] : memref<2x10x10x3xf32, #tpu.memory_space<vmem>>, vector<2x8x8x3xf32>
    %20 = vector.shape_cast %19 : vector<2x8x8x3xf32> to vector<128x3xf32>
    %c3 = arith.constant 3 : index
    %c0_24 = arith.constant 0 : index
    %c0_25 = arith.constant 0 : index
    %21 = vector.load %arg2[%c3, %c0_24, %c0_25] : memref<9x3x16xf32, #tpu.memory_space<vmem>>, vector<1x3x16xf32>
    %22 = vector.shape_cast %21 : vector<1x3x16xf32> to vector<3x16xf32>
    %cst_26 = arith.constant dense<0.000000e+00> : vector<128x16xf32>
    %23 = tpu.matmul %20, %22, %cst_26 {dimension_numbers = #tpu.dot_dimension_numbers<[1], [0], [0], [1], [0, 0, 1, 1], [], []>} : vector<128x3xf32>, vector<3x16xf32>, vector<128x16xf32> -> vector<128x16xf32>
    %c0_27 = arith.constant 0 : index
    %c1_28 = arith.constant 1 : index
    %c1_29 = arith.constant 1 : index
    %c0_30 = arith.constant 0 : index
    %24 = vector.load %arg0[%c0_27, %c1_28, %c1_29, %c0_30] : memref<2x10x10x3xf32, #tpu.memory_space<vmem>>, vector<2x8x8x3xf32>
    %25 = vector.shape_cast %24 : vector<2x8x8x3xf32> to vector<128x3xf32>
    %c4 = arith.constant 4 : index
    %c0_31 = arith.constant 0 : index
    %c0_32 = arith.constant 0 : index
    %26 = vector.load %arg2[%c4, %c0_31, %c0_32] : memref<9x3x16xf32, #tpu.memory_space<vmem>>, vector<1x3x16xf32>
    %27 = vector.shape_cast %26 : vector<1x3x16xf32> to vector<3x16xf32>
    %cst_33 = arith.constant dense<0.000000e+00> : vector<128x16xf32>
    %28 = tpu.matmul %25, %27, %cst_33 {dimension_numbers = #tpu.dot_dimension_numbers<[1], [0], [0], [1], [0, 0, 1, 1], [], []>} : vector<128x3xf32>, vector<3x16xf32>, vector<128x16xf32> -> vector<128x16xf32>
    %c0_34 = arith.constant 0 : index
    %c1_35 = arith.constant 1 : index
    %c2_36 = arith.constant 2 : index
    %c0_37 = arith.constant 0 : index
    %29 = vector.load %arg0[%c0_34, %c1_35, %c2_36, %c0_37] : memref<2x10x10x3xf32, #tpu.memory_space<vmem>>, vector<2x8x8x3xf32>
    %30 = vector.shape_cast %29 : vector<2x8x8x3xf32> to vector<128x3xf32>
    %c5 = arith.constant 5 : index
    %c0_38 = arith.constant 0 : index
    %c0_39 = arith.constant 0 : index
    %31 = vector.load %arg2[%c5, %c0_38, %c0_39] : memref<9x3x16xf32, #tpu.memory_space<vmem>>, vector<1x3x16xf32>
    %32 = vector.shape_cast %31 : vector<1x3x16xf32> to vector<3x16xf32>
    %cst_40 = arith.constant dense<0.000000e+00> : vector<128x16xf32>
    %33 = tpu.matmul %30, %32, %cst_40 {dimension_numbers = #tpu.dot_dimension_numbers<[1], [0], [0], [1], [0, 0, 1, 1], [], []>} : vector<128x3xf32>, vector<3x16xf32>, vector<128x16xf32> -> vector<128x16xf32>
    %c0_41 = arith.constant 0 : index
    %c2_42 = arith.constant 2 : index
    %c0_43 = arith.constant 0 : index
    %c0_44 = arith.constant 0 : index
    %34 = vector.load %arg0[%c0_41, %c2_42, %c0_43, %c0_44] : memref<2x10x10x3xf32, #tpu.memory_space<vmem>>, vector<2x8x8x3xf32>
    %35 = vector.shape_cast %34 : vector<2x8x8x3xf32> to vector<128x3xf32>
    %c6 = arith.constant 6 : index
    %c0_45 = arith.constant 0 : index
    %c0_46 = arith.constant 0 : index
    %36 = vector.load %arg2[%c6, %c0_45, %c0_46] : memref<9x3x16xf32, #tpu.memory_space<vmem>>, vector<1x3x16xf32>
    %37 = vector.shape_cast %36 : vector<1x3x16xf32> to vector<3x16xf32>
    %cst_47 = arith.constant dense<0.000000e+00> : vector<128x16xf32>
    %38 = tpu.matmul %35, %37, %cst_47 {dimension_numbers = #tpu.dot_dimension_numbers<[1], [0], [0], [1], [0, 0, 1, 1], [], []>} : vector<128x3xf32>, vector<3x16xf32>, vector<128x16xf32> -> vector<128x16xf32>
    %c0_48 = arith.constant 0 : index
    %c2_49 = arith.constant 2 : index
    %c1_50 = arith.constant 1 : index
    %c0_51 = arith.constant 0 : index
    %39 = vector.load %arg0[%c0_48, %c2_49, %c1_50, %c0_51] : memref<2x10x10x3xf32, #tpu.memory_space<vmem>>, vector<2x8x8x3xf32>
    %40 = vector.shape_cast %39 : vector<2x8x8x3xf32> to vector<128x3xf32>
    %c7 = arith.constant 7 : index
    %c0_52 = arith.constant 0 : index
    %c0_53 = arith.constant 0 : index
    %41 = vector.load %arg2[%c7, %c0_52, %c0_53] : memref<9x3x16xf32, #tpu.memory_space<vmem>>, vector<1x3x16xf32>
    %42 = vector.shape_cast %41 : vector<1x3x16xf32> to vector<3x16xf32>
    %cst_54 = arith.constant dense<0.000000e+00> : vector<128x16xf32>
    %43 = tpu.matmul %40, %42, %cst_54 {dimension_numbers = #tpu.dot_dimension_numbers<[1], [0], [0], [1], [0, 0, 1, 1], [], []>} : vector<128x3xf32>, vector<3x16xf32>, vector<128x16xf32> -> vector<128x16xf32>
    %c0_55 = arith.constant 0 : index
    %c2_56 = arith.constant 2 : index
    %c2_57 = arith.constant 2 : index
    %c0_58 = arith.constant 0 : index
    %44 = vector.load %arg0[%c0_55, %c2_56, %c2_57, %c0_58] : memref<2x10x10x3xf32, #tpu.memory_space<vmem>>, vector<2x8x8x3xf32>
    %45 = vector.shape_cast %44 : vector<2x8x8x3xf32> to vector<128x3xf32>
    %c8 = arith.constant 8 : index
    %c0_59 = arith.constant 0 : index
    %c0_60 = arith.constant 0 : index
    %46 = vector.load %arg2[%c8, %c0_59, %c0_60] : memref<9x3x16xf32, #tpu.memory_space<vmem>>, vector<1x3x16xf32>
    %47 = vector.shape_cast %46 : vector<1x3x16xf32> to vector<3x16xf32>
    %cst_61 = arith.constant dense<0.000000e+00> : vector<128x16xf32>
    %48 = tpu.matmul %45, %47, %cst_61 {dimension_numbers = #tpu.dot_dimension_numbers<[1], [0], [0], [1], [0, 0, 1, 1], [], []>} : vector<128x3xf32>, vector<3x16xf32>, vector<128x16xf32> -> vector<128x16xf32>
    %49 = arith.addf %8, %13 : vector<128x16xf32>
    %50 = arith.addf %18, %23 : vector<128x16xf32>
    %51 = arith.addf %28, %33 : vector<128x16xf32>
    %52 = arith.addf %38, %43 : vector<128x16xf32>
    %53 = arith.addf %49, %50 : vector<128x16xf32>
    %54 = arith.addf %51, %52 : vector<128x16xf32>
    %55 = arith.addf %53, %54 : vector<128x16xf32>
    %56 = arith.addf %55, %48 : vector<128x16xf32>
    %c0_62 = arith.constant 0 : index
    %c0_63 = arith.constant 0 : index
    %57 = vector.load %arg3[%c0_62, %c0_63] : memref<1x16xf32, #tpu.memory_space<vmem>>, vector<1x16xf32>
    %58 = vector.broadcast %57 : vector<1x16xf32> to vector<128x16xf32>
    %59 = arith.addf %56, %58 : vector<128x16xf32>
    %cst_64 = arith.constant 0.000000e+00 : f32
    %60 = vector.broadcast %cst_64 : f32 to vector<128x16xf32>
    %61 = arith.maximumf %59, %60 : vector<128x16xf32>
    %cst_65 = arith.constant 0.000000e+00 : f32
    %62 = vector.broadcast %cst_65 : f32 to vector<2x10x10x16xf32>
    %c0_66 = arith.constant 0 : index
    %c0_67 = arith.constant 0 : index
    %c0_68 = arith.constant 0 : index
    %c0_69 = arith.constant 0 : index
    %63 = vector.load %arg14[%c0_66, %c0_67, %c0_68, %c0_69] : memref<2x10x10x16xf32, #tpu.memory_space<vmem>>, vector<2x10x10x16xf32>
    tpu.vector_store %arg14[%c0_66, %c0_67, %c0_68, %c0_69], %62 {strides = array<i32>} : memref<2x10x10x16xf32, #tpu.memory_space<vmem>>, vector<2x10x10x16xf32>,
    %64 = vector.shape_cast %61 : vector<128x16xf32> to vector<2x8x8x16xf32>
    %c0_70 = arith.constant 0 : index
    %c1_71 = arith.constant 1 : index
    %c1_72 = arith.constant 1 : index
    %c0_73 = arith.constant 0 : index
    %65 = vector.load %arg14[%c0_70, %c1_71, %c1_72, %c0_73] : memref<2x10x10x16xf32, #tpu.memory_space<vmem>>, vector<2x8x8x16xf32>
    tpu.vector_store %arg14[%c0_70, %c1_71, %c1_72, %c0_73], %64 {strides = array<i32>} : memref<2x10x10x16xf32, #tpu.memory_space<vmem>>, vector<2x8x8x16xf32>,
    %c0_74 = arith.constant 0 : index
    %c0_75 = arith.constant 0 : index
    %c0_76 = arith.constant 0 : index
    %c0_77 = arith.constant 0 : index
    %66 = vector.load %arg14[%c0_74, %c0_75, %c0_76, %c0_77] : memref<2x10x10x16xf32, #tpu.memory_space<vmem>>, vector<2x8x8x16xf32>
    %67 = vector.shape_cast %66 : vector<2x8x8x16xf32> to vector<128x16xf32>
    %c0_78 = arith.constant 0 : index
    %c0_79 = arith.constant 0 : index
    %c0_80 = arith.constant 0 : index
    %68 = vector.load %arg4[%c0_78, %c0_79, %c0_80] : memref<9x16x32xf32, #tpu.memory_space<vmem>>, vector<1x16x32xf32>
    %69 = vector.shape_cast %68 : vector<1x16x32xf32> to vector<16x32xf32>
    %cst_81 = arith.constant dense<0.000000e+00> : vector<128x32xf32>
    %70 = tpu.matmul %67, %69, %cst_81 {dimension_numbers = #tpu.dot_dimension_numbers<[1], [0], [0], [1], [0, 0, 1, 1], [], []>} : vector<128x16xf32>, vector<16x32xf32>, vector<128x32xf32> -> vector<128x32xf32>
    %c0_82 = arith.constant 0 : index
    %c0_83 = arith.constant 0 : index
    %c1_84 = arith.constant 1 : index
    %c0_85 = arith.constant 0 : index
    %71 = vector.load %arg14[%c0_82, %c0_83, %c1_84, %c0_85] : memref<2x10x10x16xf32, #tpu.memory_space<vmem>>, vector<2x8x8x16xf32>
    %72 = vector.shape_cast %71 : vector<2x8x8x16xf32> to vector<128x16xf32>
    %c1_86 = arith.constant 1 : index
    %c0_87 = arith.constant 0 : index
    %c0_88 = arith.constant 0 : index
    %73 = vector.load %arg4[%c1_86, %c0_87, %c0_88] : memref<9x16x32xf32, #tpu.memory_space<vmem>>, vector<1x16x32xf32>
    %74 = vector.shape_cast %73 : vector<1x16x32xf32> to vector<16x32xf32>
    %cst_89 = arith.constant dense<0.000000e+00> : vector<128x32xf32>
    %75 = tpu.matmul %72, %74, %cst_89 {dimension_numbers = #tpu.dot_dimension_numbers<[1], [0], [0], [1], [0, 0, 1, 1], [], []>} : vector<128x16xf32>, vector<16x32xf32>, vector<128x32xf32> -> vector<128x32xf32>
    %c0_90 = arith.constant 0 : index
    %c0_91 = arith.constant 0 : index
    %c2_92 = arith.constant 2 : index
    %c0_93 = arith.constant 0 : index
    %76 = vector.load %arg14[%c0_90, %c0_91, %c2_92, %c0_93] : memref<2x10x10x16xf32, #tpu.memory_space<vmem>>, vector<2x8x8x16xf32>
    %77 = vector.shape_cast %76 : vector<2x8x8x16xf32> to vector<128x16xf32>
    %c2_94 = arith.constant 2 : index
    %c0_95 = arith.constant 0 : index
    %c0_96 = arith.constant 0 : index
    %78 = vector.load %arg4[%c2_94, %c0_95, %c0_96] : memref<9x16x32xf32, #tpu.memory_space<vmem>>, vector<1x16x32xf32>
    %79 = vector.shape_cast %78 : vector<1x16x32xf32> to vector<16x32xf32>
    %cst_97 = arith.constant dense<0.000000e+00> : vector<128x32xf32>
    %80 = tpu.matmul %77, %79, %cst_97 {dimension_numbers = #tpu.dot_dimension_numbers<[1], [0], [0], [1], [0, 0, 1, 1], [], []>} : vector<128x16xf32>, vector<16x32xf32>, vector<128x32xf32> -> vector<128x32xf32>
    %c0_98 = arith.constant 0 : index
    %c1_99 = arith.constant 1 : index
    %c0_100 = arith.constant 0 : index
    %c0_101 = arith.constant 0 : index
    %81 = vector.load %arg14[%c0_98, %c1_99, %c0_100, %c0_101] : memref<2x10x10x16xf32, #tpu.memory_space<vmem>>, vector<2x8x8x16xf32>
    %82 = vector.shape_cast %81 : vector<2x8x8x16xf32> to vector<128x16xf32>
    %c3_102 = arith.constant 3 : index
    %c0_103 = arith.constant 0 : index
    %c0_104 = arith.constant 0 : index
    %83 = vector.load %arg4[%c3_102, %c0_103, %c0_104] : memref<9x16x32xf32, #tpu.memory_space<vmem>>, vector<1x16x32xf32>
    %84 = vector.shape_cast %83 : vector<1x16x32xf32> to vector<16x32xf32>
    %cst_105 = arith.constant dense<0.000000e+00> : vector<128x32xf32>
    %85 = tpu.matmul %82, %84, %cst_105 {dimension_numbers = #tpu.dot_dimension_numbers<[1], [0], [0], [1], [0, 0, 1, 1], [], []>} : vector<128x16xf32>, vector<16x32xf32>, vector<128x32xf32> -> vector<128x32xf32>
    %c0_106 = arith.constant 0 : index
    %c1_107 = arith.constant 1 : index
    %c1_108 = arith.constant 1 : index
    %c0_109 = arith.constant 0 : index
    %86 = vector.load %arg14[%c0_106, %c1_107, %c1_108, %c0_109] : memref<2x10x10x16xf32, #tpu.memory_space<vmem>>, vector<2x8x8x16xf32>
    %87 = vector.shape_cast %86 : vector<2x8x8x16xf32> to vector<128x16xf32>
    %c4_110 = arith.constant 4 : index
    %c0_111 = arith.constant 0 : index
    %c0_112 = arith.constant 0 : index
    %88 = vector.load %arg4[%c4_110, %c0_111, %c0_112] : memref<9x16x32xf32, #tpu.memory_space<vmem>>, vector<1x16x32xf32>
    %89 = vector.shape_cast %88 : vector<1x16x32xf32> to vector<16x32xf32>
    %cst_113 = arith.constant dense<0.000000e+00> : vector<128x32xf32>
    %90 = tpu.matmul %87, %89, %cst_113 {dimension_numbers = #tpu.dot_dimension_numbers<[1], [0], [0], [1], [0, 0, 1, 1], [], []>} : vector<128x16xf32>, vector<16x32xf32>, vector<128x32xf32> -> vector<128x32xf32>
    %c0_114 = arith.constant 0 : index
    %c1_115 = arith.constant 1 : index
    %c2_116 = arith.constant 2 : index
    %c0_117 = arith.constant 0 : index
    %91 = vector.load %arg14[%c0_114, %c1_115, %c2_116, %c0_117] : memref<2x10x10x16xf32, #tpu.memory_space<vmem>>, vector<2x8x8x16xf32>
    %92 = vector.shape_cast %91 : vector<2x8x8x16xf32> to vector<128x16xf32>
    %c5_118 = arith.constant 5 : index
    %c0_119 = arith.constant 0 : index
    %c0_120 = arith.constant 0 : index
    %93 = vector.load %arg4[%c5_118, %c0_119, %c0_120] : memref<9x16x32xf32, #tpu.memory_space<vmem>>, vector<1x16x32xf32>
    %94 = vector.shape_cast %93 : vector<1x16x32xf32> to vector<16x32xf32>
    %cst_121 = arith.constant dense<0.000000e+00> : vector<128x32xf32>
    %95 = tpu.matmul %92, %94, %cst_121 {dimension_numbers = #tpu.dot_dimension_numbers<[1], [0], [0], [1], [0, 0, 1, 1], [], []>} : vector<128x16xf32>, vector<16x32xf32>, vector<128x32xf32> -> vector<128x32xf32>
    %c0_122 = arith.constant 0 : index
    %c2_123 = arith.constant 2 : index
    %c0_124 = arith.constant 0 : index
    %c0_125 = arith.constant 0 : index
    %96 = vector.load %arg14[%c0_122, %c2_123, %c0_124, %c0_125] : memref<2x10x10x16xf32, #tpu.memory_space<vmem>>, vector<2x8x8x16xf32>
    %97 = vector.shape_cast %96 : vector<2x8x8x16xf32> to vector<128x16xf32>
    %c6_126 = arith.constant 6 : index
    %c0_127 = arith.constant 0 : index
    %c0_128 = arith.constant 0 : index
    %98 = vector.load %arg4[%c6_126, %c0_127, %c0_128] : memref<9x16x32xf32, #tpu.memory_space<vmem>>, vector<1x16x32xf32>
    %99 = vector.shape_cast %98 : vector<1x16x32xf32> to vector<16x32xf32>
    %cst_129 = arith.constant dense<0.000000e+00> : vector<128x32xf32>
    %100 = tpu.matmul %97, %99, %cst_129 {dimension_numbers = #tpu.dot_dimension_numbers<[1], [0], [0], [1], [0, 0, 1, 1], [], []>} : vector<128x16xf32>, vector<16x32xf32>, vector<128x32xf32> -> vector<128x32xf32>
    %c0_130 = arith.constant 0 : index
    %c2_131 = arith.constant 2 : index
    %c1_132 = arith.constant 1 : index
    %c0_133 = arith.constant 0 : index
    %101 = vector.load %arg14[%c0_130, %c2_131, %c1_132, %c0_133] : memref<2x10x10x16xf32, #tpu.memory_space<vmem>>, vector<2x8x8x16xf32>
    %102 = vector.shape_cast %101 : vector<2x8x8x16xf32> to vector<128x16xf32>
    %c7_134 = arith.constant 7 : index
    %c0_135 = arith.constant 0 : index
    %c0_136 = arith.constant 0 : index
    %103 = vector.load %arg4[%c7_134, %c0_135, %c0_136] : memref<9x16x32xf32, #tpu.memory_space<vmem>>, vector<1x16x32xf32>
    %104 = vector.shape_cast %103 : vector<1x16x32xf32> to vector<16x32xf32>
    %cst_137 = arith.constant dense<0.000000e+00> : vector<128x32xf32>
    %105 = tpu.matmul %102, %104, %cst_137 {dimension_numbers = #tpu.dot_dimension_numbers<[1], [0], [0], [1], [0, 0, 1, 1], [], []>} : vector<128x16xf32>, vector<16x32xf32>, vector<128x32xf32> -> vector<128x32xf32>
    %c0_138 = arith.constant 0 : index
    %c2_139 = arith.constant 2 : index
    %c2_140 = arith.constant 2 : index
    %c0_141 = arith.constant 0 : index
    %106 = vector.load %arg14[%c0_138, %c2_139, %c2_140, %c0_141] : memref<2x10x10x16xf32, #tpu.memory_space<vmem>>, vector<2x8x8x16xf32>
    %107 = vector.shape_cast %106 : vector<2x8x8x16xf32> to vector<128x16xf32>
    %c8_142 = arith.constant 8 : index
    %c0_143 = arith.constant 0 : index
    %c0_144 = arith.constant 0 : index
    %108 = vector.load %arg4[%c8_142, %c0_143, %c0_144] : memref<9x16x32xf32, #tpu.memory_space<vmem>>, vector<1x16x32xf32>
    %109 = vector.shape_cast %108 : vector<1x16x32xf32> to vector<16x32xf32>
    %cst_145 = arith.constant dense<0.000000e+00> : vector<128x32xf32>
    %110 = tpu.matmul %107, %109, %cst_145 {dimension_numbers = #tpu.dot_dimension_numbers<[1], [0], [0], [1], [0, 0, 1, 1], [], []>} : vector<128x16xf32>, vector<16x32xf32>, vector<128x32xf32> -> vector<128x32xf32>
    %111 = arith.addf %70, %75 : vector<128x32xf32>
    %112 = arith.addf %80, %85 : vector<128x32xf32>
    %113 = arith.addf %90, %95 : vector<128x32xf32>
    %114 = arith.addf %100, %105 : vector<128x32xf32>
    %115 = arith.addf %111, %112 : vector<128x32xf32>
    %116 = arith.addf %113, %114 : vector<128x32xf32>
    %117 = arith.addf %115, %116 : vector<128x32xf32>
    %118 = arith.addf %117, %110 : vector<128x32xf32>
    %c0_146 = arith.constant 0 : index
    %c0_147 = arith.constant 0 : index
    %119 = vector.load %arg5[%c0_146, %c0_147] : memref<1x32xf32, #tpu.memory_space<vmem>>, vector<1x32xf32>
    %120 = vector.broadcast %119 : vector<1x32xf32> to vector<128x32xf32>
    %121 = arith.addf %118, %120 : vector<128x32xf32>
    %cst_148 = arith.constant 0.000000e+00 : f32
    %122 = vector.broadcast %cst_148 : f32 to vector<128x32xf32>
    %123 = arith.maximumf %121, %122 : vector<128x32xf32>
    %124 = vector.shape_cast %123 : vector<128x32xf32> to vector<2x64x32xf32>
    %125 = vector.extract_strided_slice %124 {offsets = [0, 0, 0], sizes = [2, 1, 32], strides = [1, 1, 1]} : vector<2x64x32xf32> to vector<2x1x32xf32>
    %126 = vector.shape_cast %125 : vector<2x1x32xf32> to vector<2x32xf32>
    %c0_149 = arith.constant 0 : index
    %c0_150 = arith.constant 0 : index
    %127 = vector.load %arg15[%c0_149, %c0_150] : memref<2x2048xf32, #tpu.memory_space<vmem>>, vector<2x32xf32>
    tpu.vector_store %arg15[%c0_149, %c0_150], %126 {strides = array<i32>} : memref<2x2048xf32, #tpu.memory_space<vmem>>, vector<2x32xf32>,
    %128 = vector.extract_strided_slice %124 {offsets = [0, 1, 0], sizes = [2, 1, 32], strides = [1, 1, 1]} : vector<2x64x32xf32> to vector<2x1x32xf32>
    %129 = vector.shape_cast %128 : vector<2x1x32xf32> to vector<2x32xf32>
    %c0_151 = arith.constant 0 : index
    %c32 = arith.constant 32 : index
    %130 = vector.load %arg15[%c0_151, %c32] : memref<2x2048xf32, #tpu.memory_space<vmem>>, vector<2x32xf32>
    tpu.vector_store %arg15[%c0_151, %c32], %129 {strides = array<i32>} : memref<2x2048xf32, #tpu.memory_space<vmem>>, vector<2x32xf32>,
    %131 = vector.extract_strided_slice %124 {offsets = [0, 2, 0], sizes = [2, 1, 32], strides = [1, 1, 1]} : vector<2x64x32xf32> to vector<2x1x32xf32>
    %132 = vector.shape_cast %131 : vector<2x1x32xf32> to vector<2x32xf32>
    %c0_152 = arith.constant 0 : index
    %c64 = arith.constant 64 : index
    %133 = vector.load %arg15[%c0_152, %c64] : memref<2x2048xf32, #tpu.memory_space<vmem>>, vector<2x32xf32>
    tpu.vector_store %arg15[%c0_152, %c64], %132 {strides = array<i32>} : memref<2x2048xf32, #tpu.memory_space<vmem>>, vector<2x32xf32>,
    %134 = vector.extract_strided_slice %124 {offsets = [0, 3, 0], sizes = [2, 1, 32], strides = [1, 1, 1]} : vector<2x64x32xf32> to vector<2x1x32xf32>
    %135 = vector.shape_cast %134 : vector<2x1x32xf32> to vector<2x32xf32>
    %c0_153 = arith.constant 0 : index
    %c96 = arith.constant 96 : index
    %136 = vector.load %arg15[%c0_153, %c96] : memref<2x2048xf32, #tpu.memory_space<vmem>>, vector<2x32xf32>
    tpu.vector_store %arg15[%c0_153, %c96], %135 {strides = array<i32>} : memref<2x2048xf32, #tpu.memory_space<vmem>>, vector<2x32xf32>,
    %137 = vector.extract_strided_slice %124 {offsets = [0, 4, 0], sizes = [2, 1, 32], strides = [1, 1, 1]} : vector<2x64x32xf32> to vector<2x1x32xf32>
    %138 = vector.shape_cast %137 : vector<2x1x32xf32> to vector<2x32xf32>
    %c0_154 = arith.constant 0 : index
    %c128 = arith.constant 128 : index
    %139 = vector.load %arg15[%c0_154, %c128] : memref<2x2048xf32, #tpu.memory_space<vmem>>, vector<2x32xf32>
    tpu.vector_store %arg15[%c0_154, %c128], %138 {strides = array<i32>} : memref<2x2048xf32, #tpu.memory_space<vmem>>, vector<2x32xf32>,
    %140 = vector.extract_strided_slice %124 {offsets = [0, 5, 0], sizes = [2, 1, 32], strides = [1, 1, 1]} : vector<2x64x32xf32> to vector<2x1x32xf32>
    %141 = vector.shape_cast %140 : vector<2x1x32xf32> to vector<2x32xf32>
    %c0_155 = arith.constant 0 : index
    %c160 = arith.constant 160 : index
    %142 = vector.load %arg15[%c0_155, %c160] : memref<2x2048xf32, #tpu.memory_space<vmem>>, vector<2x32xf32>
    tpu.vector_store %arg15[%c0_155, %c160], %141 {strides = array<i32>} : memref<2x2048xf32, #tpu.memory_space<vmem>>, vector<2x32xf32>,
    %143 = vector.extract_strided_slice %124 {offsets = [0, 6, 0], sizes = [2, 1, 32], strides = [1, 1, 1]} : vector<2x64x32xf32> to vector<2x1x32xf32>
    %144 = vector.shape_cast %143 : vector<2x1x32xf32> to vector<2x32xf32>
    %c0_156 = arith.constant 0 : index
    %c192 = arith.constant 192 : index
    %145 = vector.load %arg15[%c0_156, %c192] : memref<2x2048xf32, #tpu.memory_space<vmem>>, vector<2x32xf32>
    tpu.vector_store %arg15[%c0_156, %c192], %144 {strides = array<i32>} : memref<2x2048xf32, #tpu.memory_space<vmem>>, vector<2x32xf32>,
    %146 = vector.extract_strided_slice %124 {offsets = [0, 7, 0], sizes = [2, 1, 32], strides = [1, 1, 1]} : vector<2x64x32xf32> to vector<2x1x32xf32>
    %147 = vector.shape_cast %146 : vector<2x1x32xf32> to vector<2x32xf32>
    %c0_157 = arith.constant 0 : index
    %c224 = arith.constant 224 : index
    %148 = vector.load %arg15[%c0_157, %c224] : memref<2x2048xf32, #tpu.memory_space<vmem>>, vector<2x32xf32>
    tpu.vector_store %arg15[%c0_157, %c224], %147 {strides = array<i32>} : memref<2x2048xf32, #tpu.memory_space<vmem>>, vector<2x32xf32>,
    %149 = vector.extract_strided_slice %124 {offsets = [0, 8, 0], sizes = [2, 1, 32], strides = [1, 1, 1]} : vector<2x64x32xf32> to vector<2x1x32xf32>
    %150 = vector.shape_cast %149 : vector<2x1x32xf32> to vector<2x32xf32>
    %c0_158 = arith.constant 0 : index
    %c256 = arith.constant 256 : index
    %151 = vector.load %arg15[%c0_158, %c256] : memref<2x2048xf32, #tpu.memory_space<vmem>>, vector<2x32xf32>
    tpu.vector_store %arg15[%c0_158, %c256], %150 {strides = array<i32>} : memref<2x2048xf32, #tpu.memory_space<vmem>>, vector<2x32xf32>,
    %152 = vector.extract_strided_slice %124 {offsets = [0, 9, 0], sizes = [2, 1, 32], strides = [1, 1, 1]} : vector<2x64x32xf32> to vector<2x1x32xf32>
    %153 = vector.shape_cast %152 : vector<2x1x32xf32> to vector<2x32xf32>
    %c0_159 = arith.constant 0 : index
    %c288 = arith.constant 288 : index
    %154 = vector.load %arg15[%c0_159, %c288] : memref<2x2048xf32, #tpu.memory_space<vmem>>, vector<2x32xf32>
    tpu.vector_store %arg15[%c0_159, %c288], %153 {strides = array<i32>} : memref<2x2048xf32, #tpu.memory_space<vmem>>, vector<2x32xf32>,
    %155 = vector.extract_strided_slice %124 {offsets = [0, 10, 0], sizes = [2, 1, 32], strides = [1, 1, 1]} : vector<2x64x32xf32> to vector<2x1x32xf32>
    %156 = vector.shape_cast %155 : vector<2x1x32xf32> to vector<2x32xf32>
    %c0_160 = arith.constant 0 : index
    %c320 = arith.constant 320 : index
    %157 = vector.load %arg15[%c0_160, %c320] : memref<2x2048xf32, #tpu.memory_space<vmem>>, vector<2x32xf32>
    tpu.vector_store %arg15[%c0_160, %c320], %156 {strides = array<i32>} : memref<2x2048xf32, #tpu.memory_space<vmem>>, vector<2x32xf32>,
    %158 = vector.extract_strided_slice %124 {offsets = [0, 11, 0], sizes = [2, 1, 32], strides = [1, 1, 1]} : vector<2x64x32xf32> to vector<2x1x32xf32>
    %159 = vector.shape_cast %158 : vector<2x1x32xf32> to vector<2x32xf32>
    %c0_161 = arith.constant 0 : index
    %c352 = arith.constant 352 : index
    %160 = vector.load %arg15[%c0_161, %c352] : memref<2x2048xf32, #tpu.memory_space<vmem>>, vector<2x32xf32>
    tpu.vector_store %arg15[%c0_161, %c352], %159 {strides = array<i32>} : memref<2x2048xf32, #tpu.memory_space<vmem>>, vector<2x32xf32>,
    %161 = vector.extract_strided_slice %124 {offsets = [0, 12, 0], sizes = [2, 1, 32], strides = [1, 1, 1]} : vector<2x64x32xf32> to vector<2x1x32xf32>
    %162 = vector.shape_cast %161 : vector<2x1x32xf32> to vector<2x32xf32>
    %c0_162 = arith.constant 0 : index
    %c384 = arith.constant 384 : index
    %163 = vector.load %arg15[%c0_162, %c384] : memref<2x2048xf32, #tpu.memory_space<vmem>>, vector<2x32xf32>
    tpu.vector_store %arg15[%c0_162, %c384], %162 {strides = array<i32>} : memref<2x2048xf32, #tpu.memory_space<vmem>>, vector<2x32xf32>,
    %164 = vector.extract_strided_slice %124 {offsets = [0, 13, 0], sizes = [2, 1, 32], strides = [1, 1, 1]} : vector<2x64x32xf32> to vector<2x1x32xf32>
    %165 = vector.shape_cast %164 : vector<2x1x32xf32> to vector<2x32xf32>
    %c0_163 = arith.constant 0 : index
    %c416 = arith.constant 416 : index
    %166 = vector.load %arg15[%c0_163, %c416] : memref<2x2048xf32, #tpu.memory_space<vmem>>, vector<2x32xf32>
    tpu.vector_store %arg15[%c0_163, %c416], %165 {strides = array<i32>} : memref<2x2048xf32, #tpu.memory_space<vmem>>, vector<2x32xf32>,
    %167 = vector.extract_strided_slice %124 {offsets = [0, 14, 0], sizes = [2, 1, 32], strides = [1, 1, 1]} : vector<2x64x32xf32> to vector<2x1x32xf32>
    %168 = vector.shape_cast %167 : vector<2x1x32xf32> to vector<2x32xf32>
    %c0_164 = arith.constant 0 : index
    %c448 = arith.constant 448 : index
    %169 = vector.load %arg15[%c0_164, %c448] : memref<2x2048xf32, #tpu.memory_space<vmem>>, vector<2x32xf32>
    tpu.vector_store %arg15[%c0_164, %c448], %168 {strides = array<i32>} : memref<2x2048xf32, #tpu.memory_space<vmem>>, vector<2x32xf32>,
    %170 = vector.extract_strided_slice %124 {offsets = [0, 15, 0], sizes = [2, 1, 32], strides = [1, 1, 1]} : vector<2x64x32xf32> to vector<2x1x32xf32>
    %171 = vector.shape_cast %170 : vector<2x1x32xf32> to vector<2x32xf32>
    %c0_165 = arith.constant 0 : index
    %c480 = arith.constant 480 : index
    %172 = vector.load %arg15[%c0_165, %c480] : memref<2x2048xf32, #tpu.memory_space<vmem>>, vector<2x32xf32>
    tpu.vector_store %arg15[%c0_165, %c480], %171 {strides = array<i32>} : memref<2x2048xf32, #tpu.memory_space<vmem>>, vector<2x32xf32>,
    %173 = vector.extract_strided_slice %124 {offsets = [0, 16, 0], sizes = [2, 1, 32], strides = [1, 1, 1]} : vector<2x64x32xf32> to vector<2x1x32xf32>
    %174 = vector.shape_cast %173 : vector<2x1x32xf32> to vector<2x32xf32>
    %c0_166 = arith.constant 0 : index
    %c512 = arith.constant 512 : index
    %175 = vector.load %arg15[%c0_166, %c512] : memref<2x2048xf32, #tpu.memory_space<vmem>>, vector<2x32xf32>
    tpu.vector_store %arg15[%c0_166, %c512], %174 {strides = array<i32>} : memref<2x2048xf32, #tpu.memory_space<vmem>>, vector<2x32xf32>,
    %176 = vector.extract_strided_slice %124 {offsets = [0, 17, 0], sizes = [2, 1, 32], strides = [1, 1, 1]} : vector<2x64x32xf32> to vector<2x1x32xf32>
    %177 = vector.shape_cast %176 : vector<2x1x32xf32> to vector<2x32xf32>
    %c0_167 = arith.constant 0 : index
    %c544 = arith.constant 544 : index
    %178 = vector.load %arg15[%c0_167, %c544] : memref<2x2048xf32, #tpu.memory_space<vmem>>, vector<2x32xf32>
    tpu.vector_store %arg15[%c0_167, %c544], %177 {strides = array<i32>} : memref<2x2048xf32, #tpu.memory_space<vmem>>, vector<2x32xf32>,
    %179 = vector.extract_strided_slice %124 {offsets = [0, 18, 0], sizes = [2, 1, 32], strides = [1, 1, 1]} : vector<2x64x32xf32> to vector<2x1x32xf32>
    %180 = vector.shape_cast %179 : vector<2x1x32xf32> to vector<2x32xf32>
    %c0_168 = arith.constant 0 : index
    %c576 = arith.constant 576 : index
    %181 = vector.load %arg15[%c0_168, %c576] : memref<2x2048xf32, #tpu.memory_space<vmem>>, vector<2x32xf32>
    tpu.vector_store %arg15[%c0_168, %c576], %180 {strides = array<i32>} : memref<2x2048xf32, #tpu.memory_space<vmem>>, vector<2x32xf32>,
    %182 = vector.extract_strided_slice %124 {offsets = [0, 19, 0], sizes = [2, 1, 32], strides = [1, 1, 1]} : vector<2x64x32xf32> to vector<2x1x32xf32>
    %183 = vector.shape_cast %182 : vector<2x1x32xf32> to vector<2x32xf32>
    %c0_169 = arith.constant 0 : index
    %c608 = arith.constant 608 : index
    %184 = vector.load %arg15[%c0_169, %c608] : memref<2x2048xf32, #tpu.memory_space<vmem>>, vector<2x32xf32>
    tpu.vector_store %arg15[%c0_169, %c608], %183 {strides = array<i32>} : memref<2x2048xf32, #tpu.memory_space<vmem>>, vector<2x32xf32>,
    %185 = vector.extract_strided_slice %124 {offsets = [0, 20, 0], sizes = [2, 1, 32], strides = [1, 1, 1]} : vector<2x64x32xf32> to vector<2x1x32xf32>
    %186 = vector.shape_cast %185 : vector<2x1x32xf32> to vector<2x32xf32>
    %c0_170 = arith.constant 0 : index
    %c640 = arith.constant 640 : index
    %187 = vector.load %arg15[%c0_170, %c640] : memref<2x2048xf32, #tpu.memory_space<vmem>>, vector<2x32xf32>
    tpu.vector_store %arg15[%c0_170, %c640], %186 {strides = array<i32>} : memref<2x2048xf32, #tpu.memory_space<vmem>>, vector<2x32xf32>,
    %188 = vector.extract_strided_slice %124 {offsets = [0, 21, 0], sizes = [2, 1, 32], strides = [1, 1, 1]} : vector<2x64x32xf32> to vector<2x1x32xf32>
    %189 = vector.shape_cast %188 : vector<2x1x32xf32> to vector<2x32xf32>
    %c0_171 = arith.constant 0 : index
    %c672 = arith.constant 672 : index
    %190 = vector.load %arg15[%c0_171, %c672] : memref<2x2048xf32, #tpu.memory_space<vmem>>, vector<2x32xf32>
    tpu.vector_store %arg15[%c0_171, %c672], %189 {strides = array<i32>} : memref<2x2048xf32, #tpu.memory_space<vmem>>, vector<2x32xf32>,
    %191 = vector.extract_strided_slice %124 {offsets = [0, 22, 0], sizes = [2, 1, 32], strides = [1, 1, 1]} : vector<2x64x32xf32> to vector<2x1x32xf32>
    %192 = vector.shape_cast %191 : vector<2x1x32xf32> to vector<2x32xf32>
    %c0_172 = arith.constant 0 : index
    %c704 = arith.constant 704 : index
    %193 = vector.load %arg15[%c0_172, %c704] : memref<2x2048xf32, #tpu.memory_space<vmem>>, vector<2x32xf32>
    tpu.vector_store %arg15[%c0_172, %c704], %192 {strides = array<i32>} : memref<2x2048xf32, #tpu.memory_space<vmem>>, vector<2x32xf32>,
    %194 = vector.extract_strided_slice %124 {offsets = [0, 23, 0], sizes = [2, 1, 32], strides = [1, 1, 1]} : vector<2x64x32xf32> to vector<2x1x32xf32>
    %195 = vector.shape_cast %194 : vector<2x1x32xf32> to vector<2x32xf32>
    %c0_173 = arith.constant 0 : index
    %c736 = arith.constant 736 : index
    %196 = vector.load %arg15[%c0_173, %c736] : memref<2x2048xf32, #tpu.memory_space<vmem>>, vector<2x32xf32>
    tpu.vector_store %arg15[%c0_173, %c736], %195 {strides = array<i32>} : memref<2x2048xf32, #tpu.memory_space<vmem>>, vector<2x32xf32>,
    %197 = vector.extract_strided_slice %124 {offsets = [0, 24, 0], sizes = [2, 1, 32], strides = [1, 1, 1]} : vector<2x64x32xf32> to vector<2x1x32xf32>
    %198 = vector.shape_cast %197 : vector<2x1x32xf32> to vector<2x32xf32>
    %c0_174 = arith.constant 0 : index
    %c768 = arith.constant 768 : index
    %199 = vector.load %arg15[%c0_174, %c768] : memref<2x2048xf32, #tpu.memory_space<vmem>>, vector<2x32xf32>
    tpu.vector_store %arg15[%c0_174, %c768], %198 {strides = array<i32>} : memref<2x2048xf32, #tpu.memory_space<vmem>>, vector<2x32xf32>,
    %200 = vector.extract_strided_slice %124 {offsets = [0, 25, 0], sizes = [2, 1, 32], strides = [1, 1, 1]} : vector<2x64x32xf32> to vector<2x1x32xf32>
    %201 = vector.shape_cast %200 : vector<2x1x32xf32> to vector<2x32xf32>
    %c0_175 = arith.constant 0 : index
    %c800 = arith.constant 800 : index
    %202 = vector.load %arg15[%c0_175, %c800] : memref<2x2048xf32, #tpu.memory_space<vmem>>, vector<2x32xf32>
    tpu.vector_store %arg15[%c0_175, %c800], %201 {strides = array<i32>} : memref<2x2048xf32, #tpu.memory_space<vmem>>, vector<2x32xf32>,
    %203 = vector.extract_strided_slice %124 {offsets = [0, 26, 0], sizes = [2, 1, 32], strides = [1, 1, 1]} : vector<2x64x32xf32> to vector<2x1x32xf32>
    %204 = vector.shape_cast %203 : vector<2x1x32xf32> to vector<2x32xf32>
    %c0_176 = arith.constant 0 : index
    %c832 = arith.constant 832 : index
    %205 = vector.load %arg15[%c0_176, %c832] : memref<2x2048xf32, #tpu.memory_space<vmem>>, vector<2x32xf32>
    tpu.vector_store %arg15[%c0_176, %c832], %204 {strides = array<i32>} : memref<2x2048xf32, #tpu.memory_space<vmem>>, vector<2x32xf32>,
    %206 = vector.extract_strided_slice %124 {offsets = [0, 27, 0], sizes = [2, 1, 32], strides = [1, 1, 1]} : vector<2x64x32xf32> to vector<2x1x32xf32>
    %207 = vector.shape_cast %206 : vector<2x1x32xf32> to vector<2x32xf32>
    %c0_177 = arith.constant 0 : index
    %c864 = arith.constant 864 : index
    %208 = vector.load %arg15[%c0_177, %c864] : memref<2x2048xf32, #tpu.memory_space<vmem>>, vector<2x32xf32>
    tpu.vector_store %arg15[%c0_177, %c864], %207 {strides = array<i32>} : memref<2x2048xf32, #tpu.memory_space<vmem>>, vector<2x32xf32>,
    %209 = vector.extract_strided_slice %124 {offsets = [0, 28, 0], sizes = [2, 1, 32], strides = [1, 1, 1]} : vector<2x64x32xf32> to vector<2x1x32xf32>
    %210 = vector.shape_cast %209 : vector<2x1x32xf32> to vector<2x32xf32>
    %c0_178 = arith.constant 0 : index
    %c896 = arith.constant 896 : index
    %211 = vector.load %arg15[%c0_178, %c896] : memref<2x2048xf32, #tpu.memory_space<vmem>>, vector<2x32xf32>
    tpu.vector_store %arg15[%c0_178, %c896], %210 {strides = array<i32>} : memref<2x2048xf32, #tpu.memory_space<vmem>>, vector<2x32xf32>,
    %212 = vector.extract_strided_slice %124 {offsets = [0, 29, 0], sizes = [2, 1, 32], strides = [1, 1, 1]} : vector<2x64x32xf32> to vector<2x1x32xf32>
    %213 = vector.shape_cast %212 : vector<2x1x32xf32> to vector<2x32xf32>
    %c0_179 = arith.constant 0 : index
    %c928 = arith.constant 928 : index
    %214 = vector.load %arg15[%c0_179, %c928] : memref<2x2048xf32, #tpu.memory_space<vmem>>, vector<2x32xf32>
    tpu.vector_store %arg15[%c0_179, %c928], %213 {strides = array<i32>} : memref<2x2048xf32, #tpu.memory_space<vmem>>, vector<2x32xf32>,
    %215 = vector.extract_strided_slice %124 {offsets = [0, 30, 0], sizes = [2, 1, 32], strides = [1, 1, 1]} : vector<2x64x32xf32> to vector<2x1x32xf32>
    %216 = vector.shape_cast %215 : vector<2x1x32xf32> to vector<2x32xf32>
    %c0_180 = arith.constant 0 : index
    %c960 = arith.constant 960 : index
    %217 = vector.load %arg15[%c0_180, %c960] : memref<2x2048xf32, #tpu.memory_space<vmem>>, vector<2x32xf32>
    tpu.vector_store %arg15[%c0_180, %c960], %216 {strides = array<i32>} : memref<2x2048xf32, #tpu.memory_space<vmem>>, vector<2x32xf32>,
    %218 = vector.extract_strided_slice %124 {offsets = [0, 31, 0], sizes = [2, 1, 32], strides = [1, 1, 1]} : vector<2x64x32xf32> to vector<2x1x32xf32>
    %219 = vector.shape_cast %218 : vector<2x1x32xf32> to vector<2x32xf32>
    %c0_181 = arith.constant 0 : index
    %c992 = arith.constant 992 : index
    %220 = vector.load %arg15[%c0_181, %c992] : memref<2x2048xf32, #tpu.memory_space<vmem>>, vector<2x32xf32>
    tpu.vector_store %arg15[%c0_181, %c992], %219 {strides = array<i32>} : memref<2x2048xf32, #tpu.memory_space<vmem>>, vector<2x32xf32>,
    %221 = vector.extract_strided_slice %124 {offsets = [0, 32, 0], sizes = [2, 1, 32], strides = [1, 1, 1]} : vector<2x64x32xf32> to vector<2x1x32xf32>
    %222 = vector.shape_cast %221 : vector<2x1x32xf32> to vector<2x32xf32>
    %c0_182 = arith.constant 0 : index
    %c1024 = arith.constant 1024 : index
    %223 = vector.load %arg15[%c0_182, %c1024] : memref<2x2048xf32, #tpu.memory_space<vmem>>, vector<2x32xf32>
    tpu.vector_store %arg15[%c0_182, %c1024], %222 {strides = array<i32>} : memref<2x2048xf32, #tpu.memory_space<vmem>>, vector<2x32xf32>,
    %224 = vector.extract_strided_slice %124 {offsets = [0, 33, 0], sizes = [2, 1, 32], strides = [1, 1, 1]} : vector<2x64x32xf32> to vector<2x1x32xf32>
    %225 = vector.shape_cast %224 : vector<2x1x32xf32> to vector<2x32xf32>
    %c0_183 = arith.constant 0 : index
    %c1056 = arith.constant 1056 : index
    %226 = vector.load %arg15[%c0_183, %c1056] : memref<2x2048xf32, #tpu.memory_space<vmem>>, vector<2x32xf32>
    tpu.vector_store %arg15[%c0_183, %c1056], %225 {strides = array<i32>} : memref<2x2048xf32, #tpu.memory_space<vmem>>, vector<2x32xf32>,
    %227 = vector.extract_strided_slice %124 {offsets = [0, 34, 0], sizes = [2, 1, 32], strides = [1, 1, 1]} : vector<2x64x32xf32> to vector<2x1x32xf32>
    %228 = vector.shape_cast %227 : vector<2x1x32xf32> to vector<2x32xf32>
    %c0_184 = arith.constant 0 : index
    %c1088 = arith.constant 1088 : index
    %229 = vector.load %arg15[%c0_184, %c1088] : memref<2x2048xf32, #tpu.memory_space<vmem>>, vector<2x32xf32>
    tpu.vector_store %arg15[%c0_184, %c1088], %228 {strides = array<i32>} : memref<2x2048xf32, #tpu.memory_space<vmem>>, vector<2x32xf32>,
    %230 = vector.extract_strided_slice %124 {offsets = [0, 35, 0], sizes = [2, 1, 32], strides = [1, 1, 1]} : vector<2x64x32xf32> to vector<2x1x32xf32>
    %231 = vector.shape_cast %230 : vector<2x1x32xf32> to vector<2x32xf32>
    %c0_185 = arith.constant 0 : index
    %c1120 = arith.constant 1120 : index
    %232 = vector.load %arg15[%c0_185, %c1120] : memref<2x2048xf32, #tpu.memory_space<vmem>>, vector<2x32xf32>
    tpu.vector_store %arg15[%c0_185, %c1120], %231 {strides = array<i32>} : memref<2x2048xf32, #tpu.memory_space<vmem>>, vector<2x32xf32>,
    %233 = vector.extract_strided_slice %124 {offsets = [0, 36, 0], sizes = [2, 1, 32], strides = [1, 1, 1]} : vector<2x64x32xf32> to vector<2x1x32xf32>
    %234 = vector.shape_cast %233 : vector<2x1x32xf32> to vector<2x32xf32>
    %c0_186 = arith.constant 0 : index
    %c1152 = arith.constant 1152 : index
    %235 = vector.load %arg15[%c0_186, %c1152] : memref<2x2048xf32, #tpu.memory_space<vmem>>, vector<2x32xf32>
    tpu.vector_store %arg15[%c0_186, %c1152], %234 {strides = array<i32>} : memref<2x2048xf32, #tpu.memory_space<vmem>>, vector<2x32xf32>,
    %236 = vector.extract_strided_slice %124 {offsets = [0, 37, 0], sizes = [2, 1, 32], strides = [1, 1, 1]} : vector<2x64x32xf32> to vector<2x1x32xf32>
    %237 = vector.shape_cast %236 : vector<2x1x32xf32> to vector<2x32xf32>
    %c0_187 = arith.constant 0 : index
    %c1184 = arith.constant 1184 : index
    %238 = vector.load %arg15[%c0_187, %c1184] : memref<2x2048xf32, #tpu.memory_space<vmem>>, vector<2x32xf32>
    tpu.vector_store %arg15[%c0_187, %c1184], %237 {strides = array<i32>} : memref<2x2048xf32, #tpu.memory_space<vmem>>, vector<2x32xf32>,
    %239 = vector.extract_strided_slice %124 {offsets = [0, 38, 0], sizes = [2, 1, 32], strides = [1, 1, 1]} : vector<2x64x32xf32> to vector<2x1x32xf32>
    %240 = vector.shape_cast %239 : vector<2x1x32xf32> to vector<2x32xf32>
    %c0_188 = arith.constant 0 : index
    %c1216 = arith.constant 1216 : index
    %241 = vector.load %arg15[%c0_188, %c1216] : memref<2x2048xf32, #tpu.memory_space<vmem>>, vector<2x32xf32>
    tpu.vector_store %arg15[%c0_188, %c1216], %240 {strides = array<i32>} : memref<2x2048xf32, #tpu.memory_space<vmem>>, vector<2x32xf32>,
    %242 = vector.extract_strided_slice %124 {offsets = [0, 39, 0], sizes = [2, 1, 32], strides = [1, 1, 1]} : vector<2x64x32xf32> to vector<2x1x32xf32>
    %243 = vector.shape_cast %242 : vector<2x1x32xf32> to vector<2x32xf32>
    %c0_189 = arith.constant 0 : index
    %c1248 = arith.constant 1248 : index
    %244 = vector.load %arg15[%c0_189, %c1248] : memref<2x2048xf32, #tpu.memory_space<vmem>>, vector<2x32xf32>
    tpu.vector_store %arg15[%c0_189, %c1248], %243 {strides = array<i32>} : memref<2x2048xf32, #tpu.memory_space<vmem>>, vector<2x32xf32>,
    %245 = vector.extract_strided_slice %124 {offsets = [0, 40, 0], sizes = [2, 1, 32], strides = [1, 1, 1]} : vector<2x64x32xf32> to vector<2x1x32xf32>
    %246 = vector.shape_cast %245 : vector<2x1x32xf32> to vector<2x32xf32>
    %c0_190 = arith.constant 0 : index
    %c1280 = arith.constant 1280 : index
    %247 = vector.load %arg15[%c0_190, %c1280] : memref<2x2048xf32, #tpu.memory_space<vmem>>, vector<2x32xf32>
    tpu.vector_store %arg15[%c0_190, %c1280], %246 {strides = array<i32>} : memref<2x2048xf32, #tpu.memory_space<vmem>>, vector<2x32xf32>,
    %248 = vector.extract_strided_slice %124 {offsets = [0, 41, 0], sizes = [2, 1, 32], strides = [1, 1, 1]} : vector<2x64x32xf32> to vector<2x1x32xf32>
    %249 = vector.shape_cast %248 : vector<2x1x32xf32> to vector<2x32xf32>
    %c0_191 = arith.constant 0 : index
    %c1312 = arith.constant 1312 : index
    %250 = vector.load %arg15[%c0_191, %c1312] : memref<2x2048xf32, #tpu.memory_space<vmem>>, vector<2x32xf32>
    tpu.vector_store %arg15[%c0_191, %c1312], %249 {strides = array<i32>} : memref<2x2048xf32, #tpu.memory_space<vmem>>, vector<2x32xf32>,
    %251 = vector.extract_strided_slice %124 {offsets = [0, 42, 0], sizes = [2, 1, 32], strides = [1, 1, 1]} : vector<2x64x32xf32> to vector<2x1x32xf32>
    %252 = vector.shape_cast %251 : vector<2x1x32xf32> to vector<2x32xf32>
    %c0_192 = arith.constant 0 : index
    %c1344 = arith.constant 1344 : index
    %253 = vector.load %arg15[%c0_192, %c1344] : memref<2x2048xf32, #tpu.memory_space<vmem>>, vector<2x32xf32>
    tpu.vector_store %arg15[%c0_192, %c1344], %252 {strides = array<i32>} : memref<2x2048xf32, #tpu.memory_space<vmem>>, vector<2x32xf32>,
    %254 = vector.extract_strided_slice %124 {offsets = [0, 43, 0], sizes = [2, 1, 32], strides = [1, 1, 1]} : vector<2x64x32xf32> to vector<2x1x32xf32>
    %255 = vector.shape_cast %254 : vector<2x1x32xf32> to vector<2x32xf32>
    %c0_193 = arith.constant 0 : index
    %c1376 = arith.constant 1376 : index
    %256 = vector.load %arg15[%c0_193, %c1376] : memref<2x2048xf32, #tpu.memory_space<vmem>>, vector<2x32xf32>
    tpu.vector_store %arg15[%c0_193, %c1376], %255 {strides = array<i32>} : memref<2x2048xf32, #tpu.memory_space<vmem>>, vector<2x32xf32>,
    %257 = vector.extract_strided_slice %124 {offsets = [0, 44, 0], sizes = [2, 1, 32], strides = [1, 1, 1]} : vector<2x64x32xf32> to vector<2x1x32xf32>
    %258 = vector.shape_cast %257 : vector<2x1x32xf32> to vector<2x32xf32>
    %c0_194 = arith.constant 0 : index
    %c1408 = arith.constant 1408 : index
    %259 = vector.load %arg15[%c0_194, %c1408] : memref<2x2048xf32, #tpu.memory_space<vmem>>, vector<2x32xf32>
    tpu.vector_store %arg15[%c0_194, %c1408], %258 {strides = array<i32>} : memref<2x2048xf32, #tpu.memory_space<vmem>>, vector<2x32xf32>,
    %260 = vector.extract_strided_slice %124 {offsets = [0, 45, 0], sizes = [2, 1, 32], strides = [1, 1, 1]} : vector<2x64x32xf32> to vector<2x1x32xf32>
    %261 = vector.shape_cast %260 : vector<2x1x32xf32> to vector<2x32xf32>
    %c0_195 = arith.constant 0 : index
    %c1440 = arith.constant 1440 : index
    %262 = vector.load %arg15[%c0_195, %c1440] : memref<2x2048xf32, #tpu.memory_space<vmem>>, vector<2x32xf32>
    tpu.vector_store %arg15[%c0_195, %c1440], %261 {strides = array<i32>} : memref<2x2048xf32, #tpu.memory_space<vmem>>, vector<2x32xf32>,
    %263 = vector.extract_strided_slice %124 {offsets = [0, 46, 0], sizes = [2, 1, 32], strides = [1, 1, 1]} : vector<2x64x32xf32> to vector<2x1x32xf32>
    %264 = vector.shape_cast %263 : vector<2x1x32xf32> to vector<2x32xf32>
    %c0_196 = arith.constant 0 : index
    %c1472 = arith.constant 1472 : index
    %265 = vector.load %arg15[%c0_196, %c1472] : memref<2x2048xf32, #tpu.memory_space<vmem>>, vector<2x32xf32>
    tpu.vector_store %arg15[%c0_196, %c1472], %264 {strides = array<i32>} : memref<2x2048xf32, #tpu.memory_space<vmem>>, vector<2x32xf32>,
    %266 = vector.extract_strided_slice %124 {offsets = [0, 47, 0], sizes = [2, 1, 32], strides = [1, 1, 1]} : vector<2x64x32xf32> to vector<2x1x32xf32>
    %267 = vector.shape_cast %266 : vector<2x1x32xf32> to vector<2x32xf32>
    %c0_197 = arith.constant 0 : index
    %c1504 = arith.constant 1504 : index
    %268 = vector.load %arg15[%c0_197, %c1504] : memref<2x2048xf32, #tpu.memory_space<vmem>>, vector<2x32xf32>
    tpu.vector_store %arg15[%c0_197, %c1504], %267 {strides = array<i32>} : memref<2x2048xf32, #tpu.memory_space<vmem>>, vector<2x32xf32>,
    %269 = vector.extract_strided_slice %124 {offsets = [0, 48, 0], sizes = [2, 1, 32], strides = [1, 1, 1]} : vector<2x64x32xf32> to vector<2x1x32xf32>
    %270 = vector.shape_cast %269 : vector<2x1x32xf32> to vector<2x32xf32>
    %c0_198 = arith.constant 0 : index
    %c1536 = arith.constant 1536 : index
    %271 = vector.load %arg15[%c0_198, %c1536] : memref<2x2048xf32, #tpu.memory_space<vmem>>, vector<2x32xf32>
    tpu.vector_store %arg15[%c0_198, %c1536], %270 {strides = array<i32>} : memref<2x2048xf32, #tpu.memory_space<vmem>>, vector<2x32xf32>,
    %272 = vector.extract_strided_slice %124 {offsets = [0, 49, 0], sizes = [2, 1, 32], strides = [1, 1, 1]} : vector<2x64x32xf32> to vector<2x1x32xf32>
    %273 = vector.shape_cast %272 : vector<2x1x32xf32> to vector<2x32xf32>
    %c0_199 = arith.constant 0 : index
    %c1568 = arith.constant 1568 : index
    %274 = vector.load %arg15[%c0_199, %c1568] : memref<2x2048xf32, #tpu.memory_space<vmem>>, vector<2x32xf32>
    tpu.vector_store %arg15[%c0_199, %c1568], %273 {strides = array<i32>} : memref<2x2048xf32, #tpu.memory_space<vmem>>, vector<2x32xf32>,
    %275 = vector.extract_strided_slice %124 {offsets = [0, 50, 0], sizes = [2, 1, 32], strides = [1, 1, 1]} : vector<2x64x32xf32> to vector<2x1x32xf32>
    %276 = vector.shape_cast %275 : vector<2x1x32xf32> to vector<2x32xf32>
    %c0_200 = arith.constant 0 : index
    %c1600 = arith.constant 1600 : index
    %277 = vector.load %arg15[%c0_200, %c1600] : memref<2x2048xf32, #tpu.memory_space<vmem>>, vector<2x32xf32>
    tpu.vector_store %arg15[%c0_200, %c1600], %276 {strides = array<i32>} : memref<2x2048xf32, #tpu.memory_space<vmem>>, vector<2x32xf32>,
    %278 = vector.extract_strided_slice %124 {offsets = [0, 51, 0], sizes = [2, 1, 32], strides = [1, 1, 1]} : vector<2x64x32xf32> to vector<2x1x32xf32>
    %279 = vector.shape_cast %278 : vector<2x1x32xf32> to vector<2x32xf32>
    %c0_201 = arith.constant 0 : index
    %c1632 = arith.constant 1632 : index
    %280 = vector.load %arg15[%c0_201, %c1632] : memref<2x2048xf32, #tpu.memory_space<vmem>>, vector<2x32xf32>
    tpu.vector_store %arg15[%c0_201, %c1632], %279 {strides = array<i32>} : memref<2x2048xf32, #tpu.memory_space<vmem>>, vector<2x32xf32>,
    %281 = vector.extract_strided_slice %124 {offsets = [0, 52, 0], sizes = [2, 1, 32], strides = [1, 1, 1]} : vector<2x64x32xf32> to vector<2x1x32xf32>
    %282 = vector.shape_cast %281 : vector<2x1x32xf32> to vector<2x32xf32>
    %c0_202 = arith.constant 0 : index
    %c1664 = arith.constant 1664 : index
    %283 = vector.load %arg15[%c0_202, %c1664] : memref<2x2048xf32, #tpu.memory_space<vmem>>, vector<2x32xf32>
    tpu.vector_store %arg15[%c0_202, %c1664], %282 {strides = array<i32>} : memref<2x2048xf32, #tpu.memory_space<vmem>>, vector<2x32xf32>,
    %284 = vector.extract_strided_slice %124 {offsets = [0, 53, 0], sizes = [2, 1, 32], strides = [1, 1, 1]} : vector<2x64x32xf32> to vector<2x1x32xf32>
    %285 = vector.shape_cast %284 : vector<2x1x32xf32> to vector<2x32xf32>
    %c0_203 = arith.constant 0 : index
    %c1696 = arith.constant 1696 : index
    %286 = vector.load %arg15[%c0_203, %c1696] : memref<2x2048xf32, #tpu.memory_space<vmem>>, vector<2x32xf32>
    tpu.vector_store %arg15[%c0_203, %c1696], %285 {strides = array<i32>} : memref<2x2048xf32, #tpu.memory_space<vmem>>, vector<2x32xf32>,
    %287 = vector.extract_strided_slice %124 {offsets = [0, 54, 0], sizes = [2, 1, 32], strides = [1, 1, 1]} : vector<2x64x32xf32> to vector<2x1x32xf32>
    %288 = vector.shape_cast %287 : vector<2x1x32xf32> to vector<2x32xf32>
    %c0_204 = arith.constant 0 : index
    %c1728 = arith.constant 1728 : index
    %289 = vector.load %arg15[%c0_204, %c1728] : memref<2x2048xf32, #tpu.memory_space<vmem>>, vector<2x32xf32>
    tpu.vector_store %arg15[%c0_204, %c1728], %288 {strides = array<i32>} : memref<2x2048xf32, #tpu.memory_space<vmem>>, vector<2x32xf32>,
    %290 = vector.extract_strided_slice %124 {offsets = [0, 55, 0], sizes = [2, 1, 32], strides = [1, 1, 1]} : vector<2x64x32xf32> to vector<2x1x32xf32>
    %291 = vector.shape_cast %290 : vector<2x1x32xf32> to vector<2x32xf32>
    %c0_205 = arith.constant 0 : index
    %c1760 = arith.constant 1760 : index
    %292 = vector.load %arg15[%c0_205, %c1760] : memref<2x2048xf32, #tpu.memory_space<vmem>>, vector<2x32xf32>
    tpu.vector_store %arg15[%c0_205, %c1760], %291 {strides = array<i32>} : memref<2x2048xf32, #tpu.memory_space<vmem>>, vector<2x32xf32>,
    %293 = vector.extract_strided_slice %124 {offsets = [0, 56, 0], sizes = [2, 1, 32], strides = [1, 1, 1]} : vector<2x64x32xf32> to vector<2x1x32xf32>
    %294 = vector.shape_cast %293 : vector<2x1x32xf32> to vector<2x32xf32>
    %c0_206 = arith.constant 0 : index
    %c1792 = arith.constant 1792 : index
    %295 = vector.load %arg15[%c0_206, %c1792] : memref<2x2048xf32, #tpu.memory_space<vmem>>, vector<2x32xf32>
    tpu.vector_store %arg15[%c0_206, %c1792], %294 {strides = array<i32>} : memref<2x2048xf32, #tpu.memory_space<vmem>>, vector<2x32xf32>,
    %296 = vector.extract_strided_slice %124 {offsets = [0, 57, 0], sizes = [2, 1, 32], strides = [1, 1, 1]} : vector<2x64x32xf32> to vector<2x1x32xf32>
    %297 = vector.shape_cast %296 : vector<2x1x32xf32> to vector<2x32xf32>
    %c0_207 = arith.constant 0 : index
    %c1824 = arith.constant 1824 : index
    %298 = vector.load %arg15[%c0_207, %c1824] : memref<2x2048xf32, #tpu.memory_space<vmem>>, vector<2x32xf32>
    tpu.vector_store %arg15[%c0_207, %c1824], %297 {strides = array<i32>} : memref<2x2048xf32, #tpu.memory_space<vmem>>, vector<2x32xf32>,
    %299 = vector.extract_strided_slice %124 {offsets = [0, 58, 0], sizes = [2, 1, 32], strides = [1, 1, 1]} : vector<2x64x32xf32> to vector<2x1x32xf32>
    %300 = vector.shape_cast %299 : vector<2x1x32xf32> to vector<2x32xf32>
    %c0_208 = arith.constant 0 : index
    %c1856 = arith.constant 1856 : index
    %301 = vector.load %arg15[%c0_208, %c1856] : memref<2x2048xf32, #tpu.memory_space<vmem>>, vector<2x32xf32>
    tpu.vector_store %arg15[%c0_208, %c1856], %300 {strides = array<i32>} : memref<2x2048xf32, #tpu.memory_space<vmem>>, vector<2x32xf32>,
    %302 = vector.extract_strided_slice %124 {offsets = [0, 59, 0], sizes = [2, 1, 32], strides = [1, 1, 1]} : vector<2x64x32xf32> to vector<2x1x32xf32>
    %303 = vector.shape_cast %302 : vector<2x1x32xf32> to vector<2x32xf32>
    %c0_209 = arith.constant 0 : index
    %c1888 = arith.constant 1888 : index
    %304 = vector.load %arg15[%c0_209, %c1888] : memref<2x2048xf32, #tpu.memory_space<vmem>>, vector<2x32xf32>
    tpu.vector_store %arg15[%c0_209, %c1888], %303 {strides = array<i32>} : memref<2x2048xf32, #tpu.memory_space<vmem>>, vector<2x32xf32>,
    %305 = vector.extract_strided_slice %124 {offsets = [0, 60, 0], sizes = [2, 1, 32], strides = [1, 1, 1]} : vector<2x64x32xf32> to vector<2x1x32xf32>
    %306 = vector.shape_cast %305 : vector<2x1x32xf32> to vector<2x32xf32>
    %c0_210 = arith.constant 0 : index
    %c1920 = arith.constant 1920 : index
    %307 = vector.load %arg15[%c0_210, %c1920] : memref<2x2048xf32, #tpu.memory_space<vmem>>, vector<2x32xf32>
    tpu.vector_store %arg15[%c0_210, %c1920], %306 {strides = array<i32>} : memref<2x2048xf32, #tpu.memory_space<vmem>>, vector<2x32xf32>,
    %308 = vector.extract_strided_slice %124 {offsets = [0, 61, 0], sizes = [2, 1, 32], strides = [1, 1, 1]} : vector<2x64x32xf32> to vector<2x1x32xf32>
    %309 = vector.shape_cast %308 : vector<2x1x32xf32> to vector<2x32xf32>
    %c0_211 = arith.constant 0 : index
    %c1952 = arith.constant 1952 : index
    %310 = vector.load %arg15[%c0_211, %c1952] : memref<2x2048xf32, #tpu.memory_space<vmem>>, vector<2x32xf32>
    tpu.vector_store %arg15[%c0_211, %c1952], %309 {strides = array<i32>} : memref<2x2048xf32, #tpu.memory_space<vmem>>, vector<2x32xf32>,
    %311 = vector.extract_strided_slice %124 {offsets = [0, 62, 0], sizes = [2, 1, 32], strides = [1, 1, 1]} : vector<2x64x32xf32> to vector<2x1x32xf32>
    %312 = vector.shape_cast %311 : vector<2x1x32xf32> to vector<2x32xf32>
    %c0_212 = arith.constant 0 : index
    %c1984 = arith.constant 1984 : index
    %313 = vector.load %arg15[%c0_212, %c1984] : memref<2x2048xf32, #tpu.memory_space<vmem>>, vector<2x32xf32>
    tpu.vector_store %arg15[%c0_212, %c1984], %312 {strides = array<i32>} : memref<2x2048xf32, #tpu.memory_space<vmem>>, vector<2x32xf32>,
    %314 = vector.extract_strided_slice %124 {offsets = [0, 63, 0], sizes = [2, 1, 32], strides = [1, 1, 1]} : vector<2x64x32xf32> to vector<2x1x32xf32>
    %315 = vector.shape_cast %314 : vector<2x1x32xf32> to vector<2x32xf32>
    %c0_213 = arith.constant 0 : index
    %c2016 = arith.constant 2016 : index
    %316 = vector.load %arg15[%c0_213, %c2016] : memref<2x2048xf32, #tpu.memory_space<vmem>>, vector<2x32xf32>
    tpu.vector_store %arg15[%c0_213, %c2016], %315 {strides = array<i32>} : memref<2x2048xf32, #tpu.memory_space<vmem>>, vector<2x32xf32>,
    %c0_214 = arith.constant 0 : index
    %c0_215 = arith.constant 0 : index
    %317 = vector.load %arg15[%c0_214, %c0_215] : memref<2x2048xf32, #tpu.memory_space<vmem>>, vector<2x2048xf32>
    %318 = arith.truncf %317 : vector<2x2048xf32> to vector<2x2048xbf16>
    %c0_i32_216 = arith.constant 0 : i32
    %319 = tpu.memref_slice %arg18[%c0_i32_216] : memref<2x!tpu.dma_semaphore, #tpu.memory_space<semaphore_mem>> -> memref<1x!tpu.dma_semaphore, #tpu.memory_space<semaphore_mem>>
    %320 = tpu.memref_squeeze %319 : memref<1x!tpu.dma_semaphore, #tpu.memory_space<semaphore_mem>> -> memref<!tpu.dma_semaphore, #tpu.memory_space<semaphore_mem>>
    tpu.wait_dma2 semaphore(%320 : memref<!tpu.dma_semaphore, #tpu.memory_space<semaphore_mem>>) src(%arg6 : memref<2048x256xbf16, #tpu.memory_space<any>>) dst(%arg16 : memref<2048x256xbf16, #tpu.memory_space<vmem>>)
    %c0_217 = arith.constant 0 : index
    %c0_218 = arith.constant 0 : index
    %321 = vector.load %arg1[%c0_217, %c0_218] : memref<2x8xf32, #tpu.memory_space<vmem>>, vector<2x8xf32>
    %322 = arith.truncf %321 : vector<2x8xf32> to vector<2x8xbf16>
    %c0_219 = arith.constant 0 : index
    %c0_220 = arith.constant 0 : index
    %323 = vector.load %arg7[%c0_219, %c0_220] : memref<8x256xbf16, #tpu.memory_space<vmem>>, vector<8x256xbf16>
    %cst_221 = arith.constant dense<0.000000e+00> : vector<2x256xf32>
    %324 = tpu.matmul %322, %323, %cst_221 {dimension_numbers = #tpu.dot_dimension_numbers<[1], [0], [0], [1], [0, 0, 1, 1], [], []>} : vector<2x8xbf16>, vector<8x256xbf16>, vector<2x256xf32> -> vector<2x256xf32>
    %325 = vector.extract_strided_slice %318 {offsets = [0, 0], sizes = [2, 256], strides = [1, 1]} : vector<2x2048xbf16> to vector<2x256xbf16>
    %c0_222 = arith.constant 0 : index
    %c0_223 = arith.constant 0 : index
    %326 = vector.load %arg16[%c0_222, %c0_223] : memref<2048x256xbf16, #tpu.memory_space<vmem>>, vector<256x256xbf16>
    %cst_224 = arith.constant dense<0.000000e+00> : vector<2x256xf32>
    %327 = tpu.matmul %325, %326, %cst_224 {dimension_numbers = #tpu.dot_dimension_numbers<[1], [0], [0], [1], [0, 0, 1, 1], [], []>} : vector<2x256xbf16>, vector<256x256xbf16>, vector<2x256xf32> -> vector<2x256xf32>
    %328 = vector.extract_strided_slice %318 {offsets = [0, 256], sizes = [2, 256], strides = [1, 1]} : vector<2x2048xbf16> to vector<2x256xbf16>
    %c256_225 = arith.constant 256 : index
    %c0_226 = arith.constant 0 : index
    %329 = vector.load %arg16[%c256_225, %c0_226] : memref<2048x256xbf16, #tpu.memory_space<vmem>>, vector<256x256xbf16>
    %cst_227 = arith.constant dense<0.000000e+00> : vector<2x256xf32>
    %330 = tpu.matmul %328, %329, %cst_227 {dimension_numbers = #tpu.dot_dimension_numbers<[1], [0], [0], [1], [0, 0, 1, 1], [], []>} : vector<2x256xbf16>, vector<256x256xbf16>, vector<2x256xf32> -> vector<2x256xf32>
    %331 = vector.extract_strided_slice %318 {offsets = [0, 512], sizes = [2, 256], strides = [1, 1]} : vector<2x2048xbf16> to vector<2x256xbf16>
    %c512_228 = arith.constant 512 : index
    %c0_229 = arith.constant 0 : index
    %332 = vector.load %arg16[%c512_228, %c0_229] : memref<2048x256xbf16, #tpu.memory_space<vmem>>, vector<256x256xbf16>
    %cst_230 = arith.constant dense<0.000000e+00> : vector<2x256xf32>
    %333 = tpu.matmul %331, %332, %cst_230 {dimension_numbers = #tpu.dot_dimension_numbers<[1], [0], [0], [1], [0, 0, 1, 1], [], []>} : vector<2x256xbf16>, vector<256x256xbf16>, vector<2x256xf32> -> vector<2x256xf32>
    %334 = vector.extract_strided_slice %318 {offsets = [0, 768], sizes = [2, 256], strides = [1, 1]} : vector<2x2048xbf16> to vector<2x256xbf16>
    %c768_231 = arith.constant 768 : index
    %c0_232 = arith.constant 0 : index
    %335 = vector.load %arg16[%c768_231, %c0_232] : memref<2048x256xbf16, #tpu.memory_space<vmem>>, vector<256x256xbf16>
    %cst_233 = arith.constant dense<0.000000e+00> : vector<2x256xf32>
    %336 = tpu.matmul %334, %335, %cst_233 {dimension_numbers = #tpu.dot_dimension_numbers<[1], [0], [0], [1], [0, 0, 1, 1], [], []>} : vector<2x256xbf16>, vector<256x256xbf16>, vector<2x256xf32> -> vector<2x256xf32>
    %337 = vector.extract_strided_slice %318 {offsets = [0, 1024], sizes = [2, 256], strides = [1, 1]} : vector<2x2048xbf16> to vector<2x256xbf16>
    %c1024_234 = arith.constant 1024 : index
    %c0_235 = arith.constant 0 : index
    %338 = vector.load %arg16[%c1024_234, %c0_235] : memref<2048x256xbf16, #tpu.memory_space<vmem>>, vector<256x256xbf16>
    %cst_236 = arith.constant dense<0.000000e+00> : vector<2x256xf32>
    %339 = tpu.matmul %337, %338, %cst_236 {dimension_numbers = #tpu.dot_dimension_numbers<[1], [0], [0], [1], [0, 0, 1, 1], [], []>} : vector<2x256xbf16>, vector<256x256xbf16>, vector<2x256xf32> -> vector<2x256xf32>
    %340 = vector.extract_strided_slice %318 {offsets = [0, 1280], sizes = [2, 256], strides = [1, 1]} : vector<2x2048xbf16> to vector<2x256xbf16>
    %c1280_237 = arith.constant 1280 : index
    %c0_238 = arith.constant 0 : index
    %341 = vector.load %arg16[%c1280_237, %c0_238] : memref<2048x256xbf16, #tpu.memory_space<vmem>>, vector<256x256xbf16>
    %cst_239 = arith.constant dense<0.000000e+00> : vector<2x256xf32>
    %342 = tpu.matmul %340, %341, %cst_239 {dimension_numbers = #tpu.dot_dimension_numbers<[1], [0], [0], [1], [0, 0, 1, 1], [], []>} : vector<2x256xbf16>, vector<256x256xbf16>, vector<2x256xf32> -> vector<2x256xf32>
    %343 = vector.extract_strided_slice %318 {offsets = [0, 1536], sizes = [2, 256], strides = [1, 1]} : vector<2x2048xbf16> to vector<2x256xbf16>
    %c1536_240 = arith.constant 1536 : index
    %c0_241 = arith.constant 0 : index
    %344 = vector.load %arg16[%c1536_240, %c0_241] : memref<2048x256xbf16, #tpu.memory_space<vmem>>, vector<256x256xbf16>
    %cst_242 = arith.constant dense<0.000000e+00> : vector<2x256xf32>
    %345 = tpu.matmul %343, %344, %cst_242 {dimension_numbers = #tpu.dot_dimension_numbers<[1], [0], [0], [1], [0, 0, 1, 1], [], []>} : vector<2x256xbf16>, vector<256x256xbf16>, vector<2x256xf32> -> vector<2x256xf32>
    %346 = vector.extract_strided_slice %318 {offsets = [0, 1792], sizes = [2, 256], strides = [1, 1]} : vector<2x2048xbf16> to vector<2x256xbf16>
    %c1792_243 = arith.constant 1792 : index
    %c0_244 = arith.constant 0 : index
    %347 = vector.load %arg16[%c1792_243, %c0_244] : memref<2048x256xbf16, #tpu.memory_space<vmem>>, vector<256x256xbf16>
    %cst_245 = arith.constant dense<0.000000e+00> : vector<2x256xf32>
    %348 = tpu.matmul %346, %347, %cst_245 {dimension_numbers = #tpu.dot_dimension_numbers<[1], [0], [0], [1], [0, 0, 1, 1], [], []>} : vector<2x256xbf16>, vector<256x256xbf16>, vector<2x256xf32> -> vector<2x256xf32>
    %349 = arith.addf %324, %327 : vector<2x256xf32>
    %350 = arith.addf %330, %333 : vector<2x256xf32>
    %351 = arith.addf %336, %339 : vector<2x256xf32>
    %352 = arith.addf %342, %345 : vector<2x256xf32>
    %353 = arith.addf %349, %350 : vector<2x256xf32>
    %354 = arith.addf %351, %352 : vector<2x256xf32>
    %355 = arith.addf %353, %354 : vector<2x256xf32>
    %356 = arith.addf %355, %348 : vector<2x256xf32>
    %c0_246 = arith.constant 0 : index
    %c0_247 = arith.constant 0 : index
    %357 = vector.load %arg8[%c0_246, %c0_247] : memref<1x256xf32, #tpu.memory_space<vmem>>, vector<1x256xf32>
    %358 = vector.broadcast %357 : vector<1x256xf32> to vector<2x256xf32>
    %359 = arith.addf %356, %358 : vector<2x256xf32>
    %cst_248 = arith.constant 0.000000e+00 : f32
    %360 = vector.broadcast %cst_248 : f32 to vector<2x256xf32>
    %361 = arith.maximumf %359, %360 : vector<2x256xf32>
    %c1_i32_249 = arith.constant 1 : i32
    %362 = tpu.memref_slice %arg18[%c1_i32_249] : memref<2x!tpu.dma_semaphore, #tpu.memory_space<semaphore_mem>> -> memref<1x!tpu.dma_semaphore, #tpu.memory_space<semaphore_mem>>
    %363 = tpu.memref_squeeze %362 : memref<1x!tpu.dma_semaphore, #tpu.memory_space<semaphore_mem>> -> memref<!tpu.dma_semaphore, #tpu.memory_space<semaphore_mem>>
    tpu.wait_dma2 semaphore(%363 : memref<!tpu.dma_semaphore, #tpu.memory_space<semaphore_mem>>) src(%arg9 : memref<256x256xbf16, #tpu.memory_space<any>>) dst(%arg17 : memref<256x256xbf16, #tpu.memory_space<vmem>>)
    %364 = arith.truncf %361 : vector<2x256xf32> to vector<2x256xbf16>
    %c0_250 = arith.constant 0 : index
    %c0_251 = arith.constant 0 : index
    %365 = vector.load %arg17[%c0_250, %c0_251] : memref<256x256xbf16, #tpu.memory_space<vmem>>, vector<256x256xbf16>
    %cst_252 = arith.constant dense<0.000000e+00> : vector<2x256xf32>
    %366 = tpu.matmul %364, %365, %cst_252 {dimension_numbers = #tpu.dot_dimension_numbers<[1], [0], [0], [1], [0, 0, 1, 1], [], []>} : vector<2x256xbf16>, vector<256x256xbf16>, vector<2x256xf32> -> vector<2x256xf32>
    %c0_253 = arith.constant 0 : index
    %c0_254 = arith.constant 0 : index
    %367 = vector.load %arg10[%c0_253, %c0_254] : memref<1x256xf32, #tpu.memory_space<vmem>>, vector<1x256xf32>
    %368 = vector.broadcast %367 : vector<1x256xf32> to vector<2x256xf32>
    %369 = arith.addf %366, %368 : vector<2x256xf32>
    %cst_255 = arith.constant 0.000000e+00 : f32
    %370 = vector.broadcast %cst_255 : f32 to vector<2x256xf32>
    %371 = arith.maximumf %369, %370 : vector<2x256xf32>
    %372 = arith.truncf %371 : vector<2x256xf32> to vector<2x256xbf16>
    %c0_256 = arith.constant 0 : index
    %c0_257 = arith.constant 0 : index
    %373 = vector.load %arg11[%c0_256, %c0_257] : memref<256x8xbf16, #tpu.memory_space<vmem>>, vector<256x8xbf16>
    %cst_258 = arith.constant dense<0.000000e+00> : vector<2x8xf32>
    %374 = tpu.matmul %372, %373, %cst_258 {dimension_numbers = #tpu.dot_dimension_numbers<[1], [0], [0], [1], [0, 0, 1, 1], [], []>} : vector<2x256xbf16>, vector<256x8xbf16>, vector<2x8xf32> -> vector<2x8xf32>
    %c0_259 = arith.constant 0 : index
    %c0_260 = arith.constant 0 : index
    %375 = vector.load %arg12[%c0_259, %c0_260] : memref<1x8xf32, #tpu.memory_space<vmem>>, vector<1x8xf32>
    %376 = vector.broadcast %375 : vector<1x8xf32> to vector<2x8xf32>
    %377 = arith.addf %374, %376 : vector<2x8xf32>
    %378 = tpu.iota {dimensions = array<i32: 1>} : vector<2x8xi32>
    %c4_i32 = arith.constant 4 : i32
    %379 = vector.broadcast %c4_i32 : i32 to vector<2x8xi32>
    %380 = arith.cmpi sge, %378, %379 : vector<2x8xi32>
    %cst_261 = arith.constant -2.000000e+01 : f32
    %cst_262 = arith.constant 2.000000e+00 : f32
    %381 = vector.broadcast %cst_261 : f32 to vector<2x8xf32>
    %382 = arith.maximumf %381, %377 : vector<2x8xf32>
    %383 = vector.broadcast %cst_262 : f32 to vector<2x8xf32>
    %384 = arith.minimumf %383, %382 : vector<2x8xf32>
    %385 = arith.select %380, %384, %377 : vector<2x8xi1>, vector<2x8xf32>
    %c0_263 = arith.constant 0 : index
    %c0_264 = arith.constant 0 : index
    %386 = vector.load %arg13[%c0_263, %c0_264] : memref<2x8xf32, #tpu.memory_space<vmem>>, vector<2x8xf32>
    tpu.vector_store %arg13[%c0_263, %c0_264], %385 {strides = array<i32>} : memref<2x8xf32, #tpu.memory_space<vmem>>, vector<2x8xf32>,
    return
  }
}

</mosaic_0001>

<llo_original>
// kernel: actor_forward.1
$region0: #{actor_forward.1}
  #allocation0 [shape = 'u32[]', space=smem, size = 0x4, offset = 0x4, fixed_abs, tag = 'smem constant byte address 0x4 - core index']
  #allocation1 [shape = 'u32[144,128]{1,0:T(1,128)}', space=vmem, size = 0x12000, scoped, tag = 'internal scratch']
  #allocation2 [shape = 'f32[2,10,10,16]{3,2,1,0:T(8,128)}', space=vmem, size = 0x28000, scoped, tag = 'scratch operand']
  #allocation3 [shape = 'f32[2,2048]{1,0:T(2,128)}', space=vmem, size = 0x4000, scoped, tag = 'scratch operand']
  #allocation4 [shape = 'bf16[2048,256]{1,0:T(16,128)(2,1)}', space=vmem, size = 0x100000, scoped, tag = 'scratch operand']
  #allocation5 [shape = 'bf16[256,256]{1,0:T(16,128)(2,1)}', space=vmem, size = 0x20000, scoped, tag = 'scratch operand']
  #allocation6 [shape = 's32[2]{0}', space=sflag, size = 0x8, scoped, tag = 'scratch operand']
  #allocation7 [shape = 's32[]', space=sflag, size = 0x4, offset = 0, fixed_abs, tag = 'sflag constant byte address 0x0 - dummy sync flag']
  #allocation9 [shape = 's32[]', space=sflag, size = 0x4, offset = 0, fixed_abs, tag = 'sflag constant byte address 0x0 - dummy sync flag']
  %s0 = inlined_call_operand.vmem [shape: f32[2,10,10,3], index: 0, kind: input, shape index: {}]
  %s1 = inlined_call_operand.vmem [shape: f32[2,8], index: 1, kind: input, shape index: {}]
  %s2 = inlined_call_operand.vmem [shape: f32[9,3,16], index: 2, kind: input, shape index: {}]
  %s3 = inlined_call_operand.vmem [shape: f32[1,16], index: 3, kind: input, shape index: {}]
  %s4 = inlined_call_operand.vmem [shape: f32[9,16,32], index: 4, kind: input, shape index: {}]
  %s5 = inlined_call_operand.vmem [shape: f32[1,32], index: 5, kind: input, shape index: {}]
  %s6 = inlined_call_operand.hbm [shape: bf16[2048,256], index: 6, kind: input, shape index: {}]
  %s7 = inlined_call_operand.vmem [shape: bf16[8,256], index: 7, kind: input, shape index: {}]
  %s8 = inlined_call_operand.vmem [shape: f32[1,256], index: 8, kind: input, shape index: {}]
  %s9 = inlined_call_operand.vmem [shape: bf16[256,256], index: 9, kind: input, shape index: {}]
  %s10 = inlined_call_operand.vmem [shape: f32[1,256], index: 10, kind: input, shape index: {}]
  %s11 = inlined_call_operand.vmem [shape: bf16[256,8], index: 11, kind: input, shape index: {}]
  %s12 = inlined_call_operand.vmem [shape: f32[1,8], index: 12, kind: input, shape index: {}]
  %s13 = inlined_call_operand.vmem [shape: f32[2,8], index: 13, kind: output, shape index: {}]
  %s14 = sld [smem:[#allocation0]]
  $region91: #{actor_forward.1} parent=0
    _
  %s16 = ssub.s32 1, %s14
  %s17 = scalar_select 0, %s16, %s14
  $region1: #{actor_forward.1} parent=0
    #allocation8 [shape = 'u32[9]{0}', space=smem, size = 0x24, scoped, tag = 'DMA stride descriptor']
    // Predicated region
    $region2: #{actor_forward.1} parent=1 // pred_check
      _
    $region3: #{actor_forward.1} parent=1 // pred_check_branch
      %19 = sbr.rel (0) target = $region5
    $region4: #{actor_forward.1} parent=1 // pred_region
      _
    $region5: #{actor_forward.1} parent=1 // pred_fallthru
      _
    // Predicated region
    $region6: #{actor_forward.1} parent=1 // pred_check
      _
    $region7: #{actor_forward.1} parent=1 // pred_check_branch
      %21 = sbr.rel (0) target = $region9
    $region8: #{actor_forward.1} parent=1 // pred_region
      _
    $region9: #{actor_forward.1} parent=1 // pred_fallthru
      _
    // Predicated region
    $region10: #{actor_forward.1} parent=1 // pred_check
      _
    $region11: #{actor_forward.1} parent=1 // pred_check_branch
      %23 = sbr.rel (0) target = $region13
    $region12: #{actor_forward.1} parent=1 // pred_region
      _
    $region13: #{actor_forward.1} parent=1 // pred_fallthru
      _
    // Predicated region
    $region14: #{actor_forward.1} parent=1 // pred_check
      _
    $region15: #{actor_forward.1} parent=1 // pred_check_branch
      %25 = sbr.rel (0) target = $region17
    $region16: #{actor_forward.1} parent=1 // pred_region
      _
    $region17: #{actor_forward.1} parent=1 // pred_fallthru
      _
    // Predicated region
    $region18: #{actor_forward.1} parent=1 // pred_check
      _
    $region19: #{actor_forward.1} parent=1 // pred_check_branch
      %27 = sbr.rel (0) target = $region21
    $region20: #{actor_forward.1} parent=1 // pred_region
      _
    $region21: #{actor_forward.1} parent=1 // pred_fallthru
      _
    // Predicated region
    $region22: #{actor_forward.1} parent=1 // pred_check
      _
    $region23: #{actor_forward.1} parent=1 // pred_check_branch
      %29 = sbr.rel (0) target = $region25
    $region24: #{actor_forward.1} parent=1 // pred_region
      _
    $region25: #{actor_forward.1} parent=1 // pred_fallthru
      _
    // Predicated region
    $region26: #{actor_forward.1} parent=1 // pred_check
      _
    $region27: #{actor_forward.1} parent=1 // pred_check_branch
      %31 = sbr.rel (0) target = $region29
    $region28: #{actor_forward.1} parent=1 // pred_region
      _
    $region29: #{actor_forward.1} parent=1 // pred_fallthru
      _
    // Predicated region
    $region30: #{actor_forward.1} parent=1 // pred_check
      _
    $region31: #{actor_forward.1} parent=1 // pred_check_branch
      %33 = sbr.rel (0) target = $region33
    $region32: #{actor_forward.1} parent=1 // pred_region
      _
    $region33: #{actor_forward.1} parent=1 // pred_fallthru
      _
    // Predicated region
    $region34: #{actor_forward.1} parent=1 // pred_check
      _
    $region35: #{actor_forward.1} parent=1 // pred_check_branch
      %35 = sbr.rel (0) target = $region37
    $region36: #{actor_forward.1} parent=1 // pred_region
      _
    $region37: #{actor_forward.1} parent=1 // pred_fallthru
      _
    // Predicated region
    $region38: #{actor_forward.1} parent=1 // pred_check
      _
    $region39: #{actor_forward.1} parent=1 // pred_check_branch
      %37 = sbr.rel (0) target = $region41
    $region40: #{actor_forward.1} parent=1 // pred_region
      _
    $region41: #{actor_forward.1} parent=1 // pred_fallthru
      _
    // Predicated region
    $region42: #{actor_forward.1} parent=1 // pred_check
      _
    $region43: #{actor_forward.1} parent=1 // pred_check_branch
      %39 = sbr.rel (0) target = $region45
    $region44: #{actor_forward.1} parent=1 // pred_region
      _
    $region45: #{actor_forward.1} parent=1 // pred_fallthru
      _
    %s42 = sshll.u32 1, 14
    %s43 = sxor.u32 4294967295, %s42
    %s45 = sld [smem:[#allocation0]]
    %s46 = sadd.s32 2, %s45
    %s48 = sshll.u32 7, 26
    %s49 = sxor.u32 4294967295, %s48
    %s50 = sand.u32 0, %s49
    %s51 = sshll.u32 %s46, 26
    %s52 = sor.u32 %s50, %s51
    %s53 = sshll.u32 [#allocation4], 4
    %s54 = int_to_ptr.vmem [resolvable:$true] %s53
    %57 = sst [smem:[#allocation8]] 256
    %s58 = scalar_lea.smem [#allocation8], 1
    %59 = sst [smem:[%s58]] 256
    %s60 = scalar_lea.smem [#allocation8], 2
    %61 = sst [smem:[%s60]] 2
    %s62 = scalar_lea.smem [#allocation8], 3
    %63 = sst [smem:[%s62]] 64
    %s64 = scalar_lea.smem [#allocation8], 4
    %65 = sst [smem:[%s64]] 128
    %s66 = scalar_lea.smem [#allocation8], 5
    %67 = sst [smem:[%s66]] 2
    %s68 = scalar_lea.smem [#allocation8], 6
    %69 = sst [smem:[%s68]] 128
    %s70 = scalar_lea.smem [#allocation8], 7
    %71 = sst [smem:[%s70]] 64
    %s72 = scalar_lea.smem [#allocation8], 8
    %73 = sst [smem:[%s72]] 4
    %75 = dma.general %s6, 32768, %s54, [#allocation6], [#allocation7], [#allocation8], %s52, 0
    %s76 = scalar_lea.sflag [#allocation6], 1
    %p78 = scmp.lt.u32.totalorder 4, 8
    %p79 = pneg %p78
    // Predicated region
    $region46: #{actor_forward.1} parent=1 // pred_check
      _
    $region47: #{actor_forward.1} parent=1 // pred_check_branch
      %81 = sbr.rel (%p78) target = $region49
    $region48: #{actor_forward.1} parent=1 // pred_region
      %s222 = sand.u32 4, 7
      %p223 = scmp.eq.s32.totalorder %s222, 0
      %p224 = pneg %p223
      // Predicated region
      $region61: #{actor_forward.1} parent=48 // pred_check
        _
      $region62: #{actor_forward.1} parent=48 // pred_check_branch
        %226 = sbr.rel (%p223) target = $region64
      $region63: #{actor_forward.1} parent=48 // pred_region
        %s227 = sand.u32 4, 7
        %s228 = ssub.s32 4, %s227
        %s229 = scalar_lea.vmem %s9, %s228
        %s230 = ssub.s32 4, %s227
        %s231 = scalar_lea.vmem [#allocation5], %s230
        loop: start=0, step=1, limit=1
        $region65: #{actor_forward.1} parent=63 // loop_pre_header
          _
        $region66: #{actor_forward.1} parent=63 // loop_header
          %s233 = sphi 0, %s237
          %p234 = scmp.ge.s32.totalorder %s233, 1
          %s238 = sphi %s9, %s9
          %s239 = sphi [#allocation5], [#allocation5]
        $region67: #{actor_forward.1} parent=63 // loop_header_branch
          %236 = sbr.rel (%p234) target = $region71
        $region68: #{actor_forward.1} parent=63 // loop_body
          _
        $region69: #{actor_forward.1} parent=63 // loop_footer
          %s237 = sadd.s32 1, %s233
        $region70: #{actor_forward.1} parent=63 // loop_footer_branch
          %232 = sbr.rel target = $region66
        $region71: #{actor_forward.1} parent=63 // loop_exit
          _
        %s240 = sshllo.u32 0, %s227
        loop: start=0, step=1, limit=1
        $region72: #{actor_forward.1} parent=63 // loop_pre_header
          _
        $region73: #{actor_forward.1} parent=63 // loop_header
          %s242 = sphi 0, %s246
          %p243 = scmp.ge.s32.totalorder %s242, 1
          %s247 = sphi %s229, %s229
          %s248 = sphi %s231, %s231
        $region74: #{actor_forward.1} parent=63 // loop_header_branch
          %245 = sbr.rel (%p243) target = $region78
        $region75: #{actor_forward.1} parent=63 // loop_body
          %v249 = vld [vmem:[%s247] sm:%s240]
          %250 = vst [vmem:[%s248] sm:%s240] %v249
          %v251 = vld [vmem:[%s247 + $0x8] sm:%s240]
          %252 = vst [vmem:[%s248 + $0x4] sm:%s240] %v251
          %v253 = vld [vmem:[%s247 + $0x4] sm:%s240]
          %254 = vst [vmem:[%s248 + $0x8] sm:%s240] %v253
          %v255 = vld [vmem:[%s247 + $0xc] sm:%s240]
          %256 = vst [vmem:[%s248 + $0xc] sm:%s240] %v255
          %v257 = vld [vmem:[%s247 + $0x10] sm:%s240]
          %258 = vst [vmem:[%s248 + $0x10] sm:%s240] %v257
          %v259 = vld [vmem:[%s247 + $0x18] sm:%s240]
          %260 = vst [vmem:[%s248 + $0x14] sm:%s240] %v259
          %v261 = vld [vmem:[%s247 + $0x14] sm:%s240]
          %262 = vst [vmem:[%s248 + $0x18] sm:%s240] %v261
          %v263 = vld [vmem:[%s247 + $0x1c] sm:%s240]
          %264 = vst [vmem:[%s248 + $0x1c] sm:%s240] %v263
          %v265 = vld [vmem:[%s247 + $0x20] sm:%s240]
          %266 = vst [vmem:[%s248 + $0x20] sm:%s240] %v265
          %v267 = vld [vmem:[%s247 + $0x28] sm:%s240]
          %268 = vst [vmem:[%s248 + $0x24] sm:%s240] %v267
          %v269 = vld [vmem:[%s247 + $0x24] sm:%s240]
          %270 = vst [vmem:[%s248 + $0x28] sm:%s240] %v269
          %v271 = vld [vmem:[%s247 + $0x2c] sm:%s240]
          %272 = vst [vmem:[%s248 + $0x2c] sm:%s240] %v271
          %v273 = vld [vmem:[%s247 + $0x30] sm:%s240]
          %274 = vst [vmem:[%s248 + $0x30] sm:%s240] %v273
          %v275 = vld [vmem:[%s247 + $0x38] sm:%s240]
          %276 = vst [vmem:[%s248 + $0x34] sm:%s240] %v275
          %v277 = vld [vmem:[%s247 + $0x34] sm:%s240]
          %278 = vst [vmem:[%s248 + $0x38] sm:%s240] %v277
          %v279 = vld [vmem:[%s247 + $0x3c] sm:%s240]
          %280 = vst [vmem:[%s248 + $0x3c] sm:%s240] %v279
          %v281 = vld [vmem:[%s247 + $0x40] sm:%s240]
          %282 = vst [vmem:[%s248 + $0x40] sm:%s240] %v281
          %v283 = vld [vmem:[%s247 + $0x48] sm:%s240]
          %284 = vst [vmem:[%s248 + $0x44] sm:%s240] %v283
          %v285 = vld [vmem:[%s247 + $0x44] sm:%s240]
          %286 = vst [vmem:[%s248 + $0x48] sm:%s240] %v285
          %v287 = vld [vmem:[%s247 + $0x4c] sm:%s240]
          %288 = vst [vmem:[%s248 + $0x4c] sm:%s240] %v287
          %v289 = vld [vmem:[%s247 + $0x50] sm:%s240]
          %290 = vst [vmem:[%s248 + $0x50] sm:%s240] %v289
          %v291 = vld [vmem:[%s247 + $0x58] sm:%s240]
          %292 = vst [vmem:[%s248 + $0x54] sm:%s240] %v291
          %v293 = vld [vmem:[%s247 + $0x54] sm:%s240]
          %294 = vst [vmem:[%s248 + $0x58] sm:%s240] %v293
          %v295 = vld [vmem:[%s247 + $0x5c] sm:%s240]
          %296 = vst [vmem:[%s248 + $0x5c] sm:%s240] %v295
          %v297 = vld [vmem:[%s247 + $0x60] sm:%s240]
          %298 = vst [vmem:[%s248 + $0x60] sm:%s240] %v297
          %v299 = vld [vmem:[%s247 + $0x68] sm:%s240]
          %300 = vst [vmem:[%s248 + $0x64] sm:%s240] %v299
          %v301 = vld [vmem:[%s247 + $0x64] sm:%s240]
          %302 = vst [vmem:[%s248 + $0x68] sm:%s240] %v301
          %v303 = vld [vmem:[%s247 + $0x6c] sm:%s240]
          %304 = vst [vmem:[%s248 + $0x6c] sm:%s240] %v303
          %v305 = vld [vmem:[%s247 + $0x70] sm:%s240]
          %306 = vst [vmem:[%s248 + $0x70] sm:%s240] %v305
          %v307 = vld [vmem:[%s247 + $0x78] sm:%s240]
          %308 = vst [vmem:[%s248 + $0x74] sm:%s240] %v307
          %v309 = vld [vmem:[%s247 + $0x74] sm:%s240]
          %310 = vst [vmem:[%s248 + $0x78] sm:%s240] %v309
          %v311 = vld [vmem:[%s247 + $0x7c] sm:%s240]
          %312 = vst [vmem:[%s248 + $0x7c] sm:%s240] %v311
          %v313 = vld [vmem:[%s247 + $0x80] sm:%s240]
          %314 = vst [vmem:[%s248 + $0x80] sm:%s240] %v313
          %v315 = vld [vmem:[%s247 + $0x88] sm:%s240]
          %316 = vst [vmem:[%s248 + $0x84] sm:%s240] %v315
          %v317 = vld [vmem:[%s247 + $0x84] sm:%s240]
          %318 = vst [vmem:[%s248 + $0x88] sm:%s240] %v317
          %v319 = vld [vmem:[%s247 + $0x8c] sm:%s240]
          %320 = vst [vmem:[%s248 + $0x8c] sm:%s240] %v319
          %v321 = vld [vmem:[%s247 + $0x90] sm:%s240]
          %322 = vst [vmem:[%s248 + $0x90] sm:%s240] %v321
          %v323 = vld [vmem:[%s247 + $0x98] sm:%s240]
          %324 = vst [vmem:[%s248 + $0x94] sm:%s240] %v323
          %v325 = vld [vmem:[%s247 + $0x94] sm:%s240]
          %326 = vst [vmem:[%s248 + $0x98] sm:%s240] %v325
          %v327 = vld [vmem:[%s247 + $0x9c] sm:%s240]
          %328 = vst [vmem:[%s248 + $0x9c] sm:%s240] %v327
          %v329 = vld [vmem:[%s247 + $0xa0] sm:%s240]
          %330 = vst [vmem:[%s248 + $0xa0] sm:%s240] %v329
          %v331 = vld [vmem:[%s247 + $0xa8] sm:%s240]
          %332 = vst [vmem:[%s248 + $0xa4] sm:%s240] %v331
          %v333 = vld [vmem:[%s247 + $0xa4] sm:%s240]
          %334 = vst [vmem:[%s248 + $0xa8] sm:%s240] %v333
          %v335 = vld [vmem:[%s247 + $0xac] sm:%s240]
          %336 = vst [vmem:[%s248 + $0xac] sm:%s240] %v335
          %v337 = vld [vmem:[%s247 + $0xb0] sm:%s240]
          %338 = vst [vmem:[%s248 + $0xb0] sm:%s240] %v337
          %v339 = vld [vmem:[%s247 + $0xb8] sm:%s240]
          %340 = vst [vmem:[%s248 + $0xb4] sm:%s240] %v339
          %v341 = vld [vmem:[%s247 + $0xb4] sm:%s240]
          %342 = vst [vmem:[%s248 + $0xb8] sm:%s240] %v341
          %v343 = vld [vmem:[%s247 + $0xbc] sm:%s240]
          %344 = vst [vmem:[%s248 + $0xbc] sm:%s240] %v343
          %v345 = vld [vmem:[%s247 + $0xc0] sm:%s240]
          %346 = vst [vmem:[%s248 + $0xc0] sm:%s240] %v345
          %v347 = vld [vmem:[%s247 + $0xc8] sm:%s240]
          %348 = vst [vmem:[%s248 + $0xc4] sm:%s240] %v347
          %v349 = vld [vmem:[%s247 + $0xc4] sm:%s240]
          %350 = vst [vmem:[%s248 + $0xc8] sm:%s240] %v349
          %v351 = vld [vmem:[%s247 + $0xcc] sm:%s240]
          %352 = vst [vmem:[%s248 + $0xcc] sm:%s240] %v351
          %v353 = vld [vmem:[%s247 + $0xd0] sm:%s240]
          %354 = vst [vmem:[%s248 + $0xd0] sm:%s240] %v353
          %v355 = vld [vmem:[%s247 + $0xd8] sm:%s240]
          %356 = vst [vmem:[%s248 + $0xd4] sm:%s240] %v355
          %v357 = vld [vmem:[%s247 + $0xd4] sm:%s240]
          %358 = vst [vmem:[%s248 + $0xd8] sm:%s240] %v357
          %v359 = vld [vmem:[%s247 + $0xdc] sm:%s240]
          %360 = vst [vmem:[%s248 + $0xdc] sm:%s240] %v359
          %v361 = vld [vmem:[%s247 + $0xe0] sm:%s240]
          %362 = vst [vmem:[%s248 + $0xe0] sm:%s240] %v361
          %v363 = vld [vmem:[%s247 + $0xe8] sm:%s240]
          %364 = vst [vmem:[%s248 + $0xe4] sm:%s240] %v363
          %v365 = vld [vmem:[%s247 + $0xe4] sm:%s240]
          %366 = vst [vmem:[%s248 + $0xe8] sm:%s240] %v365
          %v367 = vld [vmem:[%s247 + $0xec] sm:%s240]
          %368 = vst [vmem:[%s248 + $0xec] sm:%s240] %v367
          %v369 = vld [vmem:[%s247 + $0xf0] sm:%s240]
          %370 = vst [vmem:[%s248 + $0xf0] sm:%s240] %v369
          %v371 = vld [vmem:[%s247 + $0xf8] sm:%s240]
          %372 = vst [vmem:[%s248 + $0xf4] sm:%s240] %v371
          %v373 = vld [vmem:[%s247 + $0xf4] sm:%s240]
          %374 = vst [vmem:[%s248 + $0xf8] sm:%s240] %v373
          %v375 = vld [vmem:[%s247 + $0xfc] sm:%s240]
          %376 = vst [vmem:[%s248 + $0xfc] sm:%s240] %v375
        $region76: #{actor_forward.1} parent=63 // loop_footer
          %s246 = sadd.s32 1, %s242
        $region77: #{actor_forward.1} parent=63 // loop_footer_branch
          %241 = sbr.rel target = $region73
        $region78: #{actor_forward.1} parent=63 // loop_exit
          _
      $region64: #{actor_forward.1} parent=48 // pred_fallthru
        _
    $region49: #{actor_forward.1} parent=1 // pred_fallthru
      _
    // Predicated region
    $region50: #{actor_forward.1} parent=1 // pred_check
      %p82 = pneg %p78
    $region51: #{actor_forward.1} parent=1 // pred_check_branch
      %84 = sbr.rel (%p82) target = $region53
    $region52: #{actor_forward.1} parent=1 // pred_region
      %s85 = sshllo.u32 0, 4
      loop: start=0, step=1, limit=1
      $region54: #{actor_forward.1} parent=52 // loop_pre_header
        _
      $region55: #{actor_forward.1} parent=52 // loop_header
        %s87 = sphi 0, %s91
        %p88 = scmp.ge.s32.totalorder %s87, 1
        %s92 = sphi %s9, %s9
        %s93 = sphi [#allocation5], [#allocation5]
      $region56: #{actor_forward.1} parent=52 // loop_header_branch
        %90 = sbr.rel (%p88) target = $region60
      $region57: #{actor_forward.1} parent=52 // loop_body
        %v94 = vld [vmem:[%s92] sm:%s85]
        %95 = vst [vmem:[%s93] sm:%s85] %v94
        %v96 = vld [vmem:[%s92 + $0x8] sm:%s85]
        %97 = vst [vmem:[%s93 + $0x4] sm:%s85] %v96
        %v98 = vld [vmem:[%s92 + $0x4] sm:%s85]
        %99 = vst [vmem:[%s93 + $0x8] sm:%s85] %v98
        %v100 = vld [vmem:[%s92 + $0xc] sm:%s85]
        %101 = vst [vmem:[%s93 + $0xc] sm:%s85] %v100
        %v102 = vld [vmem:[%s92 + $0x10] sm:%s85]
        %103 = vst [vmem:[%s93 + $0x10] sm:%s85] %v102
        %v104 = vld [vmem:[%s92 + $0x18] sm:%s85]
        %105 = vst [vmem:[%s93 + $0x14] sm:%s85] %v104
        %v106 = vld [vmem:[%s92 + $0x14] sm:%s85]
        %107 = vst [vmem:[%s93 + $0x18] sm:%s85] %v106
        %v108 = vld [vmem:[%s92 + $0x1c] sm:%s85]
        %109 = vst [vmem:[%s93 + $0x1c] sm:%s85] %v108
        %v110 = vld [vmem:[%s92 + $0x20] sm:%s85]
        %111 = vst [vmem:[%s93 + $0x20] sm:%s85] %v110
        %v112 = vld [vmem:[%s92 + $0x28] sm:%s85]
        %113 = vst [vmem:[%s93 + $0x24] sm:%s85] %v112
        %v114 = vld [vmem:[%s92 + $0x24] sm:%s85]
        %115 = vst [vmem:[%s93 + $0x28] sm:%s85] %v114
        %v116 = vld [vmem:[%s92 + $0x2c] sm:%s85]
        %117 = vst [vmem:[%s93 + $0x2c] sm:%s85] %v116
        %v118 = vld [vmem:[%s92 + $0x30] sm:%s85]
        %119 = vst [vmem:[%s93 + $0x30] sm:%s85] %v118
        %v120 = vld [vmem:[%s92 + $0x38] sm:%s85]
        %121 = vst [vmem:[%s93 + $0x34] sm:%s85] %v120
        %v122 = vld [vmem:[%s92 + $0x34] sm:%s85]
        %123 = vst [vmem:[%s93 + $0x38] sm:%s85] %v122
        %v124 = vld [vmem:[%s92 + $0x3c] sm:%s85]
        %125 = vst [vmem:[%s93 + $0x3c] sm:%s85] %v124
        %v126 = vld [vmem:[%s92 + $0x40] sm:%s85]
        %127 = vst [vmem:[%s93 + $0x40] sm:%s85] %v126
        %v128 = vld [vmem:[%s92 + $0x48] sm:%s85]
        %129 = vst [vmem:[%s93 + $0x44] sm:%s85] %v128
        %v130 = vld [vmem:[%s92 + $0x44] sm:%s85]
        %131 = vst [vmem:[%s93 + $0x48] sm:%s85] %v130
        %v132 = vld [vmem:[%s92 + $0x4c] sm:%s85]
        %133 = vst [vmem:[%s93 + $0x4c] sm:%s85] %v132
        %v134 = vld [vmem:[%s92 + $0x50] sm:%s85]
        %135 = vst [vmem:[%s93 + $0x50] sm:%s85] %v134
        %v136 = vld [vmem:[%s92 + $0x58] sm:%s85]
        %137 = vst [vmem:[%s93 + $0x54] sm:%s85] %v136
        %v138 = vld [vmem:[%s92 + $0x54] sm:%s85]
        %139 = vst [vmem:[%s93 + $0x58] sm:%s85] %v138
        %v140 = vld [vmem:[%s92 + $0x5c] sm:%s85]
        %141 = vst [vmem:[%s93 + $0x5c] sm:%s85] %v140
        %v142 = vld [vmem:[%s92 + $0x60] sm:%s85]
        %143 = vst [vmem:[%s93 + $0x60] sm:%s85] %v142
        %v144 = vld [vmem:[%s92 + $0x68] sm:%s85]
        %145 = vst [vmem:[%s93 + $0x64] sm:%s85] %v144
        %v146 = vld [vmem:[%s92 + $0x64] sm:%s85]
        %147 = vst [vmem:[%s93 + $0x68] sm:%s85] %v146
        %v148 = vld [vmem:[%s92 + $0x6c] sm:%s85]
        %149 = vst [vmem:[%s93 + $0x6c] sm:%s85] %v148
        %v150 = vld [vmem:[%s92 + $0x70] sm:%s85]
        %151 = vst [vmem:[%s93 + $0x70] sm:%s85] %v150
        %v152 = vld [vmem:[%s92 + $0x78] sm:%s85]
        %153 = vst [vmem:[%s93 + $0x74] sm:%s85] %v152
        %v154 = vld [vmem:[%s92 + $0x74] sm:%s85]
        %155 = vst [vmem:[%s93 + $0x78] sm:%s85] %v154
        %v156 = vld [vmem:[%s92 + $0x7c] sm:%s85]
        %157 = vst [vmem:[%s93 + $0x7c] sm:%s85] %v156
        %v158 = vld [vmem:[%s92 + $0x80] sm:%s85]
        %159 = vst [vmem:[%s93 + $0x80] sm:%s85] %v158
        %v160 = vld [vmem:[%s92 + $0x88] sm:%s85]
        %161 = vst [vmem:[%s93 + $0x84] sm:%s85] %v160
        %v162 = vld [vmem:[%s92 + $0x84] sm:%s85]
        %163 = vst [vmem:[%s93 + $0x88] sm:%s85] %v162
        %v164 = vld [vmem:[%s92 + $0x8c] sm:%s85]
        %165 = vst [vmem:[%s93 + $0x8c] sm:%s85] %v164
        %v166 = vld [vmem:[%s92 + $0x90] sm:%s85]
        %167 = vst [vmem:[%s93 + $0x90] sm:%s85] %v166
        %v168 = vld [vmem:[%s92 + $0x98] sm:%s85]
        %169 = vst [vmem:[%s93 + $0x94] sm:%s85] %v168
        %v170 = vld [vmem:[%s92 + $0x94] sm:%s85]
        %171 = vst [vmem:[%s93 + $0x98] sm:%s85] %v170
        %v172 = vld [vmem:[%s92 + $0x9c] sm:%s85]
        %173 = vst [vmem:[%s93 + $0x9c] sm:%s85] %v172
        %v174 = vld [vmem:[%s92 + $0xa0] sm:%s85]
        %175 = vst [vmem:[%s93 + $0xa0] sm:%s85] %v174
        %v176 = vld [vmem:[%s92 + $0xa8] sm:%s85]
        %177 = vst [vmem:[%s93 + $0xa4] sm:%s85] %v176
        %v178 = vld [vmem:[%s92 + $0xa4] sm:%s85]
        %179 = vst [vmem:[%s93 + $0xa8] sm:%s85] %v178
        %v180 = vld [vmem:[%s92 + $0xac] sm:%s85]
        %181 = vst [vmem:[%s93 + $0xac] sm:%s85] %v180
        %v182 = vld [vmem:[%s92 + $0xb0] sm:%s85]
        %183 = vst [vmem:[%s93 + $0xb0] sm:%s85] %v182
        %v184 = vld [vmem:[%s92 + $0xb8] sm:%s85]
        %185 = vst [vmem:[%s93 + $0xb4] sm:%s85] %v184
        %v186 = vld [vmem:[%s92 + $0xb4] sm:%s85]
        %187 = vst [vmem:[%s93 + $0xb8] sm:%s85] %v186
        %v188 = vld [vmem:[%s92 + $0xbc] sm:%s85]
        %189 = vst [vmem:[%s93 + $0xbc] sm:%s85] %v188
        %v190 = vld [vmem:[%s92 + $0xc0] sm:%s85]
        %191 = vst [vmem:[%s93 + $0xc0] sm:%s85] %v190
        %v192 = vld [vmem:[%s92 + $0xc8] sm:%s85]
        %193 = vst [vmem:[%s93 + $0xc4] sm:%s85] %v192
        %v194 = vld [vmem:[%s92 + $0xc4] sm:%s85]
        %195 = vst [vmem:[%s93 + $0xc8] sm:%s85] %v194
        %v196 = vld [vmem:[%s92 + $0xcc] sm:%s85]
        %197 = vst [vmem:[%s93 + $0xcc] sm:%s85] %v196
        %v198 = vld [vmem:[%s92 + $0xd0] sm:%s85]
        %199 = vst [vmem:[%s93 + $0xd0] sm:%s85] %v198
        %v200 = vld [vmem:[%s92 + $0xd8] sm:%s85]
        %201 = vst [vmem:[%s93 + $0xd4] sm:%s85] %v200
        %v202 = vld [vmem:[%s92 + $0xd4] sm:%s85]
        %203 = vst [vmem:[%s93 + $0xd8] sm:%s85] %v202
        %v204 = vld [vmem:[%s92 + $0xdc] sm:%s85]
        %205 = vst [vmem:[%s93 + $0xdc] sm:%s85] %v204
        %v206 = vld [vmem:[%s92 + $0xe0] sm:%s85]
        %207 = vst [vmem:[%s93 + $0xe0] sm:%s85] %v206
        %v208 = vld [vmem:[%s92 + $0xe8] sm:%s85]
        %209 = vst [vmem:[%s93 + $0xe4] sm:%s85] %v208
        %v210 = vld [vmem:[%s92 + $0xe4] sm:%s85]
        %211 = vst [vmem:[%s93 + $0xe8] sm:%s85] %v210
        %v212 = vld [vmem:[%s92 + $0xec] sm:%s85]
        %213 = vst [vmem:[%s93 + $0xec] sm:%s85] %v212
        %v214 = vld [vmem:[%s92 + $0xf0] sm:%s85]
        %215 = vst [vmem:[%s93 + $0xf0] sm:%s85] %v214
        %v216 = vld [vmem:[%s92 + $0xf8] sm:%s85]
        %217 = vst [vmem:[%s93 + $0xf4] sm:%s85] %v216
        %v218 = vld [vmem:[%s92 + $0xf4] sm:%s85]
        %219 = vst [vmem:[%s93 + $0xf8] sm:%s85] %v218
        %v220 = vld [vmem:[%s92 + $0xfc] sm:%s85]
        %221 = vst [vmem:[%s93 + $0xfc] sm:%s85] %v220
      $region58: #{actor_forward.1} parent=52 // loop_footer
        %s91 = sadd.s32 1, %s87
      $region59: #{actor_forward.1} parent=52 // loop_footer_branch
        %86 = sbr.rel target = $region55
      $region60: #{actor_forward.1} parent=52 // loop_exit
        _
    $region53: #{actor_forward.1} parent=1 // pred_fallthru
      _
    // Predicated region
    $region79: #{actor_forward.1} parent=1 // pred_check
      _
    $region80: #{actor_forward.1} parent=1 // pred_check_branch
      %379 = sbr.rel (0) target = $region82
    $region81: #{actor_forward.1} parent=1 // pred_region
      %380 = vsyncadd %s76, 4096
    $region82: #{actor_forward.1} parent=1 // pred_fallthru
      _
    %v381 = vld [vmem:[%s0] sm:$0xff]
    %v382 = vld [vmem:[%s0 + $0x10] sm:$0xff]
    %v383 = vld [vmem:[%s0 + $0x20] sm:$0xff]
    %v384 = vld [vmem:[%s0 + $0x30] sm:$0xff]
    %v385 = vld [vmem:[%s0 + $0x40] sm:$0xff]
    %v386 = vld [vmem:[%s0 + $0x50] sm:$0xff]
    %v387 = vld [vmem:[%s0 + $0x60] sm:$0xff]
    %v388 = vld [vmem:[%s0 + $0x70] sm:$0xff]
    %v389 = vld [vmem:[%s0 + $0xa0] sm:$0xff]
    %v390 = vld [vmem:[%s0 + $0xb0] sm:$0xff]
    %v391 = vld [vmem:[%s0 + $0xc0] sm:$0xff]
    %v392 = vld [vmem:[%s0 + $0xd0] sm:$0xff]
    %v393 = vld [vmem:[%s0 + $0xe0] sm:$0xff]
    %v394 = vld [vmem:[%s0 + $0xf0] sm:$0xff]
    %v395 = vld [vmem:[%s0 + $0x100] sm:$0xff]
    %v396 = vld [vmem:[%s0 + $0x110] sm:$0xff]
    %v397 = vld [vmem:[%s2] sm:$0x7]
    %v398 = vld [vmem:[%s0 + $0x1] sm:$0xff]
    %v399 = vld [vmem:[%s0 + $0x11] sm:$0xff]
    %v400 = vld [vmem:[%s0 + $0x21] sm:$0xff]
    %v401 = vld [vmem:[%s0 + $0x31] sm:$0xff]
    %v402 = vld [vmem:[%s0 + $0x41] sm:$0xff]
    %v403 = vld [vmem:[%s0 + $0x51] sm:$0xff]
    %v404 = vld [vmem:[%s0 + $0x61] sm:$0xff]
    %v405 = vld [vmem:[%s0 + $0x71] sm:$0xff]
    %v406 = vld [vmem:[%s0 + $0xa1] sm:$0xff]
    %v407 = vld [vmem:[%s0 + $0xb1] sm:$0xff]
    %v408 = vld [vmem:[%s0 + $0xc1] sm:$0xff]
    %v409 = vld [vmem:[%s0 + $0xd1] sm:$0xff]
    %v410 = vld [vmem:[%s0 + $0xe1] sm:$0xff]
    %v411 = vld [vmem:[%s0 + $0xf1] sm:$0xff]
    %v412 = vld [vmem:[%s0 + $0x101] sm:$0xff]
    %v413 = vld [vmem:[%s0 + $0x111] sm:$0xff]
    %s414 = scalar_lea.vmem %s2, 4
    %v415 = vld [vmem:[%s414] sm:$0x7]
    %vm416 = vcmask 23552
    %v418 = vsel %vm416, %v398, 0
    %v421 = vsel %vm416, %v399, 0
    %v424 = vsel %vm416, %v400, 0
    %v427 = vsel %vm416, %v401, 0
    %v430 = vsel %vm416, %v402, 0
    %v433 = vsel %vm416, %v403, 0
    %v436 = vsel %vm416, %v404, 0
    %v439 = vsel %vm416, %v405, 0
    %v442 = vsel %vm416, %v406, 0
    %v445 = vsel %vm416, %v407, 0
    %v448 = vsel %vm416, %v408, 0
    %v451 = vsel %vm416, %v409, 0
    %v454 = vsel %vm416, %v410, 0
    %v457 = vsel %vm416, %v411, 0
    %v460 = vsel %vm416, %v412, 0
    %v463 = vsel %vm416, %v413, 0
    %vm465 = vcmask 1042432
    %v467 = vsel %vm465, %v415, 0
    %469 = vmatprep.subr.mxu0 0.0
    %470 = vmatpush1.msra.mxu0 %v467
    %471 = vmatprep.subr.mxu0 0.0
    %472 = vmatpush1.msra.mxu0 0.0
    %473 = vmatprep.subr.mxu0 0.0
    %474 = vmatpush1.msra.mxu0 0.0
    %475 = vmatprep.subr.mxu0 0.0
    %476 = vmatpush1.msra.mxu0 0.0
    %477 = vmatprep.subr.mxu0 0.0
    %478 = vmatpush1.msra.mxu0 0.0
    %479 = vmatprep.subr.mxu0 0.0
    %480 = vmatpush1.msra.mxu0 0.0
    %481 = vmatprep.subr.mxu0 0.0
    %482 = vmatpush1.msra.mxu0 0.0
    %483 = vmatprep.subr.mxu0 0.0
    %484 = vmatpush1.msra.mxu0 0.0
    %485 = vmatprep.subr.mxu0 0.0
    %486 = vmatpush1.msra.mxu0 0.0
    %487 = vmatprep.subr.mxu0 0.0
    %488 = vmatpush1.msra.mxu0 0.0
    %489 = vmatprep.subr.mxu0 0.0
    %490 = vmatpush1.msra.mxu0 0.0
    %491 = vmatprep.subr.mxu0 0.0
    %492 = vmatpush1.msra.mxu0 0.0
    %493 = vmatprep.subr.mxu0 0.0
    %494 = vmatpush1.msra.mxu0 0.0
    %495 = vmatprep.subr.mxu0 0.0
    %496 = vmatpush1.msra.mxu0 0.0
    %497 = vmatprep.subr.mxu0 0.0
    %498 = vmatpush1.msra.mxu0 0.0
    %499 = vmatprep.subr.mxu0 0.0
    %500 = vmatpush1.msra.mxu0 0.0
    %501 = vmatprep.subr.mxu0 0.0
    %502 = vmatpush1.msra.mxu0 0.0
    %503 = vmatprep.subr.mxu0 0.0
    %504 = vmatpush1.msra.mxu0 0.0
    %505 = vmatprep.subr.mxu0 0.0
    %506 = vmatpush1.msra.mxu0 0.0
    %507 = vmatprep.subr.mxu0 0.0
    %508 = vmatpush1.msra.mxu0 0.0
    %509 = vmatprep.subr.mxu0 0.0
    %510 = vmatpush1.msra.mxu0 0.0
    %511 = vmatprep.subr.mxu0 0.0
    %512 = vmatpush1.msra.mxu0 0.0
    %513 = vmatprep.subr.mxu0 0.0
    %514 = vmatpush1.msra.mxu0 0.0
    %515 = vmatprep.subr.mxu0 0.0
    %516 = vmatpush1.msra.mxu0 0.0
    %517 = vmatprep.subr.mxu0 0.0
    %518 = vmatpush1.msra.mxu0 0.0
    %519 = vmatprep.subr.mxu0 0.0
    %520 = vmatpush1.msra.mxu0 0.0
    %521 = vmatprep.subr.mxu0 0.0
    %522 = vmatpush1.msra.mxu0 0.0
    %523 = vmatprep.subr.mxu0 0.0
    %524 = vmatpush1.msra.mxu0 0.0
    %525 = vmatprep.subr.mxu0 0.0
    %526 = vmatpush1.msra.mxu0 0.0
    %527 = vmatprep.subr.mxu0 0.0
    %528 = vmatpush1.msra.mxu0 0.0
    %529 = vmatprep.subr.mxu0 0.0
    %530 = vmatpush1.msra.mxu0 0.0
    %531 = vmatprep.subr.mxu0 0.0
    %532 = vmatpush1.msra.mxu0 0.0
    %533 = vmatprep.mubr.f32.mxu0 0.0
    %534 = vmatmul.mubr.f32.gmra.mrb[0].mxu0 %v418
    %v535 = vpop.f32.mrb[0].mxu0
    %v536 = vadd.f32 0.0, %v535
    %v537 = vpop.f32.mrb[0].mxu0
    %538 = vmatprep.mubr.f32.mxu0 0.0
    %539 = vmatmul.mubr.f32.gmra.mrb[0].mxu0 %v421
    %v540 = vpop.f32.mrb[0].mxu0
    %v541 = vadd.f32 0.0, %v540
    %v542 = vpop.f32.mrb[0].mxu0
    %543 = vmatprep.mubr.f32.mxu0 0.0
    %544 = vmatmul.mubr.f32.gmra.mrb[0].mxu0 %v424
    %v545 = vpop.f32.mrb[0].mxu0
    %v546 = vadd.f32 0.0, %v545
    %v547 = vpop.f32.mrb[0].mxu0
    %548 = vmatprep.mubr.f32.mxu0 0.0
    %549 = vmatmul.mubr.f32.gmra.mrb[0].mxu0 %v427
    %v550 = vpop.f32.mrb[0].mxu0
    %v551 = vadd.f32 0.0, %v550
    %v552 = vpop.f32.mrb[0].mxu0
    %553 = vmatprep.mubr.f32.mxu0 0.0
    %554 = vmatmul.mubr.f32.gmra.mrb[0].mxu0 %v430
    %v555 = vpop.f32.mrb[0].mxu0
    %v556 = vadd.f32 0.0, %v555
    %v557 = vpop.f32.mrb[0].mxu0
    %558 = vmatprep.mubr.f32.mxu0 0.0
    %559 = vmatmul.mubr.f32.gmra.mrb[0].mxu0 %v433
    %v560 = vpop.f32.mrb[0].mxu0
    %v561 = vadd.f32 0.0, %v560
    %v562 = vpop.f32.mrb[0].mxu0
    %563 = vmatprep.mubr.f32.mxu0 0.0
    %564 = vmatmul.mubr.f32.gmra.mrb[0].mxu0 %v436
    %v565 = vpop.f32.mrb[0].mxu0
    %v566 = vadd.f32 0.0, %v565
    %v567 = vpop.f32.mrb[0].mxu0
    %568 = vmatprep.mubr.f32.mxu0 0.0
    %569 = vmatmul.mubr.f32.gmra.mrb[0].mxu0 %v439
    %v570 = vpop.f32.mrb[0].mxu0
    %v571 = vadd.f32 0.0, %v570
    %v572 = vpop.f32.mrb[0].mxu0
    %573 = vmatprep.mubr.f32.mxu0 0.0
    %574 = vmatmul.mubr.f32.gmra.mrb[0].mxu0 %v442
    %v575 = vpop.f32.mrb[0].mxu0
    %v576 = vadd.f32 0.0, %v575
    %v577 = vpop.f32.mrb[0].mxu0
    %578 = vmatprep.mubr.f32.mxu0 0.0
    %579 = vmatmul.mubr.f32.gmra.mrb[0].mxu0 %v445
    %v580 = vpop.f32.mrb[0].mxu0
    %v581 = vadd.f32 0.0, %v580
    %v582 = vpop.f32.mrb[0].mxu0
    %583 = vmatprep.mubr.f32.mxu0 0.0
    %584 = vmatmul.mubr.f32.gmra.mrb[0].mxu0 %v448
    %v585 = vpop.f32.mrb[0].mxu0
    %v586 = vadd.f32 0.0, %v585
    %v587 = vpop.f32.mrb[0].mxu0
    %588 = vmatprep.mubr.f32.mxu0 0.0
    %589 = vmatmul.mubr.f32.gmra.mrb[0].mxu0 %v451
    %v590 = vpop.f32.mrb[0].mxu0
    %v591 = vadd.f32 0.0, %v590
    %v592 = vpop.f32.mrb[0].mxu0
    %593 = vmatprep.mubr.f32.mxu0 0.0
    %594 = vmatmul.mubr.f32.gmra.mrb[0].mxu0 %v454
    %v595 = vpop.f32.mrb[0].mxu0
    %v596 = vadd.f32 0.0, %v595
    %v597 = vpop.f32.mrb[0].mxu0
    %598 = vmatprep.mubr.f32.mxu0 0.0
    %599 = vmatmul.mubr.f32.gmra.mrb[0].mxu0 %v457
    %v600 = vpop.f32.mrb[0].mxu0
    %v601 = vadd.f32 0.0, %v600
    %v602 = vpop.f32.mrb[0].mxu0
    %603 = vmatprep.mubr.f32.mxu0 0.0
    %604 = vmatmul.mubr.f32.gmra.mrb[0].mxu0 %v460
    %v605 = vpop.f32.mrb[0].mxu0
    %v606 = vadd.f32 0.0, %v605
    %v607 = vpop.f32.mrb[0].mxu0
    %608 = vmatprep.mubr.f32.mxu0 0.0
    %609 = vmatmul.mubr.f32.gmra.mrb[0].mxu0 %v463
    %v610 = vpop.f32.mrb[0].mxu0
    %v611 = vadd.f32 0.0, %v610
    %v612 = vpop.f32.mrb[0].mxu0
    %613 = vdwg.mxu0
    %v614 = vld [vmem:[%s0 + $0x2] sm:$0xff]
    %v615 = vld [vmem:[%s0 + $0x12] sm:$0xff]
    %v616 = vld [vmem:[%s0 + $0x22] sm:$0xff]
    %v617 = vld [vmem:[%s0 + $0x32] sm:$0xff]
    %v618 = vld [vmem:[%s0 + $0x42] sm:$0xff]
    %v619 = vld [vmem:[%s0 + $0x52] sm:$0xff]
    %v620 = vld [vmem:[%s0 + $0x62] sm:$0xff]
    %v621 = vld [vmem:[%s0 + $0x72] sm:$0xff]
    %v622 = vld [vmem:[%s0 + $0xa2] sm:$0xff]
    %v623 = vld [vmem:[%s0 + $0xb2] sm:$0xff]
    %v624 = vld [vmem:[%s0 + $0xc2] sm:$0xff]
    %v625 = vld [vmem:[%s0 + $0xd2] sm:$0xff]
    %v626 = vld [vmem:[%s0 + $0xe2] sm:$0xff]
    %v627 = vld [vmem:[%s0 + $0xf2] sm:$0xff]
    %v628 = vld [vmem:[%s0 + $0x102] sm:$0xff]
    %v629 = vld [vmem:[%s0 + $0x112] sm:$0xff]
    %s630 = scalar_lea.vmem %s2, 8
    %v631 = vld [vmem:[%s630] sm:$0x7]
    %s632 = scalar_lea.vmem %s0, 16
    %v633 = vld [vmem:[%s632] sm:$0xff]
    %v634 = vld [vmem:[%s632 + $0x10] sm:$0xff]
    %v635 = vld [vmem:[%s632 + $0x20] sm:$0xff]
    %v636 = vld [vmem:[%s632 + $0x30] sm:$0xff]
    %v637 = vld [vmem:[%s632 + $0x40] sm:$0xff]
    %v638 = vld [vmem:[%s632 + $0x50] sm:$0xff]
    %v639 = vld [vmem:[%s632 + $0x60] sm:$0xff]
    %v640 = vld [vmem:[%s632 + $0x70] sm:$0xff]
    %v641 = vld [vmem:[%s632 + $0xa0] sm:$0xff]
    %v642 = vld [vmem:[%s632 + $0xb0] sm:$0xff]
    %v643 = vld [vmem:[%s632 + $0xc0] sm:$0xff]
    %v644 = vld [vmem:[%s632 + $0xd0] sm:$0xff]
    %v645 = vld [vmem:[%s632 + $0xe0] sm:$0xff]
    %v646 = vld [vmem:[%s632 + $0xf0] sm:$0xff]
    %v647 = vld [vmem:[%s632 + $0x100] sm:$0xff]
    %v648 = vld [vmem:[%s632 + $0x110] sm:$0xff]
    %s649 = scalar_lea.vmem %s2, 12
    %v650 = vld [vmem:[%s649] sm:$0x7]
    %v652 = vsel %vm416, %v633, 0
    %v655 = vsel %vm416, %v634, 0
    %v658 = vsel %vm416, %v635, 0
    %v661 = vsel %vm416, %v636, 0
    %v664 = vsel %vm416, %v637, 0
    %v667 = vsel %vm416, %v638, 0
    %v670 = vsel %vm416, %v639, 0
    %v673 = vsel %vm416, %v640, 0
    %v676 = vsel %vm416, %v641, 0
    %v679 = vsel %vm416, %v642, 0
    %v682 = vsel %vm416, %v643, 0
    %v685 = vsel %vm416, %v644, 0
    %v688 = vsel %vm416, %v645, 0
    %v691 = vsel %vm416, %v646, 0
    %v694 = vsel %vm416, %v647, 0
    %v697 = vsel %vm416, %v648, 0
    %v700 = vsel %vm465, %v650, 0
    %702 = vmatprep.subr.mxu0 0.0
    %703 = vmatpush1.msra.mxu0 %v700
    %704 = vmatprep.subr.mxu0 0.0
    %705 = vmatpush1.msra.mxu0 0.0
    %706 = vmatprep.subr.mxu0 0.0
    %707 = vmatpush1.msra.mxu0 0.0
    %708 = vmatprep.subr.mxu0 0.0
    %709 = vmatpush1.msra.mxu0 0.0
    %710 = vmatprep.subr.mxu0 0.0
    %711 = vmatpush1.msra.mxu0 0.0
    %712 = vmatprep.subr.mxu0 0.0
    %713 = vmatpush1.msra.mxu0 0.0
    %714 = vmatprep.subr.mxu0 0.0
    %715 = vmatpush1.msra.mxu0 0.0
    %716 = vmatprep.subr.mxu0 0.0
    %717 = vmatpush1.msra.mxu0 0.0
    %718 = vmatprep.subr.mxu0 0.0
    %719 = vmatpush1.msra.mxu0 0.0
    %720 = vmatprep.subr.mxu0 0.0
    %721 = vmatpush1.msra.mxu0 0.0
    %722 = vmatprep.subr.mxu0 0.0
    %723 = vmatpush1.msra.mxu0 0.0
    %724 = vmatprep.subr.mxu0 0.0
    %725 = vmatpush1.msra.mxu0 0.0
    %726 = vmatprep.subr.mxu0 0.0
    %727 = vmatpush1.msra.mxu0 0.0
    %728 = vmatprep.subr.mxu0 0.0
    %729 = vmatpush1.msra.mxu0 0.0
    %730 = vmatprep.subr.mxu0 0.0
    %731 = vmatpush1.msra.mxu0 0.0
    %732 = vmatprep.subr.mxu0 0.0
    %733 = vmatpush1.msra.mxu0 0.0
    %734 = vmatprep.subr.mxu0 0.0
    %735 = vmatpush1.msra.mxu0 0.0
    %736 = vmatprep.subr.mxu0 0.0
    %737 = vmatpush1.msra.mxu0 0.0
    %738 = vmatprep.subr.mxu0 0.0
    %739 = vmatpush1.msra.mxu0 0.0
    %740 = vmatprep.subr.mxu0 0.0
    %741 = vmatpush1.msra.mxu0 0.0
    %742 = vmatprep.subr.mxu0 0.0
    %743 = vmatpush1.msra.mxu0 0.0
    %744 = vmatprep.subr.mxu0 0.0
    %745 = vmatpush1.msra.mxu0 0.0
    %746 = vmatprep.subr.mxu0 0.0
    %747 = vmatpush1.msra.mxu0 0.0
    %748 = vmatprep.subr.mxu0 0.0
    %749 = vmatpush1.msra.mxu0 0.0
    %750 = vmatprep.subr.mxu0 0.0
    %751 = vmatpush1.msra.mxu0 0.0
    %752 = vmatprep.subr.mxu0 0.0
    %753 = vmatpush1.msra.mxu0 0.0
    %754 = vmatprep.subr.mxu0 0.0
    %755 = vmatpush1.msra.mxu0 0.0
    %756 = vmatprep.subr.mxu0 0.0
    %757 = vmatpush1.msra.mxu0 0.0
    %758 = vmatprep.subr.mxu0 0.0
    %759 = vmatpush1.msra.mxu0 0.0
    %760 = vmatprep.subr.mxu0 0.0
    %761 = vmatpush1.msra.mxu0 0.0
    %762 = vmatprep.subr.mxu0 0.0
    %763 = vmatpush1.msra.mxu0 0.0
    %764 = vmatprep.subr.mxu0 0.0
    %765 = vmatpush1.msra.mxu0 0.0
    %766 = vmatprep.mubr.f32.mxu0 0.0
    %767 = vmatmul.mubr.f32.gmra.mrb[0].mxu0 %v652
    %v768 = vpop.f32.mrb[0].mxu0
    %v769 = vadd.f32 0.0, %v768
    %v770 = vpop.f32.mrb[0].mxu0
    %771 = vmatprep.mubr.f32.mxu0 0.0
    %772 = vmatmul.mubr.f32.gmra.mrb[0].mxu0 %v655
    %v773 = vpop.f32.mrb[0].mxu0
    %v774 = vadd.f32 0.0, %v773
    %v775 = vpop.f32.mrb[0].mxu0
    %776 = vmatprep.mubr.f32.mxu0 0.0
    %777 = vmatmul.mubr.f32.gmra.mrb[0].mxu0 %v658
    %v778 = vpop.f32.mrb[0].mxu0
    %v779 = vadd.f32 0.0, %v778
    %v780 = vpop.f32.mrb[0].mxu0
    %781 = vmatprep.mubr.f32.mxu0 0.0
    %782 = vmatmul.mubr.f32.gmra.mrb[0].mxu0 %v661
    %v783 = vpop.f32.mrb[0].mxu0
    %v784 = vadd.f32 0.0, %v783
    %v785 = vpop.f32.mrb[0].mxu0
    %786 = vmatprep.mubr.f32.mxu0 0.0
    %787 = vmatmul.mubr.f32.gmra.mrb[0].mxu0 %v664
    %v788 = vpop.f32.mrb[0].mxu0
    %v789 = vadd.f32 0.0, %v788
    %v790 = vpop.f32.mrb[0].mxu0
    %791 = vmatprep.mubr.f32.mxu0 0.0
    %792 = vmatmul.mubr.f32.gmra.mrb[0].mxu0 %v667
    %v793 = vpop.f32.mrb[0].mxu0
    %v794 = vadd.f32 0.0, %v793
    %v795 = vpop.f32.mrb[0].mxu0
    %796 = vmatprep.mubr.f32.mxu0 0.0
    %797 = vmatmul.mubr.f32.gmra.mrb[0].mxu0 %v670
    %v798 = vpop.f32.mrb[0].mxu0
    %v799 = vadd.f32 0.0, %v798
    %v800 = vpop.f32.mrb[0].mxu0
    %801 = vmatprep.mubr.f32.mxu0 0.0
    %802 = vmatmul.mubr.f32.gmra.mrb[0].mxu0 %v673
    %v803 = vpop.f32.mrb[0].mxu0
    %v804 = vadd.f32 0.0, %v803
    %v805 = vpop.f32.mrb[0].mxu0
    %806 = vmatprep.mubr.f32.mxu0 0.0
    %807 = vmatmul.mubr.f32.gmra.mrb[0].mxu0 %v676
    %v808 = vpop.f32.mrb[0].mxu0
    %v809 = vadd.f32 0.0, %v808
    %v810 = vpop.f32.mrb[0].mxu0
    %811 = vmatprep.mubr.f32.mxu0 0.0
    %812 = vmatmul.mubr.f32.gmra.mrb[0].mxu0 %v679
    %v813 = vpop.f32.mrb[0].mxu0
    %v814 = vadd.f32 0.0, %v813
    %v815 = vpop.f32.mrb[0].mxu0
    %816 = vmatprep.mubr.f32.mxu0 0.0
    %817 = vmatmul.mubr.f32.gmra.mrb[0].mxu0 %v682
    %v818 = vpop.f32.mrb[0].mxu0
    %v819 = vadd.f32 0.0, %v818
    %v820 = vpop.f32.mrb[0].mxu0
    %821 = vmatprep.mubr.f32.mxu0 0.0
    %822 = vmatmul.mubr.f32.gmra.mrb[0].mxu0 %v685
    %v823 = vpop.f32.mrb[0].mxu0
    %v824 = vadd.f32 0.0, %v823
    %v825 = vpop.f32.mrb[0].mxu0
    %826 = vmatprep.mubr.f32.mxu0 0.0
    %827 = vmatmul.mubr.f32.gmra.mrb[0].mxu0 %v688
    %v828 = vpop.f32.mrb[0].mxu0
    %v829 = vadd.f32 0.0, %v828
    %v830 = vpop.f32.mrb[0].mxu0
    %831 = vmatprep.mubr.f32.mxu0 0.0
    %832 = vmatmul.mubr.f32.gmra.mrb[0].mxu0 %v691
    %v833 = vpop.f32.mrb[0].mxu0
    %v834 = vadd.f32 0.0, %v833
    %v835 = vpop.f32.mrb[0].mxu0
    %836 = vmatprep.mubr.f32.mxu0 0.0
    %837 = vmatmul.mubr.f32.gmra.mrb[0].mxu0 %v694
    %v838 = vpop.f32.mrb[0].mxu0
    %v839 = vadd.f32 0.0, %v838
    %v840 = vpop.f32.mrb[0].mxu0
    %841 = vmatprep.mubr.f32.mxu0 0.0
    %842 = vmatmul.mubr.f32.gmra.mrb[0].mxu0 %v697
    %v843 = vpop.f32.mrb[0].mxu0
    %v844 = vadd.f32 0.0, %v843
    %v845 = vpop.f32.mrb[0].mxu0
    %846 = vdwg.mxu0
    %v847 = vld [vmem:[%s632 + $0x1] sm:$0xff]
    %v848 = vld [vmem:[%s632 + $0x11] sm:$0xff]
    %v849 = vld [vmem:[%s632 + $0x21] sm:$0xff]
    %v850 = vld [vmem:[%s632 + $0x31] sm:$0xff]
    %v851 = vld [vmem:[%s632 + $0x41] sm:$0xff]
    %v852 = vld [vmem:[%s632 + $0x51] sm:$0xff]
    %v853 = vld [vmem:[%s632 + $0x61] sm:$0xff]
    %v854 = vld [vmem:[%s632 + $0x71] sm:$0xff]
    %v855 = vld [vmem:[%s632 + $0xa1] sm:$0xff]
    %v856 = vld [vmem:[%s632 + $0xb1] sm:$0xff]
    %v857 = vld [vmem:[%s632 + $0xc1] sm:$0xff]
    %v858 = vld [vmem:[%s632 + $0xd1] sm:$0xff]
    %v859 = vld [vmem:[%s632 + $0xe1] sm:$0xff]
    %v860 = vld [vmem:[%s632 + $0xf1] sm:$0xff]
    %v861 = vld [vmem:[%s632 + $0x101] sm:$0xff]
    %v862 = vld [vmem:[%s632 + $0x111] sm:$0xff]
    %s863 = scalar_lea.vmem %s2, 16
    %v864 = vld [vmem:[%s863] sm:$0x7]
    %v865 = vld [vmem:[%s632 + $0x2] sm:$0xff]
    %v866 = vld [vmem:[%s632 + $0x12] sm:$0xff]
    %v867 = vld [vmem:[%s632 + $0x22] sm:$0xff]
    %v868 = vld [vmem:[%s632 + $0x32] sm:$0xff]
    %v869 = vld [vmem:[%s632 + $0x42] sm:$0xff]
    %v870 = vld [vmem:[%s632 + $0x52] sm:$0xff]
    %v871 = vld [vmem:[%s632 + $0x62] sm:$0xff]
    %v872 = vld [vmem:[%s632 + $0x72] sm:$0xff]
    %v873 = vld [vmem:[%s632 + $0xa2] sm:$0xff]
    %v874 = vld [vmem:[%s632 + $0xb2] sm:$0xff]
    %v875 = vld [vmem:[%s632 + $0xc2] sm:$0xff]
    %v876 = vld [vmem:[%s632 + $0xd2] sm:$0xff]
    %v877 = vld [vmem:[%s632 + $0xe2] sm:$0xff]
    %v878 = vld [vmem:[%s632 + $0xf2] sm:$0xff]
    %v879 = vld [vmem:[%s632 + $0x102] sm:$0xff]
    %v880 = vld [vmem:[%s632 + $0x112] sm:$0xff]
    %s881 = scalar_lea.vmem %s2, 20
    %v882 = vld [vmem:[%s881] sm:$0x7]
    %v884 = vsel %vm416, %v865, 0
    %v887 = vsel %vm416, %v866, 0
    %v890 = vsel %vm416, %v867, 0
    %v893 = vsel %vm416, %v868, 0
    %v896 = vsel %vm416, %v869, 0
    %v899 = vsel %vm416, %v870, 0
    %v902 = vsel %vm416, %v871, 0
    %v905 = vsel %vm416, %v872, 0
    %v908 = vsel %vm416, %v873, 0
    %v911 = vsel %vm416, %v874, 0
    %v914 = vsel %vm416, %v875, 0
    %v917 = vsel %vm416, %v876, 0
    %v920 = vsel %vm416, %v877, 0
    %v923 = vsel %vm416, %v878, 0
    %v926 = vsel %vm416, %v879, 0
    %v929 = vsel %vm416, %v880, 0
    %v932 = vsel %vm465, %v882, 0
    %934 = vmatprep.subr.mxu0 0.0
    %935 = vmatpush1.msra.mxu0 %v932
    %936 = vmatprep.subr.mxu0 0.0
    %937 = vmatpush1.msra.mxu0 0.0
    %938 = vmatprep.subr.mxu0 0.0
    %939 = vmatpush1.msra.mxu0 0.0
    %940 = vmatprep.subr.mxu0 0.0
    %941 = vmatpush1.msra.mxu0 0.0
    %942 = vmatprep.subr.mxu0 0.0
    %943 = vmatpush1.msra.mxu0 0.0
    %944 = vmatprep.subr.mxu0 0.0
    %945 = vmatpush1.msra.mxu0 0.0
    %946 = vmatprep.subr.mxu0 0.0
    %947 = vmatpush1.msra.mxu0 0.0
    %948 = vmatprep.subr.mxu0 0.0
    %949 = vmatpush1.msra.mxu0 0.0
    %950 = vmatprep.subr.mxu0 0.0
    %951 = vmatpush1.msra.mxu0 0.0
    %952 = vmatprep.subr.mxu0 0.0
    %953 = vmatpush1.msra.mxu0 0.0
    %954 = vmatprep.subr.mxu0 0.0
    %955 = vmatpush1.msra.mxu0 0.0
    %956 = vmatprep.subr.mxu0 0.0
    %957 = vmatpush1.msra.mxu0 0.0
    %958 = vmatprep.subr.mxu0 0.0
    %959 = vmatpush1.msra.mxu0 0.0
    %960 = vmatprep.subr.mxu0 0.0
    %961 = vmatpush1.msra.mxu0 0.0
    %962 = vmatprep.subr.mxu0 0.0
    %963 = vmatpush1.msra.mxu0 0.0
    %964 = vmatprep.subr.mxu0 0.0
    %965 = vmatpush1.msra.mxu0 0.0
    %966 = vmatprep.subr.mxu0 0.0
    %967 = vmatpush1.msra.mxu0 0.0
    %968 = vmatprep.subr.mxu0 0.0
    %969 = vmatpush1.msra.mxu0 0.0
    %970 = vmatprep.subr.mxu0 0.0
    %971 = vmatpush1.msra.mxu0 0.0
    %972 = vmatprep.subr.mxu0 0.0
    %973 = vmatpush1.msra.mxu0 0.0
    %974 = vmatprep.subr.mxu0 0.0
    %975 = vmatpush1.msra.mxu0 0.0
    %976 = vmatprep.subr.mxu0 0.0
    %977 = vmatpush1.msra.mxu0 0.0
    %978 = vmatprep.subr.mxu0 0.0
    %979 = vmatpush1.msra.mxu0 0.0
    %980 = vmatprep.subr.mxu0 0.0
    %981 = vmatpush1.msra.mxu0 0.0
    %982 = vmatprep.subr.mxu0 0.0
    %983 = vmatpush1.msra.mxu0 0.0
    %984 = vmatprep.subr.mxu0 0.0
    %985 = vmatpush1.msra.mxu0 0.0
    %986 = vmatprep.subr.mxu0 0.0
    %987 = vmatpush1.msra.mxu0 0.0
    %988 = vmatprep.subr.mxu0 0.0
    %989 = vmatpush1.msra.mxu0 0.0
    %990 = vmatprep.subr.mxu0 0.0
    %991 = vmatpush1.msra.mxu0 0.0
    %992 = vmatprep.subr.mxu0 0.0
    %993 = vmatpush1.msra.mxu0 0.0
    %994 = vmatprep.subr.mxu0 0.0
    %995 = vmatpush1.msra.mxu0 0.0
    %996 = vmatprep.subr.mxu0 0.0
    %997 = vmatpush1.msra.mxu0 0.0
    %998 = vmatprep.mubr.f32.mxu0 0.0
    %999 = vmatmul.mubr.f32.gmra.mrb[0].mxu0 %v884
    %v1000 = vpop.f32.mrb[0].mxu0
    %v1001 = vadd.f32 0.0, %v1000
    %v1002 = vpop.f32.mrb[0].mxu0
    %1003 = vmatprep.mubr.f32.mxu0 0.0
    %1004 = vmatmul.mubr.f32.gmra.mrb[0].mxu0 %v887
    %v1005 = vpop.f32.mrb[0].mxu0
    %v1006 = vadd.f32 0.0, %v1005
    %v1007 = vpop.f32.mrb[0].mxu0
    %1008 = vmatprep.mubr.f32.mxu0 0.0
    %1009 = vmatmul.mubr.f32.gmra.mrb[0].mxu0 %v890
    %v1010 = vpop.f32.mrb[0].mxu0
    %v1011 = vadd.f32 0.0, %v1010
    %v1012 = vpop.f32.mrb[0].mxu0
    %1013 = vmatprep.mubr.f32.mxu0 0.0
    %1014 = vmatmul.mubr.f32.gmra.mrb[0].mxu0 %v893
    %v1015 = vpop.f32.mrb[0].mxu0
    %v1016 = vadd.f32 0.0, %v1015
    %v1017 = vpop.f32.mrb[0].mxu0
    %1018 = vmatprep.mubr.f32.mxu0 0.0
    %1019 = vmatmul.mubr.f32.gmra.mrb[0].mxu0 %v896
    %v1020 = vpop.f32.mrb[0].mxu0
    %v1021 = vadd.f32 0.0, %v1020
    %v1022 = vpop.f32.mrb[0].mxu0
    %1023 = vmatprep.mubr.f32.mxu0 0.0
    %1024 = vmatmul.mubr.f32.gmra.mrb[0].mxu0 %v899
    %v1025 = vpop.f32.mrb[0].mxu0
    %v1026 = vadd.f32 0.0, %v1025
    %v1027 = vpop.f32.mrb[0].mxu0
    %1028 = vmatprep.mubr.f32.mxu0 0.0
    %1029 = vmatmul.mubr.f32.gmra.mrb[0].mxu0 %v902
    %v1030 = vpop.f32.mrb[0].mxu0
    %v1031 = vadd.f32 0.0, %v1030
    %v1032 = vpop.f32.mrb[0].mxu0
    %1033 = vmatprep.mubr.f32.mxu0 0.0
    %1034 = vmatmul.mubr.f32.gmra.mrb[0].mxu0 %v905
    %v1035 = vpop.f32.mrb[0].mxu0
    %v1036 = vadd.f32 0.0, %v1035
    %v1037 = vpop.f32.mrb[0].mxu0
    %1038 = vmatprep.mubr.f32.mxu0 0.0
    %1039 = vmatmul.mubr.f32.gmra.mrb[0].mxu0 %v908
    %v1040 = vpop.f32.mrb[0].mxu0
    %v1041 = vadd.f32 0.0, %v1040
    %v1042 = vpop.f32.mrb[0].mxu0
    %1043 = vmatprep.mubr.f32.mxu0 0.0
    %1044 = vmatmul.mubr.f32.gmra.mrb[0].mxu0 %v911
    %v1045 = vpop.f32.mrb[0].mxu0
    %v1046 = vadd.f32 0.0, %v1045
    %v1047 = vpop.f32.mrb[0].mxu0
    %1048 = vmatprep.mubr.f32.mxu0 0.0
    %1049 = vmatmul.mubr.f32.gmra.mrb[0].mxu0 %v914
    %v1050 = vpop.f32.mrb[0].mxu0
    %v1051 = vadd.f32 0.0, %v1050
    %v1052 = vpop.f32.mrb[0].mxu0
    %1053 = vmatprep.mubr.f32.mxu0 0.0
    %1054 = vmatmul.mubr.f32.gmra.mrb[0].mxu0 %v917
    %v1055 = vpop.f32.mrb[0].mxu0
    %v1056 = vadd.f32 0.0, %v1055
    %v1057 = vpop.f32.mrb[0].mxu0
    %1058 = vmatprep.mubr.f32.mxu0 0.0
    %1059 = vmatmul.mubr.f32.gmra.mrb[0].mxu0 %v920
    %v1060 = vpop.f32.mrb[0].mxu0
    %v1061 = vadd.f32 0.0, %v1060
    %v1062 = vpop.f32.mrb[0].mxu0
    %1063 = vmatprep.mubr.f32.mxu0 0.0
    %1064 = vmatmul.mubr.f32.gmra.mrb[0].mxu0 %v923
    %v1065 = vpop.f32.mrb[0].mxu0
    %v1066 = vadd.f32 0.0, %v1065
    %v1067 = vpop.f32.mrb[0].mxu0
    %1068 = vmatprep.mubr.f32.mxu0 0.0
    %1069 = vmatmul.mubr.f32.gmra.mrb[0].mxu0 %v926
    %v1070 = vpop.f32.mrb[0].mxu0
    %v1071 = vadd.f32 0.0, %v1070
    %v1072 = vpop.f32.mrb[0].mxu0
    %1073 = vmatprep.mubr.f32.mxu0 0.0
    %1074 = vmatmul.mubr.f32.gmra.mrb[0].mxu0 %v929
    %v1075 = vpop.f32.mrb[0].mxu0
    %v1076 = vadd.f32 0.0, %v1075
    %v1077 = vpop.f32.mrb[0].mxu0
    %1078 = vdwg.mxu0
    %s1079 = scalar_lea.vmem %s0, 32
    %v1080 = vld [vmem:[%s1079] sm:$0xff]
    %v1081 = vld [vmem:[%s1079 + $0x10] sm:$0xff]
    %v1082 = vld [vmem:[%s1079 + $0x20] sm:$0xff]
    %v1083 = vld [vmem:[%s1079 + $0x30] sm:$0xff]
    %v1084 = vld [vmem:[%s1079 + $0x40] sm:$0xff]
    %v1085 = vld [vmem:[%s1079 + $0x50] sm:$0xff]
    %v1086 = vld [vmem:[%s1079 + $0x60] sm:$0xff]
    %v1087 = vld [vmem:[%s1079 + $0x70] sm:$0xff]
    %v1088 = vld [vmem:[%s1079 + $0xa0] sm:$0xff]
    %v1089 = vld [vmem:[%s1079 + $0xb0] sm:$0xff]
    %v1090 = vld [vmem:[%s1079 + $0xc0] sm:$0xff]
    %v1091 = vld [vmem:[%s1079 + $0xd0] sm:$0xff]
    %v1092 = vld [vmem:[%s1079 + $0xe0] sm:$0xff]
    %v1093 = vld [vmem:[%s1079 + $0xf0] sm:$0xff]
    %v1094 = vld [vmem:[%s1079 + $0x100] sm:$0xff]
    %v1095 = vld [vmem:[%s1079 + $0x110] sm:$0xff]
    %s1096 = scalar_lea.vmem %s2, 24
    %v1097 = vld [vmem:[%s1096] sm:$0x7]
    %v1098 = vld [vmem:[%s1079 + $0x1] sm:$0xff]
    %v1099 = vld [vmem:[%s1079 + $0x11] sm:$0xff]
    %v1100 = vld [vmem:[%s1079 + $0x21] sm:$0xff]
    %v1101 = vld [vmem:[%s1079 + $0x31] sm:$0xff]
    %v1102 = vld [vmem:[%s1079 + $0x41] sm:$0xff]
    %v1103 = vld [vmem:[%s1079 + $0x51] sm:$0xff]
    %v1104 = vld [vmem:[%s1079 + $0x61] sm:$0xff]
    %v1105 = vld [vmem:[%s1079 + $0x71] sm:$0xff]
    %v1106 = vld [vmem:[%s1079 + $0xa1] sm:$0xff]
    %v1107 = vld [vmem:[%s1079 + $0xb1] sm:$0xff]
    %v1108 = vld [vmem:[%s1079 + $0xc1] sm:$0xff]
    %v1109 = vld [vmem:[%s1079 + $0xd1] sm:$0xff]
    %v1110 = vld [vmem:[%s1079 + $0xe1] sm:$0xff]
    %v1111 = vld [vmem:[%s1079 + $0xf1] sm:$0xff]
    %v1112 = vld [vmem:[%s1079 + $0x101] sm:$0xff]
    %v1113 = vld [vmem:[%s1079 + $0x111] sm:$0xff]
    %s1114 = scalar_lea.vmem %s2, 28
    %v1115 = vld [vmem:[%s1114] sm:$0x7]
    %v1117 = vsel %vm416, %v1098, 0
    %v1120 = vsel %vm416, %v1099, 0
    %v1123 = vsel %vm416, %v1100, 0
    %v1126 = vsel %vm416, %v1101, 0
    %v1129 = vsel %vm416, %v1102, 0
    %v1132 = vsel %vm416, %v1103, 0
    %v1135 = vsel %vm416, %v1104, 0
    %v1138 = vsel %vm416, %v1105, 0
    %v1141 = vsel %vm416, %v1106, 0
    %v1144 = vsel %vm416, %v1107, 0
    %v1147 = vsel %vm416, %v1108, 0
    %v1150 = vsel %vm416, %v1109, 0
    %v1153 = vsel %vm416, %v1110, 0
    %v1156 = vsel %vm416, %v1111, 0
    %v1159 = vsel %vm416, %v1112, 0
    %v1162 = vsel %vm416, %v1113, 0
    %v1165 = vsel %vm465, %v1115, 0
    %1167 = vmatprep.subr.mxu0 0.0
    %1168 = vmatpush1.msra.mxu0 %v1165
    %1169 = vmatprep.subr.mxu0 0.0
    %1170 = vmatpush1.msra.mxu0 0.0
    %1171 = vmatprep.subr.mxu0 0.0
    %1172 = vmatpush1.msra.mxu0 0.0
    %1173 = vmatprep.subr.mxu0 0.0
    %1174 = vmatpush1.msra.mxu0 0.0
    %1175 = vmatprep.subr.mxu0 0.0
    %1176 = vmatpush1.msra.mxu0 0.0
    %1177 = vmatprep.subr.mxu0 0.0
    %1178 = vmatpush1.msra.mxu0 0.0
    %1179 = vmatprep.subr.mxu0 0.0
    %1180 = vmatpush1.msra.mxu0 0.0
    %1181 = vmatprep.subr.mxu0 0.0
    %1182 = vmatpush1.msra.mxu0 0.0
    %1183 = vmatprep.subr.mxu0 0.0
    %1184 = vmatpush1.msra.mxu0 0.0
    %1185 = vmatprep.subr.mxu0 0.0
    %1186 = vmatpush1.msra.mxu0 0.0
    %1187 = vmatprep.subr.mxu0 0.0
    %1188 = vmatpush1.msra.mxu0 0.0
    %1189 = vmatprep.subr.mxu0 0.0
    %1190 = vmatpush1.msra.mxu0 0.0
    %1191 = vmatprep.subr.mxu0 0.0
    %1192 = vmatpush1.msra.mxu0 0.0
    %1193 = vmatprep.subr.mxu0 0.0
    %1194 = vmatpush1.msra.mxu0 0.0
    %1195 = vmatprep.subr.mxu0 0.0
    %1196 = vmatpush1.msra.mxu0 0.0
    %1197 = vmatprep.subr.mxu0 0.0
    %1198 = vmatpush1.msra.mxu0 0.0
    %1199 = vmatprep.subr.mxu0 0.0
    %1200 = vmatpush1.msra.mxu0 0.0
    %1201 = vmatprep.subr.mxu0 0.0
    %1202 = vmatpush1.msra.mxu0 0.0
    %1203 = vmatprep.subr.mxu0 0.0
    %1204 = vmatpush1.msra.mxu0 0.0
    %1205 = vmatprep.subr.mxu0 0.0
    %1206 = vmatpush1.msra.mxu0 0.0
    %1207 = vmatprep.subr.mxu0 0.0
    %1208 = vmatpush1.msra.mxu0 0.0
    %1209 = vmatprep.subr.mxu0 0.0
    %1210 = vmatpush1.msra.mxu0 0.0
    %1211 = vmatprep.subr.mxu0 0.0
    %1212 = vmatpush1.msra.mxu0 0.0
    %1213 = vmatprep.subr.mxu0 0.0
    %1214 = vmatpush1.msra.mxu0 0.0
    %1215 = vmatprep.subr.mxu0 0.0
    %1216 = vmatpush1.msra.mxu0 0.0
    %1217 = vmatprep.subr.mxu0 0.0
    %1218 = vmatpush1.msra.mxu0 0.0
    %1219 = vmatprep.subr.mxu0 0.0
    %1220 = vmatpush1.msra.mxu0 0.0
    %1221 = vmatprep.subr.mxu0 0.0
    %1222 = vmatpush1.msra.mxu0 0.0
    %1223 = vmatprep.subr.mxu0 0.0
    %1224 = vmatpush1.msra.mxu0 0.0
    %1225 = vmatprep.subr.mxu0 0.0
    %1226 = vmatpush1.msra.mxu0 0.0
    %1227 = vmatprep.subr.mxu0 0.0
    %1228 = vmatpush1.msra.mxu0 0.0
    %1229 = vmatprep.subr.mxu0 0.0
    %1230 = vmatpush1.msra.mxu0 0.0
    %1231 = vmatprep.mubr.f32.mxu0 0.0
    %1232 = vmatmul.mubr.f32.gmra.mrb[0].mxu0 %v1117
    %v1233 = vpop.f32.mrb[0].mxu0
    %v1234 = vadd.f32 0.0, %v1233
    %v1235 = vpop.f32.mrb[0].mxu0
    %1236 = vmatprep.mubr.f32.mxu0 0.0
    %1237 = vmatmul.mubr.f32.gmra.mrb[0].mxu0 %v1120
    %v1238 = vpop.f32.mrb[0].mxu0
    %v1239 = vadd.f32 0.0, %v1238
    %v1240 = vpop.f32.mrb[0].mxu0
    %1241 = vmatprep.mubr.f32.mxu0 0.0
    %1242 = vmatmul.mubr.f32.gmra.mrb[0].mxu0 %v1123
    %v1243 = vpop.f32.mrb[0].mxu0
    %v1244 = vadd.f32 0.0, %v1243
    %v1245 = vpop.f32.mrb[0].mxu0
    %1246 = vmatprep.mubr.f32.mxu0 0.0
    %1247 = vmatmul.mubr.f32.gmra.mrb[0].mxu0 %v1126
    %v1248 = vpop.f32.mrb[0].mxu0
    %v1249 = vadd.f32 0.0, %v1248
    %v1250 = vpop.f32.mrb[0].mxu0
    %1251 = vmatprep.mubr.f32.mxu0 0.0
    %1252 = vmatmul.mubr.f32.gmra.mrb[0].mxu0 %v1129
    %v1253 = vpop.f32.mrb[0].mxu0
    %v1254 = vadd.f32 0.0, %v1253
    %v1255 = vpop.f32.mrb[0].mxu0
    %1256 = vmatprep.mubr.f32.mxu0 0.0
    %1257 = vmatmul.mubr.f32.gmra.mrb[0].mxu0 %v1132
    %v1258 = vpop.f32.mrb[0].mxu0
    %v1259 = vadd.f32 0.0, %v1258
    %v1260 = vpop.f32.mrb[0].mxu0
    %1261 = vmatprep.mubr.f32.mxu0 0.0
    %1262 = vmatmul.mubr.f32.gmra.mrb[0].mxu0 %v1135
    %v1263 = vpop.f32.mrb[0].mxu0
    %v1264 = vadd.f32 0.0, %v1263
    %v1265 = vpop.f32.mrb[0].mxu0
    %1266 = vmatprep.mubr.f32.mxu0 0.0
    %1267 = vmatmul.mubr.f32.gmra.mrb[0].mxu0 %v1138
    %v1268 = vpop.f32.mrb[0].mxu0
    %v1269 = vadd.f32 0.0, %v1268
    %v1270 = vpop.f32.mrb[0].mxu0
    %1271 = vmatprep.mubr.f32.mxu0 0.0
    %1272 = vmatmul.mubr.f32.gmra.mrb[0].mxu0 %v1141
    %v1273 = vpop.f32.mrb[0].mxu0
    %v1274 = vadd.f32 0.0, %v1273
    %v1275 = vpop.f32.mrb[0].mxu0
    %1276 = vmatprep.mubr.f32.mxu0 0.0
    %1277 = vmatmul.mubr.f32.gmra.mrb[0].mxu0 %v1144
    %v1278 = vpop.f32.mrb[0].mxu0
    %v1279 = vadd.f32 0.0, %v1278
    %v1280 = vpop.f32.mrb[0].mxu0
    %1281 = vmatprep.mubr.f32.mxu0 0.0
    %1282 = vmatmul.mubr.f32.gmra.mrb[0].mxu0 %v1147
    %v1283 = vpop.f32.mrb[0].mxu0
    %v1284 = vadd.f32 0.0, %v1283
    %v1285 = vpop.f32.mrb[0].mxu0
    %1286 = vmatprep.mubr.f32.mxu0 0.0
    %1287 = vmatmul.mubr.f32.gmra.mrb[0].mxu0 %v1150
    %v1288 = vpop.f32.mrb[0].mxu0
    %v1289 = vadd.f32 0.0, %v1288
    %v1290 = vpop.f32.mrb[0].mxu0
    %1291 = vmatprep.mubr.f32.mxu0 0.0
    %1292 = vmatmul.mubr.f32.gmra.mrb[0].mxu0 %v1153
    %v1293 = vpop.f32.mrb[0].mxu0
    %v1294 = vadd.f32 0.0, %v1293
    %v1295 = vpop.f32.mrb[0].mxu0
    %1296 = vmatprep.mubr.f32.mxu0 0.0
    %1297 = vmatmul.mubr.f32.gmra.mrb[0].mxu0 %v1156
    %v1298 = vpop.f32.mrb[0].mxu0
    %v1299 = vadd.f32 0.0, %v1298
    %v1300 = vpop.f32.mrb[0].mxu0
    %1301 = vmatprep.mubr.f32.mxu0 0.0
    %1302 = vmatmul.mubr.f32.gmra.mrb[0].mxu0 %v1159
    %v1303 = vpop.f32.mrb[0].mxu0
    %v1304 = vadd.f32 0.0, %v1303
    %v1305 = vpop.f32.mrb[0].mxu0
    %1306 = vmatprep.mubr.f32.mxu0 0.0
    %1307 = vmatmul.mubr.f32.gmra.mrb[0].mxu0 %v1162
    %v1308 = vpop.f32.mrb[0].mxu0
    %v1309 = vadd.f32 0.0, %v1308
    %v1310 = vpop.f32.mrb[0].mxu0
    %1311 = vdwg.mxu0
    %v1312 = vld [vmem:[%s1079 + $0x2] sm:$0xff]
    %v1313 = vld [vmem:[%s1079 + $0x12] sm:$0xff]
    %v1314 = vld [vmem:[%s1079 + $0x22] sm:$0xff]
    %v1315 = vld [vmem:[%s1079 + $0x32] sm:$0xff]
    %v1316 = vld [vmem:[%s1079 + $0x42] sm:$0xff]
    %v1317 = vld [vmem:[%s1079 + $0x52] sm:$0xff]
    %v1318 = vld [vmem:[%s1079 + $0x62] sm:$0xff]
    %v1319 = vld [vmem:[%s1079 + $0x72] sm:$0xff]
    %v1320 = vld [vmem:[%s1079 + $0xa2] sm:$0xff]
    %v1321 = vld [vmem:[%s1079 + $0xb2] sm:$0xff]
    %v1322 = vld [vmem:[%s1079 + $0xc2] sm:$0xff]
    %v1323 = vld [vmem:[%s1079 + $0xd2] sm:$0xff]
    %v1324 = vld [vmem:[%s1079 + $0xe2] sm:$0xff]
    %v1325 = vld [vmem:[%s1079 + $0xf2] sm:$0xff]
    %v1326 = vld [vmem:[%s1079 + $0x102] sm:$0xff]
    %v1327 = vld [vmem:[%s1079 + $0x112] sm:$0xff]
    %s1328 = scalar_lea.vmem %s2, 32
    %v1329 = vld [vmem:[%s1328] sm:$0x7]
    %v1331 = vsel %vm416, %v1312, 0
    %v1334 = vsel %vm416, %v1313, 0
    %v1337 = vsel %vm416, %v1314, 0
    %v1340 = vsel %vm416, %v1315, 0
    %v1343 = vsel %vm416, %v1316, 0
    %v1346 = vsel %vm416, %v1317, 0
    %v1349 = vsel %vm416, %v1318, 0
    %v1352 = vsel %vm416, %v1319, 0
    %v1355 = vsel %vm416, %v1320, 0
    %v1358 = vsel %vm416, %v1321, 0
    %v1361 = vsel %vm416, %v1322, 0
    %v1364 = vsel %vm416, %v1323, 0
    %v1367 = vsel %vm416, %v1324, 0
    %v1370 = vsel %vm416, %v1325, 0
    %v1373 = vsel %vm416, %v1326, 0
    %v1376 = vsel %vm416, %v1327, 0
    %v1379 = vsel %vm465, %v1329, 0
    %1381 = vmatprep.subr.mxu0 0.0
    %1382 = vmatpush1.msra.mxu0 %v1379
    %1383 = vmatprep.subr.mxu0 0.0
    %1384 = vmatpush1.msra.mxu0 0.0
    %1385 = vmatprep.subr.mxu0 0.0
    %1386 = vmatpush1.msra.mxu0 0.0
    %1387 = vmatprep.subr.mxu0 0.0
    %1388 = vmatpush1.msra.mxu0 0.0
    %1389 = vmatprep.subr.mxu0 0.0
    %1390 = vmatpush1.msra.mxu0 0.0
    %1391 = vmatprep.subr.mxu0 0.0
    %1392 = vmatpush1.msra.mxu0 0.0
    %1393 = vmatprep.subr.mxu0 0.0
    %1394 = vmatpush1.msra.mxu0 0.0
    %1395 = vmatprep.subr.mxu0 0.0
    %1396 = vmatpush1.msra.mxu0 0.0
    %1397 = vmatprep.subr.mxu0 0.0
    %1398 = vmatpush1.msra.mxu0 0.0
    %1399 = vmatprep.subr.mxu0 0.0
    %1400 = vmatpush1.msra.mxu0 0.0
    %1401 = vmatprep.subr.mxu0 0.0
    %1402 = vmatpush1.msra.mxu0 0.0
    %1403 = vmatprep.subr.mxu0 0.0
    %1404 = vmatpush1.msra.mxu0 0.0
    %1405 = vmatprep.subr.mxu0 0.0
    %1406 = vmatpush1.msra.mxu0 0.0
    %1407 = vmatprep.subr.mxu0 0.0
    %1408 = vmatpush1.msra.mxu0 0.0
    %1409 = vmatprep.subr.mxu0 0.0
    %1410 = vmatpush1.msra.mxu0 0.0
    %1411 = vmatprep.subr.mxu0 0.0
    %1412 = vmatpush1.msra.mxu0 0.0
    %1413 = vmatprep.subr.mxu0 0.0
    %1414 = vmatpush1.msra.mxu0 0.0
    %1415 = vmatprep.subr.mxu0 0.0
    %1416 = vmatpush1.msra.mxu0 0.0
    %1417 = vmatprep.subr.mxu0 0.0
    %1418 = vmatpush1.msra.mxu0 0.0
    %1419 = vmatprep.subr.mxu0 0.0
    %1420 = vmatpush1.msra.mxu0 0.0
    %1421 = vmatprep.subr.mxu0 0.0
    %1422 = vmatpush1.msra.mxu0 0.0
    %1423 = vmatprep.subr.mxu0 0.0
    %1424 = vmatpush1.msra.mxu0 0.0
    %1425 = vmatprep.subr.mxu0 0.0
    %1426 = vmatpush1.msra.mxu0 0.0
    %1427 = vmatprep.subr.mxu0 0.0
    %1428 = vmatpush1.msra.mxu0 0.0
    %1429 = vmatprep.subr.mxu0 0.0
    %1430 = vmatpush1.msra.mxu0 0.0
    %1431 = vmatprep.subr.mxu0 0.0
    %1432 = vmatpush1.msra.mxu0 0.0
    %1433 = vmatprep.subr.mxu0 0.0
    %1434 = vmatpush1.msra.mxu0 0.0
    %1435 = vmatprep.subr.mxu0 0.0
    %1436 = vmatpush1.msra.mxu0 0.0
    %1437 = vmatprep.subr.mxu0 0.0
    %1438 = vmatpush1.msra.mxu0 0.0
    %1439 = vmatprep.subr.mxu0 0.0
    %1440 = vmatpush1.msra.mxu0 0.0
    %1441 = vmatprep.subr.mxu0 0.0
    %1442 = vmatpush1.msra.mxu0 0.0
    %1443 = vmatprep.subr.mxu0 0.0
    %1444 = vmatpush1.msra.mxu0 0.0
    %1445 = vmatprep.mubr.f32.mxu0 0.0
    %1446 = vmatmul.mubr.f32.gmra.mrb[0].mxu0 %v1331
    %v1447 = vpop.f32.mrb[0].mxu0
    %v1448 = vadd.f32 0.0, %v1447
    %v1449 = vpop.f32.mrb[0].mxu0
    %1450 = vmatprep.mubr.f32.mxu0 0.0
    %1451 = vmatmul.mubr.f32.gmra.mrb[0].mxu0 %v1334
    %v1452 = vpop.f32.mrb[0].mxu0
    %v1453 = vadd.f32 0.0, %v1452
    %v1454 = vpop.f32.mrb[0].mxu0
    %1455 = vmatprep.mubr.f32.mxu0 0.0
    %1456 = vmatmul.mubr.f32.gmra.mrb[0].mxu0 %v1337
    %v1457 = vpop.f32.mrb[0].mxu0
    %v1458 = vadd.f32 0.0, %v1457
    %v1459 = vpop.f32.mrb[0].mxu0
    %1460 = vmatprep.mubr.f32.mxu0 0.0
    %1461 = vmatmul.mubr.f32.gmra.mrb[0].mxu0 %v1340
    %v1462 = vpop.f32.mrb[0].mxu0
    %v1463 = vadd.f32 0.0, %v1462
    %v1464 = vpop.f32.mrb[0].mxu0
    %1465 = vmatprep.mubr.f32.mxu0 0.0
    %1466 = vmatmul.mubr.f32.gmra.mrb[0].mxu0 %v1343
    %v1467 = vpop.f32.mrb[0].mxu0
    %v1468 = vadd.f32 0.0, %v1467
    %v1469 = vpop.f32.mrb[0].mxu0
    %1470 = vmatprep.mubr.f32.mxu0 0.0
    %1471 = vmatmul.mubr.f32.gmra.mrb[0].mxu0 %v1346
    %v1472 = vpop.f32.mrb[0].mxu0
    %v1473 = vadd.f32 0.0, %v1472
    %v1474 = vpop.f32.mrb[0].mxu0
    %1475 = vmatprep.mubr.f32.mxu0 0.0
    %1476 = vmatmul.mubr.f32.gmra.mrb[0].mxu0 %v1349
    %v1477 = vpop.f32.mrb[0].mxu0
    %v1478 = vadd.f32 0.0, %v1477
    %v1479 = vpop.f32.mrb[0].mxu0
    %1480 = vmatprep.mubr.f32.mxu0 0.0
    %1481 = vmatmul.mubr.f32.gmra.mrb[0].mxu0 %v1352
    %v1482 = vpop.f32.mrb[0].mxu0
    %v1483 = vadd.f32 0.0, %v1482
    %v1484 = vpop.f32.mrb[0].mxu0
    %1485 = vmatprep.mubr.f32.mxu0 0.0
    %1486 = vmatmul.mubr.f32.gmra.mrb[0].mxu0 %v1355
    %v1487 = vpop.f32.mrb[0].mxu0
    %v1488 = vadd.f32 0.0, %v1487
    %v1489 = vpop.f32.mrb[0].mxu0
    %1490 = vmatprep.mubr.f32.mxu0 0.0
    %1491 = vmatmul.mubr.f32.gmra.mrb[0].mxu0 %v1358
    %v1492 = vpop.f32.mrb[0].mxu0
    %v1493 = vadd.f32 0.0, %v1492
    %v1494 = vpop.f32.mrb[0].mxu0
    %1495 = vmatprep.mubr.f32.mxu0 0.0
    %1496 = vmatmul.mubr.f32.gmra.mrb[0].mxu0 %v1361
    %v1497 = vpop.f32.mrb[0].mxu0
    %v1498 = vadd.f32 0.0, %v1497
    %v1499 = vpop.f32.mrb[0].mxu0
    %1500 = vmatprep.mubr.f32.mxu0 0.0
    %1501 = vmatmul.mubr.f32.gmra.mrb[0].mxu0 %v1364
    %v1502 = vpop.f32.mrb[0].mxu0
    %v1503 = vadd.f32 0.0, %v1502
    %v1504 = vpop.f32.mrb[0].mxu0
    %1505 = vmatprep.mubr.f32.mxu0 0.0
    %1506 = vmatmul.mubr.f32.gmra.mrb[0].mxu0 %v1367
    %v1507 = vpop.f32.mrb[0].mxu0
    %v1508 = vadd.f32 0.0, %v1507
    %v1509 = vpop.f32.mrb[0].mxu0
    %1510 = vmatprep.mubr.f32.mxu0 0.0
    %1511 = vmatmul.mubr.f32.gmra.mrb[0].mxu0 %v1370
    %v1512 = vpop.f32.mrb[0].mxu0
    %v1513 = vadd.f32 0.0, %v1512
    %v1514 = vpop.f32.mrb[0].mxu0
    %1515 = vmatprep.mubr.f32.mxu0 0.0
    %1516 = vmatmul.mubr.f32.gmra.mrb[0].mxu0 %v1373
    %v1517 = vpop.f32.mrb[0].mxu0
    %v1518 = vadd.f32 0.0, %v1517
    %v1519 = vpop.f32.mrb[0].mxu0
    %1520 = vmatprep.mubr.f32.mxu0 0.0
    %1521 = vmatmul.mubr.f32.gmra.mrb[0].mxu0 %v1376
    %v1522 = vpop.f32.mrb[0].mxu0
    %v1523 = vadd.f32 0.0, %v1522
    %v1524 = vpop.f32.mrb[0].mxu0
    %1525 = vdwg.mxu0
    %v1527 = vsel %vm416, %v381, 0
    %v1530 = vsel %vm416, %v382, 0
    %v1533 = vsel %vm416, %v383, 0
    %v1536 = vsel %vm416, %v384, 0
    %v1539 = vsel %vm416, %v385, 0
    %v1542 = vsel %vm416, %v386, 0
    %v1545 = vsel %vm416, %v387, 0
    %v1548 = vsel %vm416, %v388, 0
    %v1551 = vsel %vm416, %v389, 0
    %v1554 = vsel %vm416, %v390, 0
    %v1557 = vsel %vm416, %v391, 0
    %v1560 = vsel %vm416, %v392, 0
    %v1563 = vsel %vm416, %v393, 0
    %v1566 = vsel %vm416, %v394, 0
    %v1569 = vsel %vm416, %v395, 0
    %v1572 = vsel %vm416, %v396, 0
    %v1575 = vsel %vm465, %v397, 0
    %1577 = vmatprep.subr.mxu0 0.0
    %1578 = vmatpush1.msra.mxu0 %v1575
    %1579 = vmatprep.subr.mxu0 0.0
    %1580 = vmatpush1.msra.mxu0 0.0
    %1581 = vmatprep.subr.mxu0 0.0
    %1582 = vmatpush1.msra.mxu0 0.0
    %1583 = vmatprep.subr.mxu0 0.0
    %1584 = vmatpush1.msra.mxu0 0.0
    %1585 = vmatprep.subr.mxu0 0.0
    %1586 = vmatpush1.msra.mxu0 0.0
    %1587 = vmatprep.subr.mxu0 0.0
    %1588 = vmatpush1.msra.mxu0 0.0
    %1589 = vmatprep.subr.mxu0 0.0
    %1590 = vmatpush1.msra.mxu0 0.0
    %1591 = vmatprep.subr.mxu0 0.0
    %1592 = vmatpush1.msra.mxu0 0.0
    %1593 = vmatprep.subr.mxu0 0.0
    %1594 = vmatpush1.msra.mxu0 0.0
    %1595 = vmatprep.subr.mxu0 0.0
    %1596 = vmatpush1.msra.mxu0 0.0
    %1597 = vmatprep.subr.mxu0 0.0
    %1598 = vmatpush1.msra.mxu0 0.0
    %1599 = vmatprep.subr.mxu0 0.0
    %1600 = vmatpush1.msra.mxu0 0.0
    %1601 = vmatprep.subr.mxu0 0.0
    %1602 = vmatpush1.msra.mxu0 0.0
    %1603 = vmatprep.subr.mxu0 0.0
    %1604 = vmatpush1.msra.mxu0 0.0
    %1605 = vmatprep.subr.mxu0 0.0
    %1606 = vmatpush1.msra.mxu0 0.0
    %1607 = vmatprep.subr.mxu0 0.0
    %1608 = vmatpush1.msra.mxu0 0.0
    %1609 = vmatprep.subr.mxu0 0.0
    %1610 = vmatpush1.msra.mxu0 0.0
    %1611 = vmatprep.subr.mxu0 0.0
    %1612 = vmatpush1.msra.mxu0 0.0
    %1613 = vmatprep.subr.mxu0 0.0
    %1614 = vmatpush1.msra.mxu0 0.0
    %1615 = vmatprep.subr.mxu0 0.0
    %1616 = vmatpush1.msra.mxu0 0.0
    %1617 = vmatprep.subr.mxu0 0.0
    %1618 = vmatpush1.msra.mxu0 0.0
    %1619 = vmatprep.subr.mxu0 0.0
    %1620 = vmatpush1.msra.mxu0 0.0
    %1621 = vmatprep.subr.mxu0 0.0
    %1622 = vmatpush1.msra.mxu0 0.0
    %1623 = vmatprep.subr.mxu0 0.0
    %1624 = vmatpush1.msra.mxu0 0.0
    %1625 = vmatprep.subr.mxu0 0.0
    %1626 = vmatpush1.msra.mxu0 0.0
    %1627 = vmatprep.subr.mxu0 0.0
    %1628 = vmatpush1.msra.mxu0 0.0
    %1629 = vmatprep.subr.mxu0 0.0
    %1630 = vmatpush1.msra.mxu0 0.0
    %1631 = vmatprep.subr.mxu0 0.0
    %1632 = vmatpush1.msra.mxu0 0.0
    %1633 = vmatprep.subr.mxu0 0.0
    %1634 = vmatpush1.msra.mxu0 0.0
    %1635 = vmatprep.subr.mxu0 0.0
    %1636 = vmatpush1.msra.mxu0 0.0
    %1637 = vmatprep.subr.mxu0 0.0
    %1638 = vmatpush1.msra.mxu0 0.0
    %1639 = vmatprep.subr.mxu0 0.0
    %1640 = vmatpush1.msra.mxu0 0.0
    %1641 = vmatprep.mubr.f32.mxu0 0.0
    %1642 = vmatmul.mubr.f32.gmra.mrb[0].mxu0 %v1527
    %v1643 = vpop.f32.mrb[0].mxu0
    %v1644 = vadd.f32 %v536, %v1643
    %v1645 = vpop.f32.mrb[0].mxu0
    %1646 = vmatprep.mubr.f32.mxu0 0.0
    %1647 = vmatmul.mubr.f32.gmra.mrb[0].mxu0 %v1530
    %v1648 = vpop.f32.mrb[0].mxu0
    %v1649 = vadd.f32 %v541, %v1648
    %v1650 = vpop.f32.mrb[0].mxu0
    %1651 = vmatprep.mubr.f32.mxu0 0.0
    %1652 = vmatmul.mubr.f32.gmra.mrb[0].mxu0 %v1533
    %v1653 = vpop.f32.mrb[0].mxu0
    %v1654 = vadd.f32 %v546, %v1653
    %v1655 = vpop.f32.mrb[0].mxu0
    %1656 = vmatprep.mubr.f32.mxu0 0.0
    %1657 = vmatmul.mubr.f32.gmra.mrb[0].mxu0 %v1536
    %v1658 = vpop.f32.mrb[0].mxu0
    %v1659 = vadd.f32 %v551, %v1658
    %v1660 = vpop.f32.mrb[0].mxu0
    %1661 = vmatprep.mubr.f32.mxu0 0.0
    %1662 = vmatmul.mubr.f32.gmra.mrb[0].mxu0 %v1539
    %v1663 = vpop.f32.mrb[0].mxu0
    %v1664 = vadd.f32 %v556, %v1663
    %v1665 = vpop.f32.mrb[0].mxu0
    %1666 = vmatprep.mubr.f32.mxu0 0.0
    %1667 = vmatmul.mubr.f32.gmra.mrb[0].mxu0 %v1542
    %v1668 = vpop.f32.mrb[0].mxu0
    %v1669 = vadd.f32 %v561, %v1668
    %v1670 = vpop.f32.mrb[0].mxu0
    %1671 = vmatprep.mubr.f32.mxu0 0.0
    %1672 = vmatmul.mubr.f32.gmra.mrb[0].mxu0 %v1545
    %v1673 = vpop.f32.mrb[0].mxu0
    %v1674 = vadd.f32 %v566, %v1673
    %v1675 = vpop.f32.mrb[0].mxu0
    %1676 = vmatprep.mubr.f32.mxu0 0.0
    %1677 = vmatmul.mubr.f32.gmra.mrb[0].mxu0 %v1548
    %v1678 = vpop.f32.mrb[0].mxu0
    %v1679 = vadd.f32 %v571, %v1678
    %v1680 = vpop.f32.mrb[0].mxu0
    %1681 = vmatprep.mubr.f32.mxu0 0.0
    %1682 = vmatmul.mubr.f32.gmra.mrb[0].mxu0 %v1551
    %v1683 = vpop.f32.mrb[0].mxu0
    %v1684 = vadd.f32 %v576, %v1683
    %v1685 = vpop.f32.mrb[0].mxu0
    %1686 = vmatprep.mubr.f32.mxu0 0.0
    %1687 = vmatmul.mubr.f32.gmra.mrb[0].mxu0 %v1554
    %v1688 = vpop.f32.mrb[0].mxu0
    %v1689 = vadd.f32 %v581, %v1688
    %v1690 = vpop.f32.mrb[0].mxu0
    %1691 = vmatprep.mubr.f32.mxu0 0.0
    %1692 = vmatmul.mubr.f32.gmra.mrb[0].mxu0 %v1557
    %v1693 = vpop.f32.mrb[0].mxu0
    %v1694 = vadd.f32 %v586, %v1693
    %v1695 = vpop.f32.mrb[0].mxu0
    %1696 = vmatprep.mubr.f32.mxu0 0.0
    %1697 = vmatmul.mubr.f32.gmra.mrb[0].mxu0 %v1560
    %v1698 = vpop.f32.mrb[0].mxu0
    %v1699 = vadd.f32 %v591, %v1698
    %v1700 = vpop.f32.mrb[0].mxu0
    %1701 = vmatprep.mubr.f32.mxu0 0.0
    %1702 = vmatmul.mubr.f32.gmra.mrb[0].mxu0 %v1563
    %v1703 = vpop.f32.mrb[0].mxu0
    %v1704 = vadd.f32 %v596, %v1703
    %v1705 = vpop.f32.mrb[0].mxu0
    %1706 = vmatprep.mubr.f32.mxu0 0.0
    %1707 = vmatmul.mubr.f32.gmra.mrb[0].mxu0 %v1566
    %v1708 = vpop.f32.mrb[0].mxu0
    %v1709 = vadd.f32 %v601, %v1708
    %v1710 = vpop.f32.mrb[0].mxu0
    %1711 = vmatprep.mubr.f32.mxu0 0.0
    %1712 = vmatmul.mubr.f32.gmra.mrb[0].mxu0 %v1569
    %v1713 = vpop.f32.mrb[0].mxu0
    %v1714 = vadd.f32 %v606, %v1713
    %v1715 = vpop.f32.mrb[0].mxu0
    %1716 = vmatprep.mubr.f32.mxu0 0.0
    %1717 = vmatmul.mubr.f32.gmra.mrb[0].mxu0 %v1572
    %v1718 = vpop.f32.mrb[0].mxu0
    %v1719 = vadd.f32 %v611, %v1718
    %v1720 = vpop.f32.mrb[0].mxu0
    %1721 = vdwg.mxu0
    %v1723 = vsel %vm416, %v614, 0
    %v1726 = vsel %vm416, %v615, 0
    %v1729 = vsel %vm416, %v616, 0
    %v1732 = vsel %vm416, %v617, 0
    %v1735 = vsel %vm416, %v618, 0
    %v1738 = vsel %vm416, %v619, 0
    %v1741 = vsel %vm416, %v620, 0
    %v1744 = vsel %vm416, %v621, 0
    %v1747 = vsel %vm416, %v622, 0
    %v1750 = vsel %vm416, %v623, 0
    %v1753 = vsel %vm416, %v624, 0
    %v1756 = vsel %vm416, %v625, 0
    %v1759 = vsel %vm416, %v626, 0
    %v1762 = vsel %vm416, %v627, 0
    %v1765 = vsel %vm416, %v628, 0
    %v1768 = vsel %vm416, %v629, 0
    %v1771 = vsel %vm465, %v631, 0
    %1773 = vmatprep.subr.mxu0 0.0
    %1774 = vmatpush1.msra.mxu0 %v1771
    %1775 = vmatprep.subr.mxu0 0.0
    %1776 = vmatpush1.msra.mxu0 0.0
    %1777 = vmatprep.subr.mxu0 0.0
    %1778 = vmatpush1.msra.mxu0 0.0
    %1779 = vmatprep.subr.mxu0 0.0
    %1780 = vmatpush1.msra.mxu0 0.0
    %1781 = vmatprep.subr.mxu0 0.0
    %1782 = vmatpush1.msra.mxu0 0.0
    %1783 = vmatprep.subr.mxu0 0.0
    %1784 = vmatpush1.msra.mxu0 0.0
    %1785 = vmatprep.subr.mxu0 0.0
    %1786 = vmatpush1.msra.mxu0 0.0
    %1787 = vmatprep.subr.mxu0 0.0
    %1788 = vmatpush1.msra.mxu0 0.0
    %1789 = vmatprep.subr.mxu0 0.0
    %1790 = vmatpush1.msra.mxu0 0.0
    %1791 = vmatprep.subr.mxu0 0.0
    %1792 = vmatpush1.msra.mxu0 0.0
    %1793 = vmatprep.subr.mxu0 0.0
    %1794 = vmatpush1.msra.mxu0 0.0
    %1795 = vmatprep.subr.mxu0 0.0
    %1796 = vmatpush1.msra.mxu0 0.0
    %1797 = vmatprep.subr.mxu0 0.0
    %1798 = vmatpush1.msra.mxu0 0.0
    %1799 = vmatprep.subr.mxu0 0.0
    %1800 = vmatpush1.msra.mxu0 0.0
    %1801 = vmatprep.subr.mxu0 0.0
    %1802 = vmatpush1.msra.mxu0 0.0
    %1803 = vmatprep.subr.mxu0 0.0
    %1804 = vmatpush1.msra.mxu0 0.0
    %1805 = vmatprep.subr.mxu0 0.0
    %1806 = vmatpush1.msra.mxu0 0.0
    %1807 = vmatprep.subr.mxu0 0.0
    %1808 = vmatpush1.msra.mxu0 0.0
    %1809 = vmatprep.subr.mxu0 0.0
    %1810 = vmatpush1.msra.mxu0 0.0
    %1811 = vmatprep.subr.mxu0 0.0
    %1812 = vmatpush1.msra.mxu0 0.0
    %1813 = vmatprep.subr.mxu0 0.0
    %1814 = vmatpush1.msra.mxu0 0.0
    %1815 = vmatprep.subr.mxu0 0.0
    %1816 = vmatpush1.msra.mxu0 0.0
    %1817 = vmatprep.subr.mxu0 0.0
    %1818 = vmatpush1.msra.mxu0 0.0
    %1819 = vmatprep.subr.mxu0 0.0
    %1820 = vmatpush1.msra.mxu0 0.0
    %1821 = vmatprep.subr.mxu0 0.0
    %1822 = vmatpush1.msra.mxu0 0.0
    %1823 = vmatprep.subr.mxu0 0.0
    %1824 = vmatpush1.msra.mxu0 0.0
    %1825 = vmatprep.subr.mxu0 0.0
    %1826 = vmatpush1.msra.mxu0 0.0
    %1827 = vmatprep.subr.mxu0 0.0
    %1828 = vmatpush1.msra.mxu0 0.0
    %1829 = vmatprep.subr.mxu0 0.0
    %1830 = vmatpush1.msra.mxu0 0.0
    %1831 = vmatprep.subr.mxu0 0.0
    %1832 = vmatpush1.msra.mxu0 0.0
    %1833 = vmatprep.subr.mxu0 0.0
    %1834 = vmatpush1.msra.mxu0 0.0
    %1835 = vmatprep.subr.mxu0 0.0
    %1836 = vmatpush1.msra.mxu0 0.0
    %1837 = vmatprep.mubr.f32.mxu0 0.0
    %1838 = vmatmul.mubr.f32.gmra.mrb[0].mxu0 %v1723
    %v1839 = vpop.f32.mrb[0].mxu0
    %v1840 = vadd.f32 %v769, %v1839
    %v1841 = vpop.f32.mrb[0].mxu0
    %1842 = vmatprep.mubr.f32.mxu0 0.0
    %1843 = vmatmul.mubr.f32.gmra.mrb[0].mxu0 %v1726
    %v1844 = vpop.f32.mrb[0].mxu0
    %v1845 = vadd.f32 %v774, %v1844
    %v1846 = vpop.f32.mrb[0].mxu0
    %1847 = vmatprep.mubr.f32.mxu0 0.0
    %1848 = vmatmul.mubr.f32.gmra.mrb[0].mxu0 %v1729
    %v1849 = vpop.f32.mrb[0].mxu0
    %v1850 = vadd.f32 %v779, %v1849
    %v1851 = vpop.f32.mrb[0].mxu0
    %1852 = vmatprep.mubr.f32.mxu0 0.0
    %1853 = vmatmul.mubr.f32.gmra.mrb[0].mxu0 %v1732
    %v1854 = vpop.f32.mrb[0].mxu0
    %v1855 = vadd.f32 %v784, %v1854
    %v1856 = vpop.f32.mrb[0].mxu0
    %1857 = vmatprep.mubr.f32.mxu0 0.0
    %1858 = vmatmul.mubr.f32.gmra.mrb[0].mxu0 %v1735
    %v1859 = vpop.f32.mrb[0].mxu0
    %v1860 = vadd.f32 %v789, %v1859
    %v1861 = vpop.f32.mrb[0].mxu0
    %1862 = vmatprep.mubr.f32.mxu0 0.0
    %1863 = vmatmul.mubr.f32.gmra.mrb[0].mxu0 %v1738
    %v1864 = vpop.f32.mrb[0].mxu0
    %v1865 = vadd.f32 %v794, %v1864
    %v1866 = vpop.f32.mrb[0].mxu0
    %1867 = vmatprep.mubr.f32.mxu0 0.0
    %1868 = vmatmul.mubr.f32.gmra.mrb[0].mxu0 %v1741
    %v1869 = vpop.f32.mrb[0].mxu0
    %v1870 = vadd.f32 %v799, %v1869
    %v1871 = vpop.f32.mrb[0].mxu0
    %1872 = vmatprep.mubr.f32.mxu0 0.0
    %1873 = vmatmul.mubr.f32.gmra.mrb[0].mxu0 %v1744
    %v1874 = vpop.f32.mrb[0].mxu0
    %v1875 = vadd.f32 %v804, %v1874
    %v1876 = vpop.f32.mrb[0].mxu0
    %1877 = vmatprep.mubr.f32.mxu0 0.0
    %1878 = vmatmul.mubr.f32.gmra.mrb[0].mxu0 %v1747
    %v1879 = vpop.f32.mrb[0].mxu0
    %v1880 = vadd.f32 %v809, %v1879
    %v1881 = vpop.f32.mrb[0].mxu0
    %1882 = vmatprep.mubr.f32.mxu0 0.0
    %1883 = vmatmul.mubr.f32.gmra.mrb[0].mxu0 %v1750
    %v1884 = vpop.f32.mrb[0].mxu0
    %v1885 = vadd.f32 %v814, %v1884
    %v1886 = vpop.f32.mrb[0].mxu0
    %1887 = vmatprep.mubr.f32.mxu0 0.0
    %1888 = vmatmul.mubr.f32.gmra.mrb[0].mxu0 %v1753
    %v1889 = vpop.f32.mrb[0].mxu0
    %v1890 = vadd.f32 %v819, %v1889
    %v1891 = vpop.f32.mrb[0].mxu0
    %1892 = vmatprep.mubr.f32.mxu0 0.0
    %1893 = vmatmul.mubr.f32.gmra.mrb[0].mxu0 %v1756
    %v1894 = vpop.f32.mrb[0].mxu0
    %v1895 = vadd.f32 %v824, %v1894
    %v1896 = vpop.f32.mrb[0].mxu0
    %1897 = vmatprep.mubr.f32.mxu0 0.0
    %1898 = vmatmul.mubr.f32.gmra.mrb[0].mxu0 %v1759
    %v1899 = vpop.f32.mrb[0].mxu0
    %v1900 = vadd.f32 %v829, %v1899
    %v1901 = vpop.f32.mrb[0].mxu0
    %1902 = vmatprep.mubr.f32.mxu0 0.0
    %1903 = vmatmul.mubr.f32.gmra.mrb[0].mxu0 %v1762
    %v1904 = vpop.f32.mrb[0].mxu0
    %v1905 = vadd.f32 %v834, %v1904
    %v1906 = vpop.f32.mrb[0].mxu0
    %1907 = vmatprep.mubr.f32.mxu0 0.0
    %1908 = vmatmul.mubr.f32.gmra.mrb[0].mxu0 %v1765
    %v1909 = vpop.f32.mrb[0].mxu0
    %v1910 = vadd.f32 %v839, %v1909
    %v1911 = vpop.f32.mrb[0].mxu0
    %1912 = vmatprep.mubr.f32.mxu0 0.0
    %1913 = vmatmul.mubr.f32.gmra.mrb[0].mxu0 %v1768
    %v1914 = vpop.f32.mrb[0].mxu0
    %v1915 = vadd.f32 %v844, %v1914
    %v1916 = vpop.f32.mrb[0].mxu0
    %1917 = vdwg.mxu0
    %v1919 = vsel %vm416, %v847, 0
    %v1922 = vsel %vm416, %v848, 0
    %v1925 = vsel %vm416, %v849, 0
    %v1928 = vsel %vm416, %v850, 0
    %v1931 = vsel %vm416, %v851, 0
    %v1934 = vsel %vm416, %v852, 0
    %v1937 = vsel %vm416, %v853, 0
    %v1940 = vsel %vm416, %v854, 0
    %v1943 = vsel %vm416, %v855, 0
    %v1946 = vsel %vm416, %v856, 0
    %v1949 = vsel %vm416, %v857, 0
    %v1952 = vsel %vm416, %v858, 0
    %v1955 = vsel %vm416, %v859, 0
    %v1958 = vsel %vm416, %v860, 0
    %v1961 = vsel %vm416, %v861, 0
    %v1964 = vsel %vm416, %v862, 0
    %v1967 = vsel %vm465, %v864, 0
    %1969 = vmatprep.subr.mxu0 0.0
    %1970 = vmatpush1.msra.mxu0 %v1967
    %1971 = vmatprep.subr.mxu0 0.0
    %1972 = vmatpush1.msra.mxu0 0.0
    %1973 = vmatprep.subr.mxu0 0.0
    %1974 = vmatpush1.msra.mxu0 0.0
    %1975 = vmatprep.subr.mxu0 0.0
    %1976 = vmatpush1.msra.mxu0 0.0
    %1977 = vmatprep.subr.mxu0 0.0
    %1978 = vmatpush1.msra.mxu0 0.0
    %1979 = vmatprep.subr.mxu0 0.0
    %1980 = vmatpush1.msra.mxu0 0.0
    %1981 = vmatprep.subr.mxu0 0.0
    %1982 = vmatpush1.msra.mxu0 0.0
    %1983 = vmatprep.subr.mxu0 0.0
    %1984 = vmatpush1.msra.mxu0 0.0
    %1985 = vmatprep.subr.mxu0 0.0
    %1986 = vmatpush1.msra.mxu0 0.0
    %1987 = vmatprep.subr.mxu0 0.0
    %1988 = vmatpush1.msra.mxu0 0.0
    %1989 = vmatprep.subr.mxu0 0.0
    %1990 = vmatpush1.msra.mxu0 0.0
    %1991 = vmatprep.subr.mxu0 0.0
    %1992 = vmatpush1.msra.mxu0 0.0
    %1993 = vmatprep.subr.mxu0 0.0
    %1994 = vmatpush1.msra.mxu0 0.0
    %1995 = vmatprep.subr.mxu0 0.0
    %1996 = vmatpush1.msra.mxu0 0.0
    %1997 = vmatprep.subr.mxu0 0.0
    %1998 = vmatpush1.msra.mxu0 0.0
    %1999 = vmatprep.subr.mxu0 0.0
    %2000 = vmatpush1.msra.mxu0 0.0
    %2001 = vmatprep.subr.mxu0 0.0
    %2002 = vmatpush1.msra.mxu0 0.0
    %2003 = vmatprep.subr.mxu0 0.0
    %2004 = vmatpush1.msra.mxu0 0.0
    %2005 = vmatprep.subr.mxu0 0.0
    %2006 = vmatpush1.msra.mxu0 0.0
    %2007 = vmatprep.subr.mxu0 0.0
    %2008 = vmatpush1.msra.mxu0 0.0
    %2009 = vmatprep.subr.mxu0 0.0
    %2010 = vmatpush1.msra.mxu0 0.0
    %2011 = vmatprep.subr.mxu0 0.0
    %2012 = vmatpush1.msra.mxu0 0.0
    %2013 = vmatprep.subr.mxu0 0.0
    %2014 = vmatpush1.msra.mxu0 0.0
    %2015 = vmatprep.subr.mxu0 0.0
    %2016 = vmatpush1.msra.mxu0 0.0
    %2017 = vmatprep.subr.mxu0 0.0
    %2018 = vmatpush1.msra.mxu0 0.0
    %2019 = vmatprep.subr.mxu0 0.0
    %2020 = vmatpush1.msra.mxu0 0.0
    %2021 = vmatprep.subr.mxu0 0.0
    %2022 = vmatpush1.msra.mxu0 0.0
    %2023 = vmatprep.subr.mxu0 0.0
    %2024 = vmatpush1.msra.mxu0 0.0
    %2025 = vmatprep.subr.mxu0 0.0
    %2026 = vmatpush1.msra.mxu0 0.0
    %2027 = vmatprep.subr.mxu0 0.0
    %2028 = vmatpush1.msra.mxu0 0.0
    %2029 = vmatprep.subr.mxu0 0.0
    %2030 = vmatpush1.msra.mxu0 0.0
    %2031 = vmatprep.subr.mxu0 0.0
    %2032 = vmatpush1.msra.mxu0 0.0
    %2033 = vmatprep.mubr.f32.mxu0 0.0
    %2034 = vmatmul.mubr.f32.gmra.mrb[0].mxu0 %v1919
    %v2035 = vpop.f32.mrb[0].mxu0
    %v2036 = vadd.f32 %v1001, %v2035
    %v2037 = vpop.f32.mrb[0].mxu0
    %2038 = vmatprep.mubr.f32.mxu0 0.0
    %2039 = vmatmul.mubr.f32.gmra.mrb[0].mxu0 %v1922
    %v2040 = vpop.f32.mrb[0].mxu0
    %v2041 = vadd.f32 %v1006, %v2040
    %v2042 = vpop.f32.mrb[0].mxu0
    %2043 = vmatprep.mubr.f32.mxu0 0.0
    %2044 = vmatmul.mubr.f32.gmra.mrb[0].mxu0 %v1925
    %v2045 = vpop.f32.mrb[0].mxu0
    %v2046 = vadd.f32 %v1011, %v2045
    %v2047 = vpop.f32.mrb[0].mxu0
    %2048 = vmatprep.mubr.f32.mxu0 0.0
    %2049 = vmatmul.mubr.f32.gmra.mrb[0].mxu0 %v1928
    %v2050 = vpop.f32.mrb[0].mxu0
    %v2051 = vadd.f32 %v1016, %v2050
    %v2052 = vpop.f32.mrb[0].mxu0
    %2053 = vmatprep.mubr.f32.mxu0 0.0
    %2054 = vmatmul.mubr.f32.gmra.mrb[0].mxu0 %v1931
    %v2055 = vpop.f32.mrb[0].mxu0
    %v2056 = vadd.f32 %v1021, %v2055
    %v2057 = vpop.f32.mrb[0].mxu0
    %2058 = vmatprep.mubr.f32.mxu0 0.0
    %2059 = vmatmul.mubr.f32.gmra.mrb[0].mxu0 %v1934
    %v2060 = vpop.f32.mrb[0].mxu0
    %v2061 = vadd.f32 %v1026, %v2060
    %v2062 = vpop.f32.mrb[0].mxu0
    %2063 = vmatprep.mubr.f32.mxu0 0.0
    %2064 = vmatmul.mubr.f32.gmra.mrb[0].mxu0 %v1937
    %v2065 = vpop.f32.mrb[0].mxu0
    %v2066 = vadd.f32 %v1031, %v2065
    %v2067 = vpop.f32.mrb[0].mxu0
    %2068 = vmatprep.mubr.f32.mxu0 0.0
    %2069 = vmatmul.mubr.f32.gmra.mrb[0].mxu0 %v1940
    %v2070 = vpop.f32.mrb[0].mxu0
    %v2071 = vadd.f32 %v1036, %v2070
    %v2072 = vpop.f32.mrb[0].mxu0
    %2073 = vmatprep.mubr.f32.mxu0 0.0
    %2074 = vmatmul.mubr.f32.gmra.mrb[0].mxu0 %v1943
    %v2075 = vpop.f32.mrb[0].mxu0
    %v2076 = vadd.f32 %v1041, %v2075
    %v2077 = vpop.f32.mrb[0].mxu0
    %2078 = vmatprep.mubr.f32.mxu0 0.0
    %2079 = vmatmul.mubr.f32.gmra.mrb[0].mxu0 %v1946
    %v2080 = vpop.f32.mrb[0].mxu0
    %v2081 = vadd.f32 %v1046, %v2080
    %v2082 = vpop.f32.mrb[0].mxu0
    %2083 = vmatprep.mubr.f32.mxu0 0.0
    %2084 = vmatmul.mubr.f32.gmra.mrb[0].mxu0 %v1949
    %v2085 = vpop.f32.mrb[0].mxu0
    %v2086 = vadd.f32 %v1051, %v2085
    %v2087 = vpop.f32.mrb[0].mxu0
    %2088 = vmatprep.mubr.f32.mxu0 0.0
    %2089 = vmatmul.mubr.f32.gmra.mrb[0].mxu0 %v1952
    %v2090 = vpop.f32.mrb[0].mxu0
    %v2091 = vadd.f32 %v1056, %v2090
    %v2092 = vpop.f32.mrb[0].mxu0
    %2093 = vmatprep.mubr.f32.mxu0 0.0
    %2094 = vmatmul.mubr.f32.gmra.mrb[0].mxu0 %v1955
    %v2095 = vpop.f32.mrb[0].mxu0
    %v2096 = vadd.f32 %v1061, %v2095
    %v2097 = vpop.f32.mrb[0].mxu0
    %2098 = vmatprep.mubr.f32.mxu0 0.0
    %2099 = vmatmul.mubr.f32.gmra.mrb[0].mxu0 %v1958
    %v2100 = vpop.f32.mrb[0].mxu0
    %v2101 = vadd.f32 %v1066, %v2100
    %v2102 = vpop.f32.mrb[0].mxu0
    %2103 = vmatprep.mubr.f32.mxu0 0.0
    %2104 = vmatmul.mubr.f32.gmra.mrb[0].mxu0 %v1961
    %v2105 = vpop.f32.mrb[0].mxu0
    %v2106 = vadd.f32 %v1071, %v2105
    %v2107 = vpop.f32.mrb[0].mxu0
    %2108 = vmatprep.mubr.f32.mxu0 0.0
    %2109 = vmatmul.mubr.f32.gmra.mrb[0].mxu0 %v1964
    %v2110 = vpop.f32.mrb[0].mxu0
    %v2111 = vadd.f32 %v1076, %v2110
    %v2112 = vpop.f32.mrb[0].mxu0
    %2113 = vdwg.mxu0
    %v2115 = vsel %vm416, %v1080, 0
    %v2118 = vsel %vm416, %v1081, 0
    %v2121 = vsel %vm416, %v1082, 0
    %v2124 = vsel %vm416, %v1083, 0
    %v2127 = vsel %vm416, %v1084, 0
    %v2130 = vsel %vm416, %v1085, 0
    %v2133 = vsel %vm416, %v1086, 0
    %v2136 = vsel %vm416, %v1087, 0
    %v2139 = vsel %vm416, %v1088, 0
    %v2142 = vsel %vm416, %v1089, 0
    %v2145 = vsel %vm416, %v1090, 0
    %v2148 = vsel %vm416, %v1091, 0
    %v2151 = vsel %vm416, %v1092, 0
    %v2154 = vsel %vm416, %v1093, 0
    %v2157 = vsel %vm416, %v1094, 0
    %v2160 = vsel %vm416, %v1095, 0
    %v2163 = vsel %vm465, %v1097, 0
    %2165 = vmatprep.subr.mxu0 0.0
    %2166 = vmatpush1.msra.mxu0 %v2163
    %2167 = vmatprep.subr.mxu0 0.0
    %2168 = vmatpush1.msra.mxu0 0.0
    %2169 = vmatprep.subr.mxu0 0.0
    %2170 = vmatpush1.msra.mxu0 0.0
    %2171 = vmatprep.subr.mxu0 0.0
    %2172 = vmatpush1.msra.mxu0 0.0
    %2173 = vmatprep.subr.mxu0 0.0
    %2174 = vmatpush1.msra.mxu0 0.0
    %2175 = vmatprep.subr.mxu0 0.0
    %2176 = vmatpush1.msra.mxu0 0.0
    %2177 = vmatprep.subr.mxu0 0.0
    %2178 = vmatpush1.msra.mxu0 0.0
    %2179 = vmatprep.subr.mxu0 0.0
    %2180 = vmatpush1.msra.mxu0 0.0
    %2181 = vmatprep.subr.mxu0 0.0
    %2182 = vmatpush1.msra.mxu0 0.0
    %2183 = vmatprep.subr.mxu0 0.0
    %2184 = vmatpush1.msra.mxu0 0.0
    %2185 = vmatprep.subr.mxu0 0.0
    %2186 = vmatpush1.msra.mxu0 0.0
    %2187 = vmatprep.subr.mxu0 0.0
    %2188 = vmatpush1.msra.mxu0 0.0
    %2189 = vmatprep.subr.mxu0 0.0
    %2190 = vmatpush1.msra.mxu0 0.0
    %2191 = vmatprep.subr.mxu0 0.0
    %2192 = vmatpush1.msra.mxu0 0.0
    %2193 = vmatprep.subr.mxu0 0.0
    %2194 = vmatpush1.msra.mxu0 0.0
    %2195 = vmatprep.subr.mxu0 0.0
    %2196 = vmatpush1.msra.mxu0 0.0
    %2197 = vmatprep.subr.mxu0 0.0
    %2198 = vmatpush1.msra.mxu0 0.0
    %2199 = vmatprep.subr.mxu0 0.0
    %2200 = vmatpush1.msra.mxu0 0.0
    %2201 = vmatprep.subr.mxu0 0.0
    %2202 = vmatpush1.msra.mxu0 0.0
    %2203 = vmatprep.subr.mxu0 0.0
    %2204 = vmatpush1.msra.mxu0 0.0
    %2205 = vmatprep.subr.mxu0 0.0
    %2206 = vmatpush1.msra.mxu0 0.0
    %2207 = vmatprep.subr.mxu0 0.0
    %2208 = vmatpush1.msra.mxu0 0.0
    %2209 = vmatprep.subr.mxu0 0.0
    %2210 = vmatpush1.msra.mxu0 0.0
    %2211 = vmatprep.subr.mxu0 0.0
    %2212 = vmatpush1.msra.mxu0 0.0
    %2213 = vmatprep.subr.mxu0 0.0
    %2214 = vmatpush1.msra.mxu0 0.0
    %2215 = vmatprep.subr.mxu0 0.0
    %2216 = vmatpush1.msra.mxu0 0.0
    %2217 = vmatprep.subr.mxu0 0.0
    %2218 = vmatpush1.msra.mxu0 0.0
    %2219 = vmatprep.subr.mxu0 0.0
    %2220 = vmatpush1.msra.mxu0 0.0
    %2221 = vmatprep.subr.mxu0 0.0
    %2222 = vmatpush1.msra.mxu0 0.0
    %2223 = vmatprep.subr.mxu0 0.0
    %2224 = vmatpush1.msra.mxu0 0.0
    %2225 = vmatprep.subr.mxu0 0.0
    %2226 = vmatpush1.msra.mxu0 0.0
    %2227 = vmatprep.subr.mxu0 0.0
    %2228 = vmatpush1.msra.mxu0 0.0
    %2229 = vmatprep.mubr.f32.mxu0 0.0
    %2230 = vmatmul.mubr.f32.gmra.mrb[0].mxu0 %v2115
    %v2231 = vpop.f32.mrb[0].mxu0
    %v2232 = vadd.f32 %v1234, %v2231
    %v2233 = vpop.f32.mrb[0].mxu0
    %2234 = vmatprep.mubr.f32.mxu0 0.0
    %2235 = vmatmul.mubr.f32.gmra.mrb[0].mxu0 %v2118
    %v2236 = vpop.f32.mrb[0].mxu0
    %v2237 = vadd.f32 %v1239, %v2236
    %v2238 = vpop.f32.mrb[0].mxu0
    %2239 = vmatprep.mubr.f32.mxu0 0.0
    %2240 = vmatmul.mubr.f32.gmra.mrb[0].mxu0 %v2121
    %v2241 = vpop.f32.mrb[0].mxu0
    %v2242 = vadd.f32 %v1244, %v2241
    %v2243 = vpop.f32.mrb[0].mxu0
    %2244 = vmatprep.mubr.f32.mxu0 0.0
    %2245 = vmatmul.mubr.f32.gmra.mrb[0].mxu0 %v2124
    %v2246 = vpop.f32.mrb[0].mxu0
    %v2247 = vadd.f32 %v1249, %v2246
    %v2248 = vpop.f32.mrb[0].mxu0
    %2249 = vmatprep.mubr.f32.mxu0 0.0
    %2250 = vmatmul.mubr.f32.gmra.mrb[0].mxu0 %v2127
    %v2251 = vpop.f32.mrb[0].mxu0
    %v2252 = vadd.f32 %v1254, %v2251
    %v2253 = vpop.f32.mrb[0].mxu0
    %2254 = vmatprep.mubr.f32.mxu0 0.0
    %2255 = vmatmul.mubr.f32.gmra.mrb[0].mxu0 %v2130
    %v2256 = vpop.f32.mrb[0].mxu0
    %v2257 = vadd.f32 %v1259, %v2256
    %v2258 = vpop.f32.mrb[0].mxu0
    %2259 = vmatprep.mubr.f32.mxu0 0.0
    %2260 = vmatmul.mubr.f32.gmra.mrb[0].mxu0 %v2133
    %v2261 = vpop.f32.mrb[0].mxu0
    %v2262 = vadd.f32 %v1264, %v2261
    %v2263 = vpop.f32.mrb[0].mxu0
    %2264 = vmatprep.mubr.f32.mxu0 0.0
    %2265 = vmatmul.mubr.f32.gmra.mrb[0].mxu0 %v2136
    %v2266 = vpop.f32.mrb[0].mxu0
    %v2267 = vadd.f32 %v1269, %v2266
    %v2268 = vpop.f32.mrb[0].mxu0
    %2269 = vmatprep.mubr.f32.mxu0 0.0
    %2270 = vmatmul.mubr.f32.gmra.mrb[0].mxu0 %v2139
    %v2271 = vpop.f32.mrb[0].mxu0
    %v2272 = vadd.f32 %v1274, %v2271
    %v2273 = vpop.f32.mrb[0].mxu0
    %2274 = vmatprep.mubr.f32.mxu0 0.0
    %2275 = vmatmul.mubr.f32.gmra.mrb[0].mxu0 %v2142
    %v2276 = vpop.f32.mrb[0].mxu0
    %v2277 = vadd.f32 %v1279, %v2276
    %v2278 = vpop.f32.mrb[0].mxu0
    %2279 = vmatprep.mubr.f32.mxu0 0.0
    %2280 = vmatmul.mubr.f32.gmra.mrb[0].mxu0 %v2145
    %v2281 = vpop.f32.mrb[0].mxu0
    %v2282 = vadd.f32 %v1284, %v2281
    %v2283 = vpop.f32.mrb[0].mxu0
    %2284 = vmatprep.mubr.f32.mxu0 0.0
    %2285 = vmatmul.mubr.f32.gmra.mrb[0].mxu0 %v2148
    %v2286 = vpop.f32.mrb[0].mxu0
    %v2287 = vadd.f32 %v1289, %v2286
    %v2288 = vpop.f32.mrb[0].mxu0
    %2289 = vmatprep.mubr.f32.mxu0 0.0
    %2290 = vmatmul.mubr.f32.gmra.mrb[0].mxu0 %v2151
    %v2291 = vpop.f32.mrb[0].mxu0
    %v2292 = vadd.f32 %v1294, %v2291
    %v2293 = vpop.f32.mrb[0].mxu0
    %2294 = vmatprep.mubr.f32.mxu0 0.0
    %2295 = vmatmul.mubr.f32.gmra.mrb[0].mxu0 %v2154
    %v2296 = vpop.f32.mrb[0].mxu0
    %v2297 = vadd.f32 %v1299, %v2296
    %v2298 = vpop.f32.mrb[0].mxu0
    %2299 = vmatprep.mubr.f32.mxu0 0.0
    %2300 = vmatmul.mubr.f32.gmra.mrb[0].mxu0 %v2157
    %v2301 = vpop.f32.mrb[0].mxu0
    %v2302 = vadd.f32 %v1304, %v2301
    %v2303 = vpop.f32.mrb[0].mxu0
    %2304 = vmatprep.mubr.f32.mxu0 0.0
    %2305 = vmatmul.mubr.f32.gmra.mrb[0].mxu0 %v2160
    %v2306 = vpop.f32.mrb[0].mxu0
    %v2307 = vadd.f32 %v1309, %v2306
    %v2308 = vpop.f32.mrb[0].mxu0
    %2309 = vdwg.mxu0
    %v2310 = vadd.f32 %v1644, %v1840
    %v2311 = vadd.f32 %v1649, %v1845
    %v2312 = vadd.f32 %v1654, %v1850
    %v2313 = vadd.f32 %v1659, %v1855
    %v2314 = vadd.f32 %v1664, %v1860
    %v2315 = vadd.f32 %v1669, %v1865
    %v2316 = vadd.f32 %v1674, %v1870
    %v2317 = vadd.f32 %v1679, %v1875
    %v2318 = vadd.f32 %v1684, %v1880
    %v2319 = vadd.f32 %v1689, %v1885
    %v2320 = vadd.f32 %v1694, %v1890
    %v2321 = vadd.f32 %v1699, %v1895
    %v2322 = vadd.f32 %v1704, %v1900
    %v2323 = vadd.f32 %v1709, %v1905
    %v2324 = vadd.f32 %v1714, %v1910
    %v2325 = vadd.f32 %v1719, %v1915
    %v2326 = vadd.f32 %v2036, %v2232
    %v2327 = vadd.f32 %v2041, %v2237
    %v2328 = vadd.f32 %v2046, %v2242
    %v2329 = vadd.f32 %v2051, %v2247
    %v2330 = vadd.f32 %v2056, %v2252
    %v2331 = vadd.f32 %v2061, %v2257
    %v2332 = vadd.f32 %v2066, %v2262
    %v2333 = vadd.f32 %v2071, %v2267
    %v2334 = vadd.f32 %v2076, %v2272
    %v2335 = vadd.f32 %v2081, %v2277
    %v2336 = vadd.f32 %v2086, %v2282
    %v2337 = vadd.f32 %v2091, %v2287
    %v2338 = vadd.f32 %v2096, %v2292
    %v2339 = vadd.f32 %v2101, %v2297
    %v2340 = vadd.f32 %v2106, %v2302
    %v2341 = vadd.f32 %v2111, %v2307
    %v2342 = vadd.f32 %v2310, %v2326
    %v2343 = vadd.f32 %v2311, %v2327
    %v2344 = vadd.f32 %v2312, %v2328
    %v2345 = vadd.f32 %v2313, %v2329
    %v2346 = vadd.f32 %v2314, %v2330
    %v2347 = vadd.f32 %v2315, %v2331
    %v2348 = vadd.f32 %v2316, %v2332
    %v2349 = vadd.f32 %v2317, %v2333
    %v2350 = vadd.f32 %v2318, %v2334
    %v2351 = vadd.f32 %v2319, %v2335
    %v2352 = vadd.f32 %v2320, %v2336
    %v2353 = vadd.f32 %v2321, %v2337
    %v2354 = vadd.f32 %v2322, %v2338
    %v2355 = vadd.f32 %v2323, %v2339
    %v2356 = vadd.f32 %v2324, %v2340
    %v2357 = vadd.f32 %v2325, %v2341
    %v2358 = vadd.f32 %v2342, %v1448
    %v2359 = vadd.f32 %v2343, %v1453
    %v2360 = vadd.f32 %v2344, %v1458
    %v2361 = vadd.f32 %v2345, %v1463
    %v2362 = vadd.f32 %v2346, %v1468
    %v2363 = vadd.f32 %v2347, %v1473
    %v2364 = vadd.f32 %v2348, %v1478
    %v2365 = vadd.f32 %v2349, %v1483
    %v2366 = vadd.f32 %v2350, %v1488
    %v2367 = vadd.f32 %v2351, %v1493
    %v2368 = vadd.f32 %v2352, %v1498
    %v2369 = vadd.f32 %v2353, %v1503
    %v2370 = vadd.f32 %v2354, %v1508
    %v2371 = vadd.f32 %v2355, %v1513
    %v2372 = vadd.f32 %v2356, %v1518
    %v2373 = vadd.f32 %v2357, %v1523
    %v2374 = vld [vmem:[%s3] sm:$0x1]
    %v2376 = vlaneseq
    %v2377 = vshrl.u32 %v2376, 7
    %v2378 = vsub.s32 0, %v2377
    %v2379 = vrot.slane %v2374, %v2378
    %v2381 = vadd.f32 %v2358, %v2379
    %v2382 = vadd.f32 %v2359, %v2379
    %v2383 = vadd.f32 %v2360, %v2379
    %v2384 = vadd.f32 %v2361, %v2379
    %v2385 = vadd.f32 %v2362, %v2379
    %v2386 = vadd.f32 %v2363, %v2379
    %v2387 = vadd.f32 %v2364, %v2379
    %v2388 = vadd.f32 %v2365, %v2379
    %v2389 = vadd.f32 %v2366, %v2379
    %v2390 = vadd.f32 %v2367, %v2379
    %v2391 = vadd.f32 %v2368, %v2379
    %v2392 = vadd.f32 %v2369, %v2379
    %v2393 = vadd.f32 %v2370, %v2379
    %v2394 = vadd.f32 %v2371, %v2379
    %v2395 = vadd.f32 %v2372, %v2379
    %v2396 = vadd.f32 %v2373, %v2379
    %v2397 = vmax.f32 %v2381, 0.0
    %v2398 = vmax.f32 %v2382, 0.0
    %v2399 = vmax.f32 %v2383, 0.0
    %v2400 = vmax.f32 %v2384, 0.0
    %v2401 = vmax.f32 %v2385, 0.0
    %v2402 = vmax.f32 %v2386, 0.0
    %v2403 = vmax.f32 %v2387, 0.0
    %v2404 = vmax.f32 %v2388, 0.0
    %v2405 = vmax.f32 %v2389, 0.0
    %v2406 = vmax.f32 %v2390, 0.0
    %v2407 = vmax.f32 %v2391, 0.0
    %v2408 = vmax.f32 %v2392, 0.0
    %v2409 = vmax.f32 %v2393, 0.0
    %v2410 = vmax.f32 %v2394, 0.0
    %v2411 = vmax.f32 %v2395, 0.0
    %v2412 = vmax.f32 %v2396, 0.0
    %vm2413 = vcmask 130048
    %2414 = vst.msk [vmem:[#allocation2] sm:$0xff] %vm2413, 0.0
    %vm2415 = vcmask 123904
    %2416 = vst.msk [vmem:[#allocation2 + $0x8] sm:$0x3] %vm2415, 0.0
    %2417 = vst.msk [vmem:[#allocation2 + $0x10] sm:$0xff] %vm2413, 0.0
    %2418 = vst.msk [vmem:[#allocation2 + $0x18] sm:$0x3] %vm2415, 0.0
    %2419 = vst.msk [vmem:[#allocation2 + $0x20] sm:$0xff] %vm2413, 0.0
    %2420 = vst.msk [vmem:[#allocation2 + $0x28] sm:$0x3] %vm2415, 0.0
    %2421 = vst.msk [vmem:[#allocation2 + $0x30] sm:$0xff] %vm2413, 0.0
    %2422 = vst.msk [vmem:[#allocation2 + $0x38] sm:$0x3] %vm2415, 0.0
    %2423 = vst.msk [vmem:[#allocation2 + $0x40] sm:$0xff] %vm2413, 0.0
    %2424 = vst.msk [vmem:[#allocation2 + $0x48] sm:$0x3] %vm2415, 0.0
    %2425 = vst.msk [vmem:[#allocation2 + $0x50] sm:$0xff] %vm2413, 0.0
    %2426 = vst.msk [vmem:[#allocation2 + $0x58] sm:$0x3] %vm2415, 0.0
    %2427 = vst.msk [vmem:[#allocation2 + $0x60] sm:$0xff] %vm2413, 0.0
    %2428 = vst.msk [vmem:[#allocation2 + $0x68] sm:$0x3] %vm2415, 0.0
    %2429 = vst.msk [vmem:[#allocation2 + $0x70] sm:$0xff] %vm2413, 0.0
    %2430 = vst.msk [vmem:[#allocation2 + $0x78] sm:$0x3] %vm2415, 0.0
    %2431 = vst.msk [vmem:[#allocation2 + $0x80] sm:$0xff] %vm2413, 0.0
    %2432 = vst.msk [vmem:[#allocation2 + $0x88] sm:$0x3] %vm2415, 0.0
    %2433 = vst.msk [vmem:[#allocation2 + $0x90] sm:$0xff] %vm2413, 0.0
    %2434 = vst.msk [vmem:[#allocation2 + $0x98] sm:$0x3] %vm2415, 0.0
    %2435 = vst.msk [vmem:[#allocation2 + $0xa0] sm:$0xff] %vm2413, 0.0
    %2436 = vst.msk [vmem:[#allocation2 + $0xa8] sm:$0x3] %vm2415, 0.0
    %2437 = vst.msk [vmem:[#allocation2 + $0xb0] sm:$0xff] %vm2413, 0.0
    %2438 = vst.msk [vmem:[#allocation2 + $0xb8] sm:$0x3] %vm2415, 0.0
    %2439 = vst.msk [vmem:[#allocation2 + $0xc0] sm:$0xff] %vm2413, 0.0
    %2440 = vst.msk [vmem:[#allocation2 + $0xc8] sm:$0x3] %vm2415, 0.0
    %2441 = vst.msk [vmem:[#allocation2 + $0xd0] sm:$0xff] %vm2413, 0.0
    %2442 = vst.msk [vmem:[#allocation2 + $0xd8] sm:$0x3] %vm2415, 0.0
    %2443 = vst.msk [vmem:[#allocation2 + $0xe0] sm:$0xff] %vm2413, 0.0
    %2444 = vst.msk [vmem:[#allocation2 + $0xe8] sm:$0x3] %vm2415, 0.0
    %2445 = vst.msk [vmem:[#allocation2 + $0xf0] sm:$0xff] %vm2413, 0.0
    %2446 = vst.msk [vmem:[#allocation2 + $0xf8] sm:$0x3] %vm2415, 0.0
    %2447 = vst.msk [vmem:[#allocation2 + $0x100] sm:$0xff] %vm2413, 0.0
    %2448 = vst.msk [vmem:[#allocation2 + $0x108] sm:$0x3] %vm2415, 0.0
    %2449 = vst.msk [vmem:[#allocation2 + $0x110] sm:$0xff] %vm2413, 0.0
    %2450 = vst.msk [vmem:[#allocation2 + $0x118] sm:$0x3] %vm2415, 0.0
    %2451 = vst.msk [vmem:[#allocation2 + $0x120] sm:$0xff] %vm2413, 0.0
    %2452 = vst.msk [vmem:[#allocation2 + $0x128] sm:$0x3] %vm2415, 0.0
    %2453 = vst.msk [vmem:[#allocation2 + $0x130] sm:$0xff] %vm2413, 0.0
    %2454 = vst.msk [vmem:[#allocation2 + $0x138] sm:$0x3] %vm2415, 0.0
    %s2455 = scalar_lea.vmem [#allocation2], 16
    %2456 = vst.msk [vmem:[%s2455 + $0x1] sm:$0xff] %vm2413, %v2397
    %2457 = vst.msk [vmem:[%s2455 + $0x11] sm:$0xff] %vm2413, %v2398
    %2458 = vst.msk [vmem:[%s2455 + $0x21] sm:$0xff] %vm2413, %v2399
    %2459 = vst.msk [vmem:[%s2455 + $0x31] sm:$0xff] %vm2413, %v2400
    %2460 = vst.msk [vmem:[%s2455 + $0x41] sm:$0xff] %vm2413, %v2401
    %2461 = vst.msk [vmem:[%s2455 + $0x51] sm:$0xff] %vm2413, %v2402
    %2462 = vst.msk [vmem:[%s2455 + $0x61] sm:$0xff] %vm2413, %v2403
    %2463 = vst.msk [vmem:[%s2455 + $0x71] sm:$0xff] %vm2413, %v2404
    %2464 = vst.msk [vmem:[%s2455 + $0xa1] sm:$0xff] %vm2413, %v2405
    %2465 = vst.msk [vmem:[%s2455 + $0xb1] sm:$0xff] %vm2413, %v2406
    %2466 = vst.msk [vmem:[%s2455 + $0xc1] sm:$0xff] %vm2413, %v2407
    %2467 = vst.msk [vmem:[%s2455 + $0xd1] sm:$0xff] %vm2413, %v2408
    %2468 = vst.msk [vmem:[%s2455 + $0xe1] sm:$0xff] %vm2413, %v2409
    %2469 = vst.msk [vmem:[%s2455 + $0xf1] sm:$0xff] %vm2413, %v2410
    %2470 = vst.msk [vmem:[%s2455 + $0x101] sm:$0xff] %vm2413, %v2411
    %2471 = vst.msk [vmem:[%s2455 + $0x111] sm:$0xff] %vm2413, %v2412
    %v2472 = vld [vmem:[#allocation2] sm:$0xff]
    %v2473 = vld [vmem:[#allocation2 + $0x10] sm:$0xff]
    %v2474 = vld [vmem:[#allocation2 + $0x20] sm:$0xff]
    %v2475 = vld [vmem:[#allocation2 + $0x30] sm:$0xff]
    %v2476 = vld [vmem:[#allocation2 + $0x40] sm:$0xff]
    %v2477 = vld [vmem:[#allocation2 + $0x50] sm:$0xff]
    %v2478 = vld [vmem:[#allocation2 + $0x60] sm:$0xff]
    %v2479 = vld [vmem:[#allocation2 + $0x70] sm:$0xff]
    %v2480 = vld [vmem:[#allocation2 + $0xa0] sm:$0xff]
    %v2481 = vld [vmem:[#allocation2 + $0xb0] sm:$0xff]
    %v2482 = vld [vmem:[#allocation2 + $0xc0] sm:$0xff]
    %v2483 = vld [vmem:[#allocation2 + $0xd0] sm:$0xff]
    %v2484 = vld [vmem:[#allocation2 + $0xe0] sm:$0xff]
    %v2485 = vld [vmem:[#allocation2 + $0xf0] sm:$0xff]
    %v2486 = vld [vmem:[#allocation2 + $0x100] sm:$0xff]
    %v2487 = vld [vmem:[#allocation2 + $0x110] sm:$0xff]
    %v2488 = vld [vmem:[%s4] sm:$0xff]
    %v2489 = vld [vmem:[%s4 + $0x8] sm:$0xff]
    %v2490 = vld [vmem:[#allocation2 + $0x1] sm:$0xff]
    %v2491 = vld [vmem:[#allocation2 + $0x11] sm:$0xff]
    %v2492 = vld [vmem:[#allocation2 + $0x21] sm:$0xff]
    %v2493 = vld [vmem:[#allocation2 + $0x31] sm:$0xff]
    %v2494 = vld [vmem:[#allocation2 + $0x41] sm:$0xff]
    %v2495 = vld [vmem:[#allocation2 + $0x51] sm:$0xff]
    %v2496 = vld [vmem:[#allocation2 + $0x61] sm:$0xff]
    %v2497 = vld [vmem:[#allocation2 + $0x71] sm:$0xff]
    %v2498 = vld [vmem:[#allocation2 + $0xa1] sm:$0xff]
    %v2499 = vld [vmem:[#allocation2 + $0xb1] sm:$0xff]
    %v2500 = vld [vmem:[#allocation2 + $0xc1] sm:$0xff]
    %v2501 = vld [vmem:[#allocation2 + $0xd1] sm:$0xff]
    %v2502 = vld [vmem:[#allocation2 + $0xe1] sm:$0xff]
    %v2503 = vld [vmem:[#allocation2 + $0xf1] sm:$0xff]
    %v2504 = vld [vmem:[#allocation2 + $0x101] sm:$0xff]
    %v2505 = vld [vmem:[#allocation2 + $0x111] sm:$0xff]
    %s2506 = scalar_lea.vmem %s4, 16
    %v2507 = vld [vmem:[%s2506] sm:$0xff]
    %v2508 = vld [vmem:[%s2506 + $0x8] sm:$0xff]
    %v2510 = vsel %vm2413, %v2490, 0
    %v2513 = vsel %vm2413, %v2491, 0
    %v2516 = vsel %vm2413, %v2492, 0
    %v2519 = vsel %vm2413, %v2493, 0
    %v2522 = vsel %vm2413, %v2494, 0
    %v2525 = vsel %vm2413, %v2495, 0
    %v2528 = vsel %vm2413, %v2496, 0
    %v2531 = vsel %vm2413, %v2497, 0
    %v2534 = vsel %vm2413, %v2498, 0
    %v2537 = vsel %vm2413, %v2499, 0
    %v2540 = vsel %vm2413, %v2500, 0
    %v2543 = vsel %vm2413, %v2501, 0
    %v2546 = vsel %vm2413, %v2502, 0
    %v2549 = vsel %vm2413, %v2503, 0
    %v2552 = vsel %vm2413, %v2504, 0
    %v2555 = vsel %vm2413, %v2505, 0
    %2557 = vmatprep.subr.mxu0 0.0
    %2558 = vmatpush1.msra.mxu0 %v2507
    %2559 = vmatprep.subr.mxu0 0.0
    %2560 = vmatpush1.msra.mxu0 %v2508
    %2561 = vmatprep.subr.mxu0 0.0
    %2562 = vmatpush1.msra.mxu0 0.0
    %2563 = vmatprep.subr.mxu0 0.0
    %2564 = vmatpush1.msra.mxu0 0.0
    %2565 = vmatprep.subr.mxu0 0.0
    %2566 = vmatpush1.msra.mxu0 0.0
    %2567 = vmatprep.subr.mxu0 0.0
    %2568 = vmatpush1.msra.mxu0 0.0
    %2569 = vmatprep.subr.mxu0 0.0
    %2570 = vmatpush1.msra.mxu0 0.0
    %2571 = vmatprep.subr.mxu0 0.0
    %2572 = vmatpush1.msra.mxu0 0.0
    %2573 = vmatprep.subr.mxu0 0.0
    %2574 = vmatpush1.msra.mxu0 0.0
    %2575 = vmatprep.subr.mxu0 0.0
    %2576 = vmatpush1.msra.mxu0 0.0
    %2577 = vmatprep.subr.mxu0 0.0
    %2578 = vmatpush1.msra.mxu0 0.0
    %2579 = vmatprep.subr.mxu0 0.0
    %2580 = vmatpush1.msra.mxu0 0.0
    %2581 = vmatprep.subr.mxu0 0.0
    %2582 = vmatpush1.msra.mxu0 0.0
    %2583 = vmatprep.subr.mxu0 0.0
    %2584 = vmatpush1.msra.mxu0 0.0
    %2585 = vmatprep.subr.mxu0 0.0
    %2586 = vmatpush1.msra.mxu0 0.0
    %2587 = vmatprep.subr.mxu0 0.0
    %2588 = vmatpush1.msra.mxu0 0.0
    %2589 = vmatprep.subr.mxu0 0.0
    %2590 = vmatpush1.msra.mxu0 0.0
    %2591 = vmatprep.subr.mxu0 0.0
    %2592 = vmatpush1.msra.mxu0 0.0
    %2593 = vmatprep.subr.mxu0 0.0
    %2594 = vmatpush1.msra.mxu0 0.0
    %2595 = vmatprep.subr.mxu0 0.0
    %2596 = vmatpush1.msra.mxu0 0.0
    %2597 = vmatprep.subr.mxu0 0.0
    %2598 = vmatpush1.msra.mxu0 0.0
    %2599 = vmatprep.subr.mxu0 0.0
    %2600 = vmatpush1.msra.mxu0 0.0
    %2601 = vmatprep.subr.mxu0 0.0
    %2602 = vmatpush1.msra.mxu0 0.0
    %2603 = vmatprep.subr.mxu0 0.0
    %2604 = vmatpush1.msra.mxu0 0.0
    %2605 = vmatprep.subr.mxu0 0.0
    %2606 = vmatpush1.msra.mxu0 0.0
    %2607 = vmatprep.subr.mxu0 0.0
    %2608 = vmatpush1.msra.mxu0 0.0
    %2609 = vmatprep.subr.mxu0 0.0
    %2610 = vmatpush1.msra.mxu0 0.0
    %2611 = vmatprep.subr.mxu0 0.0
    %2612 = vmatpush1.msra.mxu0 0.0
    %2613 = vmatprep.subr.mxu0 0.0
    %2614 = vmatpush1.msra.mxu0 0.0
    %2615 = vmatprep.subr.mxu0 0.0
    %2616 = vmatpush1.msra.mxu0 0.0
    %2617 = vmatprep.subr.mxu0 0.0
    %2618 = vmatpush1.msra.mxu0 0.0
    %2619 = vmatprep.subr.mxu0 0.0
    %2620 = vmatpush1.msra.mxu0 0.0
    %2621 = vmatprep.mubr.f32.mxu0 0.0
    %2622 = vmatmul.mubr.f32.gmra.mrb[0].mxu0 %v2510
    %v2623 = vpop.f32.mrb[0].mxu0
    %v2624 = vadd.f32 0.0, %v2623
    %v2625 = vpop.f32.mrb[0].mxu0
    %2626 = vmatprep.mubr.f32.mxu0 0.0
    %2627 = vmatmul.mubr.f32.gmra.mrb[0].mxu0 %v2513
    %v2628 = vpop.f32.mrb[0].mxu0
    %v2629 = vadd.f32 0.0, %v2628
    %v2630 = vpop.f32.mrb[0].mxu0
    %2631 = vmatprep.mubr.f32.mxu0 0.0
    %2632 = vmatmul.mubr.f32.gmra.mrb[0].mxu0 %v2516
    %v2633 = vpop.f32.mrb[0].mxu0
    %v2634 = vadd.f32 0.0, %v2633
    %v2635 = vpop.f32.mrb[0].mxu0
    %2636 = vmatprep.mubr.f32.mxu0 0.0
    %2637 = vmatmul.mubr.f32.gmra.mrb[0].mxu0 %v2519
    %v2638 = vpop.f32.mrb[0].mxu0
    %v2639 = vadd.f32 0.0, %v2638
    %v2640 = vpop.f32.mrb[0].mxu0
    %2641 = vmatprep.mubr.f32.mxu0 0.0
    %2642 = vmatmul.mubr.f32.gmra.mrb[0].mxu0 %v2522
    %v2643 = vpop.f32.mrb[0].mxu0
    %v2644 = vadd.f32 0.0, %v2643
    %v2645 = vpop.f32.mrb[0].mxu0
    %2646 = vmatprep.mubr.f32.mxu0 0.0
    %2647 = vmatmul.mubr.f32.gmra.mrb[0].mxu0 %v2525
    %v2648 = vpop.f32.mrb[0].mxu0
    %v2649 = vadd.f32 0.0, %v2648
    %v2650 = vpop.f32.mrb[0].mxu0
    %2651 = vmatprep.mubr.f32.mxu0 0.0
    %2652 = vmatmul.mubr.f32.gmra.mrb[0].mxu0 %v2528
    %v2653 = vpop.f32.mrb[0].mxu0
    %v2654 = vadd.f32 0.0, %v2653
    %v2655 = vpop.f32.mrb[0].mxu0
    %2656 = vmatprep.mubr.f32.mxu0 0.0
    %2657 = vmatmul.mubr.f32.gmra.mrb[0].mxu0 %v2531
    %v2658 = vpop.f32.mrb[0].mxu0
    %v2659 = vadd.f32 0.0, %v2658
    %v2660 = vpop.f32.mrb[0].mxu0
    %2661 = vmatprep.mubr.f32.mxu0 0.0
    %2662 = vmatmul.mubr.f32.gmra.mrb[0].mxu0 %v2534
    %v2663 = vpop.f32.mrb[0].mxu0
    %v2664 = vadd.f32 0.0, %v2663
    %v2665 = vpop.f32.mrb[0].mxu0
    %2666 = vmatprep.mubr.f32.mxu0 0.0
    %2667 = vmatmul.mubr.f32.gmra.mrb[0].mxu0 %v2537
    %v2668 = vpop.f32.mrb[0].mxu0
    %v2669 = vadd.f32 0.0, %v2668
    %v2670 = vpop.f32.mrb[0].mxu0
    %2671 = vmatprep.mubr.f32.mxu0 0.0
    %2672 = vmatmul.mubr.f32.gmra.mrb[0].mxu0 %v2540
    %v2673 = vpop.f32.mrb[0].mxu0
    %v2674 = vadd.f32 0.0, %v2673
    %v2675 = vpop.f32.mrb[0].mxu0
    %2676 = vmatprep.mubr.f32.mxu0 0.0
    %2677 = vmatmul.mubr.f32.gmra.mrb[0].mxu0 %v2543
    %v2678 = vpop.f32.mrb[0].mxu0
    %v2679 = vadd.f32 0.0, %v2678
    %v2680 = vpop.f32.mrb[0].mxu0
    %2681 = vmatprep.mubr.f32.mxu0 0.0
    %2682 = vmatmul.mubr.f32.gmra.mrb[0].mxu0 %v2546
    %v2683 = vpop.f32.mrb[0].mxu0
    %v2684 = vadd.f32 0.0, %v2683
    %v2685 = vpop.f32.mrb[0].mxu0
    %2686 = vmatprep.mubr.f32.mxu0 0.0
    %2687 = vmatmul.mubr.f32.gmra.mrb[0].mxu0 %v2549
    %v2688 = vpop.f32.mrb[0].mxu0
    %v2689 = vadd.f32 0.0, %v2688
    %v2690 = vpop.f32.mrb[0].mxu0
    %2691 = vmatprep.mubr.f32.mxu0 0.0
    %2692 = vmatmul.mubr.f32.gmra.mrb[0].mxu0 %v2552
    %v2693 = vpop.f32.mrb[0].mxu0
    %v2694 = vadd.f32 0.0, %v2693
    %v2695 = vpop.f32.mrb[0].mxu0
    %2696 = vmatprep.mubr.f32.mxu0 0.0
    %2697 = vmatmul.mubr.f32.gmra.mrb[0].mxu0 %v2555
    %v2698 = vpop.f32.mrb[0].mxu0
    %v2699 = vadd.f32 0.0, %v2698
    %v2700 = vpop.f32.mrb[0].mxu0
    %2701 = vdwg.mxu0
    %v2702 = vld [vmem:[#allocation2 + $0x2] sm:$0xff]
    %v2703 = vld [vmem:[#allocation2 + $0x12] sm:$0xff]
    %v2704 = vld [vmem:[#allocation2 + $0x22] sm:$0xff]
    %v2705 = vld [vmem:[#allocation2 + $0x32] sm:$0xff]
    %v2706 = vld [vmem:[#allocation2 + $0x42] sm:$0xff]
    %v2707 = vld [vmem:[#allocation2 + $0x52] sm:$0xff]
    %v2708 = vld [vmem:[#allocation2 + $0x62] sm:$0xff]
    %v2709 = vld [vmem:[#allocation2 + $0x72] sm:$0xff]
    %v2710 = vld [vmem:[#allocation2 + $0xa2] sm:$0xff]
    %v2711 = vld [vmem:[#allocation2 + $0xb2] sm:$0xff]
    %v2712 = vld [vmem:[#allocation2 + $0xc2] sm:$0xff]
    %v2713 = vld [vmem:[#allocation2 + $0xd2] sm:$0xff]
    %v2714 = vld [vmem:[#allocation2 + $0xe2] sm:$0xff]
    %v2715 = vld [vmem:[#allocation2 + $0xf2] sm:$0xff]
    %v2716 = vld [vmem:[#allocation2 + $0x102] sm:$0xff]
    %v2717 = vld [vmem:[#allocation2 + $0x112] sm:$0xff]
    %s2718 = scalar_lea.vmem %s4, 32
    %v2719 = vld [vmem:[%s2718] sm:$0xff]
    %v2720 = vld [vmem:[%s2718 + $0x8] sm:$0xff]
    %v2721 = vld [vmem:[%s2455] sm:$0xff]
    %v2722 = vld [vmem:[%s2455 + $0x10] sm:$0xff]
    %v2723 = vld [vmem:[%s2455 + $0x20] sm:$0xff]
    %v2724 = vld [vmem:[%s2455 + $0x30] sm:$0xff]
    %v2725 = vld [vmem:[%s2455 + $0x40] sm:$0xff]
    %v2726 = vld [vmem:[%s2455 + $0x50] sm:$0xff]
    %v2727 = vld [vmem:[%s2455 + $0x60] sm:$0xff]
    %v2728 = vld [vmem:[%s2455 + $0x70] sm:$0xff]
    %v2729 = vld [vmem:[%s2455 + $0xa0] sm:$0xff]
    %v2730 = vld [vmem:[%s2455 + $0xb0] sm:$0xff]
    %v2731 = vld [vmem:[%s2455 + $0xc0] sm:$0xff]
    %v2732 = vld [vmem:[%s2455 + $0xd0] sm:$0xff]
    %v2733 = vld [vmem:[%s2455 + $0xe0] sm:$0xff]
    %v2734 = vld [vmem:[%s2455 + $0xf0] sm:$0xff]
    %v2735 = vld [vmem:[%s2455 + $0x100] sm:$0xff]
    %v2736 = vld [vmem:[%s2455 + $0x110] sm:$0xff]
    %s2737 = scalar_lea.vmem %s4, 48
    %v2738 = vld [vmem:[%s2737] sm:$0xff]
    %v2739 = vld [vmem:[%s2737 + $0x8] sm:$0xff]
    %v2741 = vsel %vm2413, %v2721, 0
    %v2744 = vsel %vm2413, %v2722, 0
    %v2747 = vsel %vm2413, %v2723, 0
    %v2750 = vsel %vm2413, %v2724, 0
    %v2753 = vsel %vm2413, %v2725, 0
    %v2756 = vsel %vm2413, %v2726, 0
    %v2759 = vsel %vm2413, %v2727, 0
    %v2762 = vsel %vm2413, %v2728, 0
    %v2765 = vsel %vm2413, %v2729, 0
    %v2768 = vsel %vm2413, %v2730, 0
    %v2771 = vsel %vm2413, %v2731, 0
    %v2774 = vsel %vm2413, %v2732, 0
    %v2777 = vsel %vm2413, %v2733, 0
    %v2780 = vsel %vm2413, %v2734, 0
    %v2783 = vsel %vm2413, %v2735, 0
    %v2786 = vsel %vm2413, %v2736, 0
    %2788 = vmatprep.subr.mxu0 0.0
    %2789 = vmatpush1.msra.mxu0 %v2738
    %2790 = vmatprep.subr.mxu0 0.0
    %2791 = vmatpush1.msra.mxu0 %v2739
    %2792 = vmatprep.subr.mxu0 0.0
    %2793 = vmatpush1.msra.mxu0 0.0
    %2794 = vmatprep.subr.mxu0 0.0
    %2795 = vmatpush1.msra.mxu0 0.0
    %2796 = vmatprep.subr.mxu0 0.0
    %2797 = vmatpush1.msra.mxu0 0.0
    %2798 = vmatprep.subr.mxu0 0.0
    %2799 = vmatpush1.msra.mxu0 0.0
    %2800 = vmatprep.subr.mxu0 0.0
    %2801 = vmatpush1.msra.mxu0 0.0
    %2802 = vmatprep.subr.mxu0 0.0
    %2803 = vmatpush1.msra.mxu0 0.0
    %2804 = vmatprep.subr.mxu0 0.0
    %2805 = vmatpush1.msra.mxu0 0.0
    %2806 = vmatprep.subr.mxu0 0.0
    %2807 = vmatpush1.msra.mxu0 0.0
    %2808 = vmatprep.subr.mxu0 0.0
    %2809 = vmatpush1.msra.mxu0 0.0
    %2810 = vmatprep.subr.mxu0 0.0
    %2811 = vmatpush1.msra.mxu0 0.0
    %2812 = vmatprep.subr.mxu0 0.0
    %2813 = vmatpush1.msra.mxu0 0.0
    %2814 = vmatprep.subr.mxu0 0.0
    %2815 = vmatpush1.msra.mxu0 0.0
    %2816 = vmatprep.subr.mxu0 0.0
    %2817 = vmatpush1.msra.mxu0 0.0
    %2818 = vmatprep.subr.mxu0 0.0
    %2819 = vmatpush1.msra.mxu0 0.0
    %2820 = vmatprep.subr.mxu0 0.0
    %2821 = vmatpush1.msra.mxu0 0.0
    %2822 = vmatprep.subr.mxu0 0.0
    %2823 = vmatpush1.msra.mxu0 0.0
    %2824 = vmatprep.subr.mxu0 0.0
    %2825 = vmatpush1.msra.mxu0 0.0
    %2826 = vmatprep.subr.mxu0 0.0
    %2827 = vmatpush1.msra.mxu0 0.0
    %2828 = vmatprep.subr.mxu0 0.0
    %2829 = vmatpush1.msra.mxu0 0.0
    %2830 = vmatprep.subr.mxu0 0.0
    %2831 = vmatpush1.msra.mxu0 0.0
    %2832 = vmatprep.subr.mxu0 0.0
    %2833 = vmatpush1.msra.mxu0 0.0
    %2834 = vmatprep.subr.mxu0 0.0
    %2835 = vmatpush1.msra.mxu0 0.0
    %2836 = vmatprep.subr.mxu0 0.0
    %2837 = vmatpush1.msra.mxu0 0.0
    %2838 = vmatprep.subr.mxu0 0.0
    %2839 = vmatpush1.msra.mxu0 0.0
    %2840 = vmatprep.subr.mxu0 0.0
    %2841 = vmatpush1.msra.mxu0 0.0
    %2842 = vmatprep.subr.mxu0 0.0
    %2843 = vmatpush1.msra.mxu0 0.0
    %2844 = vmatprep.subr.mxu0 0.0
    %2845 = vmatpush1.msra.mxu0 0.0
    %2846 = vmatprep.subr.mxu0 0.0
    %2847 = vmatpush1.msra.mxu0 0.0
    %2848 = vmatprep.subr.mxu0 0.0
    %2849 = vmatpush1.msra.mxu0 0.0
    %2850 = vmatprep.subr.mxu0 0.0
    %2851 = vmatpush1.msra.mxu0 0.0
    %2852 = vmatprep.mubr.f32.mxu0 0.0
    %2853 = vmatmul.mubr.f32.gmra.mrb[0].mxu0 %v2741
    %v2854 = vpop.f32.mrb[0].mxu0
    %v2855 = vadd.f32 0.0, %v2854
    %v2856 = vpop.f32.mrb[0].mxu0
    %2857 = vmatprep.mubr.f32.mxu0 0.0
    %2858 = vmatmul.mubr.f32.gmra.mrb[0].mxu0 %v2744
    %v2859 = vpop.f32.mrb[0].mxu0
    %v2860 = vadd.f32 0.0, %v2859
    %v2861 = vpop.f32.mrb[0].mxu0
    %2862 = vmatprep.mubr.f32.mxu0 0.0
    %2863 = vmatmul.mubr.f32.gmra.mrb[0].mxu0 %v2747
    %v2864 = vpop.f32.mrb[0].mxu0
    %v2865 = vadd.f32 0.0, %v2864
    %v2866 = vpop.f32.mrb[0].mxu0
    %2867 = vmatprep.mubr.f32.mxu0 0.0
    %2868 = vmatmul.mubr.f32.gmra.mrb[0].mxu0 %v2750
    %v2869 = vpop.f32.mrb[0].mxu0
    %v2870 = vadd.f32 0.0, %v2869
    %v2871 = vpop.f32.mrb[0].mxu0
    %2872 = vmatprep.mubr.f32.mxu0 0.0
    %2873 = vmatmul.mubr.f32.gmra.mrb[0].mxu0 %v2753
    %v2874 = vpop.f32.mrb[0].mxu0
    %v2875 = vadd.f32 0.0, %v2874
    %v2876 = vpop.f32.mrb[0].mxu0
    %2877 = vmatprep.mubr.f32.mxu0 0.0
    %2878 = vmatmul.mubr.f32.gmra.mrb[0].mxu0 %v2756
    %v2879 = vpop.f32.mrb[0].mxu0
    %v2880 = vadd.f32 0.0, %v2879
    %v2881 = vpop.f32.mrb[0].mxu0
    %2882 = vmatprep.mubr.f32.mxu0 0.0
    %2883 = vmatmul.mubr.f32.gmra.mrb[0].mxu0 %v2759
    %v2884 = vpop.f32.mrb[0].mxu0
    %v2885 = vadd.f32 0.0, %v2884
    %v2886 = vpop.f32.mrb[0].mxu0
    %2887 = vmatprep.mubr.f32.mxu0 0.0
    %2888 = vmatmul.mubr.f32.gmra.mrb[0].mxu0 %v2762
    %v2889 = vpop.f32.mrb[0].mxu0
    %v2890 = vadd.f32 0.0, %v2889
    %v2891 = vpop.f32.mrb[0].mxu0
    %2892 = vmatprep.mubr.f32.mxu0 0.0
    %2893 = vmatmul.mubr.f32.gmra.mrb[0].mxu0 %v2765
    %v2894 = vpop.f32.mrb[0].mxu0
    %v2895 = vadd.f32 0.0, %v2894
    %v2896 = vpop.f32.mrb[0].mxu0
    %2897 = vmatprep.mubr.f32.mxu0 0.0
    %2898 = vmatmul.mubr.f32.gmra.mrb[0].mxu0 %v2768
    %v2899 = vpop.f32.mrb[0].mxu0
    %v2900 = vadd.f32 0.0, %v2899
    %v2901 = vpop.f32.mrb[0].mxu0
    %2902 = vmatprep.mubr.f32.mxu0 0.0
    %2903 = vmatmul.mubr.f32.gmra.mrb[0].mxu0 %v2771
    %v2904 = vpop.f32.mrb[0].mxu0
    %v2905 = vadd.f32 0.0, %v2904
    %v2906 = vpop.f32.mrb[0].mxu0
    %2907 = vmatprep.mubr.f32.mxu0 0.0
    %2908 = vmatmul.mubr.f32.gmra.mrb[0].mxu0 %v2774
    %v2909 = vpop.f32.mrb[0].mxu0
    %v2910 = vadd.f32 0.0, %v2909
    %v2911 = vpop.f32.mrb[0].mxu0
    %2912 = vmatprep.mubr.f32.mxu0 0.0
    %2913 = vmatmul.mubr.f32.gmra.mrb[0].mxu0 %v2777
    %v2914 = vpop.f32.mrb[0].mxu0
    %v2915 = vadd.f32 0.0, %v2914
    %v2916 = vpop.f32.mrb[0].mxu0
    %2917 = vmatprep.mubr.f32.mxu0 0.0
    %2918 = vmatmul.mubr.f32.gmra.mrb[0].mxu0 %v2780
    %v2919 = vpop.f32.mrb[0].mxu0
    %v2920 = vadd.f32 0.0, %v2919
    %v2921 = vpop.f32.mrb[0].mxu0
    %2922 = vmatprep.mubr.f32.mxu0 0.0
    %2923 = vmatmul.mubr.f32.gmra.mrb[0].mxu0 %v2783
    %v2924 = vpop.f32.mrb[0].mxu0
    %v2925 = vadd.f32 0.0, %v2924
    %v2926 = vpop.f32.mrb[0].mxu0
    %2927 = vmatprep.mubr.f32.mxu0 0.0
    %2928 = vmatmul.mubr.f32.gmra.mrb[0].mxu0 %v2786
    %v2929 = vpop.f32.mrb[0].mxu0
    %v2930 = vadd.f32 0.0, %v2929
    %v2931 = vpop.f32.mrb[0].mxu0
    %2932 = vdwg.mxu0
    %v2933 = vld [vmem:[%s2455 + $0x1] sm:$0xff]
    %v2934 = vld [vmem:[%s2455 + $0x11] sm:$0xff]
    %v2935 = vld [vmem:[%s2455 + $0x21] sm:$0xff]
    %v2936 = vld [vmem:[%s2455 + $0x31] sm:$0xff]
    %v2937 = vld [vmem:[%s2455 + $0x41] sm:$0xff]
    %v2938 = vld [vmem:[%s2455 + $0x51] sm:$0xff]
    %v2939 = vld [vmem:[%s2455 + $0x61] sm:$0xff]
    %v2940 = vld [vmem:[%s2455 + $0x71] sm:$0xff]
    %v2941 = vld [vmem:[%s2455 + $0xa1] sm:$0xff]
    %v2942 = vld [vmem:[%s2455 + $0xb1] sm:$0xff]
    %v2943 = vld [vmem:[%s2455 + $0xc1] sm:$0xff]
    %v2944 = vld [vmem:[%s2455 + $0xd1] sm:$0xff]
    %v2945 = vld [vmem:[%s2455 + $0xe1] sm:$0xff]
    %v2946 = vld [vmem:[%s2455 + $0xf1] sm:$0xff]
    %v2947 = vld [vmem:[%s2455 + $0x101] sm:$0xff]
    %v2948 = vld [vmem:[%s2455 + $0x111] sm:$0xff]
    %s2949 = scalar_lea.vmem %s4, 64
    %v2950 = vld [vmem:[%s2949] sm:$0xff]
    %v2951 = vld [vmem:[%s2949 + $0x8] sm:$0xff]
    %v2952 = vld [vmem:[%s2455 + $0x2] sm:$0xff]
    %v2953 = vld [vmem:[%s2455 + $0x12] sm:$0xff]
    %v2954 = vld [vmem:[%s2455 + $0x22] sm:$0xff]
    %v2955 = vld [vmem:[%s2455 + $0x32] sm:$0xff]
    %v2956 = vld [vmem:[%s2455 + $0x42] sm:$0xff]
    %v2957 = vld [vmem:[%s2455 + $0x52] sm:$0xff]
    %v2958 = vld [vmem:[%s2455 + $0x62] sm:$0xff]
    %v2959 = vld [vmem:[%s2455 + $0x72] sm:$0xff]
    %v2960 = vld [vmem:[%s2455 + $0xa2] sm:$0xff]
    %v2961 = vld [vmem:[%s2455 + $0xb2] sm:$0xff]
    %v2962 = vld [vmem:[%s2455 + $0xc2] sm:$0xff]
    %v2963 = vld [vmem:[%s2455 + $0xd2] sm:$0xff]
    %v2964 = vld [vmem:[%s2455 + $0xe2] sm:$0xff]
    %v2965 = vld [vmem:[%s2455 + $0xf2] sm:$0xff]
    %v2966 = vld [vmem:[%s2455 + $0x102] sm:$0xff]
    %v2967 = vld [vmem:[%s2455 + $0x112] sm:$0xff]
    %s2968 = scalar_lea.vmem %s4, 80
    %v2969 = vld [vmem:[%s2968] sm:$0xff]
    %v2970 = vld [vmem:[%s2968 + $0x8] sm:$0xff]
    %v2972 = vsel %vm2413, %v2952, 0
    %v2975 = vsel %vm2413, %v2953, 0
    %v2978 = vsel %vm2413, %v2954, 0
    %v2981 = vsel %vm2413, %v2955, 0
    %v2984 = vsel %vm2413, %v2956, 0
    %v2987 = vsel %vm2413, %v2957, 0
    %v2990 = vsel %vm2413, %v2958, 0
    %v2993 = vsel %vm2413, %v2959, 0
    %v2996 = vsel %vm2413, %v2960, 0
    %v2999 = vsel %vm2413, %v2961, 0
    %v3002 = vsel %vm2413, %v2962, 0
    %v3005 = vsel %vm2413, %v2963, 0
    %v3008 = vsel %vm2413, %v2964, 0
    %v3011 = vsel %vm2413, %v2965, 0
    %v3014 = vsel %vm2413, %v2966, 0
    %v3017 = vsel %vm2413, %v2967, 0
    %3019 = vmatprep.subr.mxu0 0.0
    %3020 = vmatpush1.msra.mxu0 %v2969
    %3021 = vmatprep.subr.mxu0 0.0
    %3022 = vmatpush1.msra.mxu0 %v2970
    %3023 = vmatprep.subr.mxu0 0.0
    %3024 = vmatpush1.msra.mxu0 0.0
    %3025 = vmatprep.subr.mxu0 0.0
    %3026 = vmatpush1.msra.mxu0 0.0
    %3027 = vmatprep.subr.mxu0 0.0
    %3028 = vmatpush1.msra.mxu0 0.0
    %3029 = vmatprep.subr.mxu0 0.0
    %3030 = vmatpush1.msra.mxu0 0.0
    %3031 = vmatprep.subr.mxu0 0.0
    %3032 = vmatpush1.msra.mxu0 0.0
    %3033 = vmatprep.subr.mxu0 0.0
    %3034 = vmatpush1.msra.mxu0 0.0
    %3035 = vmatprep.subr.mxu0 0.0
    %3036 = vmatpush1.msra.mxu0 0.0
    %3037 = vmatprep.subr.mxu0 0.0
    %3038 = vmatpush1.msra.mxu0 0.0
    %3039 = vmatprep.subr.mxu0 0.0
    %3040 = vmatpush1.msra.mxu0 0.0
    %3041 = vmatprep.subr.mxu0 0.0
    %3042 = vmatpush1.msra.mxu0 0.0
    %3043 = vmatprep.subr.mxu0 0.0
    %3044 = vmatpush1.msra.mxu0 0.0
    %3045 = vmatprep.subr.mxu0 0.0
    %3046 = vmatpush1.msra.mxu0 0.0
    %3047 = vmatprep.subr.mxu0 0.0
    %3048 = vmatpush1.msra.mxu0 0.0
    %3049 = vmatprep.subr.mxu0 0.0
    %3050 = vmatpush1.msra.mxu0 0.0
    %3051 = vmatprep.subr.mxu0 0.0
    %3052 = vmatpush1.msra.mxu0 0.0
    %3053 = vmatprep.subr.mxu0 0.0
    %3054 = vmatpush1.msra.mxu0 0.0
    %3055 = vmatprep.subr.mxu0 0.0
    %3056 = vmatpush1.msra.mxu0 0.0
    %3057 = vmatprep.subr.mxu0 0.0
    %3058 = vmatpush1.msra.mxu0 0.0
    %3059 = vmatprep.subr.mxu0 0.0
    %3060 = vmatpush1.msra.mxu0 0.0
    %3061 = vmatprep.subr.mxu0 0.0
    %3062 = vmatpush1.msra.mxu0 0.0
    %3063 = vmatprep.subr.mxu0 0.0
    %3064 = vmatpush1.msra.mxu0 0.0
    %3065 = vmatprep.subr.mxu0 0.0
    %3066 = vmatpush1.msra.mxu0 0.0
    %3067 = vmatprep.subr.mxu0 0.0
    %3068 = vmatpush1.msra.mxu0 0.0
    %3069 = vmatprep.subr.mxu0 0.0
    %3070 = vmatpush1.msra.mxu0 0.0
    %3071 = vmatprep.subr.mxu0 0.0
    %3072 = vmatpush1.msra.mxu0 0.0
    %3073 = vmatprep.subr.mxu0 0.0
    %3074 = vmatpush1.msra.mxu0 0.0
    %3075 = vmatprep.subr.mxu0 0.0
    %3076 = vmatpush1.msra.mxu0 0.0
    %3077 = vmatprep.subr.mxu0 0.0
    %3078 = vmatpush1.msra.mxu0 0.0
    %3079 = vmatprep.subr.mxu0 0.0
    %3080 = vmatpush1.msra.mxu0 0.0
    %3081 = vmatprep.subr.mxu0 0.0
    %3082 = vmatpush1.msra.mxu0 0.0
    %3083 = vmatprep.mubr.f32.mxu0 0.0
    %3084 = vmatmul.mubr.f32.gmra.mrb[0].mxu0 %v2972
    %v3085 = vpop.f32.mrb[0].mxu0
    %v3086 = vadd.f32 0.0, %v3085
    %v3087 = vpop.f32.mrb[0].mxu0
    %3088 = vmatprep.mubr.f32.mxu0 0.0
    %3089 = vmatmul.mubr.f32.gmra.mrb[0].mxu0 %v2975
    %v3090 = vpop.f32.mrb[0].mxu0
    %v3091 = vadd.f32 0.0, %v3090
    %v3092 = vpop.f32.mrb[0].mxu0
    %3093 = vmatprep.mubr.f32.mxu0 0.0
    %3094 = vmatmul.mubr.f32.gmra.mrb[0].mxu0 %v2978
    %v3095 = vpop.f32.mrb[0].mxu0
    %v3096 = vadd.f32 0.0, %v3095
    %v3097 = vpop.f32.mrb[0].mxu0
    %3098 = vmatprep.mubr.f32.mxu0 0.0
    %3099 = vmatmul.mubr.f32.gmra.mrb[0].mxu0 %v2981
    %v3100 = vpop.f32.mrb[0].mxu0
    %v3101 = vadd.f32 0.0, %v3100
    %v3102 = vpop.f32.mrb[0].mxu0
    %3103 = vmatprep.mubr.f32.mxu0 0.0
    %3104 = vmatmul.mubr.f32.gmra.mrb[0].mxu0 %v2984
    %v3105 = vpop.f32.mrb[0].mxu0
    %v3106 = vadd.f32 0.0, %v3105
    %v3107 = vpop.f32.mrb[0].mxu0
    %3108 = vmatprep.mubr.f32.mxu0 0.0
    %3109 = vmatmul.mubr.f32.gmra.mrb[0].mxu0 %v2987
    %v3110 = vpop.f32.mrb[0].mxu0
    %v3111 = vadd.f32 0.0, %v3110
    %v3112 = vpop.f32.mrb[0].mxu0
    %3113 = vmatprep.mubr.f32.mxu0 0.0
    %3114 = vmatmul.mubr.f32.gmra.mrb[0].mxu0 %v2990
    %v3115 = vpop.f32.mrb[0].mxu0
    %v3116 = vadd.f32 0.0, %v3115
    %v3117 = vpop.f32.mrb[0].mxu0
    %3118 = vmatprep.mubr.f32.mxu0 0.0
    %3119 = vmatmul.mubr.f32.gmra.mrb[0].mxu0 %v2993
    %v3120 = vpop.f32.mrb[0].mxu0
    %v3121 = vadd.f32 0.0, %v3120
    %v3122 = vpop.f32.mrb[0].mxu0
    %3123 = vmatprep.mubr.f32.mxu0 0.0
    %3124 = vmatmul.mubr.f32.gmra.mrb[0].mxu0 %v2996
    %v3125 = vpop.f32.mrb[0].mxu0
    %v3126 = vadd.f32 0.0, %v3125
    %v3127 = vpop.f32.mrb[0].mxu0
    %3128 = vmatprep.mubr.f32.mxu0 0.0
    %3129 = vmatmul.mubr.f32.gmra.mrb[0].mxu0 %v2999
    %v3130 = vpop.f32.mrb[0].mxu0
    %v3131 = vadd.f32 0.0, %v3130
    %v3132 = vpop.f32.mrb[0].mxu0
    %3133 = vmatprep.mubr.f32.mxu0 0.0
    %3134 = vmatmul.mubr.f32.gmra.mrb[0].mxu0 %v3002
    %v3135 = vpop.f32.mrb[0].mxu0
    %v3136 = vadd.f32 0.0, %v3135
    %v3137 = vpop.f32.mrb[0].mxu0
    %3138 = vmatprep.mubr.f32.mxu0 0.0
    %3139 = vmatmul.mubr.f32.gmra.mrb[0].mxu0 %v3005
    %v3140 = vpop.f32.mrb[0].mxu0
    %v3141 = vadd.f32 0.0, %v3140
    %v3142 = vpop.f32.mrb[0].mxu0
    %3143 = vmatprep.mubr.f32.mxu0 0.0
    %3144 = vmatmul.mubr.f32.gmra.mrb[0].mxu0 %v3008
    %v3145 = vpop.f32.mrb[0].mxu0
    %v3146 = vadd.f32 0.0, %v3145
    %v3147 = vpop.f32.mrb[0].mxu0
    %3148 = vmatprep.mubr.f32.mxu0 0.0
    %3149 = vmatmul.mubr.f32.gmra.mrb[0].mxu0 %v3011
    %v3150 = vpop.f32.mrb[0].mxu0
    %v3151 = vadd.f32 0.0, %v3150
    %v3152 = vpop.f32.mrb[0].mxu0
    %3153 = vmatprep.mubr.f32.mxu0 0.0
    %3154 = vmatmul.mubr.f32.gmra.mrb[0].mxu0 %v3014
    %v3155 = vpop.f32.mrb[0].mxu0
    %v3156 = vadd.f32 0.0, %v3155
    %v3157 = vpop.f32.mrb[0].mxu0
    %3158 = vmatprep.mubr.f32.mxu0 0.0
    %3159 = vmatmul.mubr.f32.gmra.mrb[0].mxu0 %v3017
    %v3160 = vpop.f32.mrb[0].mxu0
    %v3161 = vadd.f32 0.0, %v3160
    %v3162 = vpop.f32.mrb[0].mxu0
    %3163 = vdwg.mxu0
    %s3164 = scalar_lea.vmem [#allocation2], 32
    %v3165 = vld [vmem:[%s3164] sm:$0xff]
    %v3166 = vld [vmem:[%s3164 + $0x10] sm:$0xff]
    %v3167 = vld [vmem:[%s3164 + $0x20] sm:$0xff]
    %v3168 = vld [vmem:[%s3164 + $0x30] sm:$0xff]
    %v3169 = vld [vmem:[%s3164 + $0x40] sm:$0xff]
    %v3170 = vld [vmem:[%s3164 + $0x50] sm:$0xff]
    %v3171 = vld [vmem:[%s3164 + $0x60] sm:$0xff]
    %v3172 = vld [vmem:[%s3164 + $0x70] sm:$0xff]
    %v3173 = vld [vmem:[%s3164 + $0xa0] sm:$0xff]
    %v3174 = vld [vmem:[%s3164 + $0xb0] sm:$0xff]
    %v3175 = vld [vmem:[%s3164 + $0xc0] sm:$0xff]
    %v3176 = vld [vmem:[%s3164 + $0xd0] sm:$0xff]
    %v3177 = vld [vmem:[%s3164 + $0xe0] sm:$0xff]
    %v3178 = vld [vmem:[%s3164 + $0xf0] sm:$0xff]
    %v3179 = vld [vmem:[%s3164 + $0x100] sm:$0xff]
    %v3180 = vld [vmem:[%s3164 + $0x110] sm:$0xff]
    %s3181 = scalar_lea.vmem %s4, 96
    %v3182 = vld [vmem:[%s3181] sm:$0xff]
    %v3183 = vld [vmem:[%s3181 + $0x8] sm:$0xff]
    %v3184 = vld [vmem:[%s3164 + $0x1] sm:$0xff]
    %v3185 = vld [vmem:[%s3164 + $0x11] sm:$0xff]
    %v3186 = vld [vmem:[%s3164 + $0x21] sm:$0xff]
    %v3187 = vld [vmem:[%s3164 + $0x31] sm:$0xff]
    %v3188 = vld [vmem:[%s3164 + $0x41] sm:$0xff]
    %v3189 = vld [vmem:[%s3164 + $0x51] sm:$0xff]
    %v3190 = vld [vmem:[%s3164 + $0x61] sm:$0xff]
    %v3191 = vld [vmem:[%s3164 + $0x71] sm:$0xff]
    %v3192 = vld [vmem:[%s3164 + $0xa1] sm:$0xff]
    %v3193 = vld [vmem:[%s3164 + $0xb1] sm:$0xff]
    %v3194 = vld [vmem:[%s3164 + $0xc1] sm:$0xff]
    %v3195 = vld [vmem:[%s3164 + $0xd1] sm:$0xff]
    %v3196 = vld [vmem:[%s3164 + $0xe1] sm:$0xff]
    %v3197 = vld [vmem:[%s3164 + $0xf1] sm:$0xff]
    %v3198 = vld [vmem:[%s3164 + $0x101] sm:$0xff]
    %v3199 = vld [vmem:[%s3164 + $0x111] sm:$0xff]
    %s3200 = scalar_lea.vmem %s4, 112
    %v3201 = vld [vmem:[%s3200] sm:$0xff]
    %v3202 = vld [vmem:[%s3200 + $0x8] sm:$0xff]
    %v3204 = vsel %vm2413, %v3184, 0
    %v3207 = vsel %vm2413, %v3185, 0
    %v3210 = vsel %vm2413, %v3186, 0
    %v3213 = vsel %vm2413, %v3187, 0
    %v3216 = vsel %vm2413, %v3188, 0
    %v3219 = vsel %vm2413, %v3189, 0
    %v3222 = vsel %vm2413, %v3190, 0
    %v3225 = vsel %vm2413, %v3191, 0
    %v3228 = vsel %vm2413, %v3192, 0
    %v3231 = vsel %vm2413, %v3193, 0
    %v3234 = vsel %vm2413, %v3194, 0
    %v3237 = vsel %vm2413, %v3195, 0
    %v3240 = vsel %vm2413, %v3196, 0
    %v3243 = vsel %vm2413, %v3197, 0
    %v3246 = vsel %vm2413, %v3198, 0
    %v3249 = vsel %vm2413, %v3199, 0
    %3251 = vmatprep.subr.mxu0 0.0
    %3252 = vmatpush1.msra.mxu0 %v3201
    %3253 = vmatprep.subr.mxu0 0.0
    %3254 = vmatpush1.msra.mxu0 %v3202
    %3255 = vmatprep.subr.mxu0 0.0
    %3256 = vmatpush1.msra.mxu0 0.0
    %3257 = vmatprep.subr.mxu0 0.0
    %3258 = vmatpush1.msra.mxu0 0.0
    %3259 = vmatprep.subr.mxu0 0.0
    %3260 = vmatpush1.msra.mxu0 0.0
    %3261 = vmatprep.subr.mxu0 0.0
    %3262 = vmatpush1.msra.mxu0 0.0
    %3263 = vmatprep.subr.mxu0 0.0
    %3264 = vmatpush1.msra.mxu0 0.0
    %3265 = vmatprep.subr.mxu0 0.0
    %3266 = vmatpush1.msra.mxu0 0.0
    %3267 = vmatprep.subr.mxu0 0.0
    %3268 = vmatpush1.msra.mxu0 0.0
    %3269 = vmatprep.subr.mxu0 0.0
    %3270 = vmatpush1.msra.mxu0 0.0
    %3271 = vmatprep.subr.mxu0 0.0
    %3272 = vmatpush1.msra.mxu0 0.0
    %3273 = vmatprep.subr.mxu0 0.0
    %3274 = vmatpush1.msra.mxu0 0.0
    %3275 = vmatprep.subr.mxu0 0.0
    %3276 = vmatpush1.msra.mxu0 0.0
    %3277 = vmatprep.subr.mxu0 0.0
    %3278 = vmatpush1.msra.mxu0 0.0
    %3279 = vmatprep.subr.mxu0 0.0
    %3280 = vmatpush1.msra.mxu0 0.0
    %3281 = vmatprep.subr.mxu0 0.0
    %3282 = vmatpush1.msra.mxu0 0.0
    %3283 = vmatprep.subr.mxu0 0.0
    %3284 = vmatpush1.msra.mxu0 0.0
    %3285 = vmatprep.subr.mxu0 0.0
    %3286 = vmatpush1.msra.mxu0 0.0
    %3287 = vmatprep.subr.mxu0 0.0
    %3288 = vmatpush1.msra.mxu0 0.0
    %3289 = vmatprep.subr.mxu0 0.0
    %3290 = vmatpush1.msra.mxu0 0.0
    %3291 = vmatprep.subr.mxu0 0.0
    %3292 = vmatpush1.msra.mxu0 0.0
    %3293 = vmatprep.subr.mxu0 0.0
    %3294 = vmatpush1.msra.mxu0 0.0
    %3295 = vmatprep.subr.mxu0 0.0
    %3296 = vmatpush1.msra.mxu0 0.0
    %3297 = vmatprep.subr.mxu0 0.0
    %3298 = vmatpush1.msra.mxu0 0.0
    %3299 = vmatprep.subr.mxu0 0.0
    %3300 = vmatpush1.msra.mxu0 0.0
    %3301 = vmatprep.subr.mxu0 0.0
    %3302 = vmatpush1.msra.mxu0 0.0
    %3303 = vmatprep.subr.mxu0 0.0
    %3304 = vmatpush1.msra.mxu0 0.0
    %3305 = vmatprep.subr.mxu0 0.0
    %3306 = vmatpush1.msra.mxu0 0.0
    %3307 = vmatprep.subr.mxu0 0.0
    %3308 = vmatpush1.msra.mxu0 0.0
    %3309 = vmatprep.subr.mxu0 0.0
    %3310 = vmatpush1.msra.mxu0 0.0
    %3311 = vmatprep.subr.mxu0 0.0
    %3312 = vmatpush1.msra.mxu0 0.0
    %3313 = vmatprep.subr.mxu0 0.0
    %3314 = vmatpush1.msra.mxu0 0.0
    %3315 = vmatprep.mubr.f32.mxu0 0.0
    %3316 = vmatmul.mubr.f32.gmra.mrb[0].mxu0 %v3204
    %v3317 = vpop.f32.mrb[0].mxu0
    %v3318 = vadd.f32 0.0, %v3317
    %v3319 = vpop.f32.mrb[0].mxu0
    %3320 = vmatprep.mubr.f32.mxu0 0.0
    %3321 = vmatmul.mubr.f32.gmra.mrb[0].mxu0 %v3207
    %v3322 = vpop.f32.mrb[0].mxu0
    %v3323 = vadd.f32 0.0, %v3322
    %v3324 = vpop.f32.mrb[0].mxu0
    %3325 = vmatprep.mubr.f32.mxu0 0.0
    %3326 = vmatmul.mubr.f32.gmra.mrb[0].mxu0 %v3210
    %v3327 = vpop.f32.mrb[0].mxu0
    %v3328 = vadd.f32 0.0, %v3327
    %v3329 = vpop.f32.mrb[0].mxu0
    %3330 = vmatprep.mubr.f32.mxu0 0.0
    %3331 = vmatmul.mubr.f32.gmra.mrb[0].mxu0 %v3213
    %v3332 = vpop.f32.mrb[0].mxu0
    %v3333 = vadd.f32 0.0, %v3332
    %v3334 = vpop.f32.mrb[0].mxu0
    %3335 = vmatprep.mubr.f32.mxu0 0.0
    %3336 = vmatmul.mubr.f32.gmra.mrb[0].mxu0 %v3216
    %v3337 = vpop.f32.mrb[0].mxu0
    %v3338 = vadd.f32 0.0, %v3337
    %v3339 = vpop.f32.mrb[0].mxu0
    %3340 = vmatprep.mubr.f32.mxu0 0.0
    %3341 = vmatmul.mubr.f32.gmra.mrb[0].mxu0 %v3219
    %v3342 = vpop.f32.mrb[0].mxu0
    %v3343 = vadd.f32 0.0, %v3342
    %v3344 = vpop.f32.mrb[0].mxu0
    %3345 = vmatprep.mubr.f32.mxu0 0.0
    %3346 = vmatmul.mubr.f32.gmra.mrb[0].mxu0 %v3222
    %v3347 = vpop.f32.mrb[0].mxu0
    %v3348 = vadd.f32 0.0, %v3347
    %v3349 = vpop.f32.mrb[0].mxu0
    %3350 = vmatprep.mubr.f32.mxu0 0.0
    %3351 = vmatmul.mubr.f32.gmra.mrb[0].mxu0 %v3225
    %v3352 = vpop.f32.mrb[0].mxu0
    %v3353 = vadd.f32 0.0, %v3352
    %v3354 = vpop.f32.mrb[0].mxu0
    %3355 = vmatprep.mubr.f32.mxu0 0.0
    %3356 = vmatmul.mubr.f32.gmra.mrb[0].mxu0 %v3228
    %v3357 = vpop.f32.mrb[0].mxu0
    %v3358 = vadd.f32 0.0, %v3357
    %v3359 = vpop.f32.mrb[0].mxu0
    %3360 = vmatprep.mubr.f32.mxu0 0.0
    %3361 = vmatmul.mubr.f32.gmra.mrb[0].mxu0 %v3231
    %v3362 = vpop.f32.mrb[0].mxu0
    %v3363 = vadd.f32 0.0, %v3362
    %v3364 = vpop.f32.mrb[0].mxu0
    %3365 = vmatprep.mubr.f32.mxu0 0.0
    %3366 = vmatmul.mubr.f32.gmra.mrb[0].mxu0 %v3234
    %v3367 = vpop.f32.mrb[0].mxu0
    %v3368 = vadd.f32 0.0, %v3367
    %v3369 = vpop.f32.mrb[0].mxu0
    %3370 = vmatprep.mubr.f32.mxu0 0.0
    %3371 = vmatmul.mubr.f32.gmra.mrb[0].mxu0 %v3237
    %v3372 = vpop.f32.mrb[0].mxu0
    %v3373 = vadd.f32 0.0, %v3372
    %v3374 = vpop.f32.mrb[0].mxu0
    %3375 = vmatprep.mubr.f32.mxu0 0.0
    %3376 = vmatmul.mubr.f32.gmra.mrb[0].mxu0 %v3240
    %v3377 = vpop.f32.mrb[0].mxu0
    %v3378 = vadd.f32 0.0, %v3377
    %v3379 = vpop.f32.mrb[0].mxu0
    %3380 = vmatprep.mubr.f32.mxu0 0.0
    %3381 = vmatmul.mubr.f32.gmra.mrb[0].mxu0 %v3243
    %v3382 = vpop.f32.mrb[0].mxu0
    %v3383 = vadd.f32 0.0, %v3382
    %v3384 = vpop.f32.mrb[0].mxu0
    %3385 = vmatprep.mubr.f32.mxu0 0.0
    %3386 = vmatmul.mubr.f32.gmra.mrb[0].mxu0 %v3246
    %v3387 = vpop.f32.mrb[0].mxu0
    %v3388 = vadd.f32 0.0, %v3387
    %v3389 = vpop.f32.mrb[0].mxu0
    %3390 = vmatprep.mubr.f32.mxu0 0.0
    %3391 = vmatmul.mubr.f32.gmra.mrb[0].mxu0 %v3249
    %v3392 = vpop.f32.mrb[0].mxu0
    %v3393 = vadd.f32 0.0, %v3392
    %v3394 = vpop.f32.mrb[0].mxu0
    %3395 = vdwg.mxu0
    %v3396 = vld [vmem:[%s3164 + $0x2] sm:$0xff]
    %v3397 = vld [vmem:[%s3164 + $0x12] sm:$0xff]
    %v3398 = vld [vmem:[%s3164 + $0x22] sm:$0xff]
    %v3399 = vld [vmem:[%s3164 + $0x32] sm:$0xff]
    %v3400 = vld [vmem:[%s3164 + $0x42] sm:$0xff]
    %v3401 = vld [vmem:[%s3164 + $0x52] sm:$0xff]
    %v3402 = vld [vmem:[%s3164 + $0x62] sm:$0xff]
    %v3403 = vld [vmem:[%s3164 + $0x72] sm:$0xff]
    %v3404 = vld [vmem:[%s3164 + $0xa2] sm:$0xff]
    %v3405 = vld [vmem:[%s3164 + $0xb2] sm:$0xff]
    %v3406 = vld [vmem:[%s3164 + $0xc2] sm:$0xff]
    %v3407 = vld [vmem:[%s3164 + $0xd2] sm:$0xff]
    %v3408 = vld [vmem:[%s3164 + $0xe2] sm:$0xff]
    %v3409 = vld [vmem:[%s3164 + $0xf2] sm:$0xff]
    %v3410 = vld [vmem:[%s3164 + $0x102] sm:$0xff]
    %v3411 = vld [vmem:[%s3164 + $0x112] sm:$0xff]
    %s3412 = scalar_lea.vmem %s4, 128
    %v3413 = vld [vmem:[%s3412] sm:$0xff]
    %v3414 = vld [vmem:[%s3412 + $0x8] sm:$0xff]
    %v3416 = vsel %vm2413, %v3396, 0
    %v3419 = vsel %vm2413, %v3397, 0
    %v3422 = vsel %vm2413, %v3398, 0
    %v3425 = vsel %vm2413, %v3399, 0
    %v3428 = vsel %vm2413, %v3400, 0
    %v3431 = vsel %vm2413, %v3401, 0
    %v3434 = vsel %vm2413, %v3402, 0
    %v3437 = vsel %vm2413, %v3403, 0
    %v3440 = vsel %vm2413, %v3404, 0
    %v3443 = vsel %vm2413, %v3405, 0
    %v3446 = vsel %vm2413, %v3406, 0
    %v3449 = vsel %vm2413, %v3407, 0
    %v3452 = vsel %vm2413, %v3408, 0
    %v3455 = vsel %vm2413, %v3409, 0
    %v3458 = vsel %vm2413, %v3410, 0
    %v3461 = vsel %vm2413, %v3411, 0
    %3463 = vmatprep.subr.mxu0 0.0
    %3464 = vmatpush1.msra.mxu0 %v3413
    %3465 = vmatprep.subr.mxu0 0.0
    %3466 = vmatpush1.msra.mxu0 %v3414
    %3467 = vmatprep.subr.mxu0 0.0
    %3468 = vmatpush1.msra.mxu0 0.0
    %3469 = vmatprep.subr.mxu0 0.0
    %3470 = vmatpush1.msra.mxu0 0.0
    %3471 = vmatprep.subr.mxu0 0.0
    %3472 = vmatpush1.msra.mxu0 0.0
    %3473 = vmatprep.subr.mxu0 0.0
    %3474 = vmatpush1.msra.mxu0 0.0
    %3475 = vmatprep.subr.mxu0 0.0
    %3476 = vmatpush1.msra.mxu0 0.0
    %3477 = vmatprep.subr.mxu0 0.0
    %3478 = vmatpush1.msra.mxu0 0.0
    %3479 = vmatprep.subr.mxu0 0.0
    %3480 = vmatpush1.msra.mxu0 0.0
    %3481 = vmatprep.subr.mxu0 0.0
    %3482 = vmatpush1.msra.mxu0 0.0
    %3483 = vmatprep.subr.mxu0 0.0
    %3484 = vmatpush1.msra.mxu0 0.0
    %3485 = vmatprep.subr.mxu0 0.0
    %3486 = vmatpush1.msra.mxu0 0.0
    %3487 = vmatprep.subr.mxu0 0.0
    %3488 = vmatpush1.msra.mxu0 0.0
    %3489 = vmatprep.subr.mxu0 0.0
    %3490 = vmatpush1.msra.mxu0 0.0
    %3491 = vmatprep.subr.mxu0 0.0
    %3492 = vmatpush1.msra.mxu0 0.0
    %3493 = vmatprep.subr.mxu0 0.0
    %3494 = vmatpush1.msra.mxu0 0.0
    %3495 = vmatprep.subr.mxu0 0.0
    %3496 = vmatpush1.msra.mxu0 0.0
    %3497 = vmatprep.subr.mxu0 0.0
    %3498 = vmatpush1.msra.mxu0 0.0
    %3499 = vmatprep.subr.mxu0 0.0
    %3500 = vmatpush1.msra.mxu0 0.0
    %3501 = vmatprep.subr.mxu0 0.0
    %3502 = vmatpush1.msra.mxu0 0.0
    %3503 = vmatprep.subr.mxu0 0.0
    %3504 = vmatpush1.msra.mxu0 0.0
    %3505 = vmatprep.subr.mxu0 0.0
    %3506 = vmatpush1.msra.mxu0 0.0
    %3507 = vmatprep.subr.mxu0 0.0
    %3508 = vmatpush1.msra.mxu0 0.0
    %3509 = vmatprep.subr.mxu0 0.0
    %3510 = vmatpush1.msra.mxu0 0.0
    %3511 = vmatprep.subr.mxu0 0.0
    %3512 = vmatpush1.msra.mxu0 0.0
    %3513 = vmatprep.subr.mxu0 0.0
    %3514 = vmatpush1.msra.mxu0 0.0
    %3515 = vmatprep.subr.mxu0 0.0
    %3516 = vmatpush1.msra.mxu0 0.0
    %3517 = vmatprep.subr.mxu0 0.0
    %3518 = vmatpush1.msra.mxu0 0.0
    %3519 = vmatprep.subr.mxu0 0.0
    %3520 = vmatpush1.msra.mxu0 0.0
    %3521 = vmatprep.subr.mxu0 0.0
    %3522 = vmatpush1.msra.mxu0 0.0
    %3523 = vmatprep.subr.mxu0 0.0
    %3524 = vmatpush1.msra.mxu0 0.0
    %3525 = vmatprep.subr.mxu0 0.0
    %3526 = vmatpush1.msra.mxu0 0.0
    %3527 = vmatprep.mubr.f32.mxu0 0.0
    %3528 = vmatmul.mubr.f32.gmra.mrb[0].mxu0 %v3416
    %v3529 = vpop.f32.mrb[0].mxu0
    %v3530 = vadd.f32 0.0, %v3529
    %v3531 = vpop.f32.mrb[0].mxu0
    %3532 = vmatprep.mubr.f32.mxu0 0.0
    %3533 = vmatmul.mubr.f32.gmra.mrb[0].mxu0 %v3419
    %v3534 = vpop.f32.mrb[0].mxu0
    %v3535 = vadd.f32 0.0, %v3534
    %v3536 = vpop.f32.mrb[0].mxu0
    %3537 = vmatprep.mubr.f32.mxu0 0.0
    %3538 = vmatmul.mubr.f32.gmra.mrb[0].mxu0 %v3422
    %v3539 = vpop.f32.mrb[0].mxu0
    %v3540 = vadd.f32 0.0, %v3539
    %v3541 = vpop.f32.mrb[0].mxu0
    %3542 = vmatprep.mubr.f32.mxu0 0.0
    %3543 = vmatmul.mubr.f32.gmra.mrb[0].mxu0 %v3425
    %v3544 = vpop.f32.mrb[0].mxu0
    %v3545 = vadd.f32 0.0, %v3544
    %v3546 = vpop.f32.mrb[0].mxu0
    %3547 = vmatprep.mubr.f32.mxu0 0.0
    %3548 = vmatmul.mubr.f32.gmra.mrb[0].mxu0 %v3428
    %v3549 = vpop.f32.mrb[0].mxu0
    %v3550 = vadd.f32 0.0, %v3549
    %v3551 = vpop.f32.mrb[0].mxu0
    %3552 = vmatprep.mubr.f32.mxu0 0.0
    %3553 = vmatmul.mubr.f32.gmra.mrb[0].mxu0 %v3431
    %v3554 = vpop.f32.mrb[0].mxu0
    %v3555 = vadd.f32 0.0, %v3554
    %v3556 = vpop.f32.mrb[0].mxu0
    %3557 = vmatprep.mubr.f32.mxu0 0.0
    %3558 = vmatmul.mubr.f32.gmra.mrb[0].mxu0 %v3434
    %v3559 = vpop.f32.mrb[0].mxu0
    %v3560 = vadd.f32 0.0, %v3559
    %v3561 = vpop.f32.mrb[0].mxu0
    %3562 = vmatprep.mubr.f32.mxu0 0.0
    %3563 = vmatmul.mubr.f32.gmra.mrb[0].mxu0 %v3437
    %v3564 = vpop.f32.mrb[0].mxu0
    %v3565 = vadd.f32 0.0, %v3564
    %v3566 = vpop.f32.mrb[0].mxu0
    %3567 = vmatprep.mubr.f32.mxu0 0.0
    %3568 = vmatmul.mubr.f32.gmra.mrb[0].mxu0 %v3440
    %v3569 = vpop.f32.mrb[0].mxu0
    %v3570 = vadd.f32 0.0, %v3569
    %v3571 = vpop.f32.mrb[0].mxu0
    %3572 = vmatprep.mubr.f32.mxu0 0.0
    %3573 = vmatmul.mubr.f32.gmra.mrb[0].mxu0 %v3443
    %v3574 = vpop.f32.mrb[0].mxu0
    %v3575 = vadd.f32 0.0, %v3574
    %v3576 = vpop.f32.mrb[0].mxu0
    %3577 = vmatprep.mubr.f32.mxu0 0.0
    %3578 = vmatmul.mubr.f32.gmra.mrb[0].mxu0 %v3446
    %v3579 = vpop.f32.mrb[0].mxu0
    %v3580 = vadd.f32 0.0, %v3579
    %v3581 = vpop.f32.mrb[0].mxu0
    %3582 = vmatprep.mubr.f32.mxu0 0.0
    %3583 = vmatmul.mubr.f32.gmra.mrb[0].mxu0 %v3449
    %v3584 = vpop.f32.mrb[0].mxu0
    %v3585 = vadd.f32 0.0, %v3584
    %v3586 = vpop.f32.mrb[0].mxu0
    %3587 = vmatprep.mubr.f32.mxu0 0.0
    %3588 = vmatmul.mubr.f32.gmra.mrb[0].mxu0 %v3452
    %v3589 = vpop.f32.mrb[0].mxu0
    %v3590 = vadd.f32 0.0, %v3589
    %v3591 = vpop.f32.mrb[0].mxu0
    %3592 = vmatprep.mubr.f32.mxu0 0.0
    %3593 = vmatmul.mubr.f32.gmra.mrb[0].mxu0 %v3455
    %v3594 = vpop.f32.mrb[0].mxu0
    %v3595 = vadd.f32 0.0, %v3594
    %v3596 = vpop.f32.mrb[0].mxu0
    %3597 = vmatprep.mubr.f32.mxu0 0.0
    %3598 = vmatmul.mubr.f32.gmra.mrb[0].mxu0 %v3458
    %v3599 = vpop.f32.mrb[0].mxu0
    %v3600 = vadd.f32 0.0, %v3599
    %v3601 = vpop.f32.mrb[0].mxu0
    %3602 = vmatprep.mubr.f32.mxu0 0.0
    %3603 = vmatmul.mubr.f32.gmra.mrb[0].mxu0 %v3461
    %v3604 = vpop.f32.mrb[0].mxu0
    %v3605 = vadd.f32 0.0, %v3604
    %v3606 = vpop.f32.mrb[0].mxu0
    %3607 = vdwg.mxu0
    %v3609 = vsel %vm2413, %v2472, 0
    %v3612 = vsel %vm2413, %v2473, 0
    %v3615 = vsel %vm2413, %v2474, 0
    %v3618 = vsel %vm2413, %v2475, 0
    %v3621 = vsel %vm2413, %v2476, 0
    %v3624 = vsel %vm2413, %v2477, 0
    %v3627 = vsel %vm2413, %v2478, 0
    %v3630 = vsel %vm2413, %v2479, 0
    %v3633 = vsel %vm2413, %v2480, 0
    %v3636 = vsel %vm2413, %v2481, 0
    %v3639 = vsel %vm2413, %v2482, 0
    %v3642 = vsel %vm2413, %v2483, 0
    %v3645 = vsel %vm2413, %v2484, 0
    %v3648 = vsel %vm2413, %v2485, 0
    %v3651 = vsel %vm2413, %v2486, 0
    %v3654 = vsel %vm2413, %v2487, 0
    %3656 = vmatprep.subr.mxu0 0.0
    %3657 = vmatpush1.msra.mxu0 %v2488
    %3658 = vmatprep.subr.mxu0 0.0
    %3659 = vmatpush1.msra.mxu0 %v2489
    %3660 = vmatprep.subr.mxu0 0.0
    %3661 = vmatpush1.msra.mxu0 0.0
    %3662 = vmatprep.subr.mxu0 0.0
    %3663 = vmatpush1.msra.mxu0 0.0
    %3664 = vmatprep.subr.mxu0 0.0
    %3665 = vmatpush1.msra.mxu0 0.0
    %3666 = vmatprep.subr.mxu0 0.0
    %3667 = vmatpush1.msra.mxu0 0.0
    %3668 = vmatprep.subr.mxu0 0.0
    %3669 = vmatpush1.msra.mxu0 0.0
    %3670 = vmatprep.subr.mxu0 0.0
    %3671 = vmatpush1.msra.mxu0 0.0
    %3672 = vmatprep.subr.mxu0 0.0
    %3673 = vmatpush1.msra.mxu0 0.0
    %3674 = vmatprep.subr.mxu0 0.0
    %3675 = vmatpush1.msra.mxu0 0.0
    %3676 = vmatprep.subr.mxu0 0.0
    %3677 = vmatpush1.msra.mxu0 0.0
    %3678 = vmatprep.subr.mxu0 0.0
    %3679 = vmatpush1.msra.mxu0 0.0
    %3680 = vmatprep.subr.mxu0 0.0
    %3681 = vmatpush1.msra.mxu0 0.0
    %3682 = vmatprep.subr.mxu0 0.0
    %3683 = vmatpush1.msra.mxu0 0.0
    %3684 = vmatprep.subr.mxu0 0.0
    %3685 = vmatpush1.msra.mxu0 0.0
    %3686 = vmatprep.subr.mxu0 0.0
    %3687 = vmatpush1.msra.mxu0 0.0
    %3688 = vmatprep.subr.mxu0 0.0
    %3689 = vmatpush1.msra.mxu0 0.0
    %3690 = vmatprep.subr.mxu0 0.0
    %3691 = vmatpush1.msra.mxu0 0.0
    %3692 = vmatprep.subr.mxu0 0.0
    %3693 = vmatpush1.msra.mxu0 0.0
    %3694 = vmatprep.subr.mxu0 0.0
    %3695 = vmatpush1.msra.mxu0 0.0
    %3696 = vmatprep.subr.mxu0 0.0
    %3697 = vmatpush1.msra.mxu0 0.0
    %3698 = vmatprep.subr.mxu0 0.0
    %3699 = vmatpush1.msra.mxu0 0.0
    %3700 = vmatprep.subr.mxu0 0.0
    %3701 = vmatpush1.msra.mxu0 0.0
    %3702 = vmatprep.subr.mxu0 0.0
    %3703 = vmatpush1.msra.mxu0 0.0
    %3704 = vmatprep.subr.mxu0 0.0
    %3705 = vmatpush1.msra.mxu0 0.0
    %3706 = vmatprep.subr.mxu0 0.0
    %3707 = vmatpush1.msra.mxu0 0.0
    %3708 = vmatprep.subr.mxu0 0.0
    %3709 = vmatpush1.msra.mxu0 0.0
    %3710 = vmatprep.subr.mxu0 0.0
    %3711 = vmatpush1.msra.mxu0 0.0
    %3712 = vmatprep.subr.mxu0 0.0
    %3713 = vmatpush1.msra.mxu0 0.0
    %3714 = vmatprep.subr.mxu0 0.0
    %3715 = vmatpush1.msra.mxu0 0.0
    %3716 = vmatprep.subr.mxu0 0.0
    %3717 = vmatpush1.msra.mxu0 0.0
    %3718 = vmatprep.subr.mxu0 0.0
    %3719 = vmatpush1.msra.mxu0 0.0
    %3720 = vmatprep.mubr.f32.mxu0 0.0
    %3721 = vmatmul.mubr.f32.gmra.mrb[0].mxu0 %v3609
    %v3722 = vpop.f32.mrb[0].mxu0
    %v3723 = vadd.f32 %v2624, %v3722
    %v3724 = vpop.f32.mrb[0].mxu0
    %3725 = vmatprep.mubr.f32.mxu0 0.0
    %3726 = vmatmul.mubr.f32.gmra.mrb[0].mxu0 %v3612
    %v3727 = vpop.f32.mrb[0].mxu0
    %v3728 = vadd.f32 %v2629, %v3727
    %v3729 = vpop.f32.mrb[0].mxu0
    %3730 = vmatprep.mubr.f32.mxu0 0.0
    %3731 = vmatmul.mubr.f32.gmra.mrb[0].mxu0 %v3615
    %v3732 = vpop.f32.mrb[0].mxu0
    %v3733 = vadd.f32 %v2634, %v3732
    %v3734 = vpop.f32.mrb[0].mxu0
    %3735 = vmatprep.mubr.f32.mxu0 0.0
    %3736 = vmatmul.mubr.f32.gmra.mrb[0].mxu0 %v3618
    %v3737 = vpop.f32.mrb[0].mxu0
    %v3738 = vadd.f32 %v2639, %v3737
    %v3739 = vpop.f32.mrb[0].mxu0
    %3740 = vmatprep.mubr.f32.mxu0 0.0
    %3741 = vmatmul.mubr.f32.gmra.mrb[0].mxu0 %v3621
    %v3742 = vpop.f32.mrb[0].mxu0
    %v3743 = vadd.f32 %v2644, %v3742
    %v3744 = vpop.f32.mrb[0].mxu0
    %3745 = vmatprep.mubr.f32.mxu0 0.0
    %3746 = vmatmul.mubr.f32.gmra.mrb[0].mxu0 %v3624
    %v3747 = vpop.f32.mrb[0].mxu0
    %v3748 = vadd.f32 %v2649, %v3747
    %v3749 = vpop.f32.mrb[0].mxu0
    %3750 = vmatprep.mubr.f32.mxu0 0.0
    %3751 = vmatmul.mubr.f32.gmra.mrb[0].mxu0 %v3627
    %v3752 = vpop.f32.mrb[0].mxu0
    %v3753 = vadd.f32 %v2654, %v3752
    %v3754 = vpop.f32.mrb[0].mxu0
    %3755 = vmatprep.mubr.f32.mxu0 0.0
    %3756 = vmatmul.mubr.f32.gmra.mrb[0].mxu0 %v3630
    %v3757 = vpop.f32.mrb[0].mxu0
    %v3758 = vadd.f32 %v2659, %v3757
    %v3759 = vpop.f32.mrb[0].mxu0
    %3760 = vmatprep.mubr.f32.mxu0 0.0
    %3761 = vmatmul.mubr.f32.gmra.mrb[0].mxu0 %v3633
    %v3762 = vpop.f32.mrb[0].mxu0
    %v3763 = vadd.f32 %v2664, %v3762
    %v3764 = vpop.f32.mrb[0].mxu0
    %3765 = vmatprep.mubr.f32.mxu0 0.0
    %3766 = vmatmul.mubr.f32.gmra.mrb[0].mxu0 %v3636
    %v3767 = vpop.f32.mrb[0].mxu0
    %v3768 = vadd.f32 %v2669, %v3767
    %v3769 = vpop.f32.mrb[0].mxu0
    %3770 = vmatprep.mubr.f32.mxu0 0.0
    %3771 = vmatmul.mubr.f32.gmra.mrb[0].mxu0 %v3639
    %v3772 = vpop.f32.mrb[0].mxu0
    %v3773 = vadd.f32 %v2674, %v3772
    %v3774 = vpop.f32.mrb[0].mxu0
    %3775 = vmatprep.mubr.f32.mxu0 0.0
    %3776 = vmatmul.mubr.f32.gmra.mrb[0].mxu0 %v3642
    %v3777 = vpop.f32.mrb[0].mxu0
    %v3778 = vadd.f32 %v2679, %v3777
    %v3779 = vpop.f32.mrb[0].mxu0
    %3780 = vmatprep.mubr.f32.mxu0 0.0
    %3781 = vmatmul.mubr.f32.gmra.mrb[0].mxu0 %v3645
    %v3782 = vpop.f32.mrb[0].mxu0
    %v3783 = vadd.f32 %v2684, %v3782
    %v3784 = vpop.f32.mrb[0].mxu0
    %3785 = vmatprep.mubr.f32.mxu0 0.0
    %3786 = vmatmul.mubr.f32.gmra.mrb[0].mxu0 %v3648
    %v3787 = vpop.f32.mrb[0].mxu0
    %v3788 = vadd.f32 %v2689, %v3787
    %v3789 = vpop.f32.mrb[0].mxu0
    %3790 = vmatprep.mubr.f32.mxu0 0.0
    %3791 = vmatmul.mubr.f32.gmra.mrb[0].mxu0 %v3651
    %v3792 = vpop.f32.mrb[0].mxu0
    %v3793 = vadd.f32 %v2694, %v3792
    %v3794 = vpop.f32.mrb[0].mxu0
    %3795 = vmatprep.mubr.f32.mxu0 0.0
    %3796 = vmatmul.mubr.f32.gmra.mrb[0].mxu0 %v3654
    %v3797 = vpop.f32.mrb[0].mxu0
    %v3798 = vadd.f32 %v2699, %v3797
    %v3799 = vpop.f32.mrb[0].mxu0
    %3800 = vdwg.mxu0
    %v3802 = vsel %vm2413, %v2702, 0
    %v3805 = vsel %vm2413, %v2703, 0
    %v3808 = vsel %vm2413, %v2704, 0
    %v3811 = vsel %vm2413, %v2705, 0
    %v3814 = vsel %vm2413, %v2706, 0
    %v3817 = vsel %vm2413, %v2707, 0
    %v3820 = vsel %vm2413, %v2708, 0
    %v3823 = vsel %vm2413, %v2709, 0
    %v3826 = vsel %vm2413, %v2710, 0
    %v3829 = vsel %vm2413, %v2711, 0
    %v3832 = vsel %vm2413, %v2712, 0
    %v3835 = vsel %vm2413, %v2713, 0
    %v3838 = vsel %vm2413, %v2714, 0
    %v3841 = vsel %vm2413, %v2715, 0
    %v3844 = vsel %vm2413, %v2716, 0
    %v3847 = vsel %vm2413, %v2717, 0
    %3849 = vmatprep.subr.mxu0 0.0
    %3850 = vmatpush1.msra.mxu0 %v2719
    %3851 = vmatprep.subr.mxu0 0.0
    %3852 = vmatpush1.msra.mxu0 %v2720
    %3853 = vmatprep.subr.mxu0 0.0
    %3854 = vmatpush1.msra.mxu0 0.0
    %3855 = vmatprep.subr.mxu0 0.0
    %3856 = vmatpush1.msra.mxu0 0.0
    %3857 = vmatprep.subr.mxu0 0.0
    %3858 = vmatpush1.msra.mxu0 0.0
    %3859 = vmatprep.subr.mxu0 0.0
    %3860 = vmatpush1.msra.mxu0 0.0
    %3861 = vmatprep.subr.mxu0 0.0
    %3862 = vmatpush1.msra.mxu0 0.0
    %3863 = vmatprep.subr.mxu0 0.0
    %3864 = vmatpush1.msra.mxu0 0.0
    %3865 = vmatprep.subr.mxu0 0.0
    %3866 = vmatpush1.msra.mxu0 0.0
    %3867 = vmatprep.subr.mxu0 0.0
    %3868 = vmatpush1.msra.mxu0 0.0
    %3869 = vmatprep.subr.mxu0 0.0
    %3870 = vmatpush1.msra.mxu0 0.0
    %3871 = vmatprep.subr.mxu0 0.0
    %3872 = vmatpush1.msra.mxu0 0.0
    %3873 = vmatprep.subr.mxu0 0.0
    %3874 = vmatpush1.msra.mxu0 0.0
    %3875 = vmatprep.subr.mxu0 0.0
    %3876 = vmatpush1.msra.mxu0 0.0
    %3877 = vmatprep.subr.mxu0 0.0
    %3878 = vmatpush1.msra.mxu0 0.0
    %3879 = vmatprep.subr.mxu0 0.0
    %3880 = vmatpush1.msra.mxu0 0.0
    %3881 = vmatprep.subr.mxu0 0.0
    %3882 = vmatpush1.msra.mxu0 0.0
    %3883 = vmatprep.subr.mxu0 0.0
    %3884 = vmatpush1.msra.mxu0 0.0
    %3885 = vmatprep.subr.mxu0 0.0
    %3886 = vmatpush1.msra.mxu0 0.0
    %3887 = vmatprep.subr.mxu0 0.0
    %3888 = vmatpush1.msra.mxu0 0.0
    %3889 = vmatprep.subr.mxu0 0.0
    %3890 = vmatpush1.msra.mxu0 0.0
    %3891 = vmatprep.subr.mxu0 0.0
    %3892 = vmatpush1.msra.mxu0 0.0
    %3893 = vmatprep.subr.mxu0 0.0
    %3894 = vmatpush1.msra.mxu0 0.0
    %3895 = vmatprep.subr.mxu0 0.0
    %3896 = vmatpush1.msra.mxu0 0.0
    %3897 = vmatprep.subr.mxu0 0.0
    %3898 = vmatpush1.msra.mxu0 0.0
    %3899 = vmatprep.subr.mxu0 0.0
    %3900 = vmatpush1.msra.mxu0 0.0
    %3901 = vmatprep.subr.mxu0 0.0
    %3902 = vmatpush1.msra.mxu0 0.0
    %3903 = vmatprep.subr.mxu0 0.0
    %3904 = vmatpush1.msra.mxu0 0.0
    %3905 = vmatprep.subr.mxu0 0.0
    %3906 = vmatpush1.msra.mxu0 0.0
    %3907 = vmatprep.subr.mxu0 0.0
    %3908 = vmatpush1.msra.mxu0 0.0
    %3909 = vmatprep.subr.mxu0 0.0
    %3910 = vmatpush1.msra.mxu0 0.0
    %3911 = vmatprep.subr.mxu0 0.0
    %3912 = vmatpush1.msra.mxu0 0.0
    %3913 = vmatprep.mubr.f32.mxu0 0.0
    %3914 = vmatmul.mubr.f32.gmra.mrb[0].mxu0 %v3802
    %v3915 = vpop.f32.mrb[0].mxu0
    %v3916 = vadd.f32 %v2855, %v3915
    %v3917 = vpop.f32.mrb[0].mxu0
    %3918 = vmatprep.mubr.f32.mxu0 0.0
    %3919 = vmatmul.mubr.f32.gmra.mrb[0].mxu0 %v3805
    %v3920 = vpop.f32.mrb[0].mxu0
    %v3921 = vadd.f32 %v2860, %v3920
    %v3922 = vpop.f32.mrb[0].mxu0
    %3923 = vmatprep.mubr.f32.mxu0 0.0
    %3924 = vmatmul.mubr.f32.gmra.mrb[0].mxu0 %v3808
    %v3925 = vpop.f32.mrb[0].mxu0
    %v3926 = vadd.f32 %v2865, %v3925
    %v3927 = vpop.f32.mrb[0].mxu0
    %3928 = vmatprep.mubr.f32.mxu0 0.0
    %3929 = vmatmul.mubr.f32.gmra.mrb[0].mxu0 %v3811
    %v3930 = vpop.f32.mrb[0].mxu0
    %v3931 = vadd.f32 %v2870, %v3930
    %v3932 = vpop.f32.mrb[0].mxu0
    %3933 = vmatprep.mubr.f32.mxu0 0.0
    %3934 = vmatmul.mubr.f32.gmra.mrb[0].mxu0 %v3814
    %v3935 = vpop.f32.mrb[0].mxu0
    %v3936 = vadd.f32 %v2875, %v3935
    %v3937 = vpop.f32.mrb[0].mxu0
    %3938 = vmatprep.mubr.f32.mxu0 0.0
    %3939 = vmatmul.mubr.f32.gmra.mrb[0].mxu0 %v3817
    %v3940 = vpop.f32.mrb[0].mxu0
    %v3941 = vadd.f32 %v2880, %v3940
    %v3942 = vpop.f32.mrb[0].mxu0
    %3943 = vmatprep.mubr.f32.mxu0 0.0
    %3944 = vmatmul.mubr.f32.gmra.mrb[0].mxu0 %v3820
    %v3945 = vpop.f32.mrb[0].mxu0
    %v3946 = vadd.f32 %v2885, %v3945
    %v3947 = vpop.f32.mrb[0].mxu0
    %3948 = vmatprep.mubr.f32.mxu0 0.0
    %3949 = vmatmul.mubr.f32.gmra.mrb[0].mxu0 %v3823
    %v3950 = vpop.f32.mrb[0].mxu0
    %v3951 = vadd.f32 %v2890, %v3950
    %v3952 = vpop.f32.mrb[0].mxu0
    %3953 = vmatprep.mubr.f32.mxu0 0.0
    %3954 = vmatmul.mubr.f32.gmra.mrb[0].mxu0 %v3826
    %v3955 = vpop.f32.mrb[0].mxu0
    %v3956 = vadd.f32 %v2895, %v3955
    %v3957 = vpop.f32.mrb[0].mxu0
    %3958 = vmatprep.mubr.f32.mxu0 0.0
    %3959 = vmatmul.mubr.f32.gmra.mrb[0].mxu0 %v3829
    %v3960 = vpop.f32.mrb[0].mxu0
    %v3961 = vadd.f32 %v2900, %v3960
    %v3962 = vpop.f32.mrb[0].mxu0
    %3963 = vmatprep.mubr.f32.mxu0 0.0
    %3964 = vmatmul.mubr.f32.gmra.mrb[0].mxu0 %v3832
    %v3965 = vpop.f32.mrb[0].mxu0
    %v3966 = vadd.f32 %v2905, %v3965
    %v3967 = vpop.f32.mrb[0].mxu0
    %3968 = vmatprep.mubr.f32.mxu0 0.0
    %3969 = vmatmul.mubr.f32.gmra.mrb[0].mxu0 %v3835
    %v3970 = vpop.f32.mrb[0].mxu0
    %v3971 = vadd.f32 %v2910, %v3970
    %v3972 = vpop.f32.mrb[0].mxu0
    %3973 = vmatprep.mubr.f32.mxu0 0.0
    %3974 = vmatmul.mubr.f32.gmra.mrb[0].mxu0 %v3838
    %v3975 = vpop.f32.mrb[0].mxu0
    %v3976 = vadd.f32 %v2915, %v3975
    %v3977 = vpop.f32.mrb[0].mxu0
    %3978 = vmatprep.mubr.f32.mxu0 0.0
    %3979 = vmatmul.mubr.f32.gmra.mrb[0].mxu0 %v3841
    %v3980 = vpop.f32.mrb[0].mxu0
    %v3981 = vadd.f32 %v2920, %v3980
    %v3982 = vpop.f32.mrb[0].mxu0
    %3983 = vmatprep.mubr.f32.mxu0 0.0
    %3984 = vmatmul.mubr.f32.gmra.mrb[0].mxu0 %v3844
    %v3985 = vpop.f32.mrb[0].mxu0
    %v3986 = vadd.f32 %v2925, %v3985
    %v3987 = vpop.f32.mrb[0].mxu0
    %3988 = vmatprep.mubr.f32.mxu0 0.0
    %3989 = vmatmul.mubr.f32.gmra.mrb[0].mxu0 %v3847
    %v3990 = vpop.f32.mrb[0].mxu0
    %v3991 = vadd.f32 %v2930, %v3990
    %v3992 = vpop.f32.mrb[0].mxu0
    %3993 = vdwg.mxu0
    %v3995 = vsel %vm2413, %v2933, 0
    %v3998 = vsel %vm2413, %v2934, 0
    %v4001 = vsel %vm2413, %v2935, 0
    %v4004 = vsel %vm2413, %v2936, 0
    %v4007 = vsel %vm2413, %v2937, 0
    %v4010 = vsel %vm2413, %v2938, 0
    %v4013 = vsel %vm2413, %v2939, 0
    %v4016 = vsel %vm2413, %v2940, 0
    %v4019 = vsel %vm2413, %v2941, 0
    %v4022 = vsel %vm2413, %v2942, 0
    %v4025 = vsel %vm2413, %v2943, 0
    %v4028 = vsel %vm2413, %v2944, 0
    %v4031 = vsel %vm2413, %v2945, 0
    %v4034 = vsel %vm2413, %v2946, 0
    %v4037 = vsel %vm2413, %v2947, 0
    %v4040 = vsel %vm2413, %v2948, 0
    %4042 = vmatprep.subr.mxu0 0.0
    %4043 = vmatpush1.msra.mxu0 %v2950
    %4044 = vmatprep.subr.mxu0 0.0
    %4045 = vmatpush1.msra.mxu0 %v2951
    %4046 = vmatprep.subr.mxu0 0.0
    %4047 = vmatpush1.msra.mxu0 0.0
    %4048 = vmatprep.subr.mxu0 0.0
    %4049 = vmatpush1.msra.mxu0 0.0
    %4050 = vmatprep.subr.mxu0 0.0
    %4051 = vmatpush1.msra.mxu0 0.0
    %4052 = vmatprep.subr.mxu0 0.0
    %4053 = vmatpush1.msra.mxu0 0.0
    %4054 = vmatprep.subr.mxu0 0.0
    %4055 = vmatpush1.msra.mxu0 0.0
    %4056 = vmatprep.subr.mxu0 0.0
    %4057 = vmatpush1.msra.mxu0 0.0
    %4058 = vmatprep.subr.mxu0 0.0
    %4059 = vmatpush1.msra.mxu0 0.0
    %4060 = vmatprep.subr.mxu0 0.0
    %4061 = vmatpush1.msra.mxu0 0.0
    %4062 = vmatprep.subr.mxu0 0.0
    %4063 = vmatpush1.msra.mxu0 0.0
    %4064 = vmatprep.subr.mxu0 0.0
    %4065 = vmatpush1.msra.mxu0 0.0
    %4066 = vmatprep.subr.mxu0 0.0
    %4067 = vmatpush1.msra.mxu0 0.0
    %4068 = vmatprep.subr.mxu0 0.0
    %4069 = vmatpush1.msra.mxu0 0.0
    %4070 = vmatprep.subr.mxu0 0.0
    %4071 = vmatpush1.msra.mxu0 0.0
    %4072 = vmatprep.subr.mxu0 0.0
    %4073 = vmatpush1.msra.mxu0 0.0
    %4074 = vmatprep.subr.mxu0 0.0
    %4075 = vmatpush1.msra.mxu0 0.0
    %4076 = vmatprep.subr.mxu0 0.0
    %4077 = vmatpush1.msra.mxu0 0.0
    %4078 = vmatprep.subr.mxu0 0.0
    %4079 = vmatpush1.msra.mxu0 0.0
    %4080 = vmatprep.subr.mxu0 0.0
    %4081 = vmatpush1.msra.mxu0 0.0
    %4082 = vmatprep.subr.mxu0 0.0
    %4083 = vmatpush1.msra.mxu0 0.0
    %4084 = vmatprep.subr.mxu0 0.0
    %4085 = vmatpush1.msra.mxu0 0.0
    %4086 = vmatprep.subr.mxu0 0.0
    %4087 = vmatpush1.msra.mxu0 0.0
    %4088 = vmatprep.subr.mxu0 0.0
    %4089 = vmatpush1.msra.mxu0 0.0
    %4090 = vmatprep.subr.mxu0 0.0
    %4091 = vmatpush1.msra.mxu0 0.0
    %4092 = vmatprep.subr.mxu0 0.0
    %4093 = vmatpush1.msra.mxu0 0.0
    %4094 = vmatprep.subr.mxu0 0.0
    %4095 = vmatpush1.msra.mxu0 0.0
    %4096 = vmatprep.subr.mxu0 0.0
    %4097 = vmatpush1.msra.mxu0 0.0
    %4098 = vmatprep.subr.mxu0 0.0
    %4099 = vmatpush1.msra.mxu0 0.0
    %4100 = vmatprep.subr.mxu0 0.0
    %4101 = vmatpush1.msra.mxu0 0.0
    %4102 = vmatprep.subr.mxu0 0.0
    %4103 = vmatpush1.msra.mxu0 0.0
    %4104 = vmatprep.subr.mxu0 0.0
    %4105 = vmatpush1.msra.mxu0 0.0
    %4106 = vmatprep.mubr.f32.mxu0 0.0
    %4107 = vmatmul.mubr.f32.gmra.mrb[0].mxu0 %v3995
    %v4108 = vpop.f32.mrb[0].mxu0
    %v4109 = vadd.f32 %v3086, %v4108
    %v4110 = vpop.f32.mrb[0].mxu0
    %4111 = vmatprep.mubr.f32.mxu0 0.0
    %4112 = vmatmul.mubr.f32.gmra.mrb[0].mxu0 %v3998
    %v4113 = vpop.f32.mrb[0].mxu0
    %v4114 = vadd.f32 %v3091, %v4113
    %v4115 = vpop.f32.mrb[0].mxu0
    %4116 = vmatprep.mubr.f32.mxu0 0.0
    %4117 = vmatmul.mubr.f32.gmra.mrb[0].mxu0 %v4001
    %v4118 = vpop.f32.mrb[0].mxu0
    %v4119 = vadd.f32 %v3096, %v4118
    %v4120 = vpop.f32.mrb[0].mxu0
    %4121 = vmatprep.mubr.f32.mxu0 0.0
    %4122 = vmatmul.mubr.f32.gmra.mrb[0].mxu0 %v4004
    %v4123 = vpop.f32.mrb[0].mxu0
    %v4124 = vadd.f32 %v3101, %v4123
    %v4125 = vpop.f32.mrb[0].mxu0
    %4126 = vmatprep.mubr.f32.mxu0 0.0
    %4127 = vmatmul.mubr.f32.gmra.mrb[0].mxu0 %v4007
    %v4128 = vpop.f32.mrb[0].mxu0
    %v4129 = vadd.f32 %v3106, %v4128
    %v4130 = vpop.f32.mrb[0].mxu0
    %4131 = vmatprep.mubr.f32.mxu0 0.0
    %4132 = vmatmul.mubr.f32.gmra.mrb[0].mxu0 %v4010
    %v4133 = vpop.f32.mrb[0].mxu0
    %v4134 = vadd.f32 %v3111, %v4133
    %v4135 = vpop.f32.mrb[0].mxu0
    %4136 = vmatprep.mubr.f32.mxu0 0.0
    %4137 = vmatmul.mubr.f32.gmra.mrb[0].mxu0 %v4013
    %v4138 = vpop.f32.mrb[0].mxu0
    %v4139 = vadd.f32 %v3116, %v4138
    %v4140 = vpop.f32.mrb[0].mxu0
    %4141 = vmatprep.mubr.f32.mxu0 0.0
    %4142 = vmatmul.mubr.f32.gmra.mrb[0].mxu0 %v4016
    %v4143 = vpop.f32.mrb[0].mxu0
    %v4144 = vadd.f32 %v3121, %v4143
    %v4145 = vpop.f32.mrb[0].mxu0
    %4146 = vmatprep.mubr.f32.mxu0 0.0
    %4147 = vmatmul.mubr.f32.gmra.mrb[0].mxu0 %v4019
    %v4148 = vpop.f32.mrb[0].mxu0
    %v4149 = vadd.f32 %v3126, %v4148
    %v4150 = vpop.f32.mrb[0].mxu0
    %4151 = vmatprep.mubr.f32.mxu0 0.0
    %4152 = vmatmul.mubr.f32.gmra.mrb[0].mxu0 %v4022
    %v4153 = vpop.f32.mrb[0].mxu0
    %v4154 = vadd.f32 %v3131, %v4153
    %v4155 = vpop.f32.mrb[0].mxu0
    %4156 = vmatprep.mubr.f32.mxu0 0.0
    %4157 = vmatmul.mubr.f32.gmra.mrb[0].mxu0 %v4025
    %v4158 = vpop.f32.mrb[0].mxu0
    %v4159 = vadd.f32 %v3136, %v4158
    %v4160 = vpop.f32.mrb[0].mxu0
    %4161 = vmatprep.mubr.f32.mxu0 0.0
    %4162 = vmatmul.mubr.f32.gmra.mrb[0].mxu0 %v4028
    %v4163 = vpop.f32.mrb[0].mxu0
    %v4164 = vadd.f32 %v3141, %v4163
    %v4165 = vpop.f32.mrb[0].mxu0
    %4166 = vmatprep.mubr.f32.mxu0 0.0
    %4167 = vmatmul.mubr.f32.gmra.mrb[0].mxu0 %v4031
    %v4168 = vpop.f32.mrb[0].mxu0
    %v4169 = vadd.f32 %v3146, %v4168
    %v4170 = vpop.f32.mrb[0].mxu0
    %4171 = vmatprep.mubr.f32.mxu0 0.0
    %4172 = vmatmul.mubr.f32.gmra.mrb[0].mxu0 %v4034
    %v4173 = vpop.f32.mrb[0].mxu0
    %v4174 = vadd.f32 %v3151, %v4173
    %v4175 = vpop.f32.mrb[0].mxu0
    %4176 = vmatprep.mubr.f32.mxu0 0.0
    %4177 = vmatmul.mubr.f32.gmra.mrb[0].mxu0 %v4037
    %v4178 = vpop.f32.mrb[0].mxu0
    %v4179 = vadd.f32 %v3156, %v4178
    %v4180 = vpop.f32.mrb[0].mxu0
    %4181 = vmatprep.mubr.f32.mxu0 0.0
    %4182 = vmatmul.mubr.f32.gmra.mrb[0].mxu0 %v4040
    %v4183 = vpop.f32.mrb[0].mxu0
    %v4184 = vadd.f32 %v3161, %v4183
    %v4185 = vpop.f32.mrb[0].mxu0
    %4186 = vdwg.mxu0
    %v4188 = vsel %vm2413, %v3165, 0
    %v4191 = vsel %vm2413, %v3166, 0
    %v4194 = vsel %vm2413, %v3167, 0
    %v4197 = vsel %vm2413, %v3168, 0
    %v4200 = vsel %vm2413, %v3169, 0
    %v4203 = vsel %vm2413, %v3170, 0
    %v4206 = vsel %vm2413, %v3171, 0
    %v4209 = vsel %vm2413, %v3172, 0
    %v4212 = vsel %vm2413, %v3173, 0
    %v4215 = vsel %vm2413, %v3174, 0
    %v4218 = vsel %vm2413, %v3175, 0
    %v4221 = vsel %vm2413, %v3176, 0
    %v4224 = vsel %vm2413, %v3177, 0
    %v4227 = vsel %vm2413, %v3178, 0
    %v4230 = vsel %vm2413, %v3179, 0
    %v4233 = vsel %vm2413, %v3180, 0
    %4235 = vmatprep.subr.mxu0 0.0
    %4236 = vmatpush1.msra.mxu0 %v3182
    %4237 = vmatprep.subr.mxu0 0.0
    %4238 = vmatpush1.msra.mxu0 %v3183
    %4239 = vmatprep.subr.mxu0 0.0
    %4240 = vmatpush1.msra.mxu0 0.0
    %4241 = vmatprep.subr.mxu0 0.0
    %4242 = vmatpush1.msra.mxu0 0.0
    %4243 = vmatprep.subr.mxu0 0.0
    %4244 = vmatpush1.msra.mxu0 0.0
    %4245 = vmatprep.subr.mxu0 0.0
    %4246 = vmatpush1.msra.mxu0 0.0
    %4247 = vmatprep.subr.mxu0 0.0
    %4248 = vmatpush1.msra.mxu0 0.0
    %4249 = vmatprep.subr.mxu0 0.0
    %4250 = vmatpush1.msra.mxu0 0.0
    %4251 = vmatprep.subr.mxu0 0.0
    %4252 = vmatpush1.msra.mxu0 0.0
    %4253 = vmatprep.subr.mxu0 0.0
    %4254 = vmatpush1.msra.mxu0 0.0
    %4255 = vmatprep.subr.mxu0 0.0
    %4256 = vmatpush1.msra.mxu0 0.0
    %4257 = vmatprep.subr.mxu0 0.0
    %4258 = vmatpush1.msra.mxu0 0.0
    %4259 = vmatprep.subr.mxu0 0.0
    %4260 = vmatpush1.msra.mxu0 0.0
    %4261 = vmatprep.subr.mxu0 0.0
    %4262 = vmatpush1.msra.mxu0 0.0
    %4263 = vmatprep.subr.mxu0 0.0
    %4264 = vmatpush1.msra.mxu0 0.0
    %4265 = vmatprep.subr.mxu0 0.0
    %4266 = vmatpush1.msra.mxu0 0.0
    %4267 = vmatprep.subr.mxu0 0.0
    %4268 = vmatpush1.msra.mxu0 0.0
    %4269 = vmatprep.subr.mxu0 0.0
    %4270 = vmatpush1.msra.mxu0 0.0
    %4271 = vmatprep.subr.mxu0 0.0
    %4272 = vmatpush1.msra.mxu0 0.0
    %4273 = vmatprep.subr.mxu0 0.0
    %4274 = vmatpush1.msra.mxu0 0.0
    %4275 = vmatprep.subr.mxu0 0.0
    %4276 = vmatpush1.msra.mxu0 0.0
    %4277 = vmatprep.subr.mxu0 0.0
    %4278 = vmatpush1.msra.mxu0 0.0
    %4279 = vmatprep.subr.mxu0 0.0
    %4280 = vmatpush1.msra.mxu0 0.0
    %4281 = vmatprep.subr.mxu0 0.0
    %4282 = vmatpush1.msra.mxu0 0.0
    %4283 = vmatprep.subr.mxu0 0.0
    %4284 = vmatpush1.msra.mxu0 0.0
    %4285 = vmatprep.subr.mxu0 0.0
    %4286 = vmatpush1.msra.mxu0 0.0
    %4287 = vmatprep.subr.mxu0 0.0
    %4288 = vmatpush1.msra.mxu0 0.0
    %4289 = vmatprep.subr.mxu0 0.0
    %4290 = vmatpush1.msra.mxu0 0.0
    %4291 = vmatprep.subr.mxu0 0.0
    %4292 = vmatpush1.msra.mxu0 0.0
    %4293 = vmatprep.subr.mxu0 0.0
    %4294 = vmatpush1.msra.mxu0 0.0
    %4295 = vmatprep.subr.mxu0 0.0
    %4296 = vmatpush1.msra.mxu0 0.0
    %4297 = vmatprep.subr.mxu0 0.0
    %4298 = vmatpush1.msra.mxu0 0.0
    %4299 = vmatprep.mubr.f32.mxu0 0.0
    %4300 = vmatmul.mubr.f32.gmra.mrb[0].mxu0 %v4188
    %v4301 = vpop.f32.mrb[0].mxu0
    %v4302 = vadd.f32 %v3318, %v4301
    %v4303 = vpop.f32.mrb[0].mxu0
    %4304 = vmatprep.mubr.f32.mxu0 0.0
    %4305 = vmatmul.mubr.f32.gmra.mrb[0].mxu0 %v4191
    %v4306 = vpop.f32.mrb[0].mxu0
    %v4307 = vadd.f32 %v3323, %v4306
    %v4308 = vpop.f32.mrb[0].mxu0
    %4309 = vmatprep.mubr.f32.mxu0 0.0
    %4310 = vmatmul.mubr.f32.gmra.mrb[0].mxu0 %v4194
    %v4311 = vpop.f32.mrb[0].mxu0
    %v4312 = vadd.f32 %v3328, %v4311
    %v4313 = vpop.f32.mrb[0].mxu0
    %4314 = vmatprep.mubr.f32.mxu0 0.0
    %4315 = vmatmul.mubr.f32.gmra.mrb[0].mxu0 %v4197
    %v4316 = vpop.f32.mrb[0].mxu0
    %v4317 = vadd.f32 %v3333, %v4316
    %v4318 = vpop.f32.mrb[0].mxu0
    %4319 = vmatprep.mubr.f32.mxu0 0.0
    %4320 = vmatmul.mubr.f32.gmra.mrb[0].mxu0 %v4200
    %v4321 = vpop.f32.mrb[0].mxu0
    %v4322 = vadd.f32 %v3338, %v4321
    %v4323 = vpop.f32.mrb[0].mxu0
    %4324 = vmatprep.mubr.f32.mxu0 0.0
    %4325 = vmatmul.mubr.f32.gmra.mrb[0].mxu0 %v4203
    %v4326 = vpop.f32.mrb[0].mxu0
    %v4327 = vadd.f32 %v3343, %v4326
    %v4328 = vpop.f32.mrb[0].mxu0
    %4329 = vmatprep.mubr.f32.mxu0 0.0
    %4330 = vmatmul.mubr.f32.gmra.mrb[0].mxu0 %v4206
    %v4331 = vpop.f32.mrb[0].mxu0
    %v4332 = vadd.f32 %v3348, %v4331
    %v4333 = vpop.f32.mrb[0].mxu0
    %4334 = vmatprep.mubr.f32.mxu0 0.0
    %4335 = vmatmul.mubr.f32.gmra.mrb[0].mxu0 %v4209
    %v4336 = vpop.f32.mrb[0].mxu0
    %v4337 = vadd.f32 %v3353, %v4336
    %v4338 = vpop.f32.mrb[0].mxu0
    %4339 = vmatprep.mubr.f32.mxu0 0.0
    %4340 = vmatmul.mubr.f32.gmra.mrb[0].mxu0 %v4212
    %v4341 = vpop.f32.mrb[0].mxu0
    %v4342 = vadd.f32 %v3358, %v4341
    %v4343 = vpop.f32.mrb[0].mxu0
    %4344 = vmatprep.mubr.f32.mxu0 0.0
    %4345 = vmatmul.mubr.f32.gmra.mrb[0].mxu0 %v4215
    %v4346 = vpop.f32.mrb[0].mxu0
    %v4347 = vadd.f32 %v3363, %v4346
    %v4348 = vpop.f32.mrb[0].mxu0
    %4349 = vmatprep.mubr.f32.mxu0 0.0
    %4350 = vmatmul.mubr.f32.gmra.mrb[0].mxu0 %v4218
    %v4351 = vpop.f32.mrb[0].mxu0
    %v4352 = vadd.f32 %v3368, %v4351
    %v4353 = vpop.f32.mrb[0].mxu0
    %4354 = vmatprep.mubr.f32.mxu0 0.0
    %4355 = vmatmul.mubr.f32.gmra.mrb[0].mxu0 %v4221
    %v4356 = vpop.f32.mrb[0].mxu0
    %v4357 = vadd.f32 %v3373, %v4356
    %v4358 = vpop.f32.mrb[0].mxu0
    %4359 = vmatprep.mubr.f32.mxu0 0.0
    %4360 = vmatmul.mubr.f32.gmra.mrb[0].mxu0 %v4224
    %v4361 = vpop.f32.mrb[0].mxu0
    %v4362 = vadd.f32 %v3378, %v4361
    %v4363 = vpop.f32.mrb[0].mxu0
    %4364 = vmatprep.mubr.f32.mxu0 0.0
    %4365 = vmatmul.mubr.f32.gmra.mrb[0].mxu0 %v4227
    %v4366 = vpop.f32.mrb[0].mxu0
    %v4367 = vadd.f32 %v3383, %v4366
    %v4368 = vpop.f32.mrb[0].mxu0
    %4369 = vmatprep.mubr.f32.mxu0 0.0
    %4370 = vmatmul.mubr.f32.gmra.mrb[0].mxu0 %v4230
    %v4371 = vpop.f32.mrb[0].mxu0
    %v4372 = vadd.f32 %v3388, %v4371
    %v4373 = vpop.f32.mrb[0].mxu0
    %4374 = vmatprep.mubr.f32.mxu0 0.0
    %4375 = vmatmul.mubr.f32.gmra.mrb[0].mxu0 %v4233
    %v4376 = vpop.f32.mrb[0].mxu0
    %v4377 = vadd.f32 %v3393, %v4376
    %v4378 = vpop.f32.mrb[0].mxu0
    %4379 = vdwg.mxu0
    %v4380 = vadd.f32 %v3723, %v3916
    %v4381 = vadd.f32 %v3728, %v3921
    %v4382 = vadd.f32 %v3733, %v3926
    %v4383 = vadd.f32 %v3738, %v3931
    %v4384 = vadd.f32 %v3743, %v3936
    %v4385 = vadd.f32 %v3748, %v3941
    %v4386 = vadd.f32 %v3753, %v3946
    %v4387 = vadd.f32 %v3758, %v3951
    %v4388 = vadd.f32 %v3763, %v3956
    %v4389 = vadd.f32 %v3768, %v3961
    %v4390 = vadd.f32 %v3773, %v3966
    %v4391 = vadd.f32 %v3778, %v3971
    %v4392 = vadd.f32 %v3783, %v3976
    %v4393 = vadd.f32 %v3788, %v3981
    %v4394 = vadd.f32 %v3793, %v3986
    %v4395 = vadd.f32 %v3798, %v3991
    %v4396 = vadd.f32 %v4109, %v4302
    %v4397 = vadd.f32 %v4114, %v4307
    %v4398 = vadd.f32 %v4119, %v4312
    %v4399 = vadd.f32 %v4124, %v4317
    %v4400 = vadd.f32 %v4129, %v4322
    %v4401 = vadd.f32 %v4134, %v4327
    %v4402 = vadd.f32 %v4139, %v4332
    %v4403 = vadd.f32 %v4144, %v4337
    %v4404 = vadd.f32 %v4149, %v4342
    %v4405 = vadd.f32 %v4154, %v4347
    %v4406 = vadd.f32 %v4159, %v4352
    %v4407 = vadd.f32 %v4164, %v4357
    %v4408 = vadd.f32 %v4169, %v4362
    %v4409 = vadd.f32 %v4174, %v4367
    %v4410 = vadd.f32 %v4179, %v4372
    %v4411 = vadd.f32 %v4184, %v4377
    %v4412 = vadd.f32 %v4380, %v4396
    %v4413 = vadd.f32 %v4381, %v4397
    %v4414 = vadd.f32 %v4382, %v4398
    %v4415 = vadd.f32 %v4383, %v4399
    %v4416 = vadd.f32 %v4384, %v4400
    %v4417 = vadd.f32 %v4385, %v4401
    %v4418 = vadd.f32 %v4386, %v4402
    %v4419 = vadd.f32 %v4387, %v4403
    %v4420 = vadd.f32 %v4388, %v4404
    %v4421 = vadd.f32 %v4389, %v4405
    %v4422 = vadd.f32 %v4390, %v4406
    %v4423 = vadd.f32 %v4391, %v4407
    %v4424 = vadd.f32 %v4392, %v4408
    %v4425 = vadd.f32 %v4393, %v4409
    %v4426 = vadd.f32 %v4394, %v4410
    %v4427 = vadd.f32 %v4395, %v4411
    %v4428 = vadd.f32 %v4412, %v3530
    %v4429 = vadd.f32 %v4413, %v3535
    %v4430 = vadd.f32 %v4414, %v3540
    %v4431 = vadd.f32 %v4415, %v3545
    %v4432 = vadd.f32 %v4416, %v3550
    %v4433 = vadd.f32 %v4417, %v3555
    %v4434 = vadd.f32 %v4418, %v3560
    %v4435 = vadd.f32 %v4419, %v3565
    %v4436 = vadd.f32 %v4420, %v3570
    %v4437 = vadd.f32 %v4421, %v3575
    %v4438 = vadd.f32 %v4422, %v3580
    %v4439 = vadd.f32 %v4423, %v3585
    %v4440 = vadd.f32 %v4424, %v3590
    %v4441 = vadd.f32 %v4425, %v3595
    %v4442 = vadd.f32 %v4426, %v3600
    %v4443 = vadd.f32 %v4427, %v3605
    %v4444 = vld [vmem:[%s5] sm:$0x1]
    %v4446 = vlaneseq
    %v4447 = vshrl.u32 %v4446, 7
    %v4448 = vsub.s32 0, %v4447
    %v4449 = vrot.slane %v4444, %v4448
    %v4451 = vadd.f32 %v4428, %v4449
    %v4452 = vadd.f32 %v4429, %v4449
    %v4453 = vadd.f32 %v4430, %v4449
    %v4454 = vadd.f32 %v4431, %v4449
    %v4455 = vadd.f32 %v4432, %v4449
    %v4456 = vadd.f32 %v4433, %v4449
    %v4457 = vadd.f32 %v4434, %v4449
    %v4458 = vadd.f32 %v4435, %v4449
    %v4459 = vadd.f32 %v4436, %v4449
    %v4460 = vadd.f32 %v4437, %v4449
    %v4461 = vadd.f32 %v4438, %v4449
    %v4462 = vadd.f32 %v4439, %v4449
    %v4463 = vadd.f32 %v4440, %v4449
    %v4464 = vadd.f32 %v4441, %v4449
    %v4465 = vadd.f32 %v4442, %v4449
    %v4466 = vadd.f32 %v4443, %v4449
    %v4467 = vmax.f32 %v4451, 0.0
    %v4468 = vmax.f32 %v4452, 0.0
    %v4469 = vmax.f32 %v4453, 0.0
    %v4470 = vmax.f32 %v4454, 0.0
    %v4471 = vmax.f32 %v4455, 0.0
    %v4472 = vmax.f32 %v4456, 0.0
    %v4473 = vmax.f32 %v4457, 0.0
    %v4474 = vmax.f32 %v4458, 0.0
    %v4475 = vmax.f32 %v4459, 0.0
    %v4476 = vmax.f32 %v4460, 0.0
    %v4477 = vmax.f32 %v4461, 0.0
    %v4478 = vmax.f32 %v4462, 0.0
    %v4479 = vmax.f32 %v4463, 0.0
    %v4480 = vmax.f32 %v4464, 0.0
    %v4481 = vmax.f32 %v4465, 0.0
    %v4482 = vmax.f32 %v4466, 0.0
    %v4486 = vunpack.c.l.s4 1983009808
    %v4487 = vunpack.c.0.s8 %v4486
    %v4488 = vlaneseq
    %v4489 = vshrl.u32 %v4488, 7
    %v4490 = vsub.s32 %v4487, %v4489
    %v4491 = vrot.slane %v4467, %v4490
    %v4493 = vunpack.c.l.s4 1983009808
    %v4494 = vunpack.c.0.s8 %v4493
    %v4495 = vlaneseq
    %v4496 = vshrl.u32 %v4495, 7
    %v4497 = vsub.s32 %v4494, %v4496
    %v4498 = vrot.slane %v4475, %v4497
    %vm4499 = vcmask 1044484
    %v4500 = vsel %vm4499, %v4491, %v4491
    %vm4501 = vcmask 1046534
    %v4502 = vsel %vm4501, %v4491, %v4500
    %v4503 = vrot.slane %v4498, 7
    %vm4504 = vcmask 1041409
    %v4505 = vsel %vm4504, %v4503, %v4502
    %vm4506 = vcmask 1043459
    %v4507 = vsel %vm4506, %v4503, %v4505
    %vm4508 = vcmask 1045509
    %v4509 = vsel %vm4508, %v4503, %v4507
    %vm4510 = vcmask 1047559
    %v4511 = vsel %vm4510, %v4503, %v4509
    %vm4513 = vcmask 254976
    %4514 = vst.msk [vmem:[#allocation3] sm:$0x3] %vm4513, %v4511
    %v4515 = vrot.slane %v4491, 1
    %v4516 = vsel %vm4499, %v4515, %v4515
    %v4517 = vsel %vm4501, %v4515, %v4516
    %v4518 = vsel %vm4504, %v4498, %v4517
    %v4519 = vsel %vm4506, %v4498, %v4518
    %v4520 = vsel %vm4508, %v4498, %v4519
    %v4521 = vsel %vm4510, %v4498, %v4520
    %4522 = vrot.lane.b32.xlu0 %v4521, 32
    %v4523 = vpop.permute.xlu0 %4522
    %vm4525 = vcmask 517376
    %4526 = vst.msk [vmem:[#allocation3] sm:$0x3] %vm4525, %v4523
    %v4527 = vcombine.high %v4491, %v4491
    %v4528 = vcombine.high %v4498, %v4498
    %v4529 = vsel %vm4499, %v4527, %v4527
    %v4530 = vsel %vm4501, %v4527, %v4529
    %v4531 = vrot.slane %v4528, 7
    %v4532 = vsel %vm4504, %v4531, %v4530
    %v4533 = vsel %vm4506, %v4531, %v4532
    %v4534 = vsel %vm4508, %v4531, %v4533
    %v4535 = vsel %vm4510, %v4531, %v4534
    %4536 = vrot.lane.b32.xlu0 %v4535, 64
    %v4537 = vpop.permute.xlu0 %4536
    %vm4539 = vcmask 779776
    %4540 = vst.msk [vmem:[#allocation3] sm:$0x3] %vm4539, %v4537
    %v4541 = vrot.slane %v4527, 1
    %v4542 = vsel %vm4499, %v4541, %v4541
    %v4543 = vsel %vm4501, %v4541, %v4542
    %v4544 = vsel %vm4504, %v4528, %v4543
    %v4545 = vsel %vm4506, %v4528, %v4544
    %v4546 = vsel %vm4508, %v4528, %v4545
    %v4547 = vsel %vm4510, %v4528, %v4546
    %4548 = vrot.lane.b32.xlu0 %v4547, 96
    %v4549 = vpop.permute.xlu0 %4548
    %vm4551 = vcmask 1042176
    %4552 = vst.msk [vmem:[#allocation3] sm:$0x3] %vm4551, %v4549
    %v4553 = vcombine.high %v4467, %v4467
    %v4555 = vunpack.c.l.s4 1983009808
    %v4556 = vunpack.c.0.s8 %v4555
    %v4557 = vlaneseq
    %v4558 = vshrl.u32 %v4557, 7
    %v4559 = vsub.s32 %v4556, %v4558
    %v4560 = vrot.slane %v4553, %v4559
    %v4561 = vcombine.high %v4475, %v4475
    %v4563 = vunpack.c.l.s4 1983009808
    %v4564 = vunpack.c.0.s8 %v4563
    %v4565 = vlaneseq
    %v4566 = vshrl.u32 %v4565, 7
    %v4567 = vsub.s32 %v4564, %v4566
    %v4568 = vrot.slane %v4561, %v4567
    %v4569 = vsel %vm4499, %v4560, %v4560
    %v4570 = vsel %vm4501, %v4560, %v4569
    %v4571 = vrot.slane %v4568, 7
    %v4572 = vsel %vm4504, %v4571, %v4570
    %v4573 = vsel %vm4506, %v4571, %v4572
    %v4574 = vsel %vm4508, %v4571, %v4573
    %v4575 = vsel %vm4510, %v4571, %v4574
    %4577 = vst.msk [vmem:[#allocation3 + $0x2] sm:$0x3] %vm4513, %v4575
    %v4578 = vrot.slane %v4560, 1
    %v4579 = vsel %vm4499, %v4578, %v4578
    %v4580 = vsel %vm4501, %v4578, %v4579
    %v4581 = vsel %vm4504, %v4568, %v4580
    %v4582 = vsel %vm4506, %v4568, %v4581
    %v4583 = vsel %vm4508, %v4568, %v4582
    %v4584 = vsel %vm4510, %v4568, %v4583
    %4585 = vrot.lane.b32.xlu0 %v4584, 32
    %v4586 = vpop.permute.xlu0 %4585
    %4588 = vst.msk [vmem:[#allocation3 + $0x2] sm:$0x3] %vm4525, %v4586
    %v4589 = vcombine.high %v4560, %v4560
    %v4590 = vcombine.high %v4568, %v4568
    %v4591 = vsel %vm4499, %v4589, %v4589
    %v4592 = vsel %vm4501, %v4589, %v4591
    %v4593 = vrot.slane %v4590, 7
    %v4594 = vsel %vm4504, %v4593, %v4592
    %v4595 = vsel %vm4506, %v4593, %v4594
    %v4596 = vsel %vm4508, %v4593, %v4595
    %v4597 = vsel %vm4510, %v4593, %v4596
    %4598 = vrot.lane.b32.xlu0 %v4597, 64
    %v4599 = vpop.permute.xlu0 %4598
    %4601 = vst.msk [vmem:[#allocation3 + $0x2] sm:$0x3] %vm4539, %v4599
    %v4602 = vrot.slane %v4589, 1
    %v4603 = vsel %vm4499, %v4602, %v4602
    %v4604 = vsel %vm4501, %v4602, %v4603
    %v4605 = vsel %vm4504, %v4590, %v4604
    %v4606 = vsel %vm4506, %v4590, %v4605
    %v4607 = vsel %vm4508, %v4590, %v4606
    %v4608 = vsel %vm4510, %v4590, %v4607
    %4609 = vrot.lane.b32.xlu0 %v4608, 96
    %v4610 = vpop.permute.xlu0 %4609
    %4612 = vst.msk [vmem:[#allocation3 + $0x2] sm:$0x3] %vm4551, %v4610
    %v4616 = vunpack.c.l.s4 1983009808
    %v4617 = vunpack.c.0.s8 %v4616
    %v4618 = vlaneseq
    %v4619 = vshrl.u32 %v4618, 7
    %v4620 = vsub.s32 %v4617, %v4619
    %v4621 = vrot.slane %v4468, %v4620
    %v4623 = vunpack.c.l.s4 1983009808
    %v4624 = vunpack.c.0.s8 %v4623
    %v4625 = vlaneseq
    %v4626 = vshrl.u32 %v4625, 7
    %v4627 = vsub.s32 %v4624, %v4626
    %v4628 = vrot.slane %v4476, %v4627
    %v4629 = vsel %vm4499, %v4621, %v4621
    %v4630 = vsel %vm4501, %v4621, %v4629
    %v4631 = vrot.slane %v4628, 7
    %v4632 = vsel %vm4504, %v4631, %v4630
    %v4633 = vsel %vm4506, %v4631, %v4632
    %v4634 = vsel %vm4508, %v4631, %v4633
    %v4635 = vsel %vm4510, %v4631, %v4634
    %4637 = vst.msk [vmem:[#allocation3 + $0x4] sm:$0x3] %vm4513, %v4635
    %v4638 = vrot.slane %v4621, 1
    %v4639 = vsel %vm4499, %v4638, %v4638
    %v4640 = vsel %vm4501, %v4638, %v4639
    %v4641 = vsel %vm4504, %v4628, %v4640
    %v4642 = vsel %vm4506, %v4628, %v4641
    %v4643 = vsel %vm4508, %v4628, %v4642
    %v4644 = vsel %vm4510, %v4628, %v4643
    %4645 = vrot.lane.b32.xlu0 %v4644, 32
    %v4646 = vpop.permute.xlu0 %4645
    %4648 = vst.msk [vmem:[#allocation3 + $0x4] sm:$0x3] %vm4525, %v4646
    %v4649 = vcombine.high %v4621, %v4621
    %v4650 = vcombine.high %v4628, %v4628
    %v4651 = vsel %vm4499, %v4649, %v4649
    %v4652 = vsel %vm4501, %v4649, %v4651
    %v4653 = vrot.slane %v4650, 7
    %v4654 = vsel %vm4504, %v4653, %v4652
    %v4655 = vsel %vm4506, %v4653, %v4654
    %v4656 = vsel %vm4508, %v4653, %v4655
    %v4657 = vsel %vm4510, %v4653, %v4656
    %4658 = vrot.lane.b32.xlu0 %v4657, 64
    %v4659 = vpop.permute.xlu0 %4658
    %4661 = vst.msk [vmem:[#allocation3 + $0x4] sm:$0x3] %vm4539, %v4659
    %v4662 = vrot.slane %v4649, 1
    %v4663 = vsel %vm4499, %v4662, %v4662
    %v4664 = vsel %vm4501, %v4662, %v4663
    %v4665 = vsel %vm4504, %v4650, %v4664
    %v4666 = vsel %vm4506, %v4650, %v4665
    %v4667 = vsel %vm4508, %v4650, %v4666
    %v4668 = vsel %vm4510, %v4650, %v4667
    %4669 = vrot.lane.b32.xlu0 %v4668, 96
    %v4670 = vpop.permute.xlu0 %4669
    %4672 = vst.msk [vmem:[#allocation3 + $0x4] sm:$0x3] %vm4551, %v4670
    %v4673 = vcombine.high %v4468, %v4468
    %v4675 = vunpack.c.l.s4 1983009808
    %v4676 = vunpack.c.0.s8 %v4675
    %v4677 = vlaneseq
    %v4678 = vshrl.u32 %v4677, 7
    %v4679 = vsub.s32 %v4676, %v4678
    %v4680 = vrot.slane %v4673, %v4679
    %v4681 = vcombine.high %v4476, %v4476
    %v4683 = vunpack.c.l.s4 1983009808
    %v4684 = vunpack.c.0.s8 %v4683
    %v4685 = vlaneseq
    %v4686 = vshrl.u32 %v4685, 7
    %v4687 = vsub.s32 %v4684, %v4686
    %v4688 = vrot.slane %v4681, %v4687
    %v4689 = vsel %vm4499, %v4680, %v4680
    %v4690 = vsel %vm4501, %v4680, %v4689
    %v4691 = vrot.slane %v4688, 7
    %v4692 = vsel %vm4504, %v4691, %v4690
    %v4693 = vsel %vm4506, %v4691, %v4692
    %v4694 = vsel %vm4508, %v4691, %v4693
    %v4695 = vsel %vm4510, %v4691, %v4694
    %4697 = vst.msk [vmem:[#allocation3 + $0x6] sm:$0x3] %vm4513, %v4695
    %v4698 = vrot.slane %v4680, 1
    %v4699 = vsel %vm4499, %v4698, %v4698
    %v4700 = vsel %vm4501, %v4698, %v4699
    %v4701 = vsel %vm4504, %v4688, %v4700
    %v4702 = vsel %vm4506, %v4688, %v4701
    %v4703 = vsel %vm4508, %v4688, %v4702
    %v4704 = vsel %vm4510, %v4688, %v4703
    %4705 = vrot.lane.b32.xlu0 %v4704, 32
    %v4706 = vpop.permute.xlu0 %4705
    %4708 = vst.msk [vmem:[#allocation3 + $0x6] sm:$0x3] %vm4525, %v4706
    %v4709 = vcombine.high %v4680, %v4680
    %v4710 = vcombine.high %v4688, %v4688
    %v4711 = vsel %vm4499, %v4709, %v4709
    %v4712 = vsel %vm4501, %v4709, %v4711
    %v4713 = vrot.slane %v4710, 7
    %v4714 = vsel %vm4504, %v4713, %v4712
    %v4715 = vsel %vm4506, %v4713, %v4714
    %v4716 = vsel %vm4508, %v4713, %v4715
    %v4717 = vsel %vm4510, %v4713, %v4716
    %4718 = vrot.lane.b32.xlu0 %v4717, 64
    %v4719 = vpop.permute.xlu0 %4718
    %4721 = vst.msk [vmem:[#allocation3 + $0x6] sm:$0x3] %vm4539, %v4719
    %v4722 = vrot.slane %v4709, 1
    %v4723 = vsel %vm4499, %v4722, %v4722
    %v4724 = vsel %vm4501, %v4722, %v4723
    %v4725 = vsel %vm4504, %v4710, %v4724
    %v4726 = vsel %vm4506, %v4710, %v4725
    %v4727 = vsel %vm4508, %v4710, %v4726
    %v4728 = vsel %vm4510, %v4710, %v4727
    %4729 = vrot.lane.b32.xlu0 %v4728, 96
    %v4730 = vpop.permute.xlu0 %4729
    %4732 = vst.msk [vmem:[#allocation3 + $0x6] sm:$0x3] %vm4551, %v4730
    %v4736 = vunpack.c.l.s4 1983009808
    %v4737 = vunpack.c.0.s8 %v4736
    %v4738 = vlaneseq
    %v4739 = vshrl.u32 %v4738, 7
    %v4740 = vsub.s32 %v4737, %v4739
    %v4741 = vrot.slane %v4469, %v4740
    %v4743 = vunpack.c.l.s4 1983009808
    %v4744 = vunpack.c.0.s8 %v4743
    %v4745 = vlaneseq
    %v4746 = vshrl.u32 %v4745, 7
    %v4747 = vsub.s32 %v4744, %v4746
    %v4748 = vrot.slane %v4477, %v4747
    %v4749 = vsel %vm4499, %v4741, %v4741
    %v4750 = vsel %vm4501, %v4741, %v4749
    %v4751 = vrot.slane %v4748, 7
    %v4752 = vsel %vm4504, %v4751, %v4750
    %v4753 = vsel %vm4506, %v4751, %v4752
    %v4754 = vsel %vm4508, %v4751, %v4753
    %v4755 = vsel %vm4510, %v4751, %v4754
    %4757 = vst.msk [vmem:[#allocation3 + $0x8] sm:$0x3] %vm4513, %v4755
    %v4758 = vrot.slane %v4741, 1
    %v4759 = vsel %vm4499, %v4758, %v4758
    %v4760 = vsel %vm4501, %v4758, %v4759
    %v4761 = vsel %vm4504, %v4748, %v4760
    %v4762 = vsel %vm4506, %v4748, %v4761
    %v4763 = vsel %vm4508, %v4748, %v4762
    %v4764 = vsel %vm4510, %v4748, %v4763
    %4765 = vrot.lane.b32.xlu0 %v4764, 32
    %v4766 = vpop.permute.xlu0 %4765
    %4768 = vst.msk [vmem:[#allocation3 + $0x8] sm:$0x3] %vm4525, %v4766
    %v4769 = vcombine.high %v4741, %v4741
    %v4770 = vcombine.high %v4748, %v4748
    %v4771 = vsel %vm4499, %v4769, %v4769
    %v4772 = vsel %vm4501, %v4769, %v4771
    %v4773 = vrot.slane %v4770, 7
    %v4774 = vsel %vm4504, %v4773, %v4772
    %v4775 = vsel %vm4506, %v4773, %v4774
    %v4776 = vsel %vm4508, %v4773, %v4775
    %v4777 = vsel %vm4510, %v4773, %v4776
    %4778 = vrot.lane.b32.xlu0 %v4777, 64
    %v4779 = vpop.permute.xlu0 %4778
    %4781 = vst.msk [vmem:[#allocation3 + $0x8] sm:$0x3] %vm4539, %v4779
    %v4782 = vrot.slane %v4769, 1
    %v4783 = vsel %vm4499, %v4782, %v4782
    %v4784 = vsel %vm4501, %v4782, %v4783
    %v4785 = vsel %vm4504, %v4770, %v4784
    %v4786 = vsel %vm4506, %v4770, %v4785
    %v4787 = vsel %vm4508, %v4770, %v4786
    %v4788 = vsel %vm4510, %v4770, %v4787
    %4789 = vrot.lane.b32.xlu0 %v4788, 96
    %v4790 = vpop.permute.xlu0 %4789
    %4792 = vst.msk [vmem:[#allocation3 + $0x8] sm:$0x3] %vm4551, %v4790
    %v4793 = vcombine.high %v4469, %v4469
    %v4795 = vunpack.c.l.s4 1983009808
    %v4796 = vunpack.c.0.s8 %v4795
    %v4797 = vlaneseq
    %v4798 = vshrl.u32 %v4797, 7
    %v4799 = vsub.s32 %v4796, %v4798
    %v4800 = vrot.slane %v4793, %v4799
    %v4801 = vcombine.high %v4477, %v4477
    %v4803 = vunpack.c.l.s4 1983009808
    %v4804 = vunpack.c.0.s8 %v4803
    %v4805 = vlaneseq
    %v4806 = vshrl.u32 %v4805, 7
    %v4807 = vsub.s32 %v4804, %v4806
    %v4808 = vrot.slane %v4801, %v4807
    %v4809 = vsel %vm4499, %v4800, %v4800
    %v4810 = vsel %vm4501, %v4800, %v4809
    %v4811 = vrot.slane %v4808, 7
    %v4812 = vsel %vm4504, %v4811, %v4810
    %v4813 = vsel %vm4506, %v4811, %v4812
    %v4814 = vsel %vm4508, %v4811, %v4813
    %v4815 = vsel %vm4510, %v4811, %v4814
    %4817 = vst.msk [vmem:[#allocation3 + $0xa] sm:$0x3] %vm4513, %v4815
    %v4818 = vrot.slane %v4800, 1
    %v4819 = vsel %vm4499, %v4818, %v4818
    %v4820 = vsel %vm4501, %v4818, %v4819
    %v4821 = vsel %vm4504, %v4808, %v4820
    %v4822 = vsel %vm4506, %v4808, %v4821
    %v4823 = vsel %vm4508, %v4808, %v4822
    %v4824 = vsel %vm4510, %v4808, %v4823
    %4825 = vrot.lane.b32.xlu0 %v4824, 32
    %v4826 = vpop.permute.xlu0 %4825
    %4828 = vst.msk [vmem:[#allocation3 + $0xa] sm:$0x3] %vm4525, %v4826
    %v4829 = vcombine.high %v4800, %v4800
    %v4830 = vcombine.high %v4808, %v4808
    %v4831 = vsel %vm4499, %v4829, %v4829
    %v4832 = vsel %vm4501, %v4829, %v4831
    %v4833 = vrot.slane %v4830, 7
    %v4834 = vsel %vm4504, %v4833, %v4832
    %v4835 = vsel %vm4506, %v4833, %v4834
    %v4836 = vsel %vm4508, %v4833, %v4835
    %v4837 = vsel %vm4510, %v4833, %v4836
    %4838 = vrot.lane.b32.xlu0 %v4837, 64
    %v4839 = vpop.permute.xlu0 %4838
    %4841 = vst.msk [vmem:[#allocation3 + $0xa] sm:$0x3] %vm4539, %v4839
    %v4842 = vrot.slane %v4829, 1
    %v4843 = vsel %vm4499, %v4842, %v4842
    %v4844 = vsel %vm4501, %v4842, %v4843
    %v4845 = vsel %vm4504, %v4830, %v4844
    %v4846 = vsel %vm4506, %v4830, %v4845
    %v4847 = vsel %vm4508, %v4830, %v4846
    %v4848 = vsel %vm4510, %v4830, %v4847
    %4849 = vrot.lane.b32.xlu0 %v4848, 96
    %v4850 = vpop.permute.xlu0 %4849
    %4852 = vst.msk [vmem:[#allocation3 + $0xa] sm:$0x3] %vm4551, %v4850
    %v4856 = vunpack.c.l.s4 1983009808
    %v4857 = vunpack.c.0.s8 %v4856
    %v4858 = vlaneseq
    %v4859 = vshrl.u32 %v4858, 7
    %v4860 = vsub.s32 %v4857, %v4859
    %v4861 = vrot.slane %v4470, %v4860
    %v4863 = vunpack.c.l.s4 1983009808
    %v4864 = vunpack.c.0.s8 %v4863
    %v4865 = vlaneseq
    %v4866 = vshrl.u32 %v4865, 7
    %v4867 = vsub.s32 %v4864, %v4866
    %v4868 = vrot.slane %v4478, %v4867
    %v4869 = vsel %vm4499, %v4861, %v4861
    %v4870 = vsel %vm4501, %v4861, %v4869
    %v4871 = vrot.slane %v4868, 7
    %v4872 = vsel %vm4504, %v4871, %v4870
    %v4873 = vsel %vm4506, %v4871, %v4872
    %v4874 = vsel %vm4508, %v4871, %v4873
    %v4875 = vsel %vm4510, %v4871, %v4874
    %4877 = vst.msk [vmem:[#allocation3 + $0xc] sm:$0x3] %vm4513, %v4875
    %v4878 = vrot.slane %v4861, 1
    %v4879 = vsel %vm4499, %v4878, %v4878
    %v4880 = vsel %vm4501, %v4878, %v4879
    %v4881 = vsel %vm4504, %v4868, %v4880
    %v4882 = vsel %vm4506, %v4868, %v4881
    %v4883 = vsel %vm4508, %v4868, %v4882
    %v4884 = vsel %vm4510, %v4868, %v4883
    %4885 = vrot.lane.b32.xlu0 %v4884, 32
    %v4886 = vpop.permute.xlu0 %4885
    %4888 = vst.msk [vmem:[#allocation3 + $0xc] sm:$0x3] %vm4525, %v4886
    %v4889 = vcombine.high %v4861, %v4861
    %v4890 = vcombine.high %v4868, %v4868
    %v4891 = vsel %vm4499, %v4889, %v4889
    %v4892 = vsel %vm4501, %v4889, %v4891
    %v4893 = vrot.slane %v4890, 7
    %v4894 = vsel %vm4504, %v4893, %v4892
    %v4895 = vsel %vm4506, %v4893, %v4894
    %v4896 = vsel %vm4508, %v4893, %v4895
    %v4897 = vsel %vm4510, %v4893, %v4896
    %4898 = vrot.lane.b32.xlu0 %v4897, 64
    %v4899 = vpop.permute.xlu0 %4898
    %4901 = vst.msk [vmem:[#allocation3 + $0xc] sm:$0x3] %vm4539, %v4899
    %v4902 = vrot.slane %v4889, 1
    %v4903 = vsel %vm4499, %v4902, %v4902
    %v4904 = vsel %vm4501, %v4902, %v4903
    %v4905 = vsel %vm4504, %v4890, %v4904
    %v4906 = vsel %vm4506, %v4890, %v4905
    %v4907 = vsel %vm4508, %v4890, %v4906
    %v4908 = vsel %vm4510, %v4890, %v4907
    %4909 = vrot.lane.b32.xlu0 %v4908, 96
    %v4910 = vpop.permute.xlu0 %4909
    %4912 = vst.msk [vmem:[#allocation3 + $0xc] sm:$0x3] %vm4551, %v4910
    %v4913 = vcombine.high %v4470, %v4470
    %v4915 = vunpack.c.l.s4 1983009808
    %v4916 = vunpack.c.0.s8 %v4915
    %v4917 = vlaneseq
    %v4918 = vshrl.u32 %v4917, 7
    %v4919 = vsub.s32 %v4916, %v4918
    %v4920 = vrot.slane %v4913, %v4919
    %v4921 = vcombine.high %v4478, %v4478
    %v4923 = vunpack.c.l.s4 1983009808
    %v4924 = vunpack.c.0.s8 %v4923
    %v4925 = vlaneseq
    %v4926 = vshrl.u32 %v4925, 7
    %v4927 = vsub.s32 %v4924, %v4926
    %v4928 = vrot.slane %v4921, %v4927
    %v4929 = vsel %vm4499, %v4920, %v4920
    %v4930 = vsel %vm4501, %v4920, %v4929
    %v4931 = vrot.slane %v4928, 7
    %v4932 = vsel %vm4504, %v4931, %v4930
    %v4933 = vsel %vm4506, %v4931, %v4932
    %v4934 = vsel %vm4508, %v4931, %v4933
    %v4935 = vsel %vm4510, %v4931, %v4934
    %4937 = vst.msk [vmem:[#allocation3 + $0xe] sm:$0x3] %vm4513, %v4935
    %v4938 = vrot.slane %v4920, 1
    %v4939 = vsel %vm4499, %v4938, %v4938
    %v4940 = vsel %vm4501, %v4938, %v4939
    %v4941 = vsel %vm4504, %v4928, %v4940
    %v4942 = vsel %vm4506, %v4928, %v4941
    %v4943 = vsel %vm4508, %v4928, %v4942
    %v4944 = vsel %vm4510, %v4928, %v4943
    %4945 = vrot.lane.b32.xlu0 %v4944, 32
    %v4946 = vpop.permute.xlu0 %4945
    %4948 = vst.msk [vmem:[#allocation3 + $0xe] sm:$0x3] %vm4525, %v4946
    %v4949 = vcombine.high %v4920, %v4920
    %v4950 = vcombine.high %v4928, %v4928
    %v4951 = vsel %vm4499, %v4949, %v4949
    %v4952 = vsel %vm4501, %v4949, %v4951
    %v4953 = vrot.slane %v4950, 7
    %v4954 = vsel %vm4504, %v4953, %v4952
    %v4955 = vsel %vm4506, %v4953, %v4954
    %v4956 = vsel %vm4508, %v4953, %v4955
    %v4957 = vsel %vm4510, %v4953, %v4956
    %4958 = vrot.lane.b32.xlu0 %v4957, 64
    %v4959 = vpop.permute.xlu0 %4958
    %4961 = vst.msk [vmem:[#allocation3 + $0xe] sm:$0x3] %vm4539, %v4959
    %v4962 = vrot.slane %v4949, 1
    %v4963 = vsel %vm4499, %v4962, %v4962
    %v4964 = vsel %vm4501, %v4962, %v4963
    %v4965 = vsel %vm4504, %v4950, %v4964
    %v4966 = vsel %vm4506, %v4950, %v4965
    %v4967 = vsel %vm4508, %v4950, %v4966
    %v4968 = vsel %vm4510, %v4950, %v4967
    %4969 = vrot.lane.b32.xlu0 %v4968, 96
    %v4970 = vpop.permute.xlu0 %4969
    %4972 = vst.msk [vmem:[#allocation3 + $0xe] sm:$0x3] %vm4551, %v4970
    %v4976 = vunpack.c.l.s4 1983009808
    %v4977 = vunpack.c.0.s8 %v4976
    %v4978 = vlaneseq
    %v4979 = vshrl.u32 %v4978, 7
    %v4980 = vsub.s32 %v4977, %v4979
    %v4981 = vrot.slane %v4471, %v4980
    %v4983 = vunpack.c.l.s4 1983009808
    %v4984 = vunpack.c.0.s8 %v4983
    %v4985 = vlaneseq
    %v4986 = vshrl.u32 %v4985, 7
    %v4987 = vsub.s32 %v4984, %v4986
    %v4988 = vrot.slane %v4479, %v4987
    %v4989 = vsel %vm4499, %v4981, %v4981
    %v4990 = vsel %vm4501, %v4981, %v4989
    %v4991 = vrot.slane %v4988, 7
    %v4992 = vsel %vm4504, %v4991, %v4990
    %v4993 = vsel %vm4506, %v4991, %v4992
    %v4994 = vsel %vm4508, %v4991, %v4993
    %v4995 = vsel %vm4510, %v4991, %v4994
    %4997 = vst.msk [vmem:[#allocation3 + $0x10] sm:$0x3] %vm4513, %v4995
    %v4998 = vrot.slane %v4981, 1
    %v4999 = vsel %vm4499, %v4998, %v4998
    %v5000 = vsel %vm4501, %v4998, %v4999
    %v5001 = vsel %vm4504, %v4988, %v5000
    %v5002 = vsel %vm4506, %v4988, %v5001
    %v5003 = vsel %vm4508, %v4988, %v5002
    %v5004 = vsel %vm4510, %v4988, %v5003
    %5005 = vrot.lane.b32.xlu0 %v5004, 32
    %v5006 = vpop.permute.xlu0 %5005
    %5008 = vst.msk [vmem:[#allocation3 + $0x10] sm:$0x3] %vm4525, %v5006
    %v5009 = vcombine.high %v4981, %v4981
    %v5010 = vcombine.high %v4988, %v4988
    %v5011 = vsel %vm4499, %v5009, %v5009
    %v5012 = vsel %vm4501, %v5009, %v5011
    %v5013 = vrot.slane %v5010, 7
    %v5014 = vsel %vm4504, %v5013, %v5012
    %v5015 = vsel %vm4506, %v5013, %v5014
    %v5016 = vsel %vm4508, %v5013, %v5015
    %v5017 = vsel %vm4510, %v5013, %v5016
    %5018 = vrot.lane.b32.xlu0 %v5017, 64
    %v5019 = vpop.permute.xlu0 %5018
    %5021 = vst.msk [vmem:[#allocation3 + $0x10] sm:$0x3] %vm4539, %v5019
    %v5022 = vrot.slane %v5009, 1
    %v5023 = vsel %vm4499, %v5022, %v5022
    %v5024 = vsel %vm4501, %v5022, %v5023
    %v5025 = vsel %vm4504, %v5010, %v5024
    %v5026 = vsel %vm4506, %v5010, %v5025
    %v5027 = vsel %vm4508, %v5010, %v5026
    %v5028 = vsel %vm4510, %v5010, %v5027
    %5029 = vrot.lane.b32.xlu0 %v5028, 96
    %v5030 = vpop.permute.xlu0 %5029
    %5032 = vst.msk [vmem:[#allocation3 + $0x10] sm:$0x3] %vm4551, %v5030
    %v5033 = vcombine.high %v4471, %v4471
    %v5035 = vunpack.c.l.s4 1983009808
    %v5036 = vunpack.c.0.s8 %v5035
    %v5037 = vlaneseq
    %v5038 = vshrl.u32 %v5037, 7
    %v5039 = vsub.s32 %v5036, %v5038
    %v5040 = vrot.slane %v5033, %v5039
    %v5041 = vcombine.high %v4479, %v4479
    %v5043 = vunpack.c.l.s4 1983009808
    %v5044 = vunpack.c.0.s8 %v5043
    %v5045 = vlaneseq
    %v5046 = vshrl.u32 %v5045, 7
    %v5047 = vsub.s32 %v5044, %v5046
    %v5048 = vrot.slane %v5041, %v5047
    %v5049 = vsel %vm4499, %v5040, %v5040
    %v5050 = vsel %vm4501, %v5040, %v5049
    %v5051 = vrot.slane %v5048, 7
    %v5052 = vsel %vm4504, %v5051, %v5050
    %v5053 = vsel %vm4506, %v5051, %v5052
    %v5054 = vsel %vm4508, %v5051, %v5053
    %v5055 = vsel %vm4510, %v5051, %v5054
    %5057 = vst.msk [vmem:[#allocation3 + $0x12] sm:$0x3] %vm4513, %v5055
    %v5058 = vrot.slane %v5040, 1
    %v5059 = vsel %vm4499, %v5058, %v5058
    %v5060 = vsel %vm4501, %v5058, %v5059
    %v5061 = vsel %vm4504, %v5048, %v5060
    %v5062 = vsel %vm4506, %v5048, %v5061
    %v5063 = vsel %vm4508, %v5048, %v5062
    %v5064 = vsel %vm4510, %v5048, %v5063
    %5065 = vrot.lane.b32.xlu0 %v5064, 32
    %v5066 = vpop.permute.xlu0 %5065
    %5068 = vst.msk [vmem:[#allocation3 + $0x12] sm:$0x3] %vm4525, %v5066
    %v5069 = vcombine.high %v5040, %v5040
    %v5070 = vcombine.high %v5048, %v5048
    %v5071 = vsel %vm4499, %v5069, %v5069
    %v5072 = vsel %vm4501, %v5069, %v5071
    %v5073 = vrot.slane %v5070, 7
    %v5074 = vsel %vm4504, %v5073, %v5072
    %v5075 = vsel %vm4506, %v5073, %v5074
    %v5076 = vsel %vm4508, %v5073, %v5075
    %v5077 = vsel %vm4510, %v5073, %v5076
    %5078 = vrot.lane.b32.xlu0 %v5077, 64
    %v5079 = vpop.permute.xlu0 %5078
    %5081 = vst.msk [vmem:[#allocation3 + $0x12] sm:$0x3] %vm4539, %v5079
    %v5082 = vrot.slane %v5069, 1
    %v5083 = vsel %vm4499, %v5082, %v5082
    %v5084 = vsel %vm4501, %v5082, %v5083
    %v5085 = vsel %vm4504, %v5070, %v5084
    %v5086 = vsel %vm4506, %v5070, %v5085
    %v5087 = vsel %vm4508, %v5070, %v5086
    %v5088 = vsel %vm4510, %v5070, %v5087
    %5089 = vrot.lane.b32.xlu0 %v5088, 96
    %v5090 = vpop.permute.xlu0 %5089
    %5092 = vst.msk [vmem:[#allocation3 + $0x12] sm:$0x3] %vm4551, %v5090
    %v5096 = vunpack.c.l.s4 1983009808
    %v5097 = vunpack.c.0.s8 %v5096
    %v5098 = vlaneseq
    %v5099 = vshrl.u32 %v5098, 7
    %v5100 = vsub.s32 %v5097, %v5099
    %v5101 = vrot.slane %v4472, %v5100
    %v5103 = vunpack.c.l.s4 1983009808
    %v5104 = vunpack.c.0.s8 %v5103
    %v5105 = vlaneseq
    %v5106 = vshrl.u32 %v5105, 7
    %v5107 = vsub.s32 %v5104, %v5106
    %v5108 = vrot.slane %v4480, %v5107
    %v5109 = vsel %vm4499, %v5101, %v5101
    %v5110 = vsel %vm4501, %v5101, %v5109
    %v5111 = vrot.slane %v5108, 7
    %v5112 = vsel %vm4504, %v5111, %v5110
    %v5113 = vsel %vm4506, %v5111, %v5112
    %v5114 = vsel %vm4508, %v5111, %v5113
    %v5115 = vsel %vm4510, %v5111, %v5114
    %5117 = vst.msk [vmem:[#allocation3 + $0x14] sm:$0x3] %vm4513, %v5115
    %v5118 = vrot.slane %v5101, 1
    %v5119 = vsel %vm4499, %v5118, %v5118
    %v5120 = vsel %vm4501, %v5118, %v5119
    %v5121 = vsel %vm4504, %v5108, %v5120
    %v5122 = vsel %vm4506, %v5108, %v5121
    %v5123 = vsel %vm4508, %v5108, %v5122
    %v5124 = vsel %vm4510, %v5108, %v5123
    %5125 = vrot.lane.b32.xlu0 %v5124, 32
    %v5126 = vpop.permute.xlu0 %5125
    %5128 = vst.msk [vmem:[#allocation3 + $0x14] sm:$0x3] %vm4525, %v5126
    %v5129 = vcombine.high %v5101, %v5101
    %v5130 = vcombine.high %v5108, %v5108
    %v5131 = vsel %vm4499, %v5129, %v5129
    %v5132 = vsel %vm4501, %v5129, %v5131
    %v5133 = vrot.slane %v5130, 7
    %v5134 = vsel %vm4504, %v5133, %v5132
    %v5135 = vsel %vm4506, %v5133, %v5134
    %v5136 = vsel %vm4508, %v5133, %v5135
    %v5137 = vsel %vm4510, %v5133, %v5136
    %5138 = vrot.lane.b32.xlu0 %v5137, 64
    %v5139 = vpop.permute.xlu0 %5138
    %5141 = vst.msk [vmem:[#allocation3 + $0x14] sm:$0x3] %vm4539, %v5139
    %v5142 = vrot.slane %v5129, 1
    %v5143 = vsel %vm4499, %v5142, %v5142
    %v5144 = vsel %vm4501, %v5142, %v5143
    %v5145 = vsel %vm4504, %v5130, %v5144
    %v5146 = vsel %vm4506, %v5130, %v5145
    %v5147 = vsel %vm4508, %v5130, %v5146
    %v5148 = vsel %vm4510, %v5130, %v5147
    %5149 = vrot.lane.b32.xlu0 %v5148, 96
    %v5150 = vpop.permute.xlu0 %5149
    %5152 = vst.msk [vmem:[#allocation3 + $0x14] sm:$0x3] %vm4551, %v5150
    %v5153 = vcombine.high %v4472, %v4472
    %v5155 = vunpack.c.l.s4 1983009808
    %v5156 = vunpack.c.0.s8 %v5155
    %v5157 = vlaneseq
    %v5158 = vshrl.u32 %v5157, 7
    %v5159 = vsub.s32 %v5156, %v5158
    %v5160 = vrot.slane %v5153, %v5159
    %v5161 = vcombine.high %v4480, %v4480
    %v5163 = vunpack.c.l.s4 1983009808
    %v5164 = vunpack.c.0.s8 %v5163
    %v5165 = vlaneseq
    %v5166 = vshrl.u32 %v5165, 7
    %v5167 = vsub.s32 %v5164, %v5166
    %v5168 = vrot.slane %v5161, %v5167
    %v5169 = vsel %vm4499, %v5160, %v5160
    %v5170 = vsel %vm4501, %v5160, %v5169
    %v5171 = vrot.slane %v5168, 7
    %v5172 = vsel %vm4504, %v5171, %v5170
    %v5173 = vsel %vm4506, %v5171, %v5172
    %v5174 = vsel %vm4508, %v5171, %v5173
    %v5175 = vsel %vm4510, %v5171, %v5174
    %5177 = vst.msk [vmem:[#allocation3 + $0x16] sm:$0x3] %vm4513, %v5175
    %v5178 = vrot.slane %v5160, 1
    %v5179 = vsel %vm4499, %v5178, %v5178
    %v5180 = vsel %vm4501, %v5178, %v5179
    %v5181 = vsel %vm4504, %v5168, %v5180
    %v5182 = vsel %vm4506, %v5168, %v5181
    %v5183 = vsel %vm4508, %v5168, %v5182
    %v5184 = vsel %vm4510, %v5168, %v5183
    %5185 = vrot.lane.b32.xlu0 %v5184, 32
    %v5186 = vpop.permute.xlu0 %5185
    %5188 = vst.msk [vmem:[#allocation3 + $0x16] sm:$0x3] %vm4525, %v5186
    %v5189 = vcombine.high %v5160, %v5160
    %v5190 = vcombine.high %v5168, %v5168
    %v5191 = vsel %vm4499, %v5189, %v5189
    %v5192 = vsel %vm4501, %v5189, %v5191
    %v5193 = vrot.slane %v5190, 7
    %v5194 = vsel %vm4504, %v5193, %v5192
    %v5195 = vsel %vm4506, %v5193, %v5194
    %v5196 = vsel %vm4508, %v5193, %v5195
    %v5197 = vsel %vm4510, %v5193, %v5196
    %5198 = vrot.lane.b32.xlu0 %v5197, 64
    %v5199 = vpop.permute.xlu0 %5198
    %5201 = vst.msk [vmem:[#allocation3 + $0x16] sm:$0x3] %vm4539, %v5199
    %v5202 = vrot.slane %v5189, 1
    %v5203 = vsel %vm4499, %v5202, %v5202
    %v5204 = vsel %vm4501, %v5202, %v5203
    %v5205 = vsel %vm4504, %v5190, %v5204
    %v5206 = vsel %vm4506, %v5190, %v5205
    %v5207 = vsel %vm4508, %v5190, %v5206
    %v5208 = vsel %vm4510, %v5190, %v5207
    %5209 = vrot.lane.b32.xlu0 %v5208, 96
    %v5210 = vpop.permute.xlu0 %5209
    %5212 = vst.msk [vmem:[#allocation3 + $0x16] sm:$0x3] %vm4551, %v5210
    %v5216 = vunpack.c.l.s4 1983009808
    %v5217 = vunpack.c.0.s8 %v5216
    %v5218 = vlaneseq
    %v5219 = vshrl.u32 %v5218, 7
    %v5220 = vsub.s32 %v5217, %v5219
    %v5221 = vrot.slane %v4473, %v5220
    %v5223 = vunpack.c.l.s4 1983009808
    %v5224 = vunpack.c.0.s8 %v5223
    %v5225 = vlaneseq
    %v5226 = vshrl.u32 %v5225, 7
    %v5227 = vsub.s32 %v5224, %v5226
    %v5228 = vrot.slane %v4481, %v5227
    %v5229 = vsel %vm4499, %v5221, %v5221
    %v5230 = vsel %vm4501, %v5221, %v5229
    %v5231 = vrot.slane %v5228, 7
    %v5232 = vsel %vm4504, %v5231, %v5230
    %v5233 = vsel %vm4506, %v5231, %v5232
    %v5234 = vsel %vm4508, %v5231, %v5233
    %v5235 = vsel %vm4510, %v5231, %v5234
    %5237 = vst.msk [vmem:[#allocation3 + $0x18] sm:$0x3] %vm4513, %v5235
    %v5238 = vrot.slane %v5221, 1
    %v5239 = vsel %vm4499, %v5238, %v5238
    %v5240 = vsel %vm4501, %v5238, %v5239
    %v5241 = vsel %vm4504, %v5228, %v5240
    %v5242 = vsel %vm4506, %v5228, %v5241
    %v5243 = vsel %vm4508, %v5228, %v5242
    %v5244 = vsel %vm4510, %v5228, %v5243
    %5245 = vrot.lane.b32.xlu0 %v5244, 32
    %v5246 = vpop.permute.xlu0 %5245
    %5248 = vst.msk [vmem:[#allocation3 + $0x18] sm:$0x3] %vm4525, %v5246
    %v5249 = vcombine.high %v5221, %v5221
    %v5250 = vcombine.high %v5228, %v5228
    %v5251 = vsel %vm4499, %v5249, %v5249
    %v5252 = vsel %vm4501, %v5249, %v5251
    %v5253 = vrot.slane %v5250, 7
    %v5254 = vsel %vm4504, %v5253, %v5252
    %v5255 = vsel %vm4506, %v5253, %v5254
    %v5256 = vsel %vm4508, %v5253, %v5255
    %v5257 = vsel %vm4510, %v5253, %v5256
    %5258 = vrot.lane.b32.xlu0 %v5257, 64
    %v5259 = vpop.permute.xlu0 %5258
    %5261 = vst.msk [vmem:[#allocation3 + $0x18] sm:$0x3] %vm4539, %v5259
    %v5262 = vrot.slane %v5249, 1
    %v5263 = vsel %vm4499, %v5262, %v5262
    %v5264 = vsel %vm4501, %v5262, %v5263
    %v5265 = vsel %vm4504, %v5250, %v5264
    %v5266 = vsel %vm4506, %v5250, %v5265
    %v5267 = vsel %vm4508, %v5250, %v5266
    %v5268 = vsel %vm4510, %v5250, %v5267
    %5269 = vrot.lane.b32.xlu0 %v5268, 96
    %v5270 = vpop.permute.xlu0 %5269
    %5272 = vst.msk [vmem:[#allocation3 + $0x18] sm:$0x3] %vm4551, %v5270
    %v5273 = vcombine.high %v4473, %v4473
    %v5275 = vunpack.c.l.s4 1983009808
    %v5276 = vunpack.c.0.s8 %v5275
    %v5277 = vlaneseq
    %v5278 = vshrl.u32 %v5277, 7
    %v5279 = vsub.s32 %v5276, %v5278
    %v5280 = vrot.slane %v5273, %v5279
    %v5281 = vcombine.high %v4481, %v4481
    %v5283 = vunpack.c.l.s4 1983009808
    %v5284 = vunpack.c.0.s8 %v5283
    %v5285 = vlaneseq
    %v5286 = vshrl.u32 %v5285, 7
    %v5287 = vsub.s32 %v5284, %v5286
    %v5288 = vrot.slane %v5281, %v5287
    %v5289 = vsel %vm4499, %v5280, %v5280
    %v5290 = vsel %vm4501, %v5280, %v5289
    %v5291 = vrot.slane %v5288, 7
    %v5292 = vsel %vm4504, %v5291, %v5290
    %v5293 = vsel %vm4506, %v5291, %v5292
    %v5294 = vsel %vm4508, %v5291, %v5293
    %v5295 = vsel %vm4510, %v5291, %v5294
    %5297 = vst.msk [vmem:[#allocation3 + $0x1a] sm:$0x3] %vm4513, %v5295
    %v5298 = vrot.slane %v5280, 1
    %v5299 = vsel %vm4499, %v5298, %v5298
    %v5300 = vsel %vm4501, %v5298, %v5299
    %v5301 = vsel %vm4504, %v5288, %v5300
    %v5302 = vsel %vm4506, %v5288, %v5301
    %v5303 = vsel %vm4508, %v5288, %v5302
    %v5304 = vsel %vm4510, %v5288, %v5303
    %5305 = vrot.lane.b32.xlu0 %v5304, 32
    %v5306 = vpop.permute.xlu0 %5305
    %5308 = vst.msk [vmem:[#allocation3 + $0x1a] sm:$0x3] %vm4525, %v5306
    %v5309 = vcombine.high %v5280, %v5280
    %v5310 = vcombine.high %v5288, %v5288
    %v5311 = vsel %vm4499, %v5309, %v5309
    %v5312 = vsel %vm4501, %v5309, %v5311
    %v5313 = vrot.slane %v5310, 7
    %v5314 = vsel %vm4504, %v5313, %v5312
    %v5315 = vsel %vm4506, %v5313, %v5314
    %v5316 = vsel %vm4508, %v5313, %v5315
    %v5317 = vsel %vm4510, %v5313, %v5316
    %5318 = vrot.lane.b32.xlu0 %v5317, 64
    %v5319 = vpop.permute.xlu0 %5318
    %5321 = vst.msk [vmem:[#allocation3 + $0x1a] sm:$0x3] %vm4539, %v5319
    %v5322 = vrot.slane %v5309, 1
    %v5323 = vsel %vm4499, %v5322, %v5322
    %v5324 = vsel %vm4501, %v5322, %v5323
    %v5325 = vsel %vm4504, %v5310, %v5324
    %v5326 = vsel %vm4506, %v5310, %v5325
    %v5327 = vsel %vm4508, %v5310, %v5326
    %v5328 = vsel %vm4510, %v5310, %v5327
    %5329 = vrot.lane.b32.xlu0 %v5328, 96
    %v5330 = vpop.permute.xlu0 %5329
    %5332 = vst.msk [vmem:[#allocation3 + $0x1a] sm:$0x3] %vm4551, %v5330
    %v5336 = vunpack.c.l.s4 1983009808
    %v5337 = vunpack.c.0.s8 %v5336
    %v5338 = vlaneseq
    %v5339 = vshrl.u32 %v5338, 7
    %v5340 = vsub.s32 %v5337, %v5339
    %v5341 = vrot.slane %v4474, %v5340
    %v5343 = vunpack.c.l.s4 1983009808
    %v5344 = vunpack.c.0.s8 %v5343
    %v5345 = vlaneseq
    %v5346 = vshrl.u32 %v5345, 7
    %v5347 = vsub.s32 %v5344, %v5346
    %v5348 = vrot.slane %v4482, %v5347
    %v5349 = vsel %vm4499, %v5341, %v5341
    %v5350 = vsel %vm4501, %v5341, %v5349
    %v5351 = vrot.slane %v5348, 7
    %v5352 = vsel %vm4504, %v5351, %v5350
    %v5353 = vsel %vm4506, %v5351, %v5352
    %v5354 = vsel %vm4508, %v5351, %v5353
    %v5355 = vsel %vm4510, %v5351, %v5354
    %5357 = vst.msk [vmem:[#allocation3 + $0x1c] sm:$0x3] %vm4513, %v5355
    %v5358 = vrot.slane %v5341, 1
    %v5359 = vsel %vm4499, %v5358, %v5358
    %v5360 = vsel %vm4501, %v5358, %v5359
    %v5361 = vsel %vm4504, %v5348, %v5360
    %v5362 = vsel %vm4506, %v5348, %v5361
    %v5363 = vsel %vm4508, %v5348, %v5362
    %v5364 = vsel %vm4510, %v5348, %v5363
    %5365 = vrot.lane.b32.xlu0 %v5364, 32
    %v5366 = vpop.permute.xlu0 %5365
    %5368 = vst.msk [vmem:[#allocation3 + $0x1c] sm:$0x3] %vm4525, %v5366
    %v5369 = vcombine.high %v5341, %v5341
    %v5370 = vcombine.high %v5348, %v5348
    %v5371 = vsel %vm4499, %v5369, %v5369
    %v5372 = vsel %vm4501, %v5369, %v5371
    %v5373 = vrot.slane %v5370, 7
    %v5374 = vsel %vm4504, %v5373, %v5372
    %v5375 = vsel %vm4506, %v5373, %v5374
    %v5376 = vsel %vm4508, %v5373, %v5375
    %v5377 = vsel %vm4510, %v5373, %v5376
    %5378 = vrot.lane.b32.xlu0 %v5377, 64
    %v5379 = vpop.permute.xlu0 %5378
    %5381 = vst.msk [vmem:[#allocation3 + $0x1c] sm:$0x3] %vm4539, %v5379
    %v5382 = vrot.slane %v5369, 1
    %v5383 = vsel %vm4499, %v5382, %v5382
    %v5384 = vsel %vm4501, %v5382, %v5383
    %v5385 = vsel %vm4504, %v5370, %v5384
    %v5386 = vsel %vm4506, %v5370, %v5385
    %v5387 = vsel %vm4508, %v5370, %v5386
    %v5388 = vsel %vm4510, %v5370, %v5387
    %5389 = vrot.lane.b32.xlu0 %v5388, 96
    %v5390 = vpop.permute.xlu0 %5389
    %5392 = vst.msk [vmem:[#allocation3 + $0x1c] sm:$0x3] %vm4551, %v5390
    %v5393 = vcombine.high %v4474, %v4474
    %v5395 = vunpack.c.l.s4 1983009808
    %v5396 = vunpack.c.0.s8 %v5395
    %v5397 = vlaneseq
    %v5398 = vshrl.u32 %v5397, 7
    %v5399 = vsub.s32 %v5396, %v5398
    %v5400 = vrot.slane %v5393, %v5399
    %v5401 = vcombine.high %v4482, %v4482
    %v5403 = vunpack.c.l.s4 1983009808
    %v5404 = vunpack.c.0.s8 %v5403
    %v5405 = vlaneseq
    %v5406 = vshrl.u32 %v5405, 7
    %v5407 = vsub.s32 %v5404, %v5406
    %v5408 = vrot.slane %v5401, %v5407
    %v5409 = vsel %vm4499, %v5400, %v5400
    %v5410 = vsel %vm4501, %v5400, %v5409
    %v5411 = vrot.slane %v5408, 7
    %v5412 = vsel %vm4504, %v5411, %v5410
    %v5413 = vsel %vm4506, %v5411, %v5412
    %v5414 = vsel %vm4508, %v5411, %v5413
    %v5415 = vsel %vm4510, %v5411, %v5414
    %5417 = vst.msk [vmem:[#allocation3 + $0x1e] sm:$0x3] %vm4513, %v5415
    %v5418 = vrot.slane %v5400, 1
    %v5419 = vsel %vm4499, %v5418, %v5418
    %v5420 = vsel %vm4501, %v5418, %v5419
    %v5421 = vsel %vm4504, %v5408, %v5420
    %v5422 = vsel %vm4506, %v5408, %v5421
    %v5423 = vsel %vm4508, %v5408, %v5422
    %v5424 = vsel %vm4510, %v5408, %v5423
    %5425 = vrot.lane.b32.xlu0 %v5424, 32
    %v5426 = vpop.permute.xlu0 %5425
    %5428 = vst.msk [vmem:[#allocation3 + $0x1e] sm:$0x3] %vm4525, %v5426
    %v5429 = vcombine.high %v5400, %v5400
    %v5430 = vcombine.high %v5408, %v5408
    %v5431 = vsel %vm4499, %v5429, %v5429
    %v5432 = vsel %vm4501, %v5429, %v5431
    %v5433 = vrot.slane %v5430, 7
    %v5434 = vsel %vm4504, %v5433, %v5432
    %v5435 = vsel %vm4506, %v5433, %v5434
    %v5436 = vsel %vm4508, %v5433, %v5435
    %v5437 = vsel %vm4510, %v5433, %v5436
    %5438 = vrot.lane.b32.xlu0 %v5437, 64
    %v5439 = vpop.permute.xlu0 %5438
    %5441 = vst.msk [vmem:[#allocation3 + $0x1e] sm:$0x3] %vm4539, %v5439
    %v5442 = vrot.slane %v5429, 1
    %v5443 = vsel %vm4499, %v5442, %v5442
    %v5444 = vsel %vm4501, %v5442, %v5443
    %v5445 = vsel %vm4504, %v5430, %v5444
    %v5446 = vsel %vm4506, %v5430, %v5445
    %v5447 = vsel %vm4508, %v5430, %v5446
    %v5448 = vsel %vm4510, %v5430, %v5447
    %5449 = vrot.lane.b32.xlu0 %v5448, 96
    %v5450 = vpop.permute.xlu0 %5449
    %5452 = vst.msk [vmem:[#allocation3 + $0x1e] sm:$0x3] %vm4551, %v5450
    %v5453 = vld [vmem:[#allocation3] sm:$0xff]
    %v5454 = vld [vmem:[#allocation3 + $0x8] sm:$0xff]
    %v5455 = vld [vmem:[#allocation3 + $0x10] sm:$0xff]
    %v5456 = vld [vmem:[#allocation3 + $0x18] sm:$0xff]
    %v5461 = vcombine.high %v5453, %v5453
    %v5463 = vunpack.c.l.s4 1983009808
    %v5464 = vunpack.c.0.s8 %v5463
    %v5465 = vlaneseq
    %v5466 = vshrl.u32 %v5465, 7
    %v5467 = vsub.s32 %v5464, %v5466
    %v5468 = vrot.slane %v5453, %v5467
    %v5470 = vunpack.c.l.s4 1983009808
    %v5471 = vunpack.c.0.s8 %v5470
    %v5472 = vlaneseq
    %v5473 = vshrl.u32 %v5472, 7
    %v5474 = vsub.s32 %v5471, %v5473
    %v5475 = vrot.slane %v5461, %v5474
    %v5476 = vcombine.high %v5468, %v5468
    %v5477 = vcombine.high %v5475, %v5475
    %v5478 = vcombine.high %v5454, %v5454
    %v5480 = vunpack.c.l.s4 1983009808
    %v5481 = vunpack.c.0.s8 %v5480
    %v5482 = vlaneseq
    %v5483 = vshrl.u32 %v5482, 7
    %v5484 = vsub.s32 %v5481, %v5483
    %v5485 = vrot.slane %v5454, %v5484
    %v5487 = vunpack.c.l.s4 1983009808
    %v5488 = vunpack.c.0.s8 %v5487
    %v5489 = vlaneseq
    %v5490 = vshrl.u32 %v5489, 7
    %v5491 = vsub.s32 %v5488, %v5490
    %v5492 = vrot.slane %v5478, %v5491
    %v5493 = vcombine.high %v5485, %v5485
    %v5494 = vcombine.high %v5492, %v5492
    %v5495 = vcombine.high %v5455, %v5455
    %v5497 = vunpack.c.l.s4 1983009808
    %v5498 = vunpack.c.0.s8 %v5497
    %v5499 = vlaneseq
    %v5500 = vshrl.u32 %v5499, 7
    %v5501 = vsub.s32 %v5498, %v5500
    %v5502 = vrot.slane %v5455, %v5501
    %v5504 = vunpack.c.l.s4 1983009808
    %v5505 = vunpack.c.0.s8 %v5504
    %v5506 = vlaneseq
    %v5507 = vshrl.u32 %v5506, 7
    %v5508 = vsub.s32 %v5505, %v5507
    %v5509 = vrot.slane %v5495, %v5508
    %v5510 = vcombine.high %v5502, %v5502
    %v5511 = vcombine.high %v5509, %v5509
    %v5512 = vcombine.high %v5456, %v5456
    %v5514 = vunpack.c.l.s4 1983009808
    %v5515 = vunpack.c.0.s8 %v5514
    %v5516 = vlaneseq
    %v5517 = vshrl.u32 %v5516, 7
    %v5518 = vsub.s32 %v5515, %v5517
    %v5519 = vrot.slane %v5456, %v5518
    %v5521 = vunpack.c.l.s4 1983009808
    %v5522 = vunpack.c.0.s8 %v5521
    %v5523 = vlaneseq
    %v5524 = vshrl.u32 %v5523, 7
    %v5525 = vsub.s32 %v5522, %v5524
    %v5526 = vrot.slane %v5512, %v5525
    %v5527 = vcombine.high %v5519, %v5519
    %v5528 = vcombine.high %v5526, %v5526
    %v5545 = vpack.c.bf16 %v5468, %v5468
    %v5546 = vpack.c.bf16 %v5476, %v5476
    %v5547 = vpack.c.bf16 %v5475, %v5475
    %v5548 = vpack.c.bf16 %v5477, %v5477
    %v5549 = vpack.c.bf16 %v5485, %v5485
    %v5550 = vpack.c.bf16 %v5493, %v5493
    %v5551 = vpack.c.bf16 %v5492, %v5492
    %v5552 = vpack.c.bf16 %v5494, %v5494
    %v5553 = vpack.c.bf16 %v5502, %v5502
    %v5554 = vpack.c.bf16 %v5510, %v5510
    %v5555 = vpack.c.bf16 %v5509, %v5509
    %v5556 = vpack.c.bf16 %v5511, %v5511
    %v5557 = vpack.c.bf16 %v5519, %v5519
    %v5558 = vpack.c.bf16 %v5527, %v5527
    %v5559 = vpack.c.bf16 %v5526, %v5526
    %v5560 = vpack.c.bf16 %v5528, %v5528
    %s5561 = smul.u32 4, 256
    %s5562 = smul.u32 %s5561, 2
    %s5563 = sshll.u32 %s5562, 4
    %5564 = dma.done [#allocation6], %s5563
    %v5565 = vld [vmem:[%s1] sm:$0x3]
    %v5566 = vpack.c.bf16 %v5565, %v5565
    %v5567 = vld [vmem:[%s7] sm:$0xff]
    %v5568 = vld [vmem:[#allocation4] sm:$0xff]
    %v5569 = vld [vmem:[#allocation4 + $0x8] sm:$0xff]
    %v5570 = vld [vmem:[#allocation4 + $0x10] sm:$0xff]
    %v5571 = vld [vmem:[#allocation4 + $0x18] sm:$0xff]
    %v5572 = vld [vmem:[#allocation4 + $0x20] sm:$0xff]
    %v5573 = vld [vmem:[#allocation4 + $0x28] sm:$0xff]
    %v5574 = vld [vmem:[#allocation4 + $0x30] sm:$0xff]
    %v5575 = vld [vmem:[#allocation4 + $0x38] sm:$0xff]
    %v5576 = vld [vmem:[#allocation4 + $0x40] sm:$0xff]
    %v5577 = vld [vmem:[#allocation4 + $0x48] sm:$0xff]
    %v5578 = vld [vmem:[#allocation4 + $0x50] sm:$0xff]
    %v5579 = vld [vmem:[#allocation4 + $0x58] sm:$0xff]
    %v5580 = vld [vmem:[#allocation4 + $0x60] sm:$0xff]
    %v5581 = vld [vmem:[#allocation4 + $0x68] sm:$0xff]
    %v5582 = vld [vmem:[#allocation4 + $0x70] sm:$0xff]
    %v5583 = vld [vmem:[#allocation4 + $0x78] sm:$0xff]
    %v5584 = vld [vmem:[#allocation4 + $0x80] sm:$0xff]
    %v5585 = vld [vmem:[#allocation4 + $0x88] sm:$0xff]
    %v5586 = vld [vmem:[#allocation4 + $0x90] sm:$0xff]
    %v5587 = vld [vmem:[#allocation4 + $0x98] sm:$0xff]
    %v5588 = vld [vmem:[#allocation4 + $0xa0] sm:$0xff]
    %v5589 = vld [vmem:[#allocation4 + $0xa8] sm:$0xff]
    %v5590 = vld [vmem:[#allocation4 + $0xb0] sm:$0xff]
    %v5591 = vld [vmem:[#allocation4 + $0xb8] sm:$0xff]
    %v5592 = vld [vmem:[#allocation4 + $0xc0] sm:$0xff]
    %v5593 = vld [vmem:[#allocation4 + $0xc8] sm:$0xff]
    %v5594 = vld [vmem:[#allocation4 + $0xd0] sm:$0xff]
    %v5595 = vld [vmem:[#allocation4 + $0xd8] sm:$0xff]
    %v5596 = vld [vmem:[#allocation4 + $0xe0] sm:$0xff]
    %v5597 = vld [vmem:[#allocation4 + $0xe8] sm:$0xff]
    %v5598 = vld [vmem:[#allocation4 + $0xf0] sm:$0xff]
    %v5599 = vld [vmem:[#allocation4 + $0xf8] sm:$0xff]
    %5600 = vmatprep.subr.bf16.mxu0 %v5569
    %5601 = vmatpush1.bf16.msra.mxu0 %v5568
    %5602 = vmatprep.subr.bf16.mxu0 %v5571
    %5603 = vmatpush1.bf16.msra.mxu0 %v5570
    %5604 = vmatprep.subr.bf16.mxu0 %v5573
    %5605 = vmatpush1.bf16.msra.mxu0 %v5572
    %5606 = vmatprep.subr.bf16.mxu0 %v5575
    %5607 = vmatpush1.bf16.msra.mxu0 %v5574
    %5608 = vmatprep.subr.bf16.mxu0 %v5577
    %5609 = vmatpush1.bf16.msra.mxu0 %v5576
    %5610 = vmatprep.subr.bf16.mxu0 %v5579
    %5611 = vmatpush1.bf16.msra.mxu0 %v5578
    %5612 = vmatprep.subr.bf16.mxu0 %v5581
    %5613 = vmatpush1.bf16.msra.mxu0 %v5580
    %5614 = vmatprep.subr.bf16.mxu0 %v5583
    %5615 = vmatpush1.bf16.msra.mxu0 %v5582
    %5616 = vmatprep.subr.bf16.mxu0 %v5585
    %5617 = vmatpush1.bf16.msra.mxu0 %v5584
    %5618 = vmatprep.subr.bf16.mxu0 %v5587
    %5619 = vmatpush1.bf16.msra.mxu0 %v5586
    %5620 = vmatprep.subr.bf16.mxu0 %v5589
    %5621 = vmatpush1.bf16.msra.mxu0 %v5588
    %5622 = vmatprep.subr.bf16.mxu0 %v5591
    %5623 = vmatpush1.bf16.msra.mxu0 %v5590
    %5624 = vmatprep.subr.bf16.mxu0 %v5593
    %5625 = vmatpush1.bf16.msra.mxu0 %v5592
    %5626 = vmatprep.subr.bf16.mxu0 %v5595
    %5627 = vmatpush1.bf16.msra.mxu0 %v5594
    %5628 = vmatprep.subr.bf16.mxu0 %v5597
    %5629 = vmatpush1.bf16.msra.mxu0 %v5596
    %5630 = vmatprep.subr.bf16.mxu0 %v5599
    %5631 = vmatpush1.bf16.msra.mxu0 %v5598
    %5632 = vmatprep.mubr.bf16.mxu0 %v5546
    %5633 = vmatmul.mubr.bf16.gmra.mrb[0].mxu0 %v5545
    %v5634 = vpop.f32.mrb[0].mxu0
    %v5635 = vadd.f32 0.0, %v5634
    %v5636 = vpop.f32.mrb[0].mxu0
    %v5637 = vadd.f32 0.0, %v5636
    %v5638 = vpop.f32.mrb[0].mxu0
    %v5639 = vpop.f32.mrb[0].mxu0
    %5640 = vdwg.mxu0
    %v5641 = vld [vmem:[#allocation4 + $0x100] sm:$0xff]
    %v5642 = vld [vmem:[#allocation4 + $0x108] sm:$0xff]
    %v5643 = vld [vmem:[#allocation4 + $0x110] sm:$0xff]
    %v5644 = vld [vmem:[#allocation4 + $0x118] sm:$0xff]
    %v5645 = vld [vmem:[#allocation4 + $0x120] sm:$0xff]
    %v5646 = vld [vmem:[#allocation4 + $0x128] sm:$0xff]
    %v5647 = vld [vmem:[#allocation4 + $0x130] sm:$0xff]
    %v5648 = vld [vmem:[#allocation4 + $0x138] sm:$0xff]
    %v5649 = vld [vmem:[#allocation4 + $0x140] sm:$0xff]
    %v5650 = vld [vmem:[#allocation4 + $0x148] sm:$0xff]
    %v5651 = vld [vmem:[#allocation4 + $0x150] sm:$0xff]
    %v5652 = vld [vmem:[#allocation4 + $0x158] sm:$0xff]
    %v5653 = vld [vmem:[#allocation4 + $0x160] sm:$0xff]
    %v5654 = vld [vmem:[#allocation4 + $0x168] sm:$0xff]
    %v5655 = vld [vmem:[#allocation4 + $0x170] sm:$0xff]
    %v5656 = vld [vmem:[#allocation4 + $0x178] sm:$0xff]
    %v5657 = vld [vmem:[#allocation4 + $0x180] sm:$0xff]
    %v5658 = vld [vmem:[#allocation4 + $0x188] sm:$0xff]
    %v5659 = vld [vmem:[#allocation4 + $0x190] sm:$0xff]
    %v5660 = vld [vmem:[#allocation4 + $0x198] sm:$0xff]
    %v5661 = vld [vmem:[#allocation4 + $0x1a0] sm:$0xff]
    %v5662 = vld [vmem:[#allocation4 + $0x1a8] sm:$0xff]
    %v5663 = vld [vmem:[#allocation4 + $0x1b0] sm:$0xff]
    %v5664 = vld [vmem:[#allocation4 + $0x1b8] sm:$0xff]
    %v5665 = vld [vmem:[#allocation4 + $0x1c0] sm:$0xff]
    %v5666 = vld [vmem:[#allocation4 + $0x1c8] sm:$0xff]
    %v5667 = vld [vmem:[#allocation4 + $0x1d0] sm:$0xff]
    %v5668 = vld [vmem:[#allocation4 + $0x1d8] sm:$0xff]
    %v5669 = vld [vmem:[#allocation4 + $0x1e0] sm:$0xff]
    %v5670 = vld [vmem:[#allocation4 + $0x1e8] sm:$0xff]
    %v5671 = vld [vmem:[#allocation4 + $0x1f0] sm:$0xff]
    %v5672 = vld [vmem:[#allocation4 + $0x1f8] sm:$0xff]
    %v5673 = vld [vmem:[#allocation4 + $0x200] sm:$0xff]
    %v5674 = vld [vmem:[#allocation4 + $0x208] sm:$0xff]
    %v5675 = vld [vmem:[#allocation4 + $0x210] sm:$0xff]
    %v5676 = vld [vmem:[#allocation4 + $0x218] sm:$0xff]
    %v5677 = vld [vmem:[#allocation4 + $0x220] sm:$0xff]
    %v5678 = vld [vmem:[#allocation4 + $0x228] sm:$0xff]
    %v5679 = vld [vmem:[#allocation4 + $0x230] sm:$0xff]
    %v5680 = vld [vmem:[#allocation4 + $0x238] sm:$0xff]
    %v5681 = vld [vmem:[#allocation4 + $0x240] sm:$0xff]
    %v5682 = vld [vmem:[#allocation4 + $0x248] sm:$0xff]
    %v5683 = vld [vmem:[#allocation4 + $0x250] sm:$0xff]
    %v5684 = vld [vmem:[#allocation4 + $0x258] sm:$0xff]
    %v5685 = vld [vmem:[#allocation4 + $0x260] sm:$0xff]
    %v5686 = vld [vmem:[#allocation4 + $0x268] sm:$0xff]
    %v5687 = vld [vmem:[#allocation4 + $0x270] sm:$0xff]
    %v5688 = vld [vmem:[#allocation4 + $0x278] sm:$0xff]
    %v5689 = vld [vmem:[#allocation4 + $0x280] sm:$0xff]
    %v5690 = vld [vmem:[#allocation4 + $0x288] sm:$0xff]
    %v5691 = vld [vmem:[#allocation4 + $0x290] sm:$0xff]
    %v5692 = vld [vmem:[#allocation4 + $0x298] sm:$0xff]
    %v5693 = vld [vmem:[#allocation4 + $0x2a0] sm:$0xff]
    %v5694 = vld [vmem:[#allocation4 + $0x2a8] sm:$0xff]
    %v5695 = vld [vmem:[#allocation4 + $0x2b0] sm:$0xff]
    %v5696 = vld [vmem:[#allocation4 + $0x2b8] sm:$0xff]
    %v5697 = vld [vmem:[#allocation4 + $0x2c0] sm:$0xff]
    %v5698 = vld [vmem:[#allocation4 + $0x2c8] sm:$0xff]
    %v5699 = vld [vmem:[#allocation4 + $0x2d0] sm:$0xff]
    %v5700 = vld [vmem:[#allocation4 + $0x2d8] sm:$0xff]
    %v5701 = vld [vmem:[#allocation4 + $0x2e0] sm:$0xff]
    %v5702 = vld [vmem:[#allocation4 + $0x2e8] sm:$0xff]
    %v5703 = vld [vmem:[#allocation4 + $0x2f0] sm:$0xff]
    %v5704 = vld [vmem:[#allocation4 + $0x2f8] sm:$0xff]
    %5705 = vmatprep.subr.bf16.mxu0 %v5674
    %5706 = vmatpush1.bf16.msra.mxu0 %v5673
    %5707 = vmatprep.subr.bf16.mxu0 %v5676
    %5708 = vmatpush1.bf16.msra.mxu0 %v5675
    %5709 = vmatprep.subr.bf16.mxu0 %v5678
    %5710 = vmatpush1.bf16.msra.mxu0 %v5677
    %5711 = vmatprep.subr.bf16.mxu0 %v5680
    %5712 = vmatpush1.bf16.msra.mxu0 %v5679
    %5713 = vmatprep.subr.bf16.mxu0 %v5682
    %5714 = vmatpush1.bf16.msra.mxu0 %v5681
    %5715 = vmatprep.subr.bf16.mxu0 %v5684
    %5716 = vmatpush1.bf16.msra.mxu0 %v5683
    %5717 = vmatprep.subr.bf16.mxu0 %v5686
    %5718 = vmatpush1.bf16.msra.mxu0 %v5685
    %5719 = vmatprep.subr.bf16.mxu0 %v5688
    %5720 = vmatpush1.bf16.msra.mxu0 %v5687
    %5721 = vmatprep.subr.bf16.mxu0 %v5690
    %5722 = vmatpush1.bf16.msra.mxu0 %v5689
    %5723 = vmatprep.subr.bf16.mxu0 %v5692
    %5724 = vmatpush1.bf16.msra.mxu0 %v5691
    %5725 = vmatprep.subr.bf16.mxu0 %v5694
    %5726 = vmatpush1.bf16.msra.mxu0 %v5693
    %5727 = vmatprep.subr.bf16.mxu0 %v5696
    %5728 = vmatpush1.bf16.msra.mxu0 %v5695
    %5729 = vmatprep.subr.bf16.mxu0 %v5698
    %5730 = vmatpush1.bf16.msra.mxu0 %v5697
    %5731 = vmatprep.subr.bf16.mxu0 %v5700
    %5732 = vmatpush1.bf16.msra.mxu0 %v5699
    %5733 = vmatprep.subr.bf16.mxu0 %v5702
    %5734 = vmatpush1.bf16.msra.mxu0 %v5701
    %5735 = vmatprep.subr.bf16.mxu0 %v5704
    %5736 = vmatpush1.bf16.msra.mxu0 %v5703
    %5737 = vmatprep.mubr.bf16.mxu0 %v5550
    %5738 = vmatmul.mubr.bf16.gmra.mrb[0].mxu0 %v5549
    %v5739 = vpop.f32.mrb[0].mxu0
    %v5740 = vadd.f32 0.0, %v5739
    %v5741 = vpop.f32.mrb[0].mxu0
    %v5742 = vadd.f32 0.0, %v5741
    %v5743 = vpop.f32.mrb[0].mxu0
    %v5744 = vpop.f32.mrb[0].mxu0
    %5745 = vdwg.mxu0
    %v5746 = vld [vmem:[#allocation4 + $0x300] sm:$0xff]
    %v5747 = vld [vmem:[#allocation4 + $0x308] sm:$0xff]
    %v5748 = vld [vmem:[#allocation4 + $0x310] sm:$0xff]
    %v5749 = vld [vmem:[#allocation4 + $0x318] sm:$0xff]
    %v5750 = vld [vmem:[#allocation4 + $0x320] sm:$0xff]
    %v5751 = vld [vmem:[#allocation4 + $0x328] sm:$0xff]
    %v5752 = vld [vmem:[#allocation4 + $0x330] sm:$0xff]
    %v5753 = vld [vmem:[#allocation4 + $0x338] sm:$0xff]
    %v5754 = vld [vmem:[#allocation4 + $0x340] sm:$0xff]
    %v5755 = vld [vmem:[#allocation4 + $0x348] sm:$0xff]
    %v5756 = vld [vmem:[#allocation4 + $0x350] sm:$0xff]
    %v5757 = vld [vmem:[#allocation4 + $0x358] sm:$0xff]
    %v5758 = vld [vmem:[#allocation4 + $0x360] sm:$0xff]
    %v5759 = vld [vmem:[#allocation4 + $0x368] sm:$0xff]
    %v5760 = vld [vmem:[#allocation4 + $0x370] sm:$0xff]
    %v5761 = vld [vmem:[#allocation4 + $0x378] sm:$0xff]
    %v5762 = vld [vmem:[#allocation4 + $0x380] sm:$0xff]
    %v5763 = vld [vmem:[#allocation4 + $0x388] sm:$0xff]
    %v5764 = vld [vmem:[#allocation4 + $0x390] sm:$0xff]
    %v5765 = vld [vmem:[#allocation4 + $0x398] sm:$0xff]
    %v5766 = vld [vmem:[#allocation4 + $0x3a0] sm:$0xff]
    %v5767 = vld [vmem:[#allocation4 + $0x3a8] sm:$0xff]
    %v5768 = vld [vmem:[#allocation4 + $0x3b0] sm:$0xff]
    %v5769 = vld [vmem:[#allocation4 + $0x3b8] sm:$0xff]
    %v5770 = vld [vmem:[#allocation4 + $0x3c0] sm:$0xff]
    %v5771 = vld [vmem:[#allocation4 + $0x3c8] sm:$0xff]
    %v5772 = vld [vmem:[#allocation4 + $0x3d0] sm:$0xff]
    %v5773 = vld [vmem:[#allocation4 + $0x3d8] sm:$0xff]
    %v5774 = vld [vmem:[#allocation4 + $0x3e0] sm:$0xff]
    %v5775 = vld [vmem:[#allocation4 + $0x3e8] sm:$0xff]
    %v5776 = vld [vmem:[#allocation4 + $0x3f0] sm:$0xff]
    %v5777 = vld [vmem:[#allocation4 + $0x3f8] sm:$0xff]
    %v5778 = vld [vmem:[#allocation4 + $0x400] sm:$0xff]
    %v5779 = vld [vmem:[#allocation4 + $0x408] sm:$0xff]
    %v5780 = vld [vmem:[#allocation4 + $0x410] sm:$0xff]
    %v5781 = vld [vmem:[#allocation4 + $0x418] sm:$0xff]
    %v5782 = vld [vmem:[#allocation4 + $0x420] sm:$0xff]
    %v5783 = vld [vmem:[#allocation4 + $0x428] sm:$0xff]
    %v5784 = vld [vmem:[#allocation4 + $0x430] sm:$0xff]
    %v5785 = vld [vmem:[#allocation4 + $0x438] sm:$0xff]
    %v5786 = vld [vmem:[#allocation4 + $0x440] sm:$0xff]
    %v5787 = vld [vmem:[#allocation4 + $0x448] sm:$0xff]
    %v5788 = vld [vmem:[#allocation4 + $0x450] sm:$0xff]
    %v5789 = vld [vmem:[#allocation4 + $0x458] sm:$0xff]
    %v5790 = vld [vmem:[#allocation4 + $0x460] sm:$0xff]
    %v5791 = vld [vmem:[#allocation4 + $0x468] sm:$0xff]
    %v5792 = vld [vmem:[#allocation4 + $0x470] sm:$0xff]
    %v5793 = vld [vmem:[#allocation4 + $0x478] sm:$0xff]
    %v5794 = vld [vmem:[#allocation4 + $0x480] sm:$0xff]
    %v5795 = vld [vmem:[#allocation4 + $0x488] sm:$0xff]
    %v5796 = vld [vmem:[#allocation4 + $0x490] sm:$0xff]
    %v5797 = vld [vmem:[#allocation4 + $0x498] sm:$0xff]
    %v5798 = vld [vmem:[#allocation4 + $0x4a0] sm:$0xff]
    %v5799 = vld [vmem:[#allocation4 + $0x4a8] sm:$0xff]
    %v5800 = vld [vmem:[#allocation4 + $0x4b0] sm:$0xff]
    %v5801 = vld [vmem:[#allocation4 + $0x4b8] sm:$0xff]
    %v5802 = vld [vmem:[#allocation4 + $0x4c0] sm:$0xff]
    %v5803 = vld [vmem:[#allocation4 + $0x4c8] sm:$0xff]
    %v5804 = vld [vmem:[#allocation4 + $0x4d0] sm:$0xff]
    %v5805 = vld [vmem:[#allocation4 + $0x4d8] sm:$0xff]
    %v5806 = vld [vmem:[#allocation4 + $0x4e0] sm:$0xff]
    %v5807 = vld [vmem:[#allocation4 + $0x4e8] sm:$0xff]
    %v5808 = vld [vmem:[#allocation4 + $0x4f0] sm:$0xff]
    %v5809 = vld [vmem:[#allocation4 + $0x4f8] sm:$0xff]
    %5810 = vmatprep.subr.bf16.mxu0 %v5779
    %5811 = vmatpush1.bf16.msra.mxu0 %v5778
    %5812 = vmatprep.subr.bf16.mxu0 %v5781
    %5813 = vmatpush1.bf16.msra.mxu0 %v5780
    %5814 = vmatprep.subr.bf16.mxu0 %v5783
    %5815 = vmatpush1.bf16.msra.mxu0 %v5782
    %5816 = vmatprep.subr.bf16.mxu0 %v5785
    %5817 = vmatpush1.bf16.msra.mxu0 %v5784
    %5818 = vmatprep.subr.bf16.mxu0 %v5787
    %5819 = vmatpush1.bf16.msra.mxu0 %v5786
    %5820 = vmatprep.subr.bf16.mxu0 %v5789
    %5821 = vmatpush1.bf16.msra.mxu0 %v5788
    %5822 = vmatprep.subr.bf16.mxu0 %v5791
    %5823 = vmatpush1.bf16.msra.mxu0 %v5790
    %5824 = vmatprep.subr.bf16.mxu0 %v5793
    %5825 = vmatpush1.bf16.msra.mxu0 %v5792
    %5826 = vmatprep.subr.bf16.mxu0 %v5795
    %5827 = vmatpush1.bf16.msra.mxu0 %v5794
    %5828 = vmatprep.subr.bf16.mxu0 %v5797
    %5829 = vmatpush1.bf16.msra.mxu0 %v5796
    %5830 = vmatprep.subr.bf16.mxu0 %v5799
    %5831 = vmatpush1.bf16.msra.mxu0 %v5798
    %5832 = vmatprep.subr.bf16.mxu0 %v5801
    %5833 = vmatpush1.bf16.msra.mxu0 %v5800
    %5834 = vmatprep.subr.bf16.mxu0 %v5803
    %5835 = vmatpush1.bf16.msra.mxu0 %v5802
    %5836 = vmatprep.subr.bf16.mxu0 %v5805
    %5837 = vmatpush1.bf16.msra.mxu0 %v5804
    %5838 = vmatprep.subr.bf16.mxu0 %v5807
    %5839 = vmatpush1.bf16.msra.mxu0 %v5806
    %5840 = vmatprep.subr.bf16.mxu0 %v5809
    %5841 = vmatpush1.bf16.msra.mxu0 %v5808
    %5842 = vmatprep.mubr.bf16.mxu0 %v5554
    %5843 = vmatmul.mubr.bf16.gmra.mrb[0].mxu0 %v5553
    %v5844 = vpop.f32.mrb[0].mxu0
    %v5845 = vadd.f32 0.0, %v5844
    %v5846 = vpop.f32.mrb[0].mxu0
    %v5847 = vadd.f32 0.0, %v5846
    %v5848 = vpop.f32.mrb[0].mxu0
    %v5849 = vpop.f32.mrb[0].mxu0
    %5850 = vdwg.mxu0
    %v5851 = vld [vmem:[#allocation4 + $0x500] sm:$0xff]
    %v5852 = vld [vmem:[#allocation4 + $0x508] sm:$0xff]
    %v5853 = vld [vmem:[#allocation4 + $0x510] sm:$0xff]
    %v5854 = vld [vmem:[#allocation4 + $0x518] sm:$0xff]
    %v5855 = vld [vmem:[#allocation4 + $0x520] sm:$0xff]
    %v5856 = vld [vmem:[#allocation4 + $0x528] sm:$0xff]
    %v5857 = vld [vmem:[#allocation4 + $0x530] sm:$0xff]
    %v5858 = vld [vmem:[#allocation4 + $0x538] sm:$0xff]
    %v5859 = vld [vmem:[#allocation4 + $0x540] sm:$0xff]
    %v5860 = vld [vmem:[#allocation4 + $0x548] sm:$0xff]
    %v5861 = vld [vmem:[#allocation4 + $0x550] sm:$0xff]
    %v5862 = vld [vmem:[#allocation4 + $0x558] sm:$0xff]
    %v5863 = vld [vmem:[#allocation4 + $0x560] sm:$0xff]
    %v5864 = vld [vmem:[#allocation4 + $0x568] sm:$0xff]
    %v5865 = vld [vmem:[#allocation4 + $0x570] sm:$0xff]
    %v5866 = vld [vmem:[#allocation4 + $0x578] sm:$0xff]
    %v5867 = vld [vmem:[#allocation4 + $0x580] sm:$0xff]
    %v5868 = vld [vmem:[#allocation4 + $0x588] sm:$0xff]
    %v5869 = vld [vmem:[#allocation4 + $0x590] sm:$0xff]
    %v5870 = vld [vmem:[#allocation4 + $0x598] sm:$0xff]
    %v5871 = vld [vmem:[#allocation4 + $0x5a0] sm:$0xff]
    %v5872 = vld [vmem:[#allocation4 + $0x5a8] sm:$0xff]
    %v5873 = vld [vmem:[#allocation4 + $0x5b0] sm:$0xff]
    %v5874 = vld [vmem:[#allocation4 + $0x5b8] sm:$0xff]
    %v5875 = vld [vmem:[#allocation4 + $0x5c0] sm:$0xff]
    %v5876 = vld [vmem:[#allocation4 + $0x5c8] sm:$0xff]
    %v5877 = vld [vmem:[#allocation4 + $0x5d0] sm:$0xff]
    %v5878 = vld [vmem:[#allocation4 + $0x5d8] sm:$0xff]
    %v5879 = vld [vmem:[#allocation4 + $0x5e0] sm:$0xff]
    %v5880 = vld [vmem:[#allocation4 + $0x5e8] sm:$0xff]
    %v5881 = vld [vmem:[#allocation4 + $0x5f0] sm:$0xff]
    %v5882 = vld [vmem:[#allocation4 + $0x5f8] sm:$0xff]
    %v5883 = vld [vmem:[#allocation4 + $0x600] sm:$0xff]
    %v5884 = vld [vmem:[#allocation4 + $0x608] sm:$0xff]
    %v5885 = vld [vmem:[#allocation4 + $0x610] sm:$0xff]
    %v5886 = vld [vmem:[#allocation4 + $0x618] sm:$0xff]
    %v5887 = vld [vmem:[#allocation4 + $0x620] sm:$0xff]
    %v5888 = vld [vmem:[#allocation4 + $0x628] sm:$0xff]
    %v5889 = vld [vmem:[#allocation4 + $0x630] sm:$0xff]
    %v5890 = vld [vmem:[#allocation4 + $0x638] sm:$0xff]
    %v5891 = vld [vmem:[#allocation4 + $0x640] sm:$0xff]
    %v5892 = vld [vmem:[#allocation4 + $0x648] sm:$0xff]
    %v5893 = vld [vmem:[#allocation4 + $0x650] sm:$0xff]
    %v5894 = vld [vmem:[#allocation4 + $0x658] sm:$0xff]
    %v5895 = vld [vmem:[#allocation4 + $0x660] sm:$0xff]
    %v5896 = vld [vmem:[#allocation4 + $0x668] sm:$0xff]
    %v5897 = vld [vmem:[#allocation4 + $0x670] sm:$0xff]
    %v5898 = vld [vmem:[#allocation4 + $0x678] sm:$0xff]
    %v5899 = vld [vmem:[#allocation4 + $0x680] sm:$0xff]
    %v5900 = vld [vmem:[#allocation4 + $0x688] sm:$0xff]
    %v5901 = vld [vmem:[#allocation4 + $0x690] sm:$0xff]
    %v5902 = vld [vmem:[#allocation4 + $0x698] sm:$0xff]
    %v5903 = vld [vmem:[#allocation4 + $0x6a0] sm:$0xff]
    %v5904 = vld [vmem:[#allocation4 + $0x6a8] sm:$0xff]
    %v5905 = vld [vmem:[#allocation4 + $0x6b0] sm:$0xff]
    %v5906 = vld [vmem:[#allocation4 + $0x6b8] sm:$0xff]
    %v5907 = vld [vmem:[#allocation4 + $0x6c0] sm:$0xff]
    %v5908 = vld [vmem:[#allocation4 + $0x6c8] sm:$0xff]
    %v5909 = vld [vmem:[#allocation4 + $0x6d0] sm:$0xff]
    %v5910 = vld [vmem:[#allocation4 + $0x6d8] sm:$0xff]
    %v5911 = vld [vmem:[#allocation4 + $0x6e0] sm:$0xff]
    %v5912 = vld [vmem:[#allocation4 + $0x6e8] sm:$0xff]
    %v5913 = vld [vmem:[#allocation4 + $0x6f0] sm:$0xff]
    %v5914 = vld [vmem:[#allocation4 + $0x6f8] sm:$0xff]
    %5915 = vmatprep.subr.bf16.mxu0 %v5884
    %5916 = vmatpush1.bf16.msra.mxu0 %v5883
    %5917 = vmatprep.subr.bf16.mxu0 %v5886
    %5918 = vmatpush1.bf16.msra.mxu0 %v5885
    %5919 = vmatprep.subr.bf16.mxu0 %v5888
    %5920 = vmatpush1.bf16.msra.mxu0 %v5887
    %5921 = vmatprep.subr.bf16.mxu0 %v5890
    %5922 = vmatpush1.bf16.msra.mxu0 %v5889
    %5923 = vmatprep.subr.bf16.mxu0 %v5892
    %5924 = vmatpush1.bf16.msra.mxu0 %v5891
    %5925 = vmatprep.subr.bf16.mxu0 %v5894
    %5926 = vmatpush1.bf16.msra.mxu0 %v5893
    %5927 = vmatprep.subr.bf16.mxu0 %v5896
    %5928 = vmatpush1.bf16.msra.mxu0 %v5895
    %5929 = vmatprep.subr.bf16.mxu0 %v5898
    %5930 = vmatpush1.bf16.msra.mxu0 %v5897
    %5931 = vmatprep.subr.bf16.mxu0 %v5900
    %5932 = vmatpush1.bf16.msra.mxu0 %v5899
    %5933 = vmatprep.subr.bf16.mxu0 %v5902
    %5934 = vmatpush1.bf16.msra.mxu0 %v5901
    %5935 = vmatprep.subr.bf16.mxu0 %v5904
    %5936 = vmatpush1.bf16.msra.mxu0 %v5903
    %5937 = vmatprep.subr.bf16.mxu0 %v5906
    %5938 = vmatpush1.bf16.msra.mxu0 %v5905
    %5939 = vmatprep.subr.bf16.mxu0 %v5908
    %5940 = vmatpush1.bf16.msra.mxu0 %v5907
    %5941 = vmatprep.subr.bf16.mxu0 %v5910
    %5942 = vmatpush1.bf16.msra.mxu0 %v5909
    %5943 = vmatprep.subr.bf16.mxu0 %v5912
    %5944 = vmatpush1.bf16.msra.mxu0 %v5911
    %5945 = vmatprep.subr.bf16.mxu0 %v5914
    %5946 = vmatpush1.bf16.msra.mxu0 %v5913
    %5947 = vmatprep.mubr.bf16.mxu0 %v5558
    %5948 = vmatmul.mubr.bf16.gmra.mrb[0].mxu0 %v5557
    %v5949 = vpop.f32.mrb[0].mxu0
    %v5950 = vadd.f32 0.0, %v5949
    %v5951 = vpop.f32.mrb[0].mxu0
    %v5952 = vadd.f32 0.0, %v5951
    %v5953 = vpop.f32.mrb[0].mxu0
    %v5954 = vpop.f32.mrb[0].mxu0
    %5955 = vdwg.mxu0
    %v5956 = vld [vmem:[#allocation4 + $0x700] sm:$0xff]
    %v5957 = vld [vmem:[#allocation4 + $0x708] sm:$0xff]
    %v5958 = vld [vmem:[#allocation4 + $0x710] sm:$0xff]
    %v5959 = vld [vmem:[#allocation4 + $0x718] sm:$0xff]
    %v5960 = vld [vmem:[#allocation4 + $0x720] sm:$0xff]
    %v5961 = vld [vmem:[#allocation4 + $0x728] sm:$0xff]
    %v5962 = vld [vmem:[#allocation4 + $0x730] sm:$0xff]
    %v5963 = vld [vmem:[#allocation4 + $0x738] sm:$0xff]
    %v5964 = vld [vmem:[#allocation4 + $0x740] sm:$0xff]
    %v5965 = vld [vmem:[#allocation4 + $0x748] sm:$0xff]
    %v5966 = vld [vmem:[#allocation4 + $0x750] sm:$0xff]
    %v5967 = vld [vmem:[#allocation4 + $0x758] sm:$0xff]
    %v5968 = vld [vmem:[#allocation4 + $0x760] sm:$0xff]
    %v5969 = vld [vmem:[#allocation4 + $0x768] sm:$0xff]
    %v5970 = vld [vmem:[#allocation4 + $0x770] sm:$0xff]
    %v5971 = vld [vmem:[#allocation4 + $0x778] sm:$0xff]
    %v5972 = vld [vmem:[#allocation4 + $0x780] sm:$0xff]
    %v5973 = vld [vmem:[#allocation4 + $0x788] sm:$0xff]
    %v5974 = vld [vmem:[#allocation4 + $0x790] sm:$0xff]
    %v5975 = vld [vmem:[#allocation4 + $0x798] sm:$0xff]
    %v5976 = vld [vmem:[#allocation4 + $0x7a0] sm:$0xff]
    %v5977 = vld [vmem:[#allocation4 + $0x7a8] sm:$0xff]
    %v5978 = vld [vmem:[#allocation4 + $0x7b0] sm:$0xff]
    %v5979 = vld [vmem:[#allocation4 + $0x7b8] sm:$0xff]
    %v5980 = vld [vmem:[#allocation4 + $0x7c0] sm:$0xff]
    %v5981 = vld [vmem:[#allocation4 + $0x7c8] sm:$0xff]
    %v5982 = vld [vmem:[#allocation4 + $0x7d0] sm:$0xff]
    %v5983 = vld [vmem:[#allocation4 + $0x7d8] sm:$0xff]
    %v5984 = vld [vmem:[#allocation4 + $0x7e0] sm:$0xff]
    %v5985 = vld [vmem:[#allocation4 + $0x7e8] sm:$0xff]
    %v5986 = vld [vmem:[#allocation4 + $0x7f0] sm:$0xff]
    %v5987 = vld [vmem:[#allocation4 + $0x7f8] sm:$0xff]
    %5988 = vmatprep.subr.bf16.mxu0 %v5957
    %5989 = vmatpush1.bf16.msra.mxu0 %v5956
    %5990 = vmatprep.subr.bf16.mxu0 %v5959
    %5991 = vmatpush1.bf16.msra.mxu0 %v5958
    %5992 = vmatprep.subr.bf16.mxu0 %v5961
    %5993 = vmatpush1.bf16.msra.mxu0 %v5960
    %5994 = vmatprep.subr.bf16.mxu0 %v5963
    %5995 = vmatpush1.bf16.msra.mxu0 %v5962
    %5996 = vmatprep.subr.bf16.mxu0 %v5965
    %5997 = vmatpush1.bf16.msra.mxu0 %v5964
    %5998 = vmatprep.subr.bf16.mxu0 %v5967
    %5999 = vmatpush1.bf16.msra.mxu0 %v5966
    %6000 = vmatprep.subr.bf16.mxu0 %v5969
    %6001 = vmatpush1.bf16.msra.mxu0 %v5968
    %6002 = vmatprep.subr.bf16.mxu0 %v5971
    %6003 = vmatpush1.bf16.msra.mxu0 %v5970
    %6004 = vmatprep.subr.bf16.mxu0 %v5973
    %6005 = vmatpush1.bf16.msra.mxu0 %v5972
    %6006 = vmatprep.subr.bf16.mxu0 %v5975
    %6007 = vmatpush1.bf16.msra.mxu0 %v5974
    %6008 = vmatprep.subr.bf16.mxu0 %v5977
    %6009 = vmatpush1.bf16.msra.mxu0 %v5976
    %6010 = vmatprep.subr.bf16.mxu0 %v5979
    %6011 = vmatpush1.bf16.msra.mxu0 %v5978
    %6012 = vmatprep.subr.bf16.mxu0 %v5981
    %6013 = vmatpush1.bf16.msra.mxu0 %v5980
    %6014 = vmatprep.subr.bf16.mxu0 %v5983
    %6015 = vmatpush1.bf16.msra.mxu0 %v5982
    %6016 = vmatprep.subr.bf16.mxu0 %v5985
    %6017 = vmatpush1.bf16.msra.mxu0 %v5984
    %6018 = vmatprep.subr.bf16.mxu0 %v5987
    %6019 = vmatpush1.bf16.msra.mxu0 %v5986
    %6020 = vmatprep.mubr.bf16.mxu0 %v5560
    %6021 = vmatmul.mubr.bf16.gmra.mrb[0].mxu0 %v5559
    %v6022 = vpop.f32.mrb[0].mxu0
    %v6023 = vadd.f32 0.0, %v6022
    %v6024 = vpop.f32.mrb[0].mxu0
    %v6025 = vadd.f32 0.0, %v6024
    %v6026 = vpop.f32.mrb[0].mxu0
    %v6027 = vpop.f32.mrb[0].mxu0
    %6028 = vdwg.mxu0
    %v6030 = vunpack.c.l.b16 %v5567
    %v6031 = vunpack.c.h.b16 %v5567
    %v6032 = vpack.c.b16 %v6030, %v6030
    %v6033 = vpack.c.b16 %v6031, %v6031
    %vm6034 = vcmask 64512
    %v6036 = vsel %vm6034, %v5566, 0
    %vm6038 = vcmask 1043456
    %v6040 = vsel %vm6038, %v6032, 0
    %v6043 = vsel %vm6038, %v6033, 0
    %6045 = vmatprep.subr.bf16.mxu0 %v6043
    %6046 = vmatpush1.bf16.msra.mxu0 %v6040
    %6047 = vmatprep.subr.bf16.mxu0 0
    %6048 = vmatpush1.bf16.msra.mxu0 0
    %6049 = vmatprep.subr.bf16.mxu0 0
    %6050 = vmatpush1.bf16.msra.mxu0 0
    %6051 = vmatprep.subr.bf16.mxu0 0
    %6052 = vmatpush1.bf16.msra.mxu0 0
    %6053 = vmatprep.subr.bf16.mxu0 0
    %6054 = vmatpush1.bf16.msra.mxu0 0
    %6055 = vmatprep.subr.bf16.mxu0 0
    %6056 = vmatpush1.bf16.msra.mxu0 0
    %6057 = vmatprep.subr.bf16.mxu0 0
    %6058 = vmatpush1.bf16.msra.mxu0 0
    %6059 = vmatprep.subr.bf16.mxu0 0
    %6060 = vmatpush1.bf16.msra.mxu0 0
    %6061 = vmatprep.subr.bf16.mxu0 0
    %6062 = vmatpush1.bf16.msra.mxu0 0
    %6063 = vmatprep.subr.bf16.mxu0 0
    %6064 = vmatpush1.bf16.msra.mxu0 0
    %6065 = vmatprep.subr.bf16.mxu0 0
    %6066 = vmatpush1.bf16.msra.mxu0 0
    %6067 = vmatprep.subr.bf16.mxu0 0
    %6068 = vmatpush1.bf16.msra.mxu0 0
    %6069 = vmatprep.subr.bf16.mxu0 0
    %6070 = vmatpush1.bf16.msra.mxu0 0
    %6071 = vmatprep.subr.bf16.mxu0 0
    %6072 = vmatpush1.bf16.msra.mxu0 0
    %6073 = vmatprep.subr.bf16.mxu0 0
    %6074 = vmatpush1.bf16.msra.mxu0 0
    %6075 = vmatprep.subr.bf16.mxu0 0
    %6076 = vmatpush1.bf16.msra.mxu0 0
    %6077 = vmatprep.mubr.bf16.mxu0 0
    %6078 = vmatmul.mubr.bf16.gmra.mrb[0].mxu0 %v6036
    %v6079 = vpop.f32.mrb[0].mxu0
    %v6080 = vadd.f32 %v5635, %v6079
    %v6081 = vpop.f32.mrb[0].mxu0
    %v6082 = vadd.f32 %v5637, %v6081
    %v6083 = vpop.f32.mrb[0].mxu0
    %v6084 = vpop.f32.mrb[0].mxu0
    %6085 = vdwg.mxu0
    %6086 = vmatprep.subr.bf16.mxu0 %v5642
    %6087 = vmatpush1.bf16.msra.mxu0 %v5641
    %6088 = vmatprep.subr.bf16.mxu0 %v5644
    %6089 = vmatpush1.bf16.msra.mxu0 %v5643
    %6090 = vmatprep.subr.bf16.mxu0 %v5646
    %6091 = vmatpush1.bf16.msra.mxu0 %v5645
    %6092 = vmatprep.subr.bf16.mxu0 %v5648
    %6093 = vmatpush1.bf16.msra.mxu0 %v5647
    %6094 = vmatprep.subr.bf16.mxu0 %v5650
    %6095 = vmatpush1.bf16.msra.mxu0 %v5649
    %6096 = vmatprep.subr.bf16.mxu0 %v5652
    %6097 = vmatpush1.bf16.msra.mxu0 %v5651
    %6098 = vmatprep.subr.bf16.mxu0 %v5654
    %6099 = vmatpush1.bf16.msra.mxu0 %v5653
    %6100 = vmatprep.subr.bf16.mxu0 %v5656
    %6101 = vmatpush1.bf16.msra.mxu0 %v5655
    %6102 = vmatprep.subr.bf16.mxu0 %v5658
    %6103 = vmatpush1.bf16.msra.mxu0 %v5657
    %6104 = vmatprep.subr.bf16.mxu0 %v5660
    %6105 = vmatpush1.bf16.msra.mxu0 %v5659
    %6106 = vmatprep.subr.bf16.mxu0 %v5662
    %6107 = vmatpush1.bf16.msra.mxu0 %v5661
    %6108 = vmatprep.subr.bf16.mxu0 %v5664
    %6109 = vmatpush1.bf16.msra.mxu0 %v5663
    %6110 = vmatprep.subr.bf16.mxu0 %v5666
    %6111 = vmatpush1.bf16.msra.mxu0 %v5665
    %6112 = vmatprep.subr.bf16.mxu0 %v5668
    %6113 = vmatpush1.bf16.msra.mxu0 %v5667
    %6114 = vmatprep.subr.bf16.mxu0 %v5670
    %6115 = vmatpush1.bf16.msra.mxu0 %v5669
    %6116 = vmatprep.subr.bf16.mxu0 %v5672
    %6117 = vmatpush1.bf16.msra.mxu0 %v5671
    %6118 = vmatprep.mubr.bf16.mxu0 %v5548
    %6119 = vmatmul.mubr.bf16.gmra.mrb[0].mxu0 %v5547
    %v6120 = vpop.f32.mrb[0].mxu0
    %v6121 = vadd.f32 %v5740, %v6120
    %v6122 = vpop.f32.mrb[0].mxu0
    %v6123 = vadd.f32 %v5742, %v6122
    %v6124 = vpop.f32.mrb[0].mxu0
    %v6125 = vpop.f32.mrb[0].mxu0
    %6126 = vdwg.mxu0
    %6127 = vmatprep.subr.bf16.mxu0 %v5747
    %6128 = vmatpush1.bf16.msra.mxu0 %v5746
    %6129 = vmatprep.subr.bf16.mxu0 %v5749
    %6130 = vmatpush1.bf16.msra.mxu0 %v5748
    %6131 = vmatprep.subr.bf16.mxu0 %v5751
    %6132 = vmatpush1.bf16.msra.mxu0 %v5750
    %6133 = vmatprep.subr.bf16.mxu0 %v5753
    %6134 = vmatpush1.bf16.msra.mxu0 %v5752
    %6135 = vmatprep.subr.bf16.mxu0 %v5755
    %6136 = vmatpush1.bf16.msra.mxu0 %v5754
    %6137 = vmatprep.subr.bf16.mxu0 %v5757
    %6138 = vmatpush1.bf16.msra.mxu0 %v5756
    %6139 = vmatprep.subr.bf16.mxu0 %v5759
    %6140 = vmatpush1.bf16.msra.mxu0 %v5758
    %6141 = vmatprep.subr.bf16.mxu0 %v5761
    %6142 = vmatpush1.bf16.msra.mxu0 %v5760
    %6143 = vmatprep.subr.bf16.mxu0 %v5763
    %6144 = vmatpush1.bf16.msra.mxu0 %v5762
    %6145 = vmatprep.subr.bf16.mxu0 %v5765
    %6146 = vmatpush1.bf16.msra.mxu0 %v5764
    %6147 = vmatprep.subr.bf16.mxu0 %v5767
    %6148 = vmatpush1.bf16.msra.mxu0 %v5766
    %6149 = vmatprep.subr.bf16.mxu0 %v5769
    %6150 = vmatpush1.bf16.msra.mxu0 %v5768
    %6151 = vmatprep.subr.bf16.mxu0 %v5771
    %6152 = vmatpush1.bf16.msra.mxu0 %v5770
    %6153 = vmatprep.subr.bf16.mxu0 %v5773
    %6154 = vmatpush1.bf16.msra.mxu0 %v5772
    %6155 = vmatprep.subr.bf16.mxu0 %v5775
    %6156 = vmatpush1.bf16.msra.mxu0 %v5774
    %6157 = vmatprep.subr.bf16.mxu0 %v5777
    %6158 = vmatpush1.bf16.msra.mxu0 %v5776
    %6159 = vmatprep.mubr.bf16.mxu0 %v5552
    %6160 = vmatmul.mubr.bf16.gmra.mrb[0].mxu0 %v5551
    %v6161 = vpop.f32.mrb[0].mxu0
    %v6162 = vadd.f32 %v5845, %v6161
    %v6163 = vpop.f32.mrb[0].mxu0
    %v6164 = vadd.f32 %v5847, %v6163
    %v6165 = vpop.f32.mrb[0].mxu0
    %v6166 = vpop.f32.mrb[0].mxu0
    %6167 = vdwg.mxu0
    %6168 = vmatprep.subr.bf16.mxu0 %v5852
    %6169 = vmatpush1.bf16.msra.mxu0 %v5851
    %6170 = vmatprep.subr.bf16.mxu0 %v5854
    %6171 = vmatpush1.bf16.msra.mxu0 %v5853
    %6172 = vmatprep.subr.bf16.mxu0 %v5856
    %6173 = vmatpush1.bf16.msra.mxu0 %v5855
    %6174 = vmatprep.subr.bf16.mxu0 %v5858
    %6175 = vmatpush1.bf16.msra.mxu0 %v5857
    %6176 = vmatprep.subr.bf16.mxu0 %v5860
    %6177 = vmatpush1.bf16.msra.mxu0 %v5859
    %6178 = vmatprep.subr.bf16.mxu0 %v5862
    %6179 = vmatpush1.bf16.msra.mxu0 %v5861
    %6180 = vmatprep.subr.bf16.mxu0 %v5864
    %6181 = vmatpush1.bf16.msra.mxu0 %v5863
    %6182 = vmatprep.subr.bf16.mxu0 %v5866
    %6183 = vmatpush1.bf16.msra.mxu0 %v5865
    %6184 = vmatprep.subr.bf16.mxu0 %v5868
    %6185 = vmatpush1.bf16.msra.mxu0 %v5867
    %6186 = vmatprep.subr.bf16.mxu0 %v5870
    %6187 = vmatpush1.bf16.msra.mxu0 %v5869
    %6188 = vmatprep.subr.bf16.mxu0 %v5872
    %6189 = vmatpush1.bf16.msra.mxu0 %v5871
    %6190 = vmatprep.subr.bf16.mxu0 %v5874
    %6191 = vmatpush1.bf16.msra.mxu0 %v5873
    %6192 = vmatprep.subr.bf16.mxu0 %v5876
    %6193 = vmatpush1.bf16.msra.mxu0 %v5875
    %6194 = vmatprep.subr.bf16.mxu0 %v5878
    %6195 = vmatpush1.bf16.msra.mxu0 %v5877
    %6196 = vmatprep.subr.bf16.mxu0 %v5880
    %6197 = vmatpush1.bf16.msra.mxu0 %v5879
    %6198 = vmatprep.subr.bf16.mxu0 %v5882
    %6199 = vmatpush1.bf16.msra.mxu0 %v5881
    %6200 = vmatprep.mubr.bf16.mxu0 %v5556
    %6201 = vmatmul.mubr.bf16.gmra.mrb[0].mxu0 %v5555
    %v6202 = vpop.f32.mrb[0].mxu0
    %v6203 = vadd.f32 %v5950, %v6202
    %v6204 = vpop.f32.mrb[0].mxu0
    %v6205 = vadd.f32 %v5952, %v6204
    %v6206 = vpop.f32.mrb[0].mxu0
    %v6207 = vpop.f32.mrb[0].mxu0
    %6208 = vdwg.mxu0
    %v6209 = vadd.f32 %v6080, %v6121
    %v6210 = vadd.f32 %v6082, %v6123
    %v6211 = vadd.f32 %v6162, %v6203
    %v6212 = vadd.f32 %v6164, %v6205
    %v6213 = vadd.f32 %v6209, %v6211
    %v6214 = vadd.f32 %v6210, %v6212
    %v6215 = vadd.f32 %v6213, %v6023
    %v6216 = vadd.f32 %v6214, %v6025
    %v6217 = vld [vmem:[%s8] sm:$0x3]
    %v6219 = vlaneseq
    %v6220 = vshrl.u32 %v6219, 7
    %v6221 = vsub.s32 0, %v6220
    %v6222 = vrot.slane %v6217, %v6221
    %v6223 = vlaneseq
    %v6224 = vshrl.u32 %v6223, 7
    %v6225 = vsub.s32 1, %v6224
    %v6226 = vrot.slane %v6217, %v6225
    %v6229 = vadd.f32 %v6215, %v6222
    %v6230 = vadd.f32 %v6216, %v6226
    %v6231 = vmax.f32 %v6229, 0.0
    %v6232 = vmax.f32 %v6230, 0.0
    %s6233 = smul.u32 4, 32
    %s6234 = smul.u32 %s6233, 2
    %s6235 = sshll.u32 %s6234, 4
    %6236 = dma.done %s76, %s6235
    %v6237 = vpack.c.bf16 %v6231, %v6231
    %v6238 = vpack.c.bf16 %v6232, %v6232
    %v6239 = vld [vmem:[#allocation5] sm:$0xff]
    %v6240 = vld [vmem:[#allocation5 + $0x8] sm:$0xff]
    %v6241 = vld [vmem:[#allocation5 + $0x10] sm:$0xff]
    %v6242 = vld [vmem:[#allocation5 + $0x18] sm:$0xff]
    %v6243 = vld [vmem:[#allocation5 + $0x20] sm:$0xff]
    %v6244 = vld [vmem:[#allocation5 + $0x28] sm:$0xff]
    %v6245 = vld [vmem:[#allocation5 + $0x30] sm:$0xff]
    %v6246 = vld [vmem:[#allocation5 + $0x38] sm:$0xff]
    %v6247 = vld [vmem:[#allocation5 + $0x40] sm:$0xff]
    %v6248 = vld [vmem:[#allocation5 + $0x48] sm:$0xff]
    %v6249 = vld [vmem:[#allocation5 + $0x50] sm:$0xff]
    %v6250 = vld [vmem:[#allocation5 + $0x58] sm:$0xff]
    %v6251 = vld [vmem:[#allocation5 + $0x60] sm:$0xff]
    %v6252 = vld [vmem:[#allocation5 + $0x68] sm:$0xff]
    %v6253 = vld [vmem:[#allocation5 + $0x70] sm:$0xff]
    %v6254 = vld [vmem:[#allocation5 + $0x78] sm:$0xff]
    %v6255 = vld [vmem:[#allocation5 + $0x80] sm:$0xff]
    %v6256 = vld [vmem:[#allocation5 + $0x88] sm:$0xff]
    %v6257 = vld [vmem:[#allocation5 + $0x90] sm:$0xff]
    %v6258 = vld [vmem:[#allocation5 + $0x98] sm:$0xff]
    %v6259 = vld [vmem:[#allocation5 + $0xa0] sm:$0xff]
    %v6260 = vld [vmem:[#allocation5 + $0xa8] sm:$0xff]
    %v6261 = vld [vmem:[#allocation5 + $0xb0] sm:$0xff]
    %v6262 = vld [vmem:[#allocation5 + $0xb8] sm:$0xff]
    %v6263 = vld [vmem:[#allocation5 + $0xc0] sm:$0xff]
    %v6264 = vld [vmem:[#allocation5 + $0xc8] sm:$0xff]
    %v6265 = vld [vmem:[#allocation5 + $0xd0] sm:$0xff]
    %v6266 = vld [vmem:[#allocation5 + $0xd8] sm:$0xff]
    %v6267 = vld [vmem:[#allocation5 + $0xe0] sm:$0xff]
    %v6268 = vld [vmem:[#allocation5 + $0xe8] sm:$0xff]
    %v6269 = vld [vmem:[#allocation5 + $0xf0] sm:$0xff]
    %v6270 = vld [vmem:[#allocation5 + $0xf8] sm:$0xff]
    %v6271 = vld [vmem:[%s10] sm:$0x3]
    %v6273 = vlaneseq
    %v6274 = vshrl.u32 %v6273, 7
    %v6275 = vsub.s32 0, %v6274
    %v6276 = vrot.slane %v6271, %v6275
    %v6277 = vlaneseq
    %v6278 = vshrl.u32 %v6277, 7
    %v6279 = vsub.s32 1, %v6278
    %v6280 = vrot.slane %v6271, %v6279
    %6283 = vmatprep.subr.bf16.mxu0 %v6240
    %6284 = vmatpush1.bf16.msra.mxu0 %v6239
    %6285 = vmatprep.subr.bf16.mxu0 %v6242
    %6286 = vmatpush1.bf16.msra.mxu0 %v6241
    %6287 = vmatprep.subr.bf16.mxu0 %v6244
    %6288 = vmatpush1.bf16.msra.mxu0 %v6243
    %6289 = vmatprep.subr.bf16.mxu0 %v6246
    %6290 = vmatpush1.bf16.msra.mxu0 %v6245
    %6291 = vmatprep.subr.bf16.mxu0 %v6248
    %6292 = vmatpush1.bf16.msra.mxu0 %v6247
    %6293 = vmatprep.subr.bf16.mxu0 %v6250
    %6294 = vmatpush1.bf16.msra.mxu0 %v6249
    %6295 = vmatprep.subr.bf16.mxu0 %v6252
    %6296 = vmatpush1.bf16.msra.mxu0 %v6251
    %6297 = vmatprep.subr.bf16.mxu0 %v6254
    %6298 = vmatpush1.bf16.msra.mxu0 %v6253
    %6299 = vmatprep.subr.bf16.mxu0 %v6256
    %6300 = vmatpush1.bf16.msra.mxu0 %v6255
    %6301 = vmatprep.subr.bf16.mxu0 %v6258
    %6302 = vmatpush1.bf16.msra.mxu0 %v6257
    %6303 = vmatprep.subr.bf16.mxu0 %v6260
    %6304 = vmatpush1.bf16.msra.mxu0 %v6259
    %6305 = vmatprep.subr.bf16.mxu0 %v6262
    %6306 = vmatpush1.bf16.msra.mxu0 %v6261
    %6307 = vmatprep.subr.bf16.mxu0 %v6264
    %6308 = vmatpush1.bf16.msra.mxu0 %v6263
    %6309 = vmatprep.subr.bf16.mxu0 %v6266
    %6310 = vmatpush1.bf16.msra.mxu0 %v6265
    %6311 = vmatprep.subr.bf16.mxu0 %v6268
    %6312 = vmatpush1.bf16.msra.mxu0 %v6267
    %6313 = vmatprep.subr.bf16.mxu0 %v6270
    %6314 = vmatpush1.bf16.msra.mxu0 %v6269
    %6315 = vmatprep.mubr.bf16.mxu0 %v6238
    %6316 = vmatmul.mubr.bf16.gmra.mrb[0].mxu0 %v6237
    %v6317 = vpop.f32.mrb[0].mxu0
    %v6318 = vadd.f32 %v6276, %v6317
    %v6319 = vpop.f32.mrb[0].mxu0
    %v6320 = vadd.f32 %v6280, %v6319
    %v6321 = vpop.f32.mrb[0].mxu0
    %v6322 = vpop.f32.mrb[0].mxu0
    %6323 = vdwg.mxu0
    %v6324 = vmax.f32 %v6318, 0.0
    %v6325 = vmax.f32 %v6320, 0.0
    %v6326 = vpack.c.bf16 %v6324, %v6324
    %v6327 = vpack.c.bf16 %v6325, %v6325
    %v6328 = vld [vmem:[%s11] sm:$0xf]
    %v6329 = vld [vmem:[%s11 + $0x4] sm:$0xf]
    %v6330 = vld [vmem:[%s11 + $0x8] sm:$0xf]
    %v6331 = vld [vmem:[%s11 + $0xc] sm:$0xf]
    %v6332 = vld [vmem:[%s11 + $0x10] sm:$0xf]
    %v6333 = vld [vmem:[%s11 + $0x14] sm:$0xf]
    %v6334 = vld [vmem:[%s11 + $0x18] sm:$0xf]
    %v6335 = vld [vmem:[%s11 + $0x1c] sm:$0xf]
    %v6336 = vld [vmem:[%s11 + $0x20] sm:$0xf]
    %v6337 = vld [vmem:[%s11 + $0x24] sm:$0xf]
    %v6338 = vld [vmem:[%s11 + $0x28] sm:$0xf]
    %v6339 = vld [vmem:[%s11 + $0x2c] sm:$0xf]
    %v6340 = vld [vmem:[%s11 + $0x30] sm:$0xf]
    %v6341 = vld [vmem:[%s11 + $0x34] sm:$0xf]
    %v6342 = vld [vmem:[%s11 + $0x38] sm:$0xf]
    %v6343 = vld [vmem:[%s11 + $0x3c] sm:$0xf]
    %v6344 = vld [vmem:[%s11 + $0x40] sm:$0xf]
    %v6345 = vld [vmem:[%s11 + $0x44] sm:$0xf]
    %v6346 = vld [vmem:[%s11 + $0x48] sm:$0xf]
    %v6347 = vld [vmem:[%s11 + $0x4c] sm:$0xf]
    %v6348 = vld [vmem:[%s11 + $0x50] sm:$0xf]
    %v6349 = vld [vmem:[%s11 + $0x54] sm:$0xf]
    %v6350 = vld [vmem:[%s11 + $0x58] sm:$0xf]
    %v6351 = vld [vmem:[%s11 + $0x5c] sm:$0xf]
    %v6352 = vld [vmem:[%s11 + $0x60] sm:$0xf]
    %v6353 = vld [vmem:[%s11 + $0x64] sm:$0xf]
    %v6354 = vld [vmem:[%s11 + $0x68] sm:$0xf]
    %v6355 = vld [vmem:[%s11 + $0x6c] sm:$0xf]
    %v6356 = vld [vmem:[%s11 + $0x70] sm:$0xf]
    %v6357 = vld [vmem:[%s11 + $0x74] sm:$0xf]
    %v6358 = vld [vmem:[%s11 + $0x78] sm:$0xf]
    %v6359 = vld [vmem:[%s11 + $0x7c] sm:$0xf]
    %v6360 = vld [vmem:[%s12] sm:$0x1]
    %v6362 = vlaneseq
    %v6363 = vshrl.u32 %v6362, 7
    %v6364 = vsub.s32 0, %v6363
    %v6365 = vrot.slane %v6360, %v6364
    %v6399 = vunpack.c.l.b16 %v6328
    %v6400 = vunpack.c.l.b16 %v6329
    %v6401 = vunpack.c.l.b16 %v6330
    %v6402 = vunpack.c.l.b16 %v6331
    %v6403 = vunpack.c.l.b16 %v6332
    %v6404 = vunpack.c.l.b16 %v6333
    %v6405 = vunpack.c.l.b16 %v6334
    %v6406 = vunpack.c.l.b16 %v6335
    %v6407 = vunpack.c.l.b16 %v6336
    %v6408 = vunpack.c.l.b16 %v6337
    %v6409 = vunpack.c.l.b16 %v6338
    %v6410 = vunpack.c.l.b16 %v6339
    %v6411 = vunpack.c.l.b16 %v6340
    %v6412 = vunpack.c.l.b16 %v6341
    %v6413 = vunpack.c.l.b16 %v6342
    %v6414 = vunpack.c.l.b16 %v6343
    %v6415 = vunpack.c.l.b16 %v6344
    %v6416 = vunpack.c.l.b16 %v6345
    %v6417 = vunpack.c.l.b16 %v6346
    %v6418 = vunpack.c.l.b16 %v6347
    %v6419 = vunpack.c.l.b16 %v6348
    %v6420 = vunpack.c.l.b16 %v6349
    %v6421 = vunpack.c.l.b16 %v6350
    %v6422 = vunpack.c.l.b16 %v6351
    %v6423 = vunpack.c.l.b16 %v6352
    %v6424 = vunpack.c.l.b16 %v6353
    %v6425 = vunpack.c.l.b16 %v6354
    %v6426 = vunpack.c.l.b16 %v6355
    %v6427 = vunpack.c.l.b16 %v6356
    %v6428 = vunpack.c.l.b16 %v6357
    %v6429 = vunpack.c.l.b16 %v6358
    %v6430 = vunpack.c.l.b16 %v6359
    %v6431 = vpack.c.b16 %v6400, %v6399
    %v6432 = vpack.c.b16 %v6402, %v6401
    %v6433 = vpack.c.b16 %v6404, %v6403
    %v6434 = vpack.c.b16 %v6406, %v6405
    %v6435 = vpack.c.b16 %v6408, %v6407
    %v6436 = vpack.c.b16 %v6410, %v6409
    %v6437 = vpack.c.b16 %v6412, %v6411
    %v6438 = vpack.c.b16 %v6414, %v6413
    %v6439 = vpack.c.b16 %v6416, %v6415
    %v6440 = vpack.c.b16 %v6418, %v6417
    %v6441 = vpack.c.b16 %v6420, %v6419
    %v6442 = vpack.c.b16 %v6422, %v6421
    %v6443 = vpack.c.b16 %v6424, %v6423
    %v6444 = vpack.c.b16 %v6426, %v6425
    %v6445 = vpack.c.b16 %v6428, %v6427
    %v6446 = vpack.c.b16 %v6430, %v6429
    %6463 = vmatprep.subr.bf16.mxu0 0
    %6464 = vmatpush1.bf16.msra.mxu0 %v6431
    %6465 = vmatprep.subr.bf16.mxu0 0
    %6466 = vmatpush1.bf16.msra.mxu0 %v6432
    %6467 = vmatprep.subr.bf16.mxu0 0
    %6468 = vmatpush1.bf16.msra.mxu0 %v6433
    %6469 = vmatprep.subr.bf16.mxu0 0
    %6470 = vmatpush1.bf16.msra.mxu0 %v6434
    %6471 = vmatprep.subr.bf16.mxu0 0
    %6472 = vmatpush1.bf16.msra.mxu0 %v6435
    %6473 = vmatprep.subr.bf16.mxu0 0
    %6474 = vmatpush1.bf16.msra.mxu0 %v6436
    %6475 = vmatprep.subr.bf16.mxu0 0
    %6476 = vmatpush1.bf16.msra.mxu0 %v6437
    %6477 = vmatprep.subr.bf16.mxu0 0
    %6478 = vmatpush1.bf16.msra.mxu0 %v6438
    %6479 = vmatprep.subr.bf16.mxu0 0
    %6480 = vmatpush1.bf16.msra.mxu0 %v6439
    %6481 = vmatprep.subr.bf16.mxu0 0
    %6482 = vmatpush1.bf16.msra.mxu0 %v6440
    %6483 = vmatprep.subr.bf16.mxu0 0
    %6484 = vmatpush1.bf16.msra.mxu0 %v6441
    %6485 = vmatprep.subr.bf16.mxu0 0
    %6486 = vmatpush1.bf16.msra.mxu0 %v6442
    %6487 = vmatprep.subr.bf16.mxu0 0
    %6488 = vmatpush1.bf16.msra.mxu0 %v6443
    %6489 = vmatprep.subr.bf16.mxu0 0
    %6490 = vmatpush1.bf16.msra.mxu0 %v6444
    %6491 = vmatprep.subr.bf16.mxu0 0
    %6492 = vmatpush1.bf16.msra.mxu0 %v6445
    %6493 = vmatprep.subr.bf16.mxu0 0
    %6494 = vmatpush1.bf16.msra.mxu0 %v6446
    %6495 = vmatprep.mubr.bf16.mxu0 %v6327
    %6496 = vmatmul.mubr.bf16.gmra.mrb[0].mxu0 %v6326
    %v6497 = vpop.f32.mrb[0].mxu0
    %v6498 = vadd.f32 %v6365, %v6497
    %v6499 = vpop.f32.mrb[0].mxu0
    %v6500 = vpop.f32.mrb[0].mxu0
    %v6501 = vpop.f32.mrb[0].mxu0
    %6502 = vdwg.mxu0
    %v6503 = vlaneseq
    %v6504 = vand.u32 %v6503, 127
    %vm6505 = vcmp.ge.s32.totalorder %v6504, 4
    %v6506 = vmax.f32 %v6498, -20.0
    %v6507 = vmin.f32 %v6506, 2.0
    %v6508 = vsel %vm6505, %v6507, %v6498
    %vm6509 = vcmask 58368
    %6510 = vst.msk [vmem:[%s13] sm:$0x3] %vm6509, %v6508
    // Predicated region
    $region83: #{actor_forward.1} parent=1 // pred_check
      _
    $region84: #{actor_forward.1} parent=1 // pred_check_branch
      %6512 = sbr.rel (0) target = $region86
    $region85: #{actor_forward.1} parent=1 // pred_region
      _
    $region86: #{actor_forward.1} parent=1 // pred_fallthru
      _
    // Predicated region
    $region87: #{actor_forward.1} parent=1 // pred_check
      _
    $region88: #{actor_forward.1} parent=1 // pred_check_branch
      %6514 = sbr.rel (0) target = $region90
    $region89: #{actor_forward.1} parent=1 // pred_region
      _
    $region90: #{actor_forward.1} parent=1 // pred_fallthru
      _
  %6515 = vsyncmov [#allocation6]
  %s6516 = vpop.sfrf %6515
  %p6517 = scmp.eq.s32.totalorder %s6516, 0
  %p6518 = pneg %p6517
  %6520 = shalt.err (%p6518)
  %s6521 = scalar_lea.sflag [#allocation6], 1
  %6522 = vsyncmov %s6521
  %s6523 = vpop.sfrf %6522
  %p6524 = scmp.eq.s32.totalorder %s6523, 0
  %p6525 = pneg %p6524
  %6527 = shalt.err (%p6525)

</llo_original>
